<compile_context>
chip_gen: v6e
topology: v6e:2x2x1
jax: 0.10.0
libtpu: 0.0.40
codegen_flags: <defaults>
</compile_context>

<pallas_src>
import jax
import jax.numpy as jnp
from jax.experimental import pallas as pl
from jax.experimental.pallas import tpu as pltpu


# ----------------------------------------------------------------------------
# Small helpers
# ----------------------------------------------------------------------------
def _round_up(x, m):
    return ((x + m - 1) // m) * m


def _choose_tile(n, target=2048):
    """Point tile (multiple of 8) and padded point count."""
    n8 = _round_up(n, 8)
    t0 = max(8, (min(target, n8) // 8) * 8)
    if n8 <= t0:
        return n8, n8
    for t in range(t0, max(7, t0 // 2), -8):      # prefer a fat exact divisor
        if n8 % t == 0:
            return t, n8
    return t0, _round_up(n8, t0)                  # otherwise pad to target tile


def _pad_points(x, n_pad):
    n = x.shape[1]
    if n == n_pad:
        return x
    return jnp.pad(x, ((0, 0), (0, n_pad - n), (0, 0)))


def _pp_spec(tn, d):        # per-point block, batch dim squeezed
    return pl.BlockSpec((None, tn, d), lambda b, j: (b, j, 0))


def _gl_spec(d):            # per-batch global (1, d) resident block
    return pl.BlockSpec((None, 1, d), lambda b, j: (b, 0, 0))


def _w_spec(shape):         # resident weight / bias block (whole array)
    return pl.BlockSpec(shape, lambda b, j: (0, 0))


def _dot(x, w):
    """MXU dot: operands in the (pre-cast) weight dtype, f32 accumulation."""
    return jnp.dot(x.astype(w.dtype), w, preferred_element_type=jnp.float32)


def _mlp(xs, w1s, b1, rest, acts):
    """Layer 1 is a split-weight matmul over the virtually concatenated inputs
    (per-point (tn,d) tiles and global (1,d) blocks); intermediates never leave
    VMEM."""
    h = b1
    for x, w in zip(xs, w1s):
        h = h + _dot(x, w)
    if acts[0]:
        h = jnp.maximum(h, 0.0)
    for l, (w, b) in enumerate(rest):
        h = _dot(h, w) + b
        if acts[l + 1]:
            h = jnp.maximum(h, 0.0)
    return h


def _tile_max(h, j, tn, n_valid, n_pad):
    """Per-tile max over the point axis, masking padded rows."""
    if n_valid < n_pad:
        rows = j * tn + jax.lax.broadcasted_iota(jnp.int32, h.shape, 0)
        h = jnp.where(rows < n_valid, h, -jnp.inf)
    return jnp.max(h, axis=0, keepdims=True)


# ----------------------------------------------------------------------------
# Kernel 1: stacked physical MLPs + object PointNet2 stage A (+ max-pool)
# ----------------------------------------------------------------------------
def phys_stage_a(obj_geo, phys_in, phys_w, prep, *, n_valid, tn):
    bs, n_pad, g_dim = obj_geo.shape
    pn = phys_in.shape[-1]
    phys_ws, phys_bs = prep["phys_ws"], prep["phys_bs"]
    n_pl = len(phys_ws)
    w_geo, w_pf, b1 = prep["w_geo"], prep["w_pf"], prep["b1"]
    fd = w_pf.shape[0]
    hidden = w_geo.shape[1]
    n_blocks = n_pad // tn

    phys_wb = [a for l in range(n_pl) for a in (phys_ws[l], phys_bs[l])]
    nw = len(phys_wb)

    def kernel(geo_ref, pin_ref, pw_ref, *rest):
        pwb = rest[:nw]
        wg_ref, wp_ref, b1_ref = rest[nw], rest[nw + 1], rest[nw + 2]
        h1_ref, g1_ref = rest[nw + 3], rest[nw + 4]
        j = pl.program_id(1)

        pin, pw = pin_ref[...], pw_ref[...]
        # Stacked (block-diagonal) physical-property MLPs: one wide matmul chain.
        h = _dot(pin, pwb[0][...]) + pwb[1][...]
        for l in range(1, n_pl):
            h = jnp.maximum(h, 0.0)
            h = _dot(h, pwb[2 * l][...]) + pwb[2 * l + 1][...]
        # Weighted sum over properties + normalisation (guard padded zero rows).
        acc = h[:, 0:fd] * pw[:, 0:1]
        for i in range(1, pn):
            acc = acc + h[:, i * fd:(i + 1) * fd] * pw[:, i:i + 1]
        wsum = jnp.sum(pw, axis=-1, keepdims=True)
        pf = acc / jnp.where(wsum == 0.0, 1.0, wsum)

        # PointNet2 stage A layer 1 over [obj_geo, phys_feat] (split weights).
        h1 = _dot(geo_ref[...], wg_ref[...]) + _dot(pf, wp_ref[...]) + b1_ref[...]
        h1 = jnp.maximum(h1, 0.0)
        h1_ref[...] = h1.astype(h1_ref.dtype)

        # Max-pool accumulated directly in the resident pooled out_ref.
        m = _tile_max(h1, j, tn, n_valid, n_pad)

        @pl.when(j == 0)
        def _():
            g1_ref[...] = m

        @pl.when(j > 0)
        def _():
            g1_ref[...] = jnp.maximum(g1_ref[...], m)

    call_args = [obj_geo, phys_in, phys_w] + phys_wb + [w_geo, w_pf, b1]
    in_specs = ([_pp_spec(tn, g_dim), _pp_spec(tn, pn), _pp_spec(tn, pn)]
                + [_w_spec(a.shape) for a in phys_wb]
                + [_w_spec(w_geo.shape), _w_spec(w_pf.shape), _w_spec(b1.shape)])

    h1, g1 = pl.pallas_call(
        kernel,
        out_shape=(jax.ShapeDtypeStruct((bs, n_pad, hidden), jnp.bfloat16),
                   jax.ShapeDtypeStruct((bs, 1, hidden), jnp.float32)),
        grid=(bs, n_blocks),
        in_specs=in_specs,
        out_specs=(pl.BlockSpec((None, tn, hidden), lambda b, j: (b, j, 0)),
                   pl.BlockSpec((None, 1, hidden), lambda b, j: (b, 0, 0))),
        compiler_params=pltpu.CompilerParams(
            dimension_semantics=("parallel", "arbitrary")),
    )(*call_args)
    return h1, g1


# ----------------------------------------------------------------------------
# Kernels 2 & 3: plain fused per-point MLP (optional per-point / pooled output)
# ----------------------------------------------------------------------------
def plain_point_mlp(pp_inputs, gl_inputs, layers, acts, *, n_valid, tn,
                    point_dtype=None, pool=False):
    bs, n_pad = pp_inputs[0].shape[:2]
    n_pp, n_gl = len(pp_inputs), len(gl_inputs)
    w1, b1, rest = layers["w1"], layers["b1"], layers["rest"]
    n_rest = len(rest)
    dout = rest[-1][0].shape[1] if rest else w1[0].shape[1]
    n_blocks = n_pad // tn

    def kernel(*refs):
        i = 0
        pp_refs = refs[i:i + n_pp]; i += n_pp
        gl_refs = refs[i:i + n_gl]; i += n_gl
        w1_refs = refs[i:i + len(w1)]; i += len(w1)
        b1_ref = refs[i]; i += 1
        rest_refs = refs[i:i + 2 * n_rest]; i += 2 * n_rest
        out_refs = refs[i:]
        j = pl.program_id(1)

        xs = [r[...] for r in pp_refs] + [r[...] for r in gl_refs]
        w1v = [r[...] for r in w1_refs]
        restv = [(rest_refs[2 * l][...], rest_refs[2 * l + 1][...])
                 for l in range(n_rest)]
        h = _mlp(xs, w1v, b1_ref[...], restv, acts)

        oi = 0
        if point_dtype is not None:
            out_refs[oi][...] = h.astype(out_refs[oi].dtype)
            oi += 1
        if pool:
            pool_ref = out_refs[oi]
            m = _tile_max(h, j, tn, n_valid, n_pad)

            @pl.when(j == 0)
            def _():
                pool_ref[...] = m

            @pl.when(j > 0)
            def _():
                pool_ref[...] = jnp.maximum(pool_ref[...], m)

    call_args = list(pp_inputs) + list(gl_inputs) + list(w1) + [b1]
    for (w, b) in rest:
        call_args += [w, b]
    in_specs = ([_pp_spec(tn, a.shape[-1]) for a in pp_inputs]
                + [_gl_spec(a.shape[-1]) for a in gl_inputs]
                + [_w_spec(w.shape) for w in w1] + [_w_spec(b1.shape)]
                + sum([[_w_spec(w.shape), _w_spec(b.shape)] for (w, b) in rest], []))

    out_shapes, out_specs = [], []
    if point_dtype is not None:
        out_shapes.append(jax.ShapeDtypeStruct((bs, n_pad, dout), point_dtype))
        out_specs.append(pl.BlockSpec((None, tn, dout), lambda b, j: (b, j, 0)))
    if pool:
        out_shapes.append(jax.ShapeDtypeStruct((bs, 1, dout), jnp.float32))
        out_specs.append(pl.BlockSpec((None, 1, dout), lambda b, j: (b, 0, 0)))

    outs = pl.pallas_call(
        kernel,
        out_shape=tuple(out_shapes),
        grid=(bs, n_blocks),
        in_specs=in_specs,
        out_specs=tuple(out_specs),
        compiler_params=pltpu.CompilerParams(
            dimension_semantics=("parallel", "arbitrary" if pool else "parallel")),
    )(*call_args)
    if not isinstance(outs, (list, tuple)):
        outs = (outs,)
    per_point = pooled = None
    oi = 0
    if point_dtype is not None:
        per_point = outs[oi]; oi += 1
    if pool:
        pooled = outs[oi]
    return per_point, pooled


# ----------------------------------------------------------------------------
# Kernel 4: contact encoder trunk + max-pool + latent head epilogue (rsample)
# ----------------------------------------------------------------------------
def encoder_latent(obj_xyz, obj_feature, heat, hand_feature, eps, prep, *,
                   n_valid, tn):
    bs, n_pad = obj_xyz.shape[:2]
    ofd = obj_feature.shape[-1]
    hfd = hand_feature.shape[-1]
    dz = prep["ms_w"].shape[1] // 2
    hidden = prep["w2"].shape[1]
    has_sc = prep["sc_w"] is not None
    n_blocks = n_pad // tn
    eps3 = eps.reshape(bs, 1, dz)

    trunk_ws = [prep["w_xyz"], prep["w_objf"], prep["w_handf"], prep["w_heat"],
                prep["b1"], prep["w2"], prep["b2"]]
    lat_ws = [prep["fc_w"], prep["fc_b"], prep["f0_w"], prep["f0_b"],
              prep["f1_w"], prep["f1_b"]]
    if has_sc:
        lat_ws.append(prep["sc_w"])
    lat_ws += [prep["ms_w"], prep["ms_b"]]
    n_lat = len(lat_ws)

    def kernel(xyz_ref, objf_ref, heat_ref, handf_ref, eps_ref, *rest):
        wts = rest[:7]
        lat = rest[7:7 + n_lat]
        msz_ref = rest[7 + n_lat]
        g_acc = rest[7 + n_lat + 1]
        j = pl.program_id(1)

        xs = [xyz_ref[...], objf_ref[...], handf_ref[...], heat_ref[...]]
        w1v = [wts[0][...], wts[1][...], wts[2][...], wts[3][...]]
        h = _mlp(xs, w1v, wts[4][...], [(wts[5][...], wts[6][...])], (True, True))

        m = _tile_max(h, j, tn, n_valid, n_pad)

        @pl.when(j == 0)
        def _():
            g_acc[...] = m

        @pl.when(j > 0)
        def _():
            g_acc[...] = jnp.maximum(g_acc[...], m)

        # Latent head runs once per batch element at the last point tile:
        # cls fc -> ResnetBlockFC(final_nl) -> fused mean/logstd -> rsample.
        @pl.when(j == pl.num_programs(1) - 1)
        def _():
            g = g_acc[...]
            li = [r[...] for r in lat]
            fc_w, fc_b, f0_w, f0_b, f1_w, f1_b = li[:6]
            k = 6
            sc_w = None
            if has_sc:
                sc_w = li[6]
                k = 7
            ms_w, ms_b = li[k], li[k + 1]

            latv = jnp.dot(g, fc_w, preferred_element_type=jnp.float32) + fc_b
            net = jnp.dot(jnp.maximum(latv, 0.0), f0_w,
                          preferred_element_type=jnp.float32) + f0_b
            dx = jnp.dot(jnp.maximum(net, 0.0), f1_w,
                         preferred_element_type=jnp.float32) + f1_b
            x_s = (jnp.dot(latv, sc_w, preferred_element_type=jnp.float32)
                   if has_sc else latv)
            out = x_s + dx
            out = jnp.where(out > 0.0, out, 0.2 * out)        # leaky_relu(0.2)
            ms = jnp.dot(out, ms_w, preferred_element_type=jnp.float32) + ms_b
            mu = ms[:, :dz]
            std = jnp.exp(ms[:, dz:])
            z = mu + std * eps_ref[...]
            msz_ref[...] = jnp.concatenate([mu, std, z], axis=-1)

    call_args = [obj_xyz, obj_feature, heat, hand_feature, eps3] + trunk_ws + lat_ws
    in_specs = ([_pp_spec(tn, 3), _pp_spec(tn, ofd), _pp_spec(tn, 1),
                 _gl_spec(hfd), _gl_spec(dz)]
                + [_w_spec(a.shape) for a in trunk_ws]
                + [_w_spec(a.shape) for a in lat_ws])

    out = pl.pallas_call(
        kernel,
        out_shape=jax.ShapeDtypeStruct((bs, 1, 3 * dz), jnp.float32),
        grid=(bs, n_blocks),
        in_specs=in_specs,
        out_specs=pl.BlockSpec((None, 1, 3 * dz), lambda b, j: (b, 0, 0)),
        scratch_shapes=[pltpu.VMEM((1, hidden), jnp.float32)],
        compiler_params=pltpu.CompilerParams(
            dimension_semantics=("parallel", "arbitrary")),
    )(*call_args)
    mu = out[:, 0, :dz]
    std = out[:, 0, dz:2 * dz]
    z = out[:, :, 2 * dz:]          # (bs, 1, dz) — stays "global" for decoding
    return mu, std, z


# ----------------------------------------------------------------------------
# Kernel 5: fused contact + force decoders (contacts never leave VMEM)
# ----------------------------------------------------------------------------
def decoder_call(obj_xyz, obj_feature, hand_feature, z, prep, *, n_valid, tn):
    bs, n_pad = obj_xyz.shape[:2]
    ofd = obj_feature.shape[-1]
    hfd = hand_feature.shape[-1]
    dz = z.shape[-1]
    n_blocks = n_pad // tn

    c_ws = list(prep["c_w1"]) + [prep["c_b1"]] \
        + [a for wb in prep["c_rest"] for a in wb]
    f_ws = list(prep["f_w1"]) + [prep["f_b1"]] \
        + [a for wb in prep["f_rest"] for a in wb]
    nc, nf = len(c_ws), len(f_ws)

    def kernel(xyz_ref, objf_ref, handf_ref, z_ref, *rest):
        cw = rest[:nc]
        fw = rest[nc:nc + nf]
        cf_ref = rest[nc + nf]

        xyz, objf = xyz_ref[...], objf_ref[...]
        handf, zv = handf_ref[...], z_ref[...]

        contacts = _mlp([xyz, objf, handf, zv],
                        [cw[0][...], cw[1][...], cw[2][...], cw[3][...]],
                        cw[4][...],
                        [(cw[5][...], cw[6][...]), (cw[7][...], cw[8][...])],
                        (True, True, False))
        forces = _mlp([xyz, objf, handf, zv, contacts],
                      [fw[0][...], fw[1][...], fw[2][...], fw[3][...], fw[4][...]],
                      fw[5][...],
                      [(fw[6][...], fw[7][...]), (fw[8][...], fw[9][...])],
                      (True, True, False))
        # Packed output slab (fewer masked partial stores).
        cf_ref[...] = jnp.concatenate([contacts, forces], axis=-1)

    call_args = [obj_xyz, obj_feature, hand_feature, z] + c_ws + f_ws
    in_specs = ([_pp_spec(tn, 3), _pp_spec(tn, ofd), _gl_spec(hfd), _gl_spec(dz)]
                + [_w_spec(a.shape) for a in c_ws]
                + [_w_spec(a.shape) for a in f_ws])

    out = pl.pallas_call(
        kernel,
        out_shape=jax.ShapeDtypeStruct((bs, n_pad, 4), jnp.float32),
        grid=(bs, n_blocks),
        in_specs=in_specs,
        out_specs=pl.BlockSpec((None, tn, 4), lambda b, j: (b, j, 0)),
        compiler_params=pltpu.CompilerParams(
            dimension_semantics=("parallel", "parallel")),
    )(*call_args)
    # TODO(synk): a (features, points) transposed layout would make these
    # stores fully lane-dense; kept (points, features) to match the module API.
    contacts = out[:, :n_valid, 0:1]
    forces = out[:, :n_valid, 1:4]
    return contacts, forces


# ----------------------------------------------------------------------------
# Host-side weight preparation: bf16 casts, per-input layer-1 splits,
# block-diagonal stacking of the physical MLPs, fused mean/logstd head.
# ----------------------------------------------------------------------------
def prepare_manifm(params, cfg):
    bf = lambda w: jnp.asarray(w, jnp.bfloat16)
    row = lambda b: jnp.asarray(b, jnp.float32).reshape(1, -1)

    def split_rows(w, dims):
        blocks, off = [], 0
        for d in dims:
            blocks.append(bf(w[off:off + d, :]))
            off += d
        return blocks

    pn = cfg["physcial_property_num"]
    ofd = cfg["obj_feature_dim"]
    hfd = cfg["hand_feature_dim"]
    dz = cfg["d_z"]
    hidden = cfg["object_pn_hidden_dim"]

    # Physical-property MLPs stacked block-diagonally (one kernel, wider MXU N).
    mlps = params["physical_mlps"]
    n_pl = len(mlps[0])
    phys_ws, phys_bs = [], []
    for l in range(n_pl):
        K, N = mlps[0][l]["w"].shape
        wd = jnp.zeros((pn * K, pn * N), jnp.float32)
        for i in range(pn):
            wd = wd.at[i * K:(i + 1) * K, i * N:(i + 1) * N].set(mlps[i][l]["w"])
        phys_ws.append(bf(wd))
        phys_bs.append(row(jnp.concatenate([mlps[i][l]["b"] for i in range(pn)])))

    op = params["obj_feature_net"]
    a_w_geo, a_w_pf = split_rows(op["l1"]["w"],
                                 [cfg["obj_in_dim"], cfg["physical_feature_dim"]])
    phys_a = {"phys_ws": phys_ws, "phys_bs": phys_bs,
              "w_geo": a_w_geo, "w_pf": a_w_pf, "b1": row(op["l1"]["b"])}

    stage_b = {"w1": split_rows(op["l2"]["w"], [hidden, hidden]),
               "b1": row(op["l2"]["b"]),
               "rest": [(bf(op["l3"]["w"]), row(op["l3"]["b"]))]}

    hp = params["hand_feature_net"]
    hand = {"w1": [bf(hp["l1"]["w"])], "b1": row(hp["l1"]["b"]),
            "rest": [(bf(hp["l2"]["w"]), row(hp["l2"]["b"])),
                     (bf(hp["l3"]["w"]), row(hp["l3"]["b"]))]}

    enc, lat = params["contact_encoder"], params["contact_latent"]
    e1 = split_rows(enc["l1"]["w"], [3, ofd, hfd, 1])
    encoder = {
        "w_xyz": e1[0], "w_objf": e1[1], "w_handf": e1[2], "w_heat": e1[3],
        "b1": row(enc["l1"]["b"]),
        "w2": bf(enc["l2"]["w"]), "b2": row(enc["l2"]["b"]),
        # latent head runs once per batch element -> keep it f32 for precision
        "fc_w": enc["fc"]["w"], "fc_b": row(enc["fc"]["b"]),
        "f0_w": lat["block"]["fc0"]["w"], "f0_b": row(lat["block"]["fc0"]["b"]),
        "f1_w": lat["block"]["fc1"]["w"], "f1_b": row(lat["block"]["fc1"]["b"]),
        "sc_w": (None if lat["block"]["shortcut"] is None
                 else lat["block"]["shortcut"]["w"]),
        "ms_w": jnp.concatenate([lat["fc_mean"]["w"], lat["fc_logstd"]["w"]], axis=1),
        "ms_b": jnp.concatenate([lat["fc_mean"]["b"],
                                 lat["fc_logstd"]["b"]]).reshape(1, -1),
    }

    cd, fdn = params["contact_decoder"], params["force_decoder"]
    decoder = {
        "c_w1": split_rows(cd["l1"]["w"], [3, ofd, hfd, dz]),
        "c_b1": row(cd["l1"]["b"]),
        "c_rest": [(bf(cd["l2"]["w"]), row(cd["l2"]["b"])),
                   (bf(cd["l3"]["w"]), row(cd["l3"]["b"]))],
        "f_w1": split_rows(fdn["l1"]["w"], [3, ofd, hfd, dz, 1]),
        "f_b1": row(fdn["l1"]["b"]),
        "f_rest": [(bf(fdn["l2"]["w"]), row(fdn["l2"]["b"])),
                   (bf(fdn["l3"]["w"]), row(fdn["l3"]["b"]))],
    }

    return {"phys_a": phys_a, "hand": hand, "stage_b": stage_b,
            "encoder": encoder, "decoder": decoder}


# ----------------------------------------------------------------------------
# Deterministic parameter init (stand-in layer stacks, f32 "PyTorch" params)
# ----------------------------------------------------------------------------
def init_linear(key, din, dout, zero_w=False, bias=True, scale=0.1):
    wkey, bkey = jax.random.split(key)
    w = (jnp.zeros((din, dout), jnp.float32) if zero_w
         else scale * jax.random.normal(wkey, (din, dout), jnp.float32))
    b = (0.01 * jax.random.normal(bkey, (dout,), jnp.float32)
         if bias else jnp.zeros((dout,), jnp.float32))
    return {"w": w, "b": b}


def init_mlp(key, dims):
    keys = jax.random.split(key, len(dims) - 1)
    return [init_linear(keys[i], dims[i], dims[i + 1]) for i in range(len(dims) - 1)]


def init_pointnet(key, in_dim, hidden, out_dim):
    k1, k2, k3 = jax.random.split(key, 3)
    return {"l1": init_linear(k1, in_dim, hidden),
            "l2": init_linear(k2, hidden, hidden),
            "l3": init_linear(k3, hidden, out_dim)}


def init_pointnet2(key, in_dim, hidden, out_dim):
    k1, k2, k3 = jax.random.split(key, 3)
    return {"l1": init_linear(k1, in_dim, hidden),
            "l2": init_linear(k2, 2 * hidden, hidden),
            "l3": init_linear(k3, hidden, out_dim)}


def init_pointnet2cls(key, in_dim, out_dim, hidden=32):
    k1, k2, k3 = jax.random.split(key, 3)
    return {"l1": init_linear(k1, in_dim, hidden),
            "l2": init_linear(k2, hidden, hidden),
            "fc": init_linear(k3, hidden, out_dim)}


def init_resnet_block_fc(key, size_in, size_out=None, size_h=None):
    if size_out is None:
        size_out = size_in
    if size_h is None:
        size_h = min(size_in, size_out)
    k0, k1, ks = jax.random.split(key, 3)
    p = {"fc0": init_linear(k0, size_in, size_h),
         "fc1": init_linear(k1, size_h, size_out, zero_w=True),   # nn.init.zeros_
         "shortcut": None}
    if size_in != size_out:
        p["shortcut"] = init_linear(ks, size_in, size_out, bias=False)
    return p


def init_latent_encoder(key, in_dim, dim, out_dim):
    kb, km, ks = jax.random.split(key, 3)
    return {"block": init_resnet_block_fc(kb, in_dim, dim, dim),
            "fc_mean": init_linear(km, dim, out_dim),
            "fc_logstd": init_linear(ks, dim, out_dim)}


def init_manifm(key, cfg):
    keys = jax.random.split(key, 8)
    phys_dims = [1] + [cfg["physical_mlp_hidden"]] * (cfg["physical_mlp_layer"] - 2) \
                + [cfg["physical_feature_dim"]]
    phys_keys = jax.random.split(keys[0], cfg["physcial_property_num"])
    return {
        "physical_mlps": [init_mlp(phys_keys[i], phys_dims)
                          for i in range(cfg["physcial_property_num"])],
        "obj_feature_net": init_pointnet2(
            keys[1], cfg["obj_in_dim"] + cfg["physical_feature_dim"],
            cfg["object_pn_hidden_dim"], cfg["obj_feature_dim"]),
        "hand_feature_net": init_pointnet(
            keys[2], cfg["hand_in_dim"], cfg["object_pn_hidden_dim"],
            cfg["hand_feature_dim"]),
        "contact_encoder": init_pointnet2cls(
            keys[3], 3 + cfg["obj_feature_dim"] + cfg["hand_feature_dim"] + 1,
            cfg["encoder_out_dim"]),
        "contact_latent": init_latent_encoder(
            keys[4], cfg["encoder_out_dim"], cfg["latent_neurons"], cfg["d_z"]),
        "contact_decoder": init_pointnet(
            keys[5], 3 + cfg["obj_feature_dim"] + cfg["hand_feature_dim"] + cfg["d_z"],
            cfg["object_pn_hidden_dim"], 1),
        "force_decoder": init_pointnet(
            keys[6], 3 + cfg["obj_feature_dim"] + cfg["hand_feature_dim"]
            + cfg["d_z"] + 1,
            cfg["object_pn_hidden_dim"], 3),
    }


# ----------------------------------------------------------------------------
# ManiFM forward
# ----------------------------------------------------------------------------
def manifm_forward(prep, cfg, hand, obj, gt_heatmap, eps, point_tile=2048):
    pn = cfg["physcial_property_num"]
    n_obj, n_hand = obj.shape[1], hand.shape[1]

    phys_in = obj[:, :, -2 * pn:-pn]
    phys_w = obj[:, :, -pn:]
    obj_geo = obj[:, :, 0:obj.shape[2] - 2 * pn]

    # TODO(synk): when bs == 1 on v7x, split the point axis into an extra
    # parallel dimension so both TensorCores stay busy.
    tn_o, npad_o = _choose_tile(n_obj, point_tile)
    tn_h, npad_h = _choose_tile(n_hand, point_tile)

    obj_geo_p = _pad_points(obj_geo, npad_o)
    phys_in_p = _pad_points(phys_in, npad_o)
    phys_w_p = _pad_points(phys_w, npad_o)
    heat_p = _pad_points(gt_heatmap, npad_o)
    hand_p = _pad_points(hand, npad_h)

    # (1) physical MLPs + object PointNet2 stage A (+ max-pool), fused
    h1, g1 = phys_stage_a(obj_geo_p, phys_in_p, phys_w_p, prep["phys_a"],
                          n_valid=n_obj, tn=tn_o)
    # (2) hand PointNet: pooled global feature only
    _, hand_feature = plain_point_mlp([hand_p], [], prep["hand"],
                                      (True, True, False), n_valid=n_hand,
                                      tn=tn_h, point_dtype=None, pool=True)
    # (3) object PointNet2 stage B: global g1 folded in via split weights
    obj_feature, _ = plain_point_mlp([h1], [g1], prep["stage_b"], (True, False),
                                     n_valid=n_obj, tn=tn_o,
                                     point_dtype=jnp.bfloat16, pool=False)
    obj_xyz = obj_geo_p[:, :, :3]

    # (4) contact encoder + latent head + rsample, fused
    mu, std, z = encoder_latent(obj_xyz, obj_feature, heat_p, hand_feature, eps,
                                prep["encoder"], n_valid=n_obj, tn=tn_o)
    # (5) contact + force decoders, fused (contacts stay in VMEM)
    contacts, forces = decoder_call(obj_xyz, obj_feature, hand_feature, z,
                                    prep["decoder"], n_valid=n_obj, tn=tn_o)

    return {"mean_contact": mu, "std_contact": std,
            "contacts_object": contacts, "forces_object": forces}


# ----------------------------------------------------------------------------
if __name__ == "__main__":
    cfg = dict(
        physcial_property_num=2,
        physical_mlp_hidden=16,
        physical_mlp_layer=3,
        physical_feature_dim=8,
        obj_in_dim=6,
        object_pn_hidden_dim=32,
        obj_feature_dim=16,
        hand_in_dim=3,
        hand_feature_dim=16,
        encoder_out_dim=32,
        latent_neurons=32,
        d_z=8,
    )

    bs, n_obj, n_hand = 2, 203, 8      # ragged n_obj exercises the padding+mask path
    key = jax.random.PRNGKey(0)
    k_param, k_hand, k_geo, k_pin, k_pw, k_heat, k_eps = jax.random.split(key, 7)

    params = init_manifm(k_param, cfg)
    prep = prepare_manifm(params, cfg)       # host-side bf16 cast / split / stack

    hand = jax.random.normal(k_hand, (bs, n_hand, cfg["hand_in_dim"]), jnp.float32)
    obj_geo = jax.random.normal(k_geo, (bs, n_obj, cfg["obj_in_dim"]), jnp.float32)
    phys_in = jax.random.normal(k_pin, (bs, n_obj, cfg["physcial_property_num"]),
                                jnp.float32)
    phys_w = jax.random.uniform(k_pw, (bs, n_obj, cfg["physcial_property_num"]),
                                jnp.float32, minval=0.5, maxval=1.5)
    obj = jnp.concatenate([obj_geo, phys_in, phys_w], axis=-1)   # (bs, n_obj, 10)
    gt_heatmap = jax.random.uniform(k_heat, (bs, n_obj, 1), jnp.float32)
    eps = jax.random.normal(k_eps, (bs, cfg["d_z"]), jnp.float32)  # rsample noise

    fwd = jax.jit(lambda p, h, o, g, e: manifm_forward(p, cfg, h, o, g, e))
    out = fwd(prep, hand, obj, gt_heatmap, eps)
    out = jax.block_until_ready(out)

    assert out["mean_contact"].shape == (bs, cfg["d_z"])
    assert out["std_contact"].shape == (bs, cfg["d_z"])
    assert out["contacts_object"].shape == (bs, n_obj, 1)
    assert out["forces_object"].shape == (bs, n_obj, 3)
    for v in out.values():
        assert bool(jnp.all(jnp.isfinite(v)))
    print("KERNEL_OK")
</pallas_src>

<mosaic_0001>
module attributes {stable_mosaic.version = 11 : i64} {
  func.func @kernel(%arg0: i32, %arg1: i32, %arg2: memref<1x208x6xf32, #tpu.memory_space<vmem>>, %arg3: memref<1x208x2xf32, #tpu.memory_space<vmem>>, %arg4: memref<1x208x2xf32, #tpu.memory_space<vmem>>, %arg5: memref<2x32xbf16, #tpu.memory_space<vmem>>, %arg6: memref<1x32xf32, #tpu.memory_space<vmem>>, %arg7: memref<32x16xbf16, #tpu.memory_space<vmem>>, %arg8: memref<1x16xf32, #tpu.memory_space<vmem>>, %arg9: memref<6x32xbf16, #tpu.memory_space<vmem>>, %arg10: memref<8x32xbf16, #tpu.memory_space<vmem>>, %arg11: memref<1x32xf32, #tpu.memory_space<vmem>>, %arg12: memref<1x208x32xbf16, #tpu.memory_space<vmem>>, %arg13: memref<1x1x32xf32, #tpu.memory_space<vmem>>) attributes {dimension_semantics = [#tpu.dimension_semantics<parallel>, #tpu.dimension_semantics<arbitrary>], iteration_bounds = array<i64: 2, 1>, scalar_prefetch = 0 : i64, scratch_operands = 0 : i64, tpu.core_type = #tpu.core_type<tc>, window_params = [{transform_indices = @transform_0, window_bounds = array<i64: 1, 208, 6>}, {transform_indices = @transform_1, window_bounds = array<i64: 1, 208, 2>}, {transform_indices = @transform_2, window_bounds = array<i64: 1, 208, 2>}, {pipeline_mode = #tpu.pipeline_mode<synchronous>, transform_indices = @transform_3, window_bounds = array<i64: 2, 32>}, {pipeline_mode = #tpu.pipeline_mode<synchronous>, transform_indices = @transform_4, window_bounds = array<i64: 1, 32>}, {pipeline_mode = #tpu.pipeline_mode<synchronous>, transform_indices = @transform_5, window_bounds = array<i64: 32, 16>}, {pipeline_mode = #tpu.pipeline_mode<synchronous>, transform_indices = @transform_6, window_bounds = array<i64: 1, 16>}, {pipeline_mode = #tpu.pipeline_mode<synchronous>, transform_indices = @transform_7, window_bounds = array<i64: 6, 32>}, {pipeline_mode = #tpu.pipeline_mode<synchronous>, transform_indices = @transform_8, window_bounds = array<i64: 8, 32>}, {pipeline_mode = #tpu.pipeline_mode<synchronous>, transform_indices = @transform_9, window_bounds = array<i64: 1, 32>}, {transform_indices = @transform_10, window_bounds = array<i64: 1, 208, 32>}, {transform_indices = @transform_11, window_bounds = array<i64: 1, 1, 32>}]} {
    %c0 = arith.constant 0 : index
    %c0_0 = arith.constant 0 : index
    %c0_1 = arith.constant 0 : index
    %0 = vector.load %arg3[%c0, %c0_0, %c0_1] : memref<1x208x2xf32, #tpu.memory_space<vmem>>, vector<1x208x2xf32>
    %1 = vector.shape_cast %0 : vector<1x208x2xf32> to vector<208x2xf32>
    %c0_2 = arith.constant 0 : index
    %c0_3 = arith.constant 0 : index
    %c0_4 = arith.constant 0 : index
    %2 = vector.load %arg4[%c0_2, %c0_3, %c0_4] : memref<1x208x2xf32, #tpu.memory_space<vmem>>, vector<1x208x2xf32>
    %3 = vector.shape_cast %2 : vector<1x208x2xf32> to vector<208x2xf32>
    %c0_5 = arith.constant 0 : index
    %c0_6 = arith.constant 0 : index
    %4 = vector.load %arg5[%c0_5, %c0_6] : memref<2x32xbf16, #tpu.memory_space<vmem>>, vector<2x32xbf16>
    %5 = arith.truncf %1 : vector<208x2xf32> to vector<208x2xbf16>
    %cst = arith.constant dense<0.000000e+00> : vector<208x32xf32>
    %6 = tpu.matmul %5, %4, %cst {dimension_numbers = #tpu.dot_dimension_numbers<[1], [0], [0], [1], [0, 0, 1, 1], [], []>} : vector<208x2xbf16>, vector<2x32xbf16>, vector<208x32xf32> -> vector<208x32xf32>
    %c0_7 = arith.constant 0 : index
    %c0_8 = arith.constant 0 : index
    %7 = vector.load %arg6[%c0_7, %c0_8] : memref<1x32xf32, #tpu.memory_space<vmem>>, vector<1x32xf32>
    %8 = vector.broadcast %7 : vector<1x32xf32> to vector<208x32xf32>
    %9 = arith.addf %6, %8 : vector<208x32xf32>
    %cst_9 = arith.constant 0.000000e+00 : f32
    %10 = vector.broadcast %cst_9 : f32 to vector<208x32xf32>
    %11 = arith.maximumf %9, %10 : vector<208x32xf32>
    %c0_10 = arith.constant 0 : index
    %c0_11 = arith.constant 0 : index
    %12 = vector.load %arg7[%c0_10, %c0_11] : memref<32x16xbf16, #tpu.memory_space<vmem>>, vector<32x16xbf16>
    %13 = arith.truncf %11 : vector<208x32xf32> to vector<208x32xbf16>
    %cst_12 = arith.constant dense<0.000000e+00> : vector<208x16xf32>
    %14 = tpu.matmul %13, %12, %cst_12 {dimension_numbers = #tpu.dot_dimension_numbers<[1], [0], [0], [1], [0, 0, 1, 1], [], []>} : vector<208x32xbf16>, vector<32x16xbf16>, vector<208x16xf32> -> vector<208x16xf32>
    %c0_13 = arith.constant 0 : index
    %c0_14 = arith.constant 0 : index
    %15 = vector.load %arg8[%c0_13, %c0_14] : memref<1x16xf32, #tpu.memory_space<vmem>>, vector<1x16xf32>
    %16 = vector.broadcast %15 : vector<1x16xf32> to vector<208x16xf32>
    %17 = arith.addf %14, %16 : vector<208x16xf32>
    %18 = vector.extract_strided_slice %17 {offsets = [0, 0], sizes = [208, 8], strides = [1, 1]} : vector<208x16xf32> to vector<208x8xf32>
    %19 = vector.extract_strided_slice %3 {offsets = [0, 0], sizes = [208, 1], strides = [1, 1]} : vector<208x2xf32> to vector<208x1xf32>
    %20 = vector.broadcast %19 : vector<208x1xf32> to vector<208x8xf32>
    %21 = arith.mulf %18, %20 : vector<208x8xf32>
    %22 = vector.extract_strided_slice %17 {offsets = [0, 8], sizes = [208, 8], strides = [1, 1]} : vector<208x16xf32> to vector<208x8xf32>
    %23 = vector.extract_strided_slice %3 {offsets = [0, 1], sizes = [208, 1], strides = [1, 1]} : vector<208x2xf32> to vector<208x1xf32>
    %24 = vector.broadcast %23 : vector<208x1xf32> to vector<208x8xf32>
    %25 = arith.mulf %22, %24 : vector<208x8xf32>
    %26 = arith.addf %21, %25 : vector<208x8xf32>
    %cst_15 = arith.constant dense<0.000000e+00> : vector<208xf32>
    %27 = vector.multi_reduction <add>, %3, %cst_15 [1] : vector<208x2xf32> to vector<208xf32>
    %28 = vector.shape_cast %27 : vector<208xf32> to vector<208x1xf32>
    %cst_16 = arith.constant 0.000000e+00 : f32
    %29 = vector.broadcast %cst_16 : f32 to vector<208x1xf32>
    %30 = arith.cmpf oeq, %28, %29 : vector<208x1xf32>
    %cst_17 = arith.constant 1.000000e+00 : f32
    %31 = vector.broadcast %cst_17 : f32 to vector<208x1xf32>
    %32 = arith.select %30, %31, %28 : vector<208x1xi1>, vector<208x1xf32>
    %33 = vector.broadcast %32 : vector<208x1xf32> to vector<208x8xf32>
    %34 = arith.divf %26, %33 : vector<208x8xf32>
    %c0_18 = arith.constant 0 : index
    %c0_19 = arith.constant 0 : index
    %c0_20 = arith.constant 0 : index
    %35 = vector.load %arg2[%c0_18, %c0_19, %c0_20] : memref<1x208x6xf32, #tpu.memory_space<vmem>>, vector<1x208x6xf32>
    %36 = vector.shape_cast %35 : vector<1x208x6xf32> to vector<208x6xf32>
    %c0_21 = arith.constant 0 : index
    %c0_22 = arith.constant 0 : index
    %37 = vector.load %arg9[%c0_21, %c0_22] : memref<6x32xbf16, #tpu.memory_space<vmem>>, vector<6x32xbf16>
    %38 = arith.truncf %36 : vector<208x6xf32> to vector<208x6xbf16>
    %cst_23 = arith.constant dense<0.000000e+00> : vector<208x32xf32>
    %39 = tpu.matmul %38, %37, %cst_23 {dimension_numbers = #tpu.dot_dimension_numbers<[1], [0], [0], [1], [0, 0, 1, 1], [], []>} : vector<208x6xbf16>, vector<6x32xbf16>, vector<208x32xf32> -> vector<208x32xf32>
    %c0_24 = arith.constant 0 : index
    %c0_25 = arith.constant 0 : index
    %40 = vector.load %arg10[%c0_24, %c0_25] : memref<8x32xbf16, #tpu.memory_space<vmem>>, vector<8x32xbf16>
    %41 = arith.truncf %34 : vector<208x8xf32> to vector<208x8xbf16>
    %cst_26 = arith.constant dense<0.000000e+00> : vector<208x32xf32>
    %42 = tpu.matmul %41, %40, %cst_26 {dimension_numbers = #tpu.dot_dimension_numbers<[1], [0], [0], [1], [0, 0, 1, 1], [], []>} : vector<208x8xbf16>, vector<8x32xbf16>, vector<208x32xf32> -> vector<208x32xf32>
    %43 = arith.addf %39, %42 : vector<208x32xf32>
    %c0_27 = arith.constant 0 : index
    %c0_28 = arith.constant 0 : index
    %44 = vector.load %arg11[%c0_27, %c0_28] : memref<1x32xf32, #tpu.memory_space<vmem>>, vector<1x32xf32>
    %45 = vector.broadcast %44 : vector<1x32xf32> to vector<208x32xf32>
    %46 = arith.addf %43, %45 : vector<208x32xf32>
    %cst_29 = arith.constant 0.000000e+00 : f32
    %47 = vector.broadcast %cst_29 : f32 to vector<208x32xf32>
    %48 = arith.maximumf %46, %47 : vector<208x32xf32>
    %49 = arith.truncf %48 : vector<208x32xf32> to vector<208x32xbf16>
    %c0_30 = arith.constant 0 : index
    %c0_31 = arith.constant 0 : index
    %c0_32 = arith.constant 0 : index
    %50 = vector.load %arg12[%c0_30, %c0_31, %c0_32] : memref<1x208x32xbf16, #tpu.memory_space<vmem>>, vector<1x208x32xbf16>
    %51 = vector.shape_cast %50 : vector<1x208x32xbf16> to vector<208x32xbf16>
    %52 = vector.shape_cast %49 : vector<208x32xbf16> to vector<1x208x32xbf16>
    tpu.vector_store %arg12[%c0_30, %c0_31, %c0_32], %52 {strides = array<i32>} : memref<1x208x32xbf16, #tpu.memory_space<vmem>>, vector<1x208x32xbf16>,
    %c208_i32 = arith.constant 208 : i32
    %53 = arith.muli %arg1, %c208_i32 : i32
    %54 = tpu.iota {dimensions = array<i32: 0>} : vector<208x32xi32>
    %55 = vector.broadcast %53 : i32 to vector<208x32xi32>
    %56 = arith.addi %55, %54 : vector<208x32xi32>
    %c203_i32 = arith.constant 203 : i32
    %57 = vector.broadcast %c203_i32 : i32 to vector<208x32xi32>
    %58 = arith.cmpi slt, %56, %57 : vector<208x32xi32>
    %cst_33 = arith.constant 0xFF800000 : f32
    %59 = vector.broadcast %cst_33 : f32 to vector<208x32xf32>
    %60 = arith.select %58, %48, %59 : vector<208x32xi1>, vector<208x32xf32>
    %cst_34 = arith.constant dense<0xFF800000> : vector<32xf32>
    %61 = vector.multi_reduction <maximumf>, %60, %cst_34 [0] : vector<208x32xf32> to vector<32xf32>
    %62 = vector.shape_cast %61 : vector<32xf32> to vector<1x32xf32>
    %c0_i32 = arith.constant 0 : i32
    %63 = arith.cmpi eq, %arg1, %c0_i32 : i32
    %64 = arith.extui %63 : i1 to i32
    %c0_i32_35 = arith.constant 0 : i32
    %65 = arith.cmpi ne, %64, %c0_i32_35 : i32
    scf.if %65 {
      %c0_38 = arith.constant 0 : index
      %c0_39 = arith.constant 0 : index
      %c0_40 = arith.constant 0 : index
      %69 = vector.load %arg13[%c0_38, %c0_39, %c0_40] : memref<1x1x32xf32, #tpu.memory_space<vmem>>, vector<1x1x32xf32>
      %70 = vector.shape_cast %69 : vector<1x1x32xf32> to vector<1x32xf32>
      %71 = vector.shape_cast %62 : vector<1x32xf32> to vector<1x1x32xf32>
      tpu.vector_store %arg13[%c0_38, %c0_39, %c0_40], %71 {strides = array<i32>} : memref<1x1x32xf32, #tpu.memory_space<vmem>>, vector<1x1x32xf32>,
    } else {
    }
    %c0_i32_36 = arith.constant 0 : i32
    %66 = arith.cmpi sgt, %arg1, %c0_i32_36 : i32
    %67 = arith.extui %66 : i1 to i32
    %c0_i32_37 = arith.constant 0 : i32
    %68 = arith.cmpi ne, %67, %c0_i32_37 : i32
    scf.if %68 {
      %c0_38 = arith.constant 0 : index
      %c0_39 = arith.constant 0 : index
      %c0_40 = arith.constant 0 : index
      %69 = vector.load %arg13[%c0_38, %c0_39, %c0_40] : memref<1x1x32xf32, #tpu.memory_space<vmem>>, vector<1x1x32xf32>
      %70 = vector.shape_cast %69 : vector<1x1x32xf32> to vector<1x32xf32>
      %71 = arith.maximumf %70, %62 : vector<1x32xf32>
      %c0_41 = arith.constant 0 : index
      %c0_42 = arith.constant 0 : index
      %c0_43 = arith.constant 0 : index
      %72 = vector.load %arg13[%c0_41, %c0_42, %c0_43] : memref<1x1x32xf32, #tpu.memory_space<vmem>>, vector<1x1x32xf32>
      %73 = vector.shape_cast %72 : vector<1x1x32xf32> to vector<1x32xf32>
      %74 = vector.shape_cast %71 : vector<1x32xf32> to vector<1x1x32xf32>
      tpu.vector_store %arg13[%c0_41, %c0_42, %c0_43], %74 {strides = array<i32>} : memref<1x1x32xf32, #tpu.memory_space<vmem>>, vector<1x1x32xf32>,
    } else {
    }
    return
  }
  func.func @transform_0(%arg0: i32, %arg1: i32) -> (i32, i32, i32) {
    %c0_i32 = arith.constant 0 : i32
    %c0_i32_0 = arith.constant 0 : i32
    return %arg0, %arg1, %c0_i32 : i32, i32, i32
  }
  func.func @transform_1(%arg0: i32, %arg1: i32) -> (i32, i32, i32) {
    %c0_i32 = arith.constant 0 : i32
    %c0_i32_0 = arith.constant 0 : i32
    return %arg0, %arg1, %c0_i32 : i32, i32, i32
  }
  func.func @transform_2(%arg0: i32, %arg1: i32) -> (i32, i32, i32) {
    %c0_i32 = arith.constant 0 : i32
    %c0_i32_0 = arith.constant 0 : i32
    return %arg0, %arg1, %c0_i32 : i32, i32, i32
  }
  func.func @transform_3(%arg0: i32, %arg1: i32) -> (i32, i32) {
    %c0_i32 = arith.constant 0 : i32
    %c0_i32_0 = arith.constant 0 : i32
    %c0_i32_1 = arith.constant 0 : i32
    return %c0_i32, %c0_i32_0 : i32, i32
  }
  func.func @transform_4(%arg0: i32, %arg1: i32) -> (i32, i32) {
    %c0_i32 = arith.constant 0 : i32
    %c0_i32_0 = arith.constant 0 : i32
    %c0_i32_1 = arith.constant 0 : i32
    return %c0_i32, %c0_i32_0 : i32, i32
  }
  func.func @transform_5(%arg0: i32, %arg1: i32) -> (i32, i32) {
    %c0_i32 = arith.constant 0 : i32
    %c0_i32_0 = arith.constant 0 : i32
    %c0_i32_1 = arith.constant 0 : i32
    return %c0_i32, %c0_i32_0 : i32, i32
  }
  func.func @transform_6(%arg0: i32, %arg1: i32) -> (i32, i32) {
    %c0_i32 = arith.constant 0 : i32
    %c0_i32_0 = arith.constant 0 : i32
    %c0_i32_1 = arith.constant 0 : i32
    return %c0_i32, %c0_i32_0 : i32, i32
  }
  func.func @transform_7(%arg0: i32, %arg1: i32) -> (i32, i32) {
    %c0_i32 = arith.constant 0 : i32
    %c0_i32_0 = arith.constant 0 : i32
    %c0_i32_1 = arith.constant 0 : i32
    return %c0_i32, %c0_i32_0 : i32, i32
  }
  func.func @transform_8(%arg0: i32, %arg1: i32) -> (i32, i32) {
    %c0_i32 = arith.constant 0 : i32
    %c0_i32_0 = arith.constant 0 : i32
    %c0_i32_1 = arith.constant 0 : i32
    return %c0_i32, %c0_i32_0 : i32, i32
  }
  func.func @transform_9(%arg0: i32, %arg1: i32) -> (i32, i32) {
    %c0_i32 = arith.constant 0 : i32
    %c0_i32_0 = arith.constant 0 : i32
    %c0_i32_1 = arith.constant 0 : i32
    return %c0_i32, %c0_i32_0 : i32, i32
  }
  func.func @transform_10(%arg0: i32, %arg1: i32) -> (i32, i32, i32) {
    %c0_i32 = arith.constant 0 : i32
    %c0_i32_0 = arith.constant 0 : i32
    return %arg0, %arg1, %c0_i32 : i32, i32, i32
  }
  func.func @transform_11(%arg0: i32, %arg1: i32) -> (i32, i32, i32) {
    %c0_i32 = arith.constant 0 : i32
    %c0_i32_0 = arith.constant 0 : i32
    %c0_i32_1 = arith.constant 0 : i32
    return %arg0, %c0_i32, %c0_i32_0 : i32, i32, i32
  }
}

module attributes {stable_mosaic.version = 11 : i64} {
  func.func @kernel(%arg0: i32, %arg1: i32, %arg2: memref<1x208x32xbf16, #tpu.memory_space<vmem>>, %arg3: memref<1x1x32xf32, #tpu.memory_space<vmem>>, %arg4: memref<32x32xbf16, #tpu.memory_space<vmem>>, %arg5: memref<32x32xbf16, #tpu.memory_space<vmem>>, %arg6: memref<1x32xf32, #tpu.memory_space<vmem>>, %arg7: memref<32x16xbf16, #tpu.memory_space<vmem>>, %arg8: memref<1x16xf32, #tpu.memory_space<vmem>>, %arg9: memref<1x208x16xbf16, #tpu.memory_space<vmem>>) attributes {dimension_semantics = [#tpu.dimension_semantics<parallel>, #tpu.dimension_semantics<parallel>], iteration_bounds = array<i64: 2, 1>, scalar_prefetch = 0 : i64, scratch_operands = 0 : i64, tpu.core_type = #tpu.core_type<tc>, window_params = [{transform_indices = @transform_0, window_bounds = array<i64: 1, 208, 32>}, {transform_indices = @transform_1, window_bounds = array<i64: 1, 1, 32>}, {pipeline_mode = #tpu.pipeline_mode<synchronous>, transform_indices = @transform_2, window_bounds = array<i64: 32, 32>}, {pipeline_mode = #tpu.pipeline_mode<synchronous>, transform_indices = @transform_3, window_bounds = array<i64: 32, 32>}, {pipeline_mode = #tpu.pipeline_mode<synchronous>, transform_indices = @transform_4, window_bounds = array<i64: 1, 32>}, {pipeline_mode = #tpu.pipeline_mode<synchronous>, transform_indices = @transform_5, window_bounds = array<i64: 32, 16>}, {pipeline_mode = #tpu.pipeline_mode<synchronous>, transform_indices = @transform_6, window_bounds = array<i64: 1, 16>}, {transform_indices = @transform_7, window_bounds = array<i64: 1, 208, 16>}]} {
    %c0 = arith.constant 0 : index
    %c0_0 = arith.constant 0 : index
    %c0_1 = arith.constant 0 : index
    %0 = vector.load %arg2[%c0, %c0_0, %c0_1] : memref<1x208x32xbf16, #tpu.memory_space<vmem>>, vector<1x208x32xbf16>
    %1 = vector.shape_cast %0 : vector<1x208x32xbf16> to vector<208x32xbf16>
    %c0_2 = arith.constant 0 : index
    %c0_3 = arith.constant 0 : index
    %c0_4 = arith.constant 0 : index
    %2 = vector.load %arg3[%c0_2, %c0_3, %c0_4] : memref<1x1x32xf32, #tpu.memory_space<vmem>>, vector<1x1x32xf32>
    %3 = vector.shape_cast %2 : vector<1x1x32xf32> to vector<1x32xf32>
    %c0_5 = arith.constant 0 : index
    %c0_6 = arith.constant 0 : index
    %4 = vector.load %arg4[%c0_5, %c0_6] : memref<32x32xbf16, #tpu.memory_space<vmem>>, vector<32x32xbf16>
    %c0_7 = arith.constant 0 : index
    %c0_8 = arith.constant 0 : index
    %5 = vector.load %arg5[%c0_7, %c0_8] : memref<32x32xbf16, #tpu.memory_space<vmem>>, vector<32x32xbf16>
    %c0_9 = arith.constant 0 : index
    %c0_10 = arith.constant 0 : index
    %6 = vector.load %arg7[%c0_9, %c0_10] : memref<32x16xbf16, #tpu.memory_space<vmem>>, vector<32x16xbf16>
    %c0_11 = arith.constant 0 : index
    %c0_12 = arith.constant 0 : index
    %7 = vector.load %arg8[%c0_11, %c0_12] : memref<1x16xf32, #tpu.memory_space<vmem>>, vector<1x16xf32>
    %c0_13 = arith.constant 0 : index
    %c0_14 = arith.constant 0 : index
    %8 = vector.load %arg6[%c0_13, %c0_14] : memref<1x32xf32, #tpu.memory_space<vmem>>, vector<1x32xf32>
    %cst = arith.constant dense<0.000000e+00> : vector<208x32xf32>
    %9 = tpu.matmul %1, %4, %cst {dimension_numbers = #tpu.dot_dimension_numbers<[1], [0], [0], [1], [0, 0, 1, 1], [], []>} : vector<208x32xbf16>, vector<32x32xbf16>, vector<208x32xf32> -> vector<208x32xf32>
    %10 = vector.broadcast %8 : vector<1x32xf32> to vector<208x32xf32>
    %11 = arith.addf %10, %9 : vector<208x32xf32>
    %12 = arith.truncf %3 : vector<1x32xf32> to vector<1x32xbf16>
    %cst_15 = arith.constant dense<0.000000e+00> : vector<1x32xf32>
    %13 = tpu.matmul %12, %5, %cst_15 {dimension_numbers = #tpu.dot_dimension_numbers<[1], [0], [0], [1], [0, 0, 1, 1], [], []>} : vector<1x32xbf16>, vector<32x32xbf16>, vector<1x32xf32> -> vector<1x32xf32>
    %14 = vector.broadcast %13 : vector<1x32xf32> to vector<208x32xf32>
    %15 = arith.addf %11, %14 : vector<208x32xf32>
    %cst_16 = arith.constant 0.000000e+00 : f32
    %16 = vector.broadcast %cst_16 : f32 to vector<208x32xf32>
    %17 = arith.maximumf %15, %16 : vector<208x32xf32>
    %18 = arith.truncf %17 : vector<208x32xf32> to vector<208x32xbf16>
    %cst_17 = arith.constant dense<0.000000e+00> : vector<208x16xf32>
    %19 = tpu.matmul %18, %6, %cst_17 {dimension_numbers = #tpu.dot_dimension_numbers<[1], [0], [0], [1], [0, 0, 1, 1], [], []>} : vector<208x32xbf16>, vector<32x16xbf16>, vector<208x16xf32> -> vector<208x16xf32>
    %20 = vector.broadcast %7 : vector<1x16xf32> to vector<208x16xf32>
    %21 = arith.addf %19, %20 : vector<208x16xf32>
    %22 = arith.truncf %21 : vector<208x16xf32> to vector<208x16xbf16>
    %c0_18 = arith.constant 0 : index
    %c0_19 = arith.constant 0 : index
    %c0_20 = arith.constant 0 : index
    %23 = vector.load %arg9[%c0_18, %c0_19, %c0_20] : memref<1x208x16xbf16, #tpu.memory_space<vmem>>, vector<1x208x16xbf16>
    %24 = vector.shape_cast %23 : vector<1x208x16xbf16> to vector<208x16xbf16>
    %25 = vector.shape_cast %22 : vector<208x16xbf16> to vector<1x208x16xbf16>
    tpu.vector_store %arg9[%c0_18, %c0_19, %c0_20], %25 {strides = array<i32>} : memref<1x208x16xbf16, #tpu.memory_space<vmem>>, vector<1x208x16xbf16>,
    return
  }
  func.func @transform_0(%arg0: i32, %arg1: i32) -> (i32, i32, i32) {
    %c0_i32 = arith.constant 0 : i32
    %c0_i32_0 = arith.constant 0 : i32
    return %arg0, %arg1, %c0_i32 : i32, i32, i32
  }
  func.func @transform_1(%arg0: i32, %arg1: i32) -> (i32, i32, i32) {
    %c0_i32 = arith.constant 0 : i32
    %c0_i32_0 = arith.constant 0 : i32
    %c0_i32_1 = arith.constant 0 : i32
    return %arg0, %c0_i32, %c0_i32_0 : i32, i32, i32
  }
  func.func @transform_2(%arg0: i32, %arg1: i32) -> (i32, i32) {
    %c0_i32 = arith.constant 0 : i32
    %c0_i32_0 = arith.constant 0 : i32
    %c0_i32_1 = arith.constant 0 : i32
    return %c0_i32, %c0_i32_0 : i32, i32
  }
  func.func @transform_3(%arg0: i32, %arg1: i32) -> (i32, i32) {
    %c0_i32 = arith.constant 0 : i32
    %c0_i32_0 = arith.constant 0 : i32
    %c0_i32_1 = arith.constant 0 : i32
    return %c0_i32, %c0_i32_0 : i32, i32
  }
  func.func @transform_4(%arg0: i32, %arg1: i32) -> (i32, i32) {
    %c0_i32 = arith.constant 0 : i32
    %c0_i32_0 = arith.constant 0 : i32
    %c0_i32_1 = arith.constant 0 : i32
    return %c0_i32, %c0_i32_0 : i32, i32
  }
  func.func @transform_5(%arg0: i32, %arg1: i32) -> (i32, i32) {
    %c0_i32 = arith.constant 0 : i32
    %c0_i32_0 = arith.constant 0 : i32
    %c0_i32_1 = arith.constant 0 : i32
    return %c0_i32, %c0_i32_0 : i32, i32
  }
  func.func @transform_6(%arg0: i32, %arg1: i32) -> (i32, i32) {
    %c0_i32 = arith.constant 0 : i32
    %c0_i32_0 = arith.constant 0 : i32
    %c0_i32_1 = arith.constant 0 : i32
    return %c0_i32, %c0_i32_0 : i32, i32
  }
  func.func @transform_7(%arg0: i32, %arg1: i32) -> (i32, i32, i32) {
    %c0_i32 = arith.constant 0 : i32
    %c0_i32_0 = arith.constant 0 : i32
    return %arg0, %arg1, %c0_i32 : i32, i32, i32
  }
}

module attributes {stable_mosaic.version = 11 : i64} {
  func.func @kernel(%arg0: i32, %arg1: i32, %arg2: memref<1x8x3xf32, #tpu.memory_space<vmem>>, %arg3: memref<3x32xbf16, #tpu.memory_space<vmem>>, %arg4: memref<1x32xf32, #tpu.memory_space<vmem>>, %arg5: memref<32x32xbf16, #tpu.memory_space<vmem>>, %arg6: memref<1x32xf32, #tpu.memory_space<vmem>>, %arg7: memref<32x16xbf16, #tpu.memory_space<vmem>>, %arg8: memref<1x16xf32, #tpu.memory_space<vmem>>, %arg9: memref<1x1x16xf32, #tpu.memory_space<vmem>>) attributes {dimension_semantics = [#tpu.dimension_semantics<parallel>, #tpu.dimension_semantics<arbitrary>], iteration_bounds = array<i64: 2, 1>, scalar_prefetch = 0 : i64, scratch_operands = 0 : i64, tpu.core_type = #tpu.core_type<tc>, window_params = [{transform_indices = @transform_0, window_bounds = array<i64: 1, 8, 3>}, {pipeline_mode = #tpu.pipeline_mode<synchronous>, transform_indices = @transform_1, window_bounds = array<i64: 3, 32>}, {pipeline_mode = #tpu.pipeline_mode<synchronous>, transform_indices = @transform_2, window_bounds = array<i64: 1, 32>}, {pipeline_mode = #tpu.pipeline_mode<synchronous>, transform_indices = @transform_3, window_bounds = array<i64: 32, 32>}, {pipeline_mode = #tpu.pipeline_mode<synchronous>, transform_indices = @transform_4, window_bounds = array<i64: 1, 32>}, {pipeline_mode = #tpu.pipeline_mode<synchronous>, transform_indices = @transform_5, window_bounds = array<i64: 32, 16>}, {pipeline_mode = #tpu.pipeline_mode<synchronous>, transform_indices = @transform_6, window_bounds = array<i64: 1, 16>}, {transform_indices = @transform_7, window_bounds = array<i64: 1, 1, 16>}]} {
    %c0 = arith.constant 0 : index
    %c0_0 = arith.constant 0 : index
    %c0_1 = arith.constant 0 : index
    %0 = vector.load %arg2[%c0, %c0_0, %c0_1] : memref<1x8x3xf32, #tpu.memory_space<vmem>>, vector<1x8x3xf32>
    %1 = vector.shape_cast %0 : vector<1x8x3xf32> to vector<8x3xf32>
    %c0_2 = arith.constant 0 : index
    %c0_3 = arith.constant 0 : index
    %2 = vector.load %arg3[%c0_2, %c0_3] : memref<3x32xbf16, #tpu.memory_space<vmem>>, vector<3x32xbf16>
    %c0_4 = arith.constant 0 : index
    %c0_5 = arith.constant 0 : index
    %3 = vector.load %arg5[%c0_4, %c0_5] : memref<32x32xbf16, #tpu.memory_space<vmem>>, vector<32x32xbf16>
    %c0_6 = arith.constant 0 : index
    %c0_7 = arith.constant 0 : index
    %4 = vector.load %arg6[%c0_6, %c0_7] : memref<1x32xf32, #tpu.memory_space<vmem>>, vector<1x32xf32>
    %c0_8 = arith.constant 0 : index
    %c0_9 = arith.constant 0 : index
    %5 = vector.load %arg7[%c0_8, %c0_9] : memref<32x16xbf16, #tpu.memory_space<vmem>>, vector<32x16xbf16>
    %c0_10 = arith.constant 0 : index
    %c0_11 = arith.constant 0 : index
    %6 = vector.load %arg8[%c0_10, %c0_11] : memref<1x16xf32, #tpu.memory_space<vmem>>, vector<1x16xf32>
    %c0_12 = arith.constant 0 : index
    %c0_13 = arith.constant 0 : index
    %7 = vector.load %arg4[%c0_12, %c0_13] : memref<1x32xf32, #tpu.memory_space<vmem>>, vector<1x32xf32>
    %8 = arith.truncf %1 : vector<8x3xf32> to vector<8x3xbf16>
    %cst = arith.constant dense<0.000000e+00> : vector<8x32xf32>
    %9 = tpu.matmul %8, %2, %cst {dimension_numbers = #tpu.dot_dimension_numbers<[1], [0], [0], [1], [0, 0, 1, 1], [], []>} : vector<8x3xbf16>, vector<3x32xbf16>, vector<8x32xf32> -> vector<8x32xf32>
    %10 = vector.broadcast %7 : vector<1x32xf32> to vector<8x32xf32>
    %11 = arith.addf %10, %9 : vector<8x32xf32>
    %cst_14 = arith.constant 0.000000e+00 : f32
    %12 = vector.broadcast %cst_14 : f32 to vector<8x32xf32>
    %13 = arith.maximumf %11, %12 : vector<8x32xf32>
    %14 = arith.truncf %13 : vector<8x32xf32> to vector<8x32xbf16>
    %cst_15 = arith.constant dense<0.000000e+00> : vector<8x32xf32>
    %15 = tpu.matmul %14, %3, %cst_15 {dimension_numbers = #tpu.dot_dimension_numbers<[1], [0], [0], [1], [0, 0, 1, 1], [], []>} : vector<8x32xbf16>, vector<32x32xbf16>, vector<8x32xf32> -> vector<8x32xf32>
    %16 = vector.broadcast %4 : vector<1x32xf32> to vector<8x32xf32>
    %17 = arith.addf %15, %16 : vector<8x32xf32>
    %cst_16 = arith.constant 0.000000e+00 : f32
    %18 = vector.broadcast %cst_16 : f32 to vector<8x32xf32>
    %19 = arith.maximumf %17, %18 : vector<8x32xf32>
    %20 = arith.truncf %19 : vector<8x32xf32> to vector<8x32xbf16>
    %cst_17 = arith.constant dense<0.000000e+00> : vector<8x16xf32>
    %21 = tpu.matmul %20, %5, %cst_17 {dimension_numbers = #tpu.dot_dimension_numbers<[1], [0], [0], [1], [0, 0, 1, 1], [], []>} : vector<8x32xbf16>, vector<32x16xbf16>, vector<8x16xf32> -> vector<8x16xf32>
    %22 = vector.broadcast %6 : vector<1x16xf32> to vector<8x16xf32>
    %23 = arith.addf %21, %22 : vector<8x16xf32>
    %cst_18 = arith.constant dense<0xFF800000> : vector<16xf32>
    %24 = vector.multi_reduction <maximumf>, %23, %cst_18 [0] : vector<8x16xf32> to vector<16xf32>
    %25 = vector.shape_cast %24 : vector<16xf32> to vector<1x16xf32>
    %c0_i32 = arith.constant 0 : i32
    %26 = arith.cmpi eq, %arg1, %c0_i32 : i32
    %27 = arith.extui %26 : i1 to i32
    %c0_i32_19 = arith.constant 0 : i32
    %28 = arith.cmpi ne, %27, %c0_i32_19 : i32
    scf.if %28 {
      %c0_22 = arith.constant 0 : index
      %c0_23 = arith.constant 0 : index
      %c0_24 = arith.constant 0 : index
      %32 = vector.load %arg9[%c0_22, %c0_23, %c0_24] : memref<1x1x16xf32, #tpu.memory_space<vmem>>, vector<1x1x16xf32>
      %33 = vector.shape_cast %32 : vector<1x1x16xf32> to vector<1x16xf32>
      %34 = vector.shape_cast %25 : vector<1x16xf32> to vector<1x1x16xf32>
      tpu.vector_store %arg9[%c0_22, %c0_23, %c0_24], %34 {strides = array<i32>} : memref<1x1x16xf32, #tpu.memory_space<vmem>>, vector<1x1x16xf32>,
    } else {
    }
    %c0_i32_20 = arith.constant 0 : i32
    %29 = arith.cmpi sgt, %arg1, %c0_i32_20 : i32
    %30 = arith.extui %29 : i1 to i32
    %c0_i32_21 = arith.constant 0 : i32
    %31 = arith.cmpi ne, %30, %c0_i32_21 : i32
    scf.if %31 {
      %c0_22 = arith.constant 0 : index
      %c0_23 = arith.constant 0 : index
      %c0_24 = arith.constant 0 : index
      %32 = vector.load %arg9[%c0_22, %c0_23, %c0_24] : memref<1x1x16xf32, #tpu.memory_space<vmem>>, vector<1x1x16xf32>
      %33 = vector.shape_cast %32 : vector<1x1x16xf32> to vector<1x16xf32>
      %34 = arith.maximumf %33, %25 : vector<1x16xf32>
      %c0_25 = arith.constant 0 : index
      %c0_26 = arith.constant 0 : index
      %c0_27 = arith.constant 0 : index
      %35 = vector.load %arg9[%c0_25, %c0_26, %c0_27] : memref<1x1x16xf32, #tpu.memory_space<vmem>>, vector<1x1x16xf32>
      %36 = vector.shape_cast %35 : vector<1x1x16xf32> to vector<1x16xf32>
      %37 = vector.shape_cast %34 : vector<1x16xf32> to vector<1x1x16xf32>
      tpu.vector_store %arg9[%c0_25, %c0_26, %c0_27], %37 {strides = array<i32>} : memref<1x1x16xf32, #tpu.memory_space<vmem>>, vector<1x1x16xf32>,
    } else {
    }
    return
  }
  func.func @transform_0(%arg0: i32, %arg1: i32) -> (i32, i32, i32) {
    %c0_i32 = arith.constant 0 : i32
    %c0_i32_0 = arith.constant 0 : i32
    return %arg0, %arg1, %c0_i32 : i32, i32, i32
  }
  func.func @transform_1(%arg0: i32, %arg1: i32) -> (i32, i32) {
    %c0_i32 = arith.constant 0 : i32
    %c0_i32_0 = arith.constant 0 : i32
    %c0_i32_1 = arith.constant 0 : i32
    return %c0_i32, %c0_i32_0 : i32, i32
  }
  func.func @transform_2(%arg0: i32, %arg1: i32) -> (i32, i32) {
    %c0_i32 = arith.constant 0 : i32
    %c0_i32_0 = arith.constant 0 : i32
    %c0_i32_1 = arith.constant 0 : i32
    return %c0_i32, %c0_i32_0 : i32, i32
  }
  func.func @transform_3(%arg0: i32, %arg1: i32) -> (i32, i32) {
    %c0_i32 = arith.constant 0 : i32
    %c0_i32_0 = arith.constant 0 : i32
    %c0_i32_1 = arith.constant 0 : i32
    return %c0_i32, %c0_i32_0 : i32, i32
  }
  func.func @transform_4(%arg0: i32, %arg1: i32) -> (i32, i32) {
    %c0_i32 = arith.constant 0 : i32
    %c0_i32_0 = arith.constant 0 : i32
    %c0_i32_1 = arith.constant 0 : i32
    return %c0_i32, %c0_i32_0 : i32, i32
  }
  func.func @transform_5(%arg0: i32, %arg1: i32) -> (i32, i32) {
    %c0_i32 = arith.constant 0 : i32
    %c0_i32_0 = arith.constant 0 : i32
    %c0_i32_1 = arith.constant 0 : i32
    return %c0_i32, %c0_i32_0 : i32, i32
  }
  func.func @transform_6(%arg0: i32, %arg1: i32) -> (i32, i32) {
    %c0_i32 = arith.constant 0 : i32
    %c0_i32_0 = arith.constant 0 : i32
    %c0_i32_1 = arith.constant 0 : i32
    return %c0_i32, %c0_i32_0 : i32, i32
  }
  func.func @transform_7(%arg0: i32, %arg1: i32) -> (i32, i32, i32) {
    %c0_i32 = arith.constant 0 : i32
    %c0_i32_0 = arith.constant 0 : i32
    %c0_i32_1 = arith.constant 0 : i32
    return %arg0, %c0_i32, %c0_i32_0 : i32, i32, i32
  }
}

module attributes {stable_mosaic.version = 11 : i64} {
  func.func @kernel(%arg0: i32, %arg1: i32, %arg2: memref<1x208x3xf32, #tpu.memory_space<vmem>>, %arg3: memref<1x208x16xbf16, #tpu.memory_space<vmem>>, %arg4: memref<1x208x1xf32, #tpu.memory_space<vmem>>, %arg5: memref<1x1x16xf32, #tpu.memory_space<vmem>>, %arg6: memref<1x1x8xf32, #tpu.memory_space<vmem>>, %arg7: memref<3x32xbf16, #tpu.memory_space<vmem>>, %arg8: memref<16x32xbf16, #tpu.memory_space<vmem>>, %arg9: memref<16x32xbf16, #tpu.memory_space<vmem>>, %arg10: memref<1x32xbf16, #tpu.memory_space<vmem>>, %arg11: memref<1x32xf32, #tpu.memory_space<vmem>>, %arg12: memref<32x32xbf16, #tpu.memory_space<vmem>>, %arg13: memref<1x32xf32, #tpu.memory_space<vmem>>, %arg14: memref<32x32xf32, #tpu.memory_space<vmem>>, %arg15: memref<1x32xf32, #tpu.memory_space<vmem>>, %arg16: memref<32x32xf32, #tpu.memory_space<vmem>>, %arg17: memref<1x32xf32, #tpu.memory_space<vmem>>, %arg18: memref<32x32xf32, #tpu.memory_space<vmem>>, %arg19: memref<1x32xf32, #tpu.memory_space<vmem>>, %arg20: memref<32x16xf32, #tpu.memory_space<vmem>>, %arg21: memref<1x16xf32, #tpu.memory_space<vmem>>, %arg22: memref<1x1x24xf32, #tpu.memory_space<vmem>>, %arg23: memref<1x32xf32, #tpu.memory_space<vmem>>) attributes {dimension_semantics = [#tpu.dimension_semantics<parallel>, #tpu.dimension_semantics<arbitrary>], iteration_bounds = array<i64: 2, 1>, scalar_prefetch = 0 : i64, scratch_operands = 1 : i64, tpu.core_type = #tpu.core_type<tc>, window_params = [{transform_indices = @transform_0, window_bounds = array<i64: 1, 208, 3>}, {transform_indices = @transform_1, window_bounds = array<i64: 1, 208, 16>}, {transform_indices = @transform_2, window_bounds = array<i64: 1, 208, 1>}, {transform_indices = @transform_3, window_bounds = array<i64: 1, 1, 16>}, {transform_indices = @transform_4, window_bounds = array<i64: 1, 1, 8>}, {pipeline_mode = #tpu.pipeline_mode<synchronous>, transform_indices = @transform_5, window_bounds = array<i64: 3, 32>}, {pipeline_mode = #tpu.pipeline_mode<synchronous>, transform_indices = @transform_6, window_bounds = array<i64: 16, 32>}, {pipeline_mode = #tpu.pipeline_mode<synchronous>, transform_indices = @transform_7, window_bounds = array<i64: 16, 32>}, {pipeline_mode = #tpu.pipeline_mode<synchronous>, transform_indices = @transform_8, window_bounds = array<i64: 1, 32>}, {pipeline_mode = #tpu.pipeline_mode<synchronous>, transform_indices = @transform_9, window_bounds = array<i64: 1, 32>}, {pipeline_mode = #tpu.pipeline_mode<synchronous>, transform_indices = @transform_10, window_bounds = array<i64: 32, 32>}, {pipeline_mode = #tpu.pipeline_mode<synchronous>, transform_indices = @transform_11, window_bounds = array<i64: 1, 32>}, {pipeline_mode = #tpu.pipeline_mode<synchronous>, transform_indices = @transform_12, window_bounds = array<i64: 32, 32>}, {pipeline_mode = #tpu.pipeline_mode<synchronous>, transform_indices = @transform_13, window_bounds = array<i64: 1, 32>}, {pipeline_mode = #tpu.pipeline_mode<synchronous>, transform_indices = @transform_14, window_bounds = array<i64: 32, 32>}, {pipeline_mode = #tpu.pipeline_mode<synchronous>, transform_indices = @transform_15, window_bounds = array<i64: 1, 32>}, {pipeline_mode = #tpu.pipeline_mode<synchronous>, transform_indices = @transform_16, window_bounds = array<i64: 32, 32>}, {pipeline_mode = #tpu.pipeline_mode<synchronous>, transform_indices = @transform_17, window_bounds = array<i64: 1, 32>}, {pipeline_mode = #tpu.pipeline_mode<synchronous>, transform_indices = @transform_18, window_bounds = array<i64: 32, 16>}, {pipeline_mode = #tpu.pipeline_mode<synchronous>, transform_indices = @transform_19, window_bounds = array<i64: 1, 16>}, {transform_indices = @transform_20, window_bounds = array<i64: 1, 1, 24>}]} {
    %c0 = arith.constant 0 : index
    %c0_0 = arith.constant 0 : index
    %c0_1 = arith.constant 0 : index
    %0 = vector.load %arg2[%c0, %c0_0, %c0_1] : memref<1x208x3xf32, #tpu.memory_space<vmem>>, vector<1x208x3xf32>
    %1 = vector.shape_cast %0 : vector<1x208x3xf32> to vector<208x3xf32>
    %c0_2 = arith.constant 0 : index
    %c0_3 = arith.constant 0 : index
    %c0_4 = arith.constant 0 : index
    %2 = vector.load %arg3[%c0_2, %c0_3, %c0_4] : memref<1x208x16xbf16, #tpu.memory_space<vmem>>, vector<1x208x16xbf16>
    %3 = vector.shape_cast %2 : vector<1x208x16xbf16> to vector<208x16xbf16>
    %c0_5 = arith.constant 0 : index
    %c0_6 = arith.constant 0 : index
    %c0_7 = arith.constant 0 : index
    %4 = vector.load %arg5[%c0_5, %c0_6, %c0_7] : memref<1x1x16xf32, #tpu.memory_space<vmem>>, vector<1x1x16xf32>
    %5 = vector.shape_cast %4 : vector<1x1x16xf32> to vector<1x16xf32>
    %c0_8 = arith.constant 0 : index
    %c0_9 = arith.constant 0 : index
    %c0_10 = arith.constant 0 : index
    %6 = vector.load %arg4[%c0_8, %c0_9, %c0_10] : memref<1x208x1xf32, #tpu.memory_space<vmem>>, vector<1x208x1xf32>
    %7 = vector.shape_cast %6 : vector<1x208x1xf32> to vector<208x1xf32>
    %c0_11 = arith.constant 0 : index
    %c0_12 = arith.constant 0 : index
    %8 = vector.load %arg7[%c0_11, %c0_12] : memref<3x32xbf16, #tpu.memory_space<vmem>>, vector<3x32xbf16>
    %c0_13 = arith.constant 0 : index
    %c0_14 = arith.constant 0 : index
    %9 = vector.load %arg8[%c0_13, %c0_14] : memref<16x32xbf16, #tpu.memory_space<vmem>>, vector<16x32xbf16>
    %c0_15 = arith.constant 0 : index
    %c0_16 = arith.constant 0 : index
    %10 = vector.load %arg9[%c0_15, %c0_16] : memref<16x32xbf16, #tpu.memory_space<vmem>>, vector<16x32xbf16>
    %c0_17 = arith.constant 0 : index
    %c0_18 = arith.constant 0 : index
    %11 = vector.load %arg10[%c0_17, %c0_18] : memref<1x32xbf16, #tpu.memory_space<vmem>>, vector<1x32xbf16>
    %c0_19 = arith.constant 0 : index
    %c0_20 = arith.constant 0 : index
    %12 = vector.load %arg11[%c0_19, %c0_20] : memref<1x32xf32, #tpu.memory_space<vmem>>, vector<1x32xf32>
    %c0_21 = arith.constant 0 : index
    %c0_22 = arith.constant 0 : index
    %13 = vector.load %arg12[%c0_21, %c0_22] : memref<32x32xbf16, #tpu.memory_space<vmem>>, vector<32x32xbf16>
    %c0_23 = arith.constant 0 : index
    %c0_24 = arith.constant 0 : index
    %14 = vector.load %arg13[%c0_23, %c0_24] : memref<1x32xf32, #tpu.memory_space<vmem>>, vector<1x32xf32>
    %15 = arith.truncf %1 : vector<208x3xf32> to vector<208x3xbf16>
    %cst = arith.constant dense<0.000000e+00> : vector<208x32xf32>
    %16 = tpu.matmul %15, %8, %cst {dimension_numbers = #tpu.dot_dimension_numbers<[1], [0], [0], [1], [0, 0, 1, 1], [], []>} : vector<208x3xbf16>, vector<3x32xbf16>, vector<208x32xf32> -> vector<208x32xf32>
    %17 = vector.broadcast %12 : vector<1x32xf32> to vector<208x32xf32>
    %18 = arith.addf %17, %16 : vector<208x32xf32>
    %cst_25 = arith.constant dense<0.000000e+00> : vector<208x32xf32>
    %19 = tpu.matmul %3, %9, %cst_25 {dimension_numbers = #tpu.dot_dimension_numbers<[1], [0], [0], [1], [0, 0, 1, 1], [], []>} : vector<208x16xbf16>, vector<16x32xbf16>, vector<208x32xf32> -> vector<208x32xf32>
    %20 = arith.addf %18, %19 : vector<208x32xf32>
    %21 = arith.truncf %5 : vector<1x16xf32> to vector<1x16xbf16>
    %cst_26 = arith.constant dense<0.000000e+00> : vector<1x32xf32>
    %22 = tpu.matmul %21, %10, %cst_26 {dimension_numbers = #tpu.dot_dimension_numbers<[1], [0], [0], [1], [0, 0, 1, 1], [], []>} : vector<1x16xbf16>, vector<16x32xbf16>, vector<1x32xf32> -> vector<1x32xf32>
    %23 = vector.broadcast %22 : vector<1x32xf32> to vector<208x32xf32>
    %24 = arith.addf %20, %23 : vector<208x32xf32>
    %25 = arith.truncf %7 : vector<208x1xf32> to vector<208x1xbf16>
    %cst_27 = arith.constant dense<0.000000e+00> : vector<208x32xf32>
    %26 = tpu.matmul %25, %11, %cst_27 {dimension_numbers = #tpu.dot_dimension_numbers<[1], [0], [0], [1], [0, 0, 1, 1], [], []>} : vector<208x1xbf16>, vector<1x32xbf16>, vector<208x32xf32> -> vector<208x32xf32>
    %27 = arith.addf %24, %26 : vector<208x32xf32>
    %cst_28 = arith.constant 0.000000e+00 : f32
    %28 = vector.broadcast %cst_28 : f32 to vector<208x32xf32>
    %29 = arith.maximumf %27, %28 : vector<208x32xf32>
    %30 = arith.truncf %29 : vector<208x32xf32> to vector<208x32xbf16>
    %cst_29 = arith.constant dense<0.000000e+00> : vector<208x32xf32>
    %31 = tpu.matmul %30, %13, %cst_29 {dimension_numbers = #tpu.dot_dimension_numbers<[1], [0], [0], [1], [0, 0, 1, 1], [], []>} : vector<208x32xbf16>, vector<32x32xbf16>, vector<208x32xf32> -> vector<208x32xf32>
    %32 = vector.broadcast %14 : vector<1x32xf32> to vector<208x32xf32>
    %33 = arith.addf %31, %32 : vector<208x32xf32>
    %cst_30 = arith.constant 0.000000e+00 : f32
    %34 = vector.broadcast %cst_30 : f32 to vector<208x32xf32>
    %35 = arith.maximumf %33, %34 : vector<208x32xf32>
    %c208_i32 = arith.constant 208 : i32
    %36 = arith.muli %arg1, %c208_i32 : i32
    %37 = tpu.iota {dimensions = array<i32: 0>} : vector<208x32xi32>
    %38 = vector.broadcast %36 : i32 to vector<208x32xi32>
    %39 = arith.addi %38, %37 : vector<208x32xi32>
    %c203_i32 = arith.constant 203 : i32
    %40 = vector.broadcast %c203_i32 : i32 to vector<208x32xi32>
    %41 = arith.cmpi slt, %39, %40 : vector<208x32xi32>
    %cst_31 = arith.constant 0xFF800000 : f32
    %42 = vector.broadcast %cst_31 : f32 to vector<208x32xf32>
    %43 = arith.select %41, %35, %42 : vector<208x32xi1>, vector<208x32xf32>
    %cst_32 = arith.constant dense<0xFF800000> : vector<32xf32>
    %44 = vector.multi_reduction <maximumf>, %43, %cst_32 [0] : vector<208x32xf32> to vector<32xf32>
    %45 = vector.shape_cast %44 : vector<32xf32> to vector<1x32xf32>
    %c0_i32 = arith.constant 0 : i32
    %46 = arith.cmpi eq, %arg1, %c0_i32 : i32
    %47 = arith.extui %46 : i1 to i32
    %c0_i32_33 = arith.constant 0 : i32
    %48 = arith.cmpi ne, %47, %c0_i32_33 : i32
    scf.if %48 {
      %c0_38 = arith.constant 0 : index
      %c0_39 = arith.constant 0 : index
      %55 = vector.load %arg23[%c0_38, %c0_39] : memref<1x32xf32, #tpu.memory_space<vmem>>, vector<1x32xf32>
      tpu.vector_store %arg23[%c0_38, %c0_39], %45 {strides = array<i32>} : memref<1x32xf32, #tpu.memory_space<vmem>>, vector<1x32xf32>,
    } else {
    }
    %c0_i32_34 = arith.constant 0 : i32
    %49 = arith.cmpi sgt, %arg1, %c0_i32_34 : i32
    %50 = arith.extui %49 : i1 to i32
    %c0_i32_35 = arith.constant 0 : i32
    %51 = arith.cmpi ne, %50, %c0_i32_35 : i32
    scf.if %51 {
      %c0_38 = arith.constant 0 : index
      %c0_39 = arith.constant 0 : index
      %55 = vector.load %arg23[%c0_38, %c0_39] : memref<1x32xf32, #tpu.memory_space<vmem>>, vector<1x32xf32>
      %56 = arith.maximumf %55, %45 : vector<1x32xf32>
      %c0_40 = arith.constant 0 : index
      %c0_41 = arith.constant 0 : index
      %57 = vector.load %arg23[%c0_40, %c0_41] : memref<1x32xf32, #tpu.memory_space<vmem>>, vector<1x32xf32>
      tpu.vector_store %arg23[%c0_40, %c0_41], %56 {strides = array<i32>} : memref<1x32xf32, #tpu.memory_space<vmem>>, vector<1x32xf32>,
    } else {
    }
    %c0_i32_36 = arith.constant 0 : i32
    %52 = arith.cmpi eq, %arg1, %c0_i32_36 : i32
    %53 = arith.extui %52 : i1 to i32
    %c0_i32_37 = arith.constant 0 : i32
    %54 = arith.cmpi ne, %53, %c0_i32_37 : i32
    scf.if %54 {
      %c0_38 = arith.constant 0 : index
      %c0_39 = arith.constant 0 : index
      %55 = vector.load %arg23[%c0_38, %c0_39] : memref<1x32xf32, #tpu.memory_space<vmem>>, vector<1x32xf32>
      %c0_40 = arith.constant 0 : index
      %c0_41 = arith.constant 0 : index
      %56 = vector.load %arg14[%c0_40, %c0_41] : memref<32x32xf32, #tpu.memory_space<vmem>>, vector<32x32xf32>
      %c0_42 = arith.constant 0 : index
      %c0_43 = arith.constant 0 : index
      %57 = vector.load %arg15[%c0_42, %c0_43] : memref<1x32xf32, #tpu.memory_space<vmem>>, vector<1x32xf32>
      %c0_44 = arith.constant 0 : index
      %c0_45 = arith.constant 0 : index
      %58 = vector.load %arg16[%c0_44, %c0_45] : memref<32x32xf32, #tpu.memory_space<vmem>>, vector<32x32xf32>
      %c0_46 = arith.constant 0 : index
      %c0_47 = arith.constant 0 : index
      %59 = vector.load %arg17[%c0_46, %c0_47] : memref<1x32xf32, #tpu.memory_space<vmem>>, vector<1x32xf32>
      %c0_48 = arith.constant 0 : index
      %c0_49 = arith.constant 0 : index
      %60 = vector.load %arg18[%c0_48, %c0_49] : memref<32x32xf32, #tpu.memory_space<vmem>>, vector<32x32xf32>
      %c0_50 = arith.constant 0 : index
      %c0_51 = arith.constant 0 : index
      %61 = vector.load %arg19[%c0_50, %c0_51] : memref<1x32xf32, #tpu.memory_space<vmem>>, vector<1x32xf32>
      %c0_52 = arith.constant 0 : index
      %c0_53 = arith.constant 0 : index
      %62 = vector.load %arg20[%c0_52, %c0_53] : memref<32x16xf32, #tpu.memory_space<vmem>>, vector<32x16xf32>
      %c0_54 = arith.constant 0 : index
      %c0_55 = arith.constant 0 : index
      %63 = vector.load %arg21[%c0_54, %c0_55] : memref<1x16xf32, #tpu.memory_space<vmem>>, vector<1x16xf32>
      %cst_56 = arith.constant dense<0.000000e+00> : vector<1x32xf32>
      %64 = tpu.matmul %55, %56, %cst_56 {dimension_numbers = #tpu.dot_dimension_numbers<[1], [0], [0], [1], [0, 0, 1, 1], [], []>} : vector<1x32xf32>, vector<32x32xf32>, vector<1x32xf32> -> vector<1x32xf32>
      %65 = arith.addf %64, %57 : vector<1x32xf32>
      %cst_57 = arith.constant 0.000000e+00 : f32
      %66 = vector.broadcast %cst_57 : f32 to vector<1x32xf32>
      %67 = arith.maximumf %65, %66 : vector<1x32xf32>
      %cst_58 = arith.constant dense<0.000000e+00> : vector<1x32xf32>
      %68 = tpu.matmul %67, %58, %cst_58 {dimension_numbers = #tpu.dot_dimension_numbers<[1], [0], [0], [1], [0, 0, 1, 1], [], []>} : vector<1x32xf32>, vector<32x32xf32>, vector<1x32xf32> -> vector<1x32xf32>
      %69 = arith.addf %68, %59 : vector<1x32xf32>
      %cst_59 = arith.constant 0.000000e+00 : f32
      %70 = vector.broadcast %cst_59 : f32 to vector<1x32xf32>
      %71 = arith.maximumf %69, %70 : vector<1x32xf32>
      %cst_60 = arith.constant dense<0.000000e+00> : vector<1x32xf32>
      %72 = tpu.matmul %71, %60, %cst_60 {dimension_numbers = #tpu.dot_dimension_numbers<[1], [0], [0], [1], [0, 0, 1, 1], [], []>} : vector<1x32xf32>, vector<32x32xf32>, vector<1x32xf32> -> vector<1x32xf32>
      %73 = arith.addf %72, %61 : vector<1x32xf32>
      %74 = arith.addf %65, %73 : vector<1x32xf32>
      %cst_61 = arith.constant 0.000000e+00 : f32
      %75 = vector.broadcast %cst_61 : f32 to vector<1x32xf32>
      %76 = arith.cmpf ogt, %74, %75 : vector<1x32xf32>
      %cst_62 = arith.constant 2.000000e-01 : f32
      %77 = vector.broadcast %cst_62 : f32 to vector<1x32xf32>
      %78 = arith.mulf %77, %74 : vector<1x32xf32>
      %79 = arith.select %76, %74, %78 : vector<1x32xi1>, vector<1x32xf32>
      %cst_63 = arith.constant dense<0.000000e+00> : vector<1x16xf32>
      %80 = tpu.matmul %79, %62, %cst_63 {dimension_numbers = #tpu.dot_dimension_numbers<[1], [0], [0], [1], [0, 0, 1, 1], [], []>} : vector<1x32xf32>, vector<32x16xf32>, vector<1x16xf32> -> vector<1x16xf32>
      %81 = arith.addf %80, %63 : vector<1x16xf32>
      %82 = vector.extract_strided_slice %81 {offsets = [0, 0], sizes = [1, 8], strides = [1, 1]} : vector<1x16xf32> to vector<1x8xf32>
      %83 = vector.extract_strided_slice %81 {offsets = [0, 8], sizes = [1, 8], strides = [1, 1]} : vector<1x16xf32> to vector<1x8xf32>
      %84 = math.exp %83 : vector<1x8xf32>
      %c0_64 = arith.constant 0 : index
      %c0_65 = arith.constant 0 : index
      %c0_66 = arith.constant 0 : index
      %85 = vector.load %arg6[%c0_64, %c0_65, %c0_66] : memref<1x1x8xf32, #tpu.memory_space<vmem>>, vector<1x1x8xf32>
      %86 = vector.shape_cast %85 : vector<1x1x8xf32> to vector<1x8xf32>
      %87 = arith.mulf %84, %86 : vector<1x8xf32>
      %88 = arith.addf %82, %87 : vector<1x8xf32>
      %89 = tpu.concatenate %82, %84, %88 in 1 : vector<1x8xf32>, vector<1x8xf32>, vector<1x8xf32> -> vector<1x24xf32>
      %c0_67 = arith.constant 0 : index
      %c0_68 = arith.constant 0 : index
      %c0_69 = arith.constant 0 : index
      %90 = vector.load %arg22[%c0_67, %c0_68, %c0_69] : memref<1x1x24xf32, #tpu.memory_space<vmem>>, vector<1x1x24xf32>
      %91 = vector.shape_cast %90 : vector<1x1x24xf32> to vector<1x24xf32>
      %92 = vector.shape_cast %89 : vector<1x24xf32> to vector<1x1x24xf32>
      tpu.vector_store %arg22[%c0_67, %c0_68, %c0_69], %92 {strides = array<i32>} : memref<1x1x24xf32, #tpu.memory_space<vmem>>, vector<1x1x24xf32>,
    } else {
    }
    return
  }
  func.func @transform_0(%arg0: i32, %arg1: i32) -> (i32, i32, i32) {
    %c0_i32 = arith.constant 0 : i32
    %c0_i32_0 = arith.constant 0 : i32
    return %arg0, %arg1, %c0_i32 : i32, i32, i32
  }
  func.func @transform_1(%arg0: i32, %arg1: i32) -> (i32, i32, i32) {
    %c0_i32 = arith.constant 0 : i32
    %c0_i32_0 = arith.constant 0 : i32
    return %arg0, %arg1, %c0_i32 : i32, i32, i32
  }
  func.func @transform_2(%arg0: i32, %arg1: i32) -> (i32, i32, i32) {
    %c0_i32 = arith.constant 0 : i32
    %c0_i32_0 = arith.constant 0 : i32
    return %arg0, %arg1, %c0_i32 : i32, i32, i32
  }
  func.func @transform_3(%arg0: i32, %arg1: i32) -> (i32, i32, i32) {
    %c0_i32 = arith.constant 0 : i32
    %c0_i32_0 = arith.constant 0 : i32
    %c0_i32_1 = arith.constant 0 : i32
    return %arg0, %c0_i32, %c0_i32_0 : i32, i32, i32
  }
  func.func @transform_4(%arg0: i32, %arg1: i32) -> (i32, i32, i32) {
    %c0_i32 = arith.constant 0 : i32
    %c0_i32_0 = arith.constant 0 : i32
    %c0_i32_1 = arith.constant 0 : i32
    return %arg0, %c0_i32, %c0_i32_0 : i32, i32, i32
  }
  func.func @transform_5(%arg0: i32, %arg1: i32) -> (i32, i32) {
    %c0_i32 = arith.constant 0 : i32
    %c0_i32_0 = arith.constant 0 : i32
    %c0_i32_1 = arith.constant 0 : i32
    return %c0_i32, %c0_i32_0 : i32, i32
  }
  func.func @transform_6(%arg0: i32, %arg1: i32) -> (i32, i32) {
    %c0_i32 = arith.constant 0 : i32
    %c0_i32_0 = arith.constant 0 : i32
    %c0_i32_1 = arith.constant 0 : i32
    return %c0_i32, %c0_i32_0 : i32, i32
  }
  func.func @transform_7(%arg0: i32, %arg1: i32) -> (i32, i32) {
    %c0_i32 = arith.constant 0 : i32
    %c0_i32_0 = arith.constant 0 : i32
    %c0_i32_1 = arith.constant 0 : i32
    return %c0_i32, %c0_i32_0 : i32, i32
  }
  func.func @transform_8(%arg0: i32, %arg1: i32) -> (i32, i32) {
    %c0_i32 = arith.constant 0 : i32
    %c0_i32_0 = arith.constant 0 : i32
    %c0_i32_1 = arith.constant 0 : i32
    return %c0_i32, %c0_i32_0 : i32, i32
  }
  func.func @transform_9(%arg0: i32, %arg1: i32) -> (i32, i32) {
    %c0_i32 = arith.constant 0 : i32
    %c0_i32_0 = arith.constant 0 : i32
    %c0_i32_1 = arith.constant 0 : i32
    return %c0_i32, %c0_i32_0 : i32, i32
  }
  func.func @transform_10(%arg0: i32, %arg1: i32) -> (i32, i32) {
    %c0_i32 = arith.constant 0 : i32
    %c0_i32_0 = arith.constant 0 : i32
    %c0_i32_1 = arith.constant 0 : i32
    return %c0_i32, %c0_i32_0 : i32, i32
  }
  func.func @transform_11(%arg0: i32, %arg1: i32) -> (i32, i32) {
    %c0_i32 = arith.constant 0 : i32
    %c0_i32_0 = arith.constant 0 : i32
    %c0_i32_1 = arith.constant 0 : i32
    return %c0_i32, %c0_i32_0 : i32, i32
  }
  func.func @transform_12(%arg0: i32, %arg1: i32) -> (i32, i32) {
    %c0_i32 = arith.constant 0 : i32
    %c0_i32_0 = arith.constant 0 : i32
    %c0_i32_1 = arith.constant 0 : i32
    return %c0_i32, %c0_i32_0 : i32, i32
  }
  func.func @transform_13(%arg0: i32, %arg1: i32) -> (i32, i32) {
    %c0_i32 = arith.constant 0 : i32
    %c0_i32_0 = arith.constant 0 : i32
    %c0_i32_1 = arith.constant 0 : i32
    return %c0_i32, %c0_i32_0 : i32, i32
  }
  func.func @transform_14(%arg0: i32, %arg1: i32) -> (i32, i32) {
    %c0_i32 = arith.constant 0 : i32
    %c0_i32_0 = arith.constant 0 : i32
    %c0_i32_1 = arith.constant 0 : i32
    return %c0_i32, %c0_i32_0 : i32, i32
  }
  func.func @transform_15(%arg0: i32, %arg1: i32) -> (i32, i32) {
    %c0_i32 = arith.constant 0 : i32
    %c0_i32_0 = arith.constant 0 : i32
    %c0_i32_1 = arith.constant 0 : i32
    return %c0_i32, %c0_i32_0 : i32, i32
  }
  func.func @transform_16(%arg0: i32, %arg1: i32) -> (i32, i32) {
    %c0_i32 = arith.constant 0 : i32
    %c0_i32_0 = arith.constant 0 : i32
    %c0_i32_1 = arith.constant 0 : i32
    return %c0_i32, %c0_i32_0 : i32, i32
  }
  func.func @transform_17(%arg0: i32, %arg1: i32) -> (i32, i32) {
    %c0_i32 = arith.constant 0 : i32
    %c0_i32_0 = arith.constant 0 : i32
    %c0_i32_1 = arith.constant 0 : i32
    return %c0_i32, %c0_i32_0 : i32, i32
  }
  func.func @transform_18(%arg0: i32, %arg1: i32) -> (i32, i32) {
    %c0_i32 = arith.constant 0 : i32
    %c0_i32_0 = arith.constant 0 : i32
    %c0_i32_1 = arith.constant 0 : i32
    return %c0_i32, %c0_i32_0 : i32, i32
  }
  func.func @transform_19(%arg0: i32, %arg1: i32) -> (i32, i32) {
    %c0_i32 = arith.constant 0 : i32
    %c0_i32_0 = arith.constant 0 : i32
    %c0_i32_1 = arith.constant 0 : i32
    return %c0_i32, %c0_i32_0 : i32, i32
  }
  func.func @transform_20(%arg0: i32, %arg1: i32) -> (i32, i32, i32) {
    %c0_i32 = arith.constant 0 : i32
    %c0_i32_0 = arith.constant 0 : i32
    %c0_i32_1 = arith.constant 0 : i32
    return %arg0, %c0_i32, %c0_i32_0 : i32, i32, i32
  }
}

module attributes {stable_mosaic.version = 11 : i64} {
  func.func @kernel(%arg0: i32, %arg1: i32, %arg2: memref<1x208x3xf32, #tpu.memory_space<vmem>>, %arg3: memref<1x208x16xbf16, #tpu.memory_space<vmem>>, %arg4: memref<1x1x16xf32, #tpu.memory_space<vmem>>, %arg5: memref<1x1x8xf32, #tpu.memory_space<vmem>>, %arg6: memref<3x32xbf16, #tpu.memory_space<vmem>>, %arg7: memref<16x32xbf16, #tpu.memory_space<vmem>>, %arg8: memref<16x32xbf16, #tpu.memory_space<vmem>>, %arg9: memref<8x32xbf16, #tpu.memory_space<vmem>>, %arg10: memref<1x32xf32, #tpu.memory_space<vmem>>, %arg11: memref<32x32xbf16, #tpu.memory_space<vmem>>, %arg12: memref<1x32xf32, #tpu.memory_space<vmem>>, %arg13: memref<32x1xbf16, #tpu.memory_space<vmem>>, %arg14: memref<1x1xf32, #tpu.memory_space<vmem>>, %arg15: memref<3x32xbf16, #tpu.memory_space<vmem>>, %arg16: memref<16x32xbf16, #tpu.memory_space<vmem>>, %arg17: memref<16x32xbf16, #tpu.memory_space<vmem>>, %arg18: memref<8x32xbf16, #tpu.memory_space<vmem>>, %arg19: memref<1x32xbf16, #tpu.memory_space<vmem>>, %arg20: memref<1x32xf32, #tpu.memory_space<vmem>>, %arg21: memref<32x32xbf16, #tpu.memory_space<vmem>>, %arg22: memref<1x32xf32, #tpu.memory_space<vmem>>, %arg23: memref<32x3xbf16, #tpu.memory_space<vmem>>, %arg24: memref<1x3xf32, #tpu.memory_space<vmem>>, %arg25: memref<1x208x4xf32, #tpu.memory_space<vmem>>) attributes {dimension_semantics = [#tpu.dimension_semantics<parallel>, #tpu.dimension_semantics<parallel>], iteration_bounds = array<i64: 2, 1>, scalar_prefetch = 0 : i64, scratch_operands = 0 : i64, tpu.core_type = #tpu.core_type<tc>, window_params = [{transform_indices = @transform_0, window_bounds = array<i64: 1, 208, 3>}, {transform_indices = @transform_1, window_bounds = array<i64: 1, 208, 16>}, {transform_indices = @transform_2, window_bounds = array<i64: 1, 1, 16>}, {transform_indices = @transform_3, window_bounds = array<i64: 1, 1, 8>}, {pipeline_mode = #tpu.pipeline_mode<synchronous>, transform_indices = @transform_4, window_bounds = array<i64: 3, 32>}, {pipeline_mode = #tpu.pipeline_mode<synchronous>, transform_indices = @transform_5, window_bounds = array<i64: 16, 32>}, {pipeline_mode = #tpu.pipeline_mode<synchronous>, transform_indices = @transform_6, window_bounds = array<i64: 16, 32>}, {pipeline_mode = #tpu.pipeline_mode<synchronous>, transform_indices = @transform_7, window_bounds = array<i64: 8, 32>}, {pipeline_mode = #tpu.pipeline_mode<synchronous>, transform_indices = @transform_8, window_bounds = array<i64: 1, 32>}, {pipeline_mode = #tpu.pipeline_mode<synchronous>, transform_indices = @transform_9, window_bounds = array<i64: 32, 32>}, {pipeline_mode = #tpu.pipeline_mode<synchronous>, transform_indices = @transform_10, window_bounds = array<i64: 1, 32>}, {pipeline_mode = #tpu.pipeline_mode<synchronous>, transform_indices = @transform_11, window_bounds = array<i64: 32, 1>}, {pipeline_mode = #tpu.pipeline_mode<synchronous>, transform_indices = @transform_12, window_bounds = array<i64: 1, 1>}, {pipeline_mode = #tpu.pipeline_mode<synchronous>, transform_indices = @transform_13, window_bounds = array<i64: 3, 32>}, {pipeline_mode = #tpu.pipeline_mode<synchronous>, transform_indices = @transform_14, window_bounds = array<i64: 16, 32>}, {pipeline_mode = #tpu.pipeline_mode<synchronous>, transform_indices = @transform_15, window_bounds = array<i64: 16, 32>}, {pipeline_mode = #tpu.pipeline_mode<synchronous>, transform_indices = @transform_16, window_bounds = array<i64: 8, 32>}, {pipeline_mode = #tpu.pipeline_mode<synchronous>, transform_indices = @transform_17, window_bounds = array<i64: 1, 32>}, {pipeline_mode = #tpu.pipeline_mode<synchronous>, transform_indices = @transform_18, window_bounds = array<i64: 1, 32>}, {pipeline_mode = #tpu.pipeline_mode<synchronous>, transform_indices = @transform_19, window_bounds = array<i64: 32, 32>}, {pipeline_mode = #tpu.pipeline_mode<synchronous>, transform_indices = @transform_20, window_bounds = array<i64: 1, 32>}, {pipeline_mode = #tpu.pipeline_mode<synchronous>, transform_indices = @transform_21, window_bounds = array<i64: 32, 3>}, {pipeline_mode = #tpu.pipeline_mode<synchronous>, transform_indices = @transform_22, window_bounds = array<i64: 1, 3>}, {transform_indices = @transform_23, window_bounds = array<i64: 1, 208, 4>}]} {
    %c0 = arith.constant 0 : index
    %c0_0 = arith.constant 0 : index
    %c0_1 = arith.constant 0 : index
    %0 = vector.load %arg2[%c0, %c0_0, %c0_1] : memref<1x208x3xf32, #tpu.memory_space<vmem>>, vector<1x208x3xf32>
    %1 = vector.shape_cast %0 : vector<1x208x3xf32> to vector<208x3xf32>
    %c0_2 = arith.constant 0 : index
    %c0_3 = arith.constant 0 : index
    %c0_4 = arith.constant 0 : index
    %2 = vector.load %arg3[%c0_2, %c0_3, %c0_4] : memref<1x208x16xbf16, #tpu.memory_space<vmem>>, vector<1x208x16xbf16>
    %3 = vector.shape_cast %2 : vector<1x208x16xbf16> to vector<208x16xbf16>
    %c0_5 = arith.constant 0 : index
    %c0_6 = arith.constant 0 : index
    %c0_7 = arith.constant 0 : index
    %4 = vector.load %arg4[%c0_5, %c0_6, %c0_7] : memref<1x1x16xf32, #tpu.memory_space<vmem>>, vector<1x1x16xf32>
    %5 = vector.shape_cast %4 : vector<1x1x16xf32> to vector<1x16xf32>
    %c0_8 = arith.constant 0 : index
    %c0_9 = arith.constant 0 : index
    %c0_10 = arith.constant 0 : index
    %6 = vector.load %arg5[%c0_8, %c0_9, %c0_10] : memref<1x1x8xf32, #tpu.memory_space<vmem>>, vector<1x1x8xf32>
    %7 = vector.shape_cast %6 : vector<1x1x8xf32> to vector<1x8xf32>
    %c0_11 = arith.constant 0 : index
    %c0_12 = arith.constant 0 : index
    %8 = vector.load %arg6[%c0_11, %c0_12] : memref<3x32xbf16, #tpu.memory_space<vmem>>, vector<3x32xbf16>
    %c0_13 = arith.constant 0 : index
    %c0_14 = arith.constant 0 : index
    %9 = vector.load %arg7[%c0_13, %c0_14] : memref<16x32xbf16, #tpu.memory_space<vmem>>, vector<16x32xbf16>
    %c0_15 = arith.constant 0 : index
    %c0_16 = arith.constant 0 : index
    %10 = vector.load %arg8[%c0_15, %c0_16] : memref<16x32xbf16, #tpu.memory_space<vmem>>, vector<16x32xbf16>
    %c0_17 = arith.constant 0 : index
    %c0_18 = arith.constant 0 : index
    %11 = vector.load %arg9[%c0_17, %c0_18] : memref<8x32xbf16, #tpu.memory_space<vmem>>, vector<8x32xbf16>
    %c0_19 = arith.constant 0 : index
    %c0_20 = arith.constant 0 : index
    %12 = vector.load %arg10[%c0_19, %c0_20] : memref<1x32xf32, #tpu.memory_space<vmem>>, vector<1x32xf32>
    %c0_21 = arith.constant 0 : index
    %c0_22 = arith.constant 0 : index
    %13 = vector.load %arg11[%c0_21, %c0_22] : memref<32x32xbf16, #tpu.memory_space<vmem>>, vector<32x32xbf16>
    %c0_23 = arith.constant 0 : index
    %c0_24 = arith.constant 0 : index
    %14 = vector.load %arg12[%c0_23, %c0_24] : memref<1x32xf32, #tpu.memory_space<vmem>>, vector<1x32xf32>
    %c0_25 = arith.constant 0 : index
    %c0_26 = arith.constant 0 : index
    %15 = vector.load %arg13[%c0_25, %c0_26] : memref<32x1xbf16, #tpu.memory_space<vmem>>, vector<32x1xbf16>
    %c0_27 = arith.constant 0 : index
    %c0_28 = arith.constant 0 : index
    %16 = vector.load %arg14[%c0_27, %c0_28] : memref<1x1xf32, #tpu.memory_space<vmem>>, vector<1x1xf32>
    %17 = arith.truncf %1 : vector<208x3xf32> to vector<208x3xbf16>
    %cst = arith.constant dense<0.000000e+00> : vector<208x32xf32>
    %18 = tpu.matmul %17, %8, %cst {dimension_numbers = #tpu.dot_dimension_numbers<[1], [0], [0], [1], [0, 0, 1, 1], [], []>} : vector<208x3xbf16>, vector<3x32xbf16>, vector<208x32xf32> -> vector<208x32xf32>
    %19 = vector.broadcast %12 : vector<1x32xf32> to vector<208x32xf32>
    %20 = arith.addf %19, %18 : vector<208x32xf32>
    %cst_29 = arith.constant dense<0.000000e+00> : vector<208x32xf32>
    %21 = tpu.matmul %3, %9, %cst_29 {dimension_numbers = #tpu.dot_dimension_numbers<[1], [0], [0], [1], [0, 0, 1, 1], [], []>} : vector<208x16xbf16>, vector<16x32xbf16>, vector<208x32xf32> -> vector<208x32xf32>
    %22 = arith.addf %20, %21 : vector<208x32xf32>
    %23 = arith.truncf %5 : vector<1x16xf32> to vector<1x16xbf16>
    %cst_30 = arith.constant dense<0.000000e+00> : vector<1x32xf32>
    %24 = tpu.matmul %23, %10, %cst_30 {dimension_numbers = #tpu.dot_dimension_numbers<[1], [0], [0], [1], [0, 0, 1, 1], [], []>} : vector<1x16xbf16>, vector<16x32xbf16>, vector<1x32xf32> -> vector<1x32xf32>
    %25 = vector.broadcast %24 : vector<1x32xf32> to vector<208x32xf32>
    %26 = arith.addf %22, %25 : vector<208x32xf32>
    %27 = arith.truncf %7 : vector<1x8xf32> to vector<1x8xbf16>
    %cst_31 = arith.constant dense<0.000000e+00> : vector<1x32xf32>
    %28 = tpu.matmul %27, %11, %cst_31 {dimension_numbers = #tpu.dot_dimension_numbers<[1], [0], [0], [1], [0, 0, 1, 1], [], []>} : vector<1x8xbf16>, vector<8x32xbf16>, vector<1x32xf32> -> vector<1x32xf32>
    %29 = vector.broadcast %28 : vector<1x32xf32> to vector<208x32xf32>
    %30 = arith.addf %26, %29 : vector<208x32xf32>
    %cst_32 = arith.constant 0.000000e+00 : f32
    %31 = vector.broadcast %cst_32 : f32 to vector<208x32xf32>
    %32 = arith.maximumf %30, %31 : vector<208x32xf32>
    %33 = arith.truncf %32 : vector<208x32xf32> to vector<208x32xbf16>
    %cst_33 = arith.constant dense<0.000000e+00> : vector<208x32xf32>
    %34 = tpu.matmul %33, %13, %cst_33 {dimension_numbers = #tpu.dot_dimension_numbers<[1], [0], [0], [1], [0, 0, 1, 1], [], []>} : vector<208x32xbf16>, vector<32x32xbf16>, vector<208x32xf32> -> vector<208x32xf32>
    %35 = vector.broadcast %14 : vector<1x32xf32> to vector<208x32xf32>
    %36 = arith.addf %34, %35 : vector<208x32xf32>
    %cst_34 = arith.constant 0.000000e+00 : f32
    %37 = vector.broadcast %cst_34 : f32 to vector<208x32xf32>
    %38 = arith.maximumf %36, %37 : vector<208x32xf32>
    %39 = arith.truncf %38 : vector<208x32xf32> to vector<208x32xbf16>
    %cst_35 = arith.constant dense<0.000000e+00> : vector<208x1xf32>
    %40 = tpu.matmul %39, %15, %cst_35 {dimension_numbers = #tpu.dot_dimension_numbers<[1], [0], [0], [1], [0, 0, 1, 1], [], []>} : vector<208x32xbf16>, vector<32x1xbf16>, vector<208x1xf32> -> vector<208x1xf32>
    %41 = vector.broadcast %16 : vector<1x1xf32> to vector<208x1xf32>
    %42 = arith.addf %40, %41 : vector<208x1xf32>
    %c0_36 = arith.constant 0 : index
    %c0_37 = arith.constant 0 : index
    %43 = vector.load %arg15[%c0_36, %c0_37] : memref<3x32xbf16, #tpu.memory_space<vmem>>, vector<3x32xbf16>
    %c0_38 = arith.constant 0 : index
    %c0_39 = arith.constant 0 : index
    %44 = vector.load %arg16[%c0_38, %c0_39] : memref<16x32xbf16, #tpu.memory_space<vmem>>, vector<16x32xbf16>
    %c0_40 = arith.constant 0 : index
    %c0_41 = arith.constant 0 : index
    %45 = vector.load %arg17[%c0_40, %c0_41] : memref<16x32xbf16, #tpu.memory_space<vmem>>, vector<16x32xbf16>
    %c0_42 = arith.constant 0 : index
    %c0_43 = arith.constant 0 : index
    %46 = vector.load %arg18[%c0_42, %c0_43] : memref<8x32xbf16, #tpu.memory_space<vmem>>, vector<8x32xbf16>
    %c0_44 = arith.constant 0 : index
    %c0_45 = arith.constant 0 : index
    %47 = vector.load %arg19[%c0_44, %c0_45] : memref<1x32xbf16, #tpu.memory_space<vmem>>, vector<1x32xbf16>
    %c0_46 = arith.constant 0 : index
    %c0_47 = arith.constant 0 : index
    %48 = vector.load %arg20[%c0_46, %c0_47] : memref<1x32xf32, #tpu.memory_space<vmem>>, vector<1x32xf32>
    %c0_48 = arith.constant 0 : index
    %c0_49 = arith.constant 0 : index
    %49 = vector.load %arg21[%c0_48, %c0_49] : memref<32x32xbf16, #tpu.memory_space<vmem>>, vector<32x32xbf16>
    %c0_50 = arith.constant 0 : index
    %c0_51 = arith.constant 0 : index
    %50 = vector.load %arg22[%c0_50, %c0_51] : memref<1x32xf32, #tpu.memory_space<vmem>>, vector<1x32xf32>
    %c0_52 = arith.constant 0 : index
    %c0_53 = arith.constant 0 : index
    %51 = vector.load %arg23[%c0_52, %c0_53] : memref<32x3xbf16, #tpu.memory_space<vmem>>, vector<32x3xbf16>
    %c0_54 = arith.constant 0 : index
    %c0_55 = arith.constant 0 : index
    %52 = vector.load %arg24[%c0_54, %c0_55] : memref<1x3xf32, #tpu.memory_space<vmem>>, vector<1x3xf32>
    %53 = arith.truncf %1 : vector<208x3xf32> to vector<208x3xbf16>
    %cst_56 = arith.constant dense<0.000000e+00> : vector<208x32xf32>
    %54 = tpu.matmul %53, %43, %cst_56 {dimension_numbers = #tpu.dot_dimension_numbers<[1], [0], [0], [1], [0, 0, 1, 1], [], []>} : vector<208x3xbf16>, vector<3x32xbf16>, vector<208x32xf32> -> vector<208x32xf32>
    %55 = vector.broadcast %48 : vector<1x32xf32> to vector<208x32xf32>
    %56 = arith.addf %55, %54 : vector<208x32xf32>
    %cst_57 = arith.constant dense<0.000000e+00> : vector<208x32xf32>
    %57 = tpu.matmul %3, %44, %cst_57 {dimension_numbers = #tpu.dot_dimension_numbers<[1], [0], [0], [1], [0, 0, 1, 1], [], []>} : vector<208x16xbf16>, vector<16x32xbf16>, vector<208x32xf32> -> vector<208x32xf32>
    %58 = arith.addf %56, %57 : vector<208x32xf32>
    %59 = arith.truncf %5 : vector<1x16xf32> to vector<1x16xbf16>
    %cst_58 = arith.constant dense<0.000000e+00> : vector<1x32xf32>
    %60 = tpu.matmul %59, %45, %cst_58 {dimension_numbers = #tpu.dot_dimension_numbers<[1], [0], [0], [1], [0, 0, 1, 1], [], []>} : vector<1x16xbf16>, vector<16x32xbf16>, vector<1x32xf32> -> vector<1x32xf32>
    %61 = vector.broadcast %60 : vector<1x32xf32> to vector<208x32xf32>
    %62 = arith.addf %58, %61 : vector<208x32xf32>
    %63 = arith.truncf %7 : vector<1x8xf32> to vector<1x8xbf16>
    %cst_59 = arith.constant dense<0.000000e+00> : vector<1x32xf32>
    %64 = tpu.matmul %63, %46, %cst_59 {dimension_numbers = #tpu.dot_dimension_numbers<[1], [0], [0], [1], [0, 0, 1, 1], [], []>} : vector<1x8xbf16>, vector<8x32xbf16>, vector<1x32xf32> -> vector<1x32xf32>
    %65 = vector.broadcast %64 : vector<1x32xf32> to vector<208x32xf32>
    %66 = arith.addf %62, %65 : vector<208x32xf32>
    %67 = arith.truncf %42 : vector<208x1xf32> to vector<208x1xbf16>
    %cst_60 = arith.constant dense<0.000000e+00> : vector<208x32xf32>
    %68 = tpu.matmul %67, %47, %cst_60 {dimension_numbers = #tpu.dot_dimension_numbers<[1], [0], [0], [1], [0, 0, 1, 1], [], []>} : vector<208x1xbf16>, vector<1x32xbf16>, vector<208x32xf32> -> vector<208x32xf32>
    %69 = arith.addf %66, %68 : vector<208x32xf32>
    %cst_61 = arith.constant 0.000000e+00 : f32
    %70 = vector.broadcast %cst_61 : f32 to vector<208x32xf32>
    %71 = arith.maximumf %69, %70 : vector<208x32xf32>
    %72 = arith.truncf %71 : vector<208x32xf32> to vector<208x32xbf16>
    %cst_62 = arith.constant dense<0.000000e+00> : vector<208x32xf32>
    %73 = tpu.matmul %72, %49, %cst_62 {dimension_numbers = #tpu.dot_dimension_numbers<[1], [0], [0], [1], [0, 0, 1, 1], [], []>} : vector<208x32xbf16>, vector<32x32xbf16>, vector<208x32xf32> -> vector<208x32xf32>
    %74 = vector.broadcast %50 : vector<1x32xf32> to vector<208x32xf32>
    %75 = arith.addf %73, %74 : vector<208x32xf32>
    %cst_63 = arith.constant 0.000000e+00 : f32
    %76 = vector.broadcast %cst_63 : f32 to vector<208x32xf32>
    %77 = arith.maximumf %75, %76 : vector<208x32xf32>
    %78 = arith.truncf %77 : vector<208x32xf32> to vector<208x32xbf16>
    %cst_64 = arith.constant dense<0.000000e+00> : vector<208x3xf32>
    %79 = tpu.matmul %78, %51, %cst_64 {dimension_numbers = #tpu.dot_dimension_numbers<[1], [0], [0], [1], [0, 0, 1, 1], [], []>} : vector<208x32xbf16>, vector<32x3xbf16>, vector<208x3xf32> -> vector<208x3xf32>
    %80 = vector.broadcast %52 : vector<1x3xf32> to vector<208x3xf32>
    %81 = arith.addf %79, %80 : vector<208x3xf32>
    %82 = tpu.concatenate %42, %81 in 1 : vector<208x1xf32>, vector<208x3xf32> -> vector<208x4xf32>
    %c0_65 = arith.constant 0 : index
    %c0_66 = arith.constant 0 : index
    %c0_67 = arith.constant 0 : index
    %83 = vector.load %arg25[%c0_65, %c0_66, %c0_67] : memref<1x208x4xf32, #tpu.memory_space<vmem>>, vector<1x208x4xf32>
    %84 = vector.shape_cast %83 : vector<1x208x4xf32> to vector<208x4xf32>
    %85 = vector.shape_cast %82 : vector<208x4xf32> to vector<1x208x4xf32>
    tpu.vector_store %arg25[%c0_65, %c0_66, %c0_67], %85 {strides = array<i32>} : memref<1x208x4xf32, #tpu.memory_space<vmem>>, vector<1x208x4xf32>,
    return
  }
  func.func @transform_0(%arg0: i32, %arg1: i32) -> (i32, i32, i32) {
    %c0_i32 = arith.constant 0 : i32
    %c0_i32_0 = arith.constant 0 : i32
    return %arg0, %arg1, %c0_i32 : i32, i32, i32
  }
  func.func @transform_1(%arg0: i32, %arg1: i32) -> (i32, i32, i32) {
    %c0_i32 = arith.constant 0 : i32
    %c0_i32_0 = arith.constant 0 : i32
    return %arg0, %arg1, %c0_i32 : i32, i32, i32
  }
  func.func @transform_2(%arg0: i32, %arg1: i32) -> (i32, i32, i32) {
    %c0_i32 = arith.constant 0 : i32
    %c0_i32_0 = arith.constant 0 : i32
    %c0_i32_1 = arith.constant 0 : i32
    return %arg0, %c0_i32, %c0_i32_0 : i32, i32, i32
  }
  func.func @transform_3(%arg0: i32, %arg1: i32) -> (i32, i32, i32) {
    %c0_i32 = arith.constant 0 : i32
    %c0_i32_0 = arith.constant 0 : i32
    %c0_i32_1 = arith.constant 0 : i32
    return %arg0, %c0_i32, %c0_i32_0 : i32, i32, i32
  }
  func.func @transform_4(%arg0: i32, %arg1: i32) -> (i32, i32) {
    %c0_i32 = arith.constant 0 : i32
    %c0_i32_0 = arith.constant 0 : i32
    %c0_i32_1 = arith.constant 0 : i32
    return %c0_i32, %c0_i32_0 : i32, i32
  }
  func.func @transform_5(%arg0: i32, %arg1: i32) -> (i32, i32) {
    %c0_i32 = arith.constant 0 : i32
    %c0_i32_0 = arith.constant 0 : i32
    %c0_i32_1 = arith.constant 0 : i32
    return %c0_i32, %c0_i32_0 : i32, i32
  }
  func.func @transform_6(%arg0: i32, %arg1: i32) -> (i32, i32) {
    %c0_i32 = arith.constant 0 : i32
    %c0_i32_0 = arith.constant 0 : i32
    %c0_i32_1 = arith.constant 0 : i32
    return %c0_i32, %c0_i32_0 : i32, i32
  }
  func.func @transform_7(%arg0: i32, %arg1: i32) -> (i32, i32) {
    %c0_i32 = arith.constant 0 : i32
    %c0_i32_0 = arith.constant 0 : i32
    %c0_i32_1 = arith.constant 0 : i32
    return %c0_i32, %c0_i32_0 : i32, i32
  }
  func.func @transform_8(%arg0: i32, %arg1: i32) -> (i32, i32) {
    %c0_i32 = arith.constant 0 : i32
    %c0_i32_0 = arith.constant 0 : i32
    %c0_i32_1 = arith.constant 0 : i32
    return %c0_i32, %c0_i32_0 : i32, i32
  }
  func.func @transform_9(%arg0: i32, %arg1: i32) -> (i32, i32) {
    %c0_i32 = arith.constant 0 : i32
    %c0_i32_0 = arith.constant 0 : i32
    %c0_i32_1 = arith.constant 0 : i32
    return %c0_i32, %c0_i32_0 : i32, i32
  }
  func.func @transform_10(%arg0: i32, %arg1: i32) -> (i32, i32) {
    %c0_i32 = arith.constant 0 : i32
    %c0_i32_0 = arith.constant 0 : i32
    %c0_i32_1 = arith.constant 0 : i32
    return %c0_i32, %c0_i32_0 : i32, i32
  }
  func.func @transform_11(%arg0: i32, %arg1: i32) -> (i32, i32) {
    %c0_i32 = arith.constant 0 : i32
    %c0_i32_0 = arith.constant 0 : i32
    %c0_i32_1 = arith.constant 0 : i32
    return %c0_i32, %c0_i32_0 : i32, i32
  }
  func.func @transform_12(%arg0: i32, %arg1: i32) -> (i32, i32) {
    %c0_i32 = arith.constant 0 : i32
    %c0_i32_0 = arith.constant 0 : i32
    %c0_i32_1 = arith.constant 0 : i32
    return %c0_i32, %c0_i32_0 : i32, i32
  }
  func.func @transform_13(%arg0: i32, %arg1: i32) -> (i32, i32) {
    %c0_i32 = arith.constant 0 : i32
    %c0_i32_0 = arith.constant 0 : i32
    %c0_i32_1 = arith.constant 0 : i32
    return %c0_i32, %c0_i32_0 : i32, i32
  }
  func.func @transform_14(%arg0: i32, %arg1: i32) -> (i32, i32) {
    %c0_i32 = arith.constant 0 : i32
    %c0_i32_0 = arith.constant 0 : i32
    %c0_i32_1 = arith.constant 0 : i32
    return %c0_i32, %c0_i32_0 : i32, i32
  }
  func.func @transform_15(%arg0: i32, %arg1: i32) -> (i32, i32) {
    %c0_i32 = arith.constant 0 : i32
    %c0_i32_0 = arith.constant 0 : i32
    %c0_i32_1 = arith.constant 0 : i32
    return %c0_i32, %c0_i32_0 : i32, i32
  }
  func.func @transform_16(%arg0: i32, %arg1: i32) -> (i32, i32) {
    %c0_i32 = arith.constant 0 : i32
    %c0_i32_0 = arith.constant 0 : i32
    %c0_i32_1 = arith.constant 0 : i32
    return %c0_i32, %c0_i32_0 : i32, i32
  }
  func.func @transform_17(%arg0: i32, %arg1: i32) -> (i32, i32) {
    %c0_i32 = arith.constant 0 : i32
    %c0_i32_0 = arith.constant 0 : i32
    %c0_i32_1 = arith.constant 0 : i32
    return %c0_i32, %c0_i32_0 : i32, i32
  }
  func.func @transform_18(%arg0: i32, %arg1: i32) -> (i32, i32) {
    %c0_i32 = arith.constant 0 : i32
    %c0_i32_0 = arith.constant 0 : i32
    %c0_i32_1 = arith.constant 0 : i32
    return %c0_i32, %c0_i32_0 : i32, i32
  }
  func.func @transform_19(%arg0: i32, %arg1: i32) -> (i32, i32) {
    %c0_i32 = arith.constant 0 : i32
    %c0_i32_0 = arith.constant 0 : i32
    %c0_i32_1 = arith.constant 0 : i32
    return %c0_i32, %c0_i32_0 : i32, i32
  }
  func.func @transform_20(%arg0: i32, %arg1: i32) -> (i32, i32) {
    %c0_i32 = arith.constant 0 : i32
    %c0_i32_0 = arith.constant 0 : i32
    %c0_i32_1 = arith.constant 0 : i32
    return %c0_i32, %c0_i32_0 : i32, i32
  }
  func.func @transform_21(%arg0: i32, %arg1: i32) -> (i32, i32) {
    %c0_i32 = arith.constant 0 : i32
    %c0_i32_0 = arith.constant 0 : i32
    %c0_i32_1 = arith.constant 0 : i32
    return %c0_i32, %c0_i32_0 : i32, i32
  }
  func.func @transform_22(%arg0: i32, %arg1: i32) -> (i32, i32) {
    %c0_i32 = arith.constant 0 : i32
    %c0_i32_0 = arith.constant 0 : i32
    %c0_i32_1 = arith.constant 0 : i32
    return %c0_i32, %c0_i32_0 : i32, i32
  }
  func.func @transform_23(%arg0: i32, %arg1: i32) -> (i32, i32, i32) {
    %c0_i32 = arith.constant 0 : i32
    %c0_i32_0 = arith.constant 0 : i32
    return %arg0, %arg1, %c0_i32 : i32, i32, i32
  }
}

</mosaic_0001>

<llo_original>
// kernel: _lambda_.6
$region0: #{_lambda_.6}
  #allocation0 [shape = 'u32[]', space=smem, size = 0x4, offset = 0x4, fixed_abs, tag = 'smem constant byte address 0x4 - core index']
  #allocation1 [shape = 'u32[144,128]{1,0:T(1,128)}', space=vmem, size = 0x12000, scoped, tag = 'internal scratch']
  %s0 = inlined_call_operand.vmem [shape: f32[2,8,3], index: 0, kind: input, shape index: {}]
  %s1 = inlined_call_operand.vmem [shape: bf16[3,32], index: 1, kind: input, shape index: {}]
  %s2 = inlined_call_operand.vmem [shape: f32[1,32], index: 2, kind: input, shape index: {}]
  %s3 = inlined_call_operand.vmem [shape: bf16[32,32], index: 3, kind: input, shape index: {}]
  %s4 = inlined_call_operand.vmem [shape: f32[1,32], index: 4, kind: input, shape index: {}]
  %s5 = inlined_call_operand.vmem [shape: bf16[32,16], index: 5, kind: input, shape index: {}]
  %s6 = inlined_call_operand.vmem [shape: f32[1,16], index: 6, kind: input, shape index: {}]
  %s7 = inlined_call_operand.vmem [shape: f32[2,1,16], index: 7, kind: output, shape index: {}]
  %s8 = sld [smem:[#allocation0]]
  $region69: #{_lambda_.6} parent=0
    _
  %s10 = ssub.s32 1, %s8
  %s11 = scalar_select 0, %s10, %s8
  loop: start=0, step=1, limit=4
  $region2: #{_lambda_.6} parent=0 // loop_pre_header
    _
  $region3: #{_lambda_.6} parent=0 // loop_header
    %s13 = sphi 0, %s17
    %p14 = scmp.ge.s32.totalorder %s13, 4
    %s20 = sphi 0, %s32
    %s21 = sphi 0, %s28
    %s22 = sphi 0, %s20
    %s23 = sphi 0, %s21
    %s24 = sphi 0, %s22
    %s25 = sphi 0, %s23
    %s37 = sphi 0, %s39
    %s40 = sphi 0, %s37
    %s41 = sphi 0, %s40
    %s57 = sphi 0, %s41
    %s61 = sphi 0, %s61
    %s63 = sphi 0, %s61
    %s64 = sphi 0, %s63
    %s78 = sphi 0, %s64
    %s82 = sphi 0, %s82
    %s84 = sphi 0, %s82
    %s85 = sphi 0, %s84
    %s99 = sphi 0, %s85
    %s103 = sphi 0, %s103
    %s105 = sphi 0, %s103
    %s106 = sphi 0, %s105
    %s120 = sphi 0, %s106
    %s124 = sphi 0, %s124
    %s126 = sphi 0, %s124
    %s127 = sphi 0, %s126
    %s141 = sphi 0, %s127
    %s145 = sphi 0, %s145
    %s147 = sphi 0, %s145
    %s148 = sphi 0, %s147
    %s162 = sphi 0, %s148
    %s166 = sphi 0, %s166
    %s168 = sphi 0, %s166
    %s169 = sphi 0, %s168
    %s183 = sphi 0, %s169
    %s189 = sphi 0, %s191
    %s192 = sphi 0, %s189
    %s193 = sphi 0, %s192
    %s209 = sphi 0, %s193
  $region4: #{_lambda_.6} parent=0 // loop_header_branch
    %16 = sbr.rel (%p14) target = $region8
  $region5: #{_lambda_.6} parent=0 // loop_body
    %s18 = ssub.s32 %s13, 1
    %s19 = ssub.s32 %s13, 2
    %s26 = sadd.s32 1, %s21
    %p27 = scmp.ge.s32.totalorder %s26, 1
    %s28 = scalar_select %p27, 0, %s26
    %s29 = sadd.s32 1, %s20
    %s30 = scalar_select %p27, %s29, %s20
    %p31 = scmp.ge.s32.totalorder %s30, 2
    %s32 = scalar_select %p31, 0, %s30
    %s33 = ssub.s32 %s20, %s32
    %s34 = ssub.s32 %s21, %s28
    %s35 = sor.u32 %s33, %s34
    %p36 = scmp.eq.s32.totalorder %s35, 0
    %s38 = sadd.s32 %s37, 1
    %s39 = scalar_select %p36, %s37, %s38
    %p42 = pneg %p36
    %p43 = scmp.eq.s32.totalorder %s13, 1
    %p44 = por %p42, %p43
    %p45 = scmp.ne.s32.totalorder %s37, %s40
    %p46 = scmp.eq.s32.totalorder %s13, 0
    %p47 = por %p45, %p46
    %p48 = scmp.ne.s32.totalorder %s37, %s40
    %p49 = scmp.eq.s32.totalorder %s18, 1
    %p50 = por %p48, %p49
    %p51 = scmp.ne.s32.totalorder %s40, %s41
    %p52 = scmp.eq.s32.totalorder %s18, 0
    %p53 = por %p51, %p52
    %p54 = scmp.ne.s32.totalorder %s40, %s41
    %p55 = scmp.eq.s32.totalorder %s19, 1
    %p56 = por %p54, %p55
    %p58 = scmp.ne.s32.totalorder %s41, %s57
    %p59 = scmp.eq.s32.totalorder %s19, 0
    %p60 = por %p58, %p59
    %s62 = sadd.s32 %s61, 1
    %p65 = scmp.eq.s32.totalorder %s13, 1
    %p66 = scmp.ne.s32.totalorder %s61, %s63
    %p67 = scmp.eq.s32.totalorder %s13, 0
    %p68 = por %p66, %p67
    %p69 = scmp.ne.s32.totalorder %s61, %s63
    %p70 = scmp.eq.s32.totalorder %s18, 1
    %p71 = por %p69, %p70
    %p72 = scmp.ne.s32.totalorder %s63, %s64
    %p73 = scmp.eq.s32.totalorder %s18, 0
    %p74 = por %p72, %p73
    %p75 = scmp.ne.s32.totalorder %s63, %s64
    %p76 = scmp.eq.s32.totalorder %s19, 1
    %p77 = por %p75, %p76
    %p79 = scmp.ne.s32.totalorder %s64, %s78
    %p80 = scmp.eq.s32.totalorder %s19, 0
    %p81 = por %p79, %p80
    %s83 = sadd.s32 %s82, 1
    %p86 = scmp.eq.s32.totalorder %s13, 1
    %p87 = scmp.ne.s32.totalorder %s82, %s84
    %p88 = scmp.eq.s32.totalorder %s13, 0
    %p89 = por %p87, %p88
    %p90 = scmp.ne.s32.totalorder %s82, %s84
    %p91 = scmp.eq.s32.totalorder %s18, 1
    %p92 = por %p90, %p91
    %p93 = scmp.ne.s32.totalorder %s84, %s85
    %p94 = scmp.eq.s32.totalorder %s18, 0
    %p95 = por %p93, %p94
    %p96 = scmp.ne.s32.totalorder %s84, %s85
    %p97 = scmp.eq.s32.totalorder %s19, 1
    %p98 = por %p96, %p97
    %p100 = scmp.ne.s32.totalorder %s85, %s99
    %p101 = scmp.eq.s32.totalorder %s19, 0
    %p102 = por %p100, %p101
    %s104 = sadd.s32 %s103, 1
    %p107 = scmp.eq.s32.totalorder %s13, 1
    %p108 = scmp.ne.s32.totalorder %s103, %s105
    %p109 = scmp.eq.s32.totalorder %s13, 0
    %p110 = por %p108, %p109
    %p111 = scmp.ne.s32.totalorder %s103, %s105
    %p112 = scmp.eq.s32.totalorder %s18, 1
    %p113 = por %p111, %p112
    %p114 = scmp.ne.s32.totalorder %s105, %s106
    %p115 = scmp.eq.s32.totalorder %s18, 0
    %p116 = por %p114, %p115
    %p117 = scmp.ne.s32.totalorder %s105, %s106
    %p118 = scmp.eq.s32.totalorder %s19, 1
    %p119 = por %p117, %p118
    %p121 = scmp.ne.s32.totalorder %s106, %s120
    %p122 = scmp.eq.s32.totalorder %s19, 0
    %p123 = por %p121, %p122
    %s125 = sadd.s32 %s124, 1
    %p128 = scmp.eq.s32.totalorder %s13, 1
    %p129 = scmp.ne.s32.totalorder %s124, %s126
    %p130 = scmp.eq.s32.totalorder %s13, 0
    %p131 = por %p129, %p130
    %p132 = scmp.ne.s32.totalorder %s124, %s126
    %p133 = scmp.eq.s32.totalorder %s18, 1
    %p134 = por %p132, %p133
    %p135 = scmp.ne.s32.totalorder %s126, %s127
    %p136 = scmp.eq.s32.totalorder %s18, 0
    %p137 = por %p135, %p136
    %p138 = scmp.ne.s32.totalorder %s126, %s127
    %p139 = scmp.eq.s32.totalorder %s19, 1
    %p140 = por %p138, %p139
    %p142 = scmp.ne.s32.totalorder %s127, %s141
    %p143 = scmp.eq.s32.totalorder %s19, 0
    %p144 = por %p142, %p143
    %s146 = sadd.s32 %s145, 1
    %p149 = scmp.eq.s32.totalorder %s13, 1
    %p150 = scmp.ne.s32.totalorder %s145, %s147
    %p151 = scmp.eq.s32.totalorder %s13, 0
    %p152 = por %p150, %p151
    %p153 = scmp.ne.s32.totalorder %s145, %s147
    %p154 = scmp.eq.s32.totalorder %s18, 1
    %p155 = por %p153, %p154
    %p156 = scmp.ne.s32.totalorder %s147, %s148
    %p157 = scmp.eq.s32.totalorder %s18, 0
    %p158 = por %p156, %p157
    %p159 = scmp.ne.s32.totalorder %s147, %s148
    %p160 = scmp.eq.s32.totalorder %s19, 1
    %p161 = por %p159, %p160
    %p163 = scmp.ne.s32.totalorder %s148, %s162
    %p164 = scmp.eq.s32.totalorder %s19, 0
    %p165 = por %p163, %p164
    %s167 = sadd.s32 %s166, 1
    %p170 = scmp.eq.s32.totalorder %s13, 1
    %p171 = scmp.ne.s32.totalorder %s166, %s168
    %p172 = scmp.eq.s32.totalorder %s13, 0
    %p173 = por %p171, %p172
    %p174 = scmp.ne.s32.totalorder %s166, %s168
    %p175 = scmp.eq.s32.totalorder %s18, 1
    %p176 = por %p174, %p175
    %p177 = scmp.ne.s32.totalorder %s168, %s169
    %p178 = scmp.eq.s32.totalorder %s18, 0
    %p179 = por %p177, %p178
    %p180 = scmp.ne.s32.totalorder %s168, %s169
    %p181 = scmp.eq.s32.totalorder %s19, 1
    %p182 = por %p180, %p181
    %p184 = scmp.ne.s32.totalorder %s169, %s183
    %p185 = scmp.eq.s32.totalorder %s19, 0
    %p186 = por %p184, %p185
    %s187 = ssub.s32 %s20, %s32
    %p188 = scmp.eq.s32.totalorder %s187, 0
    %s190 = sadd.s32 %s189, 1
    %s191 = scalar_select %p188, %s189, %s190
    %p194 = pneg %p188
    %p195 = scmp.eq.s32.totalorder %s13, 1
    %p196 = por %p194, %p195
    %p197 = scmp.ne.s32.totalorder %s189, %s192
    %p198 = scmp.eq.s32.totalorder %s13, 0
    %p199 = por %p197, %p198
    %p200 = scmp.ne.s32.totalorder %s189, %s192
    %p201 = scmp.eq.s32.totalorder %s18, 1
    %p202 = por %p200, %p201
    %p203 = scmp.ne.s32.totalorder %s192, %s193
    %p204 = scmp.eq.s32.totalorder %s18, 0
    %p205 = por %p203, %p204
    %p206 = scmp.ne.s32.totalorder %s192, %s193
    %p207 = scmp.eq.s32.totalorder %s19, 1
    %p208 = por %p206, %p207
    %p210 = scmp.ne.s32.totalorder %s193, %s209
    %p211 = scmp.eq.s32.totalorder %s19, 0
    %p212 = por %p210, %p211
    %p213 = scmp.le.s32.totalorder 1, %s13
    %p214 = scmp.lt.s32.totalorder %s13, 3
    %p215 = pnand %p213, %p214
    %p216 = pneg %p215
    // Predicated region
    $region9: #{_lambda_.6} parent=5 // pred_check
      _
    $region10: #{_lambda_.6} parent=5 // pred_check_branch
      %218 = sbr.rel (%p215) target = $region12
    $region11: #{_lambda_.6} parent=5 // pred_region
      %s219 = ssub.s32 %s13, 1
      // Predicated region
      $region13: #{_lambda_.6} parent=11 // pred_check
        %p220 = pneg %p74
      $region14: #{_lambda_.6} parent=11 // pred_check_branch
        %222 = sbr.rel (%p220) target = $region16
      $region15: #{_lambda_.6} parent=11 // pred_region
        _
      $region16: #{_lambda_.6} parent=11 // pred_fallthru
        _
      // Predicated region
      $region17: #{_lambda_.6} parent=11 // pred_check
        %p223 = pneg %p95
      $region18: #{_lambda_.6} parent=11 // pred_check_branch
        %225 = sbr.rel (%p223) target = $region20
      $region19: #{_lambda_.6} parent=11 // pred_region
        _
      $region20: #{_lambda_.6} parent=11 // pred_fallthru
        _
      // Predicated region
      $region21: #{_lambda_.6} parent=11 // pred_check
        %p226 = pneg %p116
      $region22: #{_lambda_.6} parent=11 // pred_check_branch
        %228 = sbr.rel (%p226) target = $region24
      $region23: #{_lambda_.6} parent=11 // pred_region
        _
      $region24: #{_lambda_.6} parent=11 // pred_fallthru
        _
      // Predicated region
      $region25: #{_lambda_.6} parent=11 // pred_check
        %p229 = pneg %p137
      $region26: #{_lambda_.6} parent=11 // pred_check_branch
        %231 = sbr.rel (%p229) target = $region28
      $region27: #{_lambda_.6} parent=11 // pred_region
        _
      $region28: #{_lambda_.6} parent=11 // pred_fallthru
        _
      // Predicated region
      $region29: #{_lambda_.6} parent=11 // pred_check
        %p232 = pneg %p158
      $region30: #{_lambda_.6} parent=11 // pred_check_branch
        %234 = sbr.rel (%p232) target = $region32
      $region31: #{_lambda_.6} parent=11 // pred_region
        _
      $region32: #{_lambda_.6} parent=11 // pred_fallthru
        _
      // Predicated region
      $region33: #{_lambda_.6} parent=11 // pred_check
        %p235 = pneg %p179
      $region34: #{_lambda_.6} parent=11 // pred_check_branch
        %237 = sbr.rel (%p235) target = $region36
      $region35: #{_lambda_.6} parent=11 // pred_region
        _
      $region36: #{_lambda_.6} parent=11 // pred_fallthru
        _
    $region12: #{_lambda_.6} parent=5 // pred_fallthru
      _
    %p238 = scmp.lt.s32.totalorder %s13, 2
    // Predicated region
    $region37: #{_lambda_.6} parent=5 // pred_check
      %p239 = pneg %p238
    $region38: #{_lambda_.6} parent=5 // pred_check_branch
      %241 = sbr.rel (%p239) target = $region40
    $region39: #{_lambda_.6} parent=5 // pred_region
      // Predicated region
      $region41: #{_lambda_.6} parent=39 // pred_check
        %p242 = pneg %p47
      $region42: #{_lambda_.6} parent=39 // pred_check_branch
        %244 = sbr.rel (%p242) target = $region44
      $region43: #{_lambda_.6} parent=39 // pred_region
        %p245 = scmp.lt.s32.totalorder %s20, 1
        %s246 = scalar_select %p245, %s20, 1
        %p247 = scmp.lt.s32.totalorder %s21, 0
        %s248 = scalar_select %p247, %s21, 0
        %s249 = sadd.s32 %s248, %s246
        %s250 = smul.addr %s249, 8
        %s251 = scalar_lea.vmem %s0, %s250
      $region44: #{_lambda_.6} parent=39 // pred_fallthru
        _
    $region40: #{_lambda_.6} parent=5 // pred_fallthru
      _
    %p252 = scmp.le.s32.totalorder 1, %s13
    %p253 = scmp.lt.s32.totalorder %s13, 3
    %p254 = pnand %p252, %p253
    %p255 = pneg %p254
    // Predicated region
    $region45: #{_lambda_.6} parent=5 // pred_check
      _
    $region46: #{_lambda_.6} parent=5 // pred_check_branch
      %257 = sbr.rel (%p254) target = $region48
    $region47: #{_lambda_.6} parent=5 // pred_region
      %s258 = ssub.s32 %s13, 1
      %p259 = scmp.lt.s32.totalorder %s22, 1
      %s260 = scalar_select %p259, %s22, 1
      %p261 = scmp.lt.s32.totalorder %s23, 0
      %s262 = scalar_select %p261, %s23, 0
      %s263 = sadd.s32 %s262, %s260
      %s264 = smul.addr %s263, 8
      %s265 = scalar_lea.vmem %s0, %s264
      %p266 = pneg %p53
      %p267 = pneg %p50
      %p268 = pneg %p74
      %p269 = pneg %p71
      %p270 = pneg %p95
      %p271 = pneg %p92
      %p272 = pneg %p116
      %p273 = pneg %p113
      %p274 = pneg %p137
      %p275 = pneg %p134
      %p276 = pneg %p158
      %p277 = pneg %p155
      %p278 = pneg %p179
      %p279 = pneg %p176
      %p280 = pneg %p205
      %p281 = pneg %p202
      %p282 = scmp.lt.s32.totalorder %s22, 1
      %s283 = scalar_select %p282, %s22, 1
      %s284 = scalar_lea.vmem %s7, %s283
      %p285 = scmp.lt.s32.totalorder %s22, 1
      %s286 = scalar_select %p285, %s22, 1
      %p287 = scmp.lt.s32.totalorder %s23, 0
      %s288 = scalar_select %p287, %s23, 0
      %s289 = sadd.s32 %s288, %s286
      %s290 = smul.addr %s289, 8
      %s291 = scalar_lea.vmem %s0, %s290
      %p292 = scmp.lt.s32.totalorder %s22, 1
      %s293 = scalar_select %p292, %s22, 1
      %s294 = scalar_lea.vmem %s7, %s293
      %v296 = vld [vmem:[%s291] sm:$0xff]
      %v297 = vld [vmem:[%s1] sm:$0x3]
      %v298 = vld [vmem:[%s3] sm:$0xf]
      %v299 = vld [vmem:[%s3 + $0x4] sm:$0xf]
      %v300 = vld [vmem:[%s3 + $0x8] sm:$0xf]
      %v301 = vld [vmem:[%s3 + $0xc] sm:$0xf]
      %v302 = vld [vmem:[%s4] sm:$0x1]
      %v303 = vld [vmem:[%s5] sm:$0xf]
      %v304 = vld [vmem:[%s5 + $0x4] sm:$0xf]
      %v305 = vld [vmem:[%s5 + $0x8] sm:$0xf]
      %v306 = vld [vmem:[%s5 + $0xc] sm:$0xf]
      %v307 = vld [vmem:[%s6] sm:$0x1]
      %v308 = vld [vmem:[%s2] sm:$0x1]
      %v309 = vpack.c.bf16 %v296, %v296
      %vm310 = vcmask 23552
      %v312 = vsel %vm310, %v309, 0
      %vm314 = vcmask 1040384
      %vm315 = vcmask 1041408
      %v316 = vsel %vm314, 4294967295, 65535
      %v317 = vsel %vm315, %v316, 0
      %v319 = vand.u32 %v297, %v317
      %321 = vmatprep.subr.bf16.mxu0 0
      %322 = vmatpush1.bf16.msra.mxu0 0
      %323 = vmatprep.subr.bf16.mxu0 0
      %324 = vmatpush1.bf16.msra.mxu0 0
      %325 = vmatprep.subr.bf16.mxu0 0
      %326 = vmatpush1.bf16.msra.mxu0 0
      %327 = vmatprep.subr.bf16.mxu0 0
      %328 = vmatpush1.bf16.msra.mxu0 0
      %329 = vmatprep.subr.bf16.mxu0 0
      %330 = vmatpush1.bf16.msra.mxu0 0
      %331 = vmatprep.subr.bf16.mxu0 0
      %332 = vmatpush1.bf16.msra.mxu0 0
      %333 = vmatprep.subr.bf16.mxu0 0
      %334 = vmatpush1.bf16.msra.mxu0 0
      %335 = vmatprep.subr.bf16.mxu0 0
      %336 = vmatpush1.bf16.msra.mxu0 %v319
      %337 = vmatprep.subr.bf16.mxu0 0
      %338 = vmatpush2.bf16.msra.mxu0 0
      %339 = vmatprep.subr.bf16.mxu0 0
      %340 = vmatpush2.bf16.msra.mxu0 0
      %341 = vmatprep.subr.bf16.mxu0 0
      %342 = vmatpush2.bf16.msra.mxu0 0
      %343 = vmatprep.subr.bf16.mxu0 0
      %344 = vmatpush2.bf16.msra.mxu0 0
      %345 = vmatprep.subr.bf16.mxu0 0
      %346 = vmatpush2.bf16.msra.mxu0 0
      %347 = vmatprep.subr.bf16.mxu0 0
      %348 = vmatpush2.bf16.msra.mxu0 0
      %349 = vmatprep.subr.bf16.mxu0 0
      %350 = vmatpush2.bf16.msra.mxu0 0
      %351 = vmatprep.subr.bf16.mxu0 0
      %352 = vmatpush2.bf16.msra.mxu0 0
      %353 = vmatprep.mubr.bf16.mxu0 0
      %354 = vmatmul.mubr.bf16.gmra.mxu0 %v312
      %v355 = vpop.f32.mrf.mxu0
      %v356 = vadd.f32 0.0, %v355
      %v357 = vpop.f32.mrf.mxu0
      %v358 = vpop.f32.mrf.mxu0
      %v359 = vpop.f32.mrf.mxu0
      %360 = vdwg.mxu0
      %v362 = vlaneseq
      %v363 = vshrl.u32 %v362, 7
      %v364 = vsub.s32 0, %v363
      %v365 = vrot.slane %v308, %v364
      %v367 = vadd.f32 %v365, %v356
      %v368 = vmax.f32 %v367, 0.0
      %v369 = vpack.c.bf16 %v368, %v368
      %v371 = vlaneseq
      %v372 = vshrl.u32 %v371, 7
      %v373 = vsub.s32 0, %v372
      %v374 = vrot.slane %v302, %v373
      %v380 = vunpack.c.l.b16 %v298
      %v381 = vunpack.c.l.b16 %v299
      %v382 = vunpack.c.l.b16 %v300
      %v383 = vunpack.c.l.b16 %v301
      %v384 = vpack.c.b16 %v381, %v380
      %v385 = vpack.c.b16 %v383, %v382
      %vm388 = vcmask 261120
      %v390 = vsel %vm388, %v369, 0
      %392 = vmatprep.subr.bf16.mxu0 0
      %393 = vmatpush1.bf16.msra.mxu0 0
      %394 = vmatprep.subr.bf16.mxu0 0
      %395 = vmatpush1.bf16.msra.mxu0 0
      %396 = vmatprep.subr.bf16.mxu0 0
      %397 = vmatpush1.bf16.msra.mxu0 0
      %398 = vmatprep.subr.bf16.mxu0 0
      %399 = vmatpush1.bf16.msra.mxu0 0
      %400 = vmatprep.subr.bf16.mxu0 0
      %401 = vmatpush1.bf16.msra.mxu0 0
      %402 = vmatprep.subr.bf16.mxu0 0
      %403 = vmatpush1.bf16.msra.mxu0 0
      %404 = vmatprep.subr.bf16.mxu0 0
      %405 = vmatpush1.bf16.msra.mxu0 %v385
      %406 = vmatprep.subr.bf16.mxu0 0
      %407 = vmatpush1.bf16.msra.mxu0 %v384
      %408 = vmatprep.subr.bf16.mxu0 0
      %409 = vmatpush2.bf16.msra.mxu0 0
      %410 = vmatprep.subr.bf16.mxu0 0
      %411 = vmatpush2.bf16.msra.mxu0 0
      %412 = vmatprep.subr.bf16.mxu0 0
      %413 = vmatpush2.bf16.msra.mxu0 0
      %414 = vmatprep.subr.bf16.mxu0 0
      %415 = vmatpush2.bf16.msra.mxu0 0
      %416 = vmatprep.subr.bf16.mxu0 0
      %417 = vmatpush2.bf16.msra.mxu0 0
      %418 = vmatprep.subr.bf16.mxu0 0
      %419 = vmatpush2.bf16.msra.mxu0 0
      %420 = vmatprep.subr.bf16.mxu0 0
      %421 = vmatpush2.bf16.msra.mxu0 0
      %422 = vmatprep.subr.bf16.mxu0 0
      %423 = vmatpush2.bf16.msra.mxu0 0
      %424 = vmatprep.mubr.bf16.mxu0 0
      %425 = vmatmul.mubr.bf16.gmra.mxu0 %v390
      %v426 = vpop.f32.mrf.mxu0
      %v427 = vadd.f32 %v374, %v426
      %v428 = vpop.f32.mrf.mxu0
      %v429 = vpop.f32.mrf.mxu0
      %v430 = vpop.f32.mrf.mxu0
      %431 = vdwg.mxu0
      %v432 = vmax.f32 %v427, 0.0
      %v433 = vpack.c.bf16 %v432, %v432
      %v435 = vlaneseq
      %v436 = vshrl.u32 %v435, 7
      %v437 = vsub.s32 0, %v436
      %v438 = vrot.slane %v307, %v437
      %v444 = vunpack.c.l.b16 %v303
      %v445 = vunpack.c.l.b16 %v304
      %v446 = vunpack.c.l.b16 %v305
      %v447 = vunpack.c.l.b16 %v306
      %v448 = vpack.c.b16 %v445, %v444
      %v449 = vpack.c.b16 %v447, %v446
      %v453 = vsel %vm388, %v433, 0
      %455 = vmatprep.subr.bf16.mxu0 0
      %456 = vmatpush1.bf16.msra.mxu0 0
      %457 = vmatprep.subr.bf16.mxu0 0
      %458 = vmatpush1.bf16.msra.mxu0 0
      %459 = vmatprep.subr.bf16.mxu0 0
      %460 = vmatpush1.bf16.msra.mxu0 0
      %461 = vmatprep.subr.bf16.mxu0 0
      %462 = vmatpush1.bf16.msra.mxu0 0
      %463 = vmatprep.subr.bf16.mxu0 0
      %464 = vmatpush1.bf16.msra.mxu0 0
      %465 = vmatprep.subr.bf16.mxu0 0
      %466 = vmatpush1.bf16.msra.mxu0 0
      %467 = vmatprep.subr.bf16.mxu0 0
      %468 = vmatpush1.bf16.msra.mxu0 %v449
      %469 = vmatprep.subr.bf16.mxu0 0
      %470 = vmatpush1.bf16.msra.mxu0 %v448
      %471 = vmatprep.subr.bf16.mxu0 0
      %472 = vmatpush2.bf16.msra.mxu0 0
      %473 = vmatprep.subr.bf16.mxu0 0
      %474 = vmatpush2.bf16.msra.mxu0 0
      %475 = vmatprep.subr.bf16.mxu0 0
      %476 = vmatpush2.bf16.msra.mxu0 0
      %477 = vmatprep.subr.bf16.mxu0 0
      %478 = vmatpush2.bf16.msra.mxu0 0
      %479 = vmatprep.subr.bf16.mxu0 0
      %480 = vmatpush2.bf16.msra.mxu0 0
      %481 = vmatprep.subr.bf16.mxu0 0
      %482 = vmatpush2.bf16.msra.mxu0 0
      %483 = vmatprep.subr.bf16.mxu0 0
      %484 = vmatpush2.bf16.msra.mxu0 0
      %485 = vmatprep.subr.bf16.mxu0 0
      %486 = vmatpush2.bf16.msra.mxu0 0
      %487 = vmatprep.mubr.bf16.mxu0 0
      %488 = vmatmul.mubr.bf16.gmra.mxu0 %v453
      %v489 = vpop.f32.mrf.mxu0
      %v490 = vadd.f32 %v438, %v489
      %v491 = vpop.f32.mrf.mxu0
      %v492 = vpop.f32.mrf.mxu0
      %v493 = vpop.f32.mrf.mxu0
      %494 = vdwg.mxu0
      %vm495 = vcmask 130048
      %v496 = vsel %vm495, %v490, -inf
      %v497 = vrot.slane %v496, 4
      %v498 = vmax.f32 %v496, %v497
      %v499 = vrot.slane %v498, 2
      %v500 = vmax.f32 %v498, %v499
      %v501 = vrot.slane %v500, 1
      %v502 = vmax.f32 %v500, %v501
      %p503 = scmp.eq.s32.totalorder %s23, 0
      // Predicated region
      $region49: #{_lambda_.6} parent=47 // pred_check
        %p504 = pneg %p503
      $region50: #{_lambda_.6} parent=47 // pred_check_branch
        %506 = sbr.rel (%p504) target = $region52
      $region51: #{_lambda_.6} parent=47 // pred_region
        %vm507 = vcmask 122880
        %508 = vst.msk [vmem:[%s294] sm:$0x1] %vm507, %v502
      $region52: #{_lambda_.6} parent=47 // pred_fallthru
        _
      %p509 = scmp.gt.s32.totalorder %s23, 0
      // Predicated region
      $region53: #{_lambda_.6} parent=47 // pred_check
        %p510 = pneg %p509
      $region54: #{_lambda_.6} parent=47 // pred_check_branch
        %512 = sbr.rel (%p510) target = $region56
      $region55: #{_lambda_.6} parent=47 // pred_region
        %v513 = vld [vmem:[%s294] sm:$0x1]
        %v514 = vmax.f32 %v513, %v502
        %vm515 = vcmask 122880
        %516 = vst.msk [vmem:[%s294] sm:$0x1] %vm515, %v514
      $region56: #{_lambda_.6} parent=47 // pred_fallthru
        _
      %p517 = scmp.lt.s32.totalorder %s22, 1
      %s518 = scalar_select %p517, %s22, 1
      %s519 = scalar_lea.vmem %s7, %s518
      // Predicated region
      $region57: #{_lambda_.6} parent=47 // pred_check
        %p520 = pneg %p202
      $region58: #{_lambda_.6} parent=47 // pred_check_branch
        %522 = sbr.rel (%p520) target = $region60
      $region59: #{_lambda_.6} parent=47 // pred_region
        _
      $region60: #{_lambda_.6} parent=47 // pred_fallthru
        _
    $region48: #{_lambda_.6} parent=5 // pred_fallthru
      _
    %p523 = scmp.le.s32.totalorder 2, %s13
    // Predicated region
    $region61: #{_lambda_.6} parent=5 // pred_check
      %p524 = pneg %p523
    $region62: #{_lambda_.6} parent=5 // pred_check_branch
      %526 = sbr.rel (%p524) target = $region64
    $region63: #{_lambda_.6} parent=5 // pred_region
      %s527 = ssub.s32 %s13, 2
      // Predicated region
      $region65: #{_lambda_.6} parent=63 // pred_check
        %p528 = pneg %p208
      $region66: #{_lambda_.6} parent=63 // pred_check_branch
        %530 = sbr.rel (%p528) target = $region68
      $region67: #{_lambda_.6} parent=63 // pred_region
        %p531 = scmp.lt.s32.totalorder %s24, 1
        %s532 = scalar_select %p531, %s24, 1
        %s533 = scalar_lea.vmem %s7, %s532
      $region68: #{_lambda_.6} parent=63 // pred_fallthru
        _
    $region64: #{_lambda_.6} parent=5 // pred_fallthru
      _
  $region6: #{_lambda_.6} parent=0 // loop_footer
    %s17 = sadd.s32 1, %s13
  $region7: #{_lambda_.6} parent=0 // loop_footer_branch
    %12 = sbr.rel target = $region3
  $region8: #{_lambda_.6} parent=0 // loop_exit
    _

// kernel: _lambda_.7
$region0: #{_lambda_.7}
  #allocation0 [shape = 'u32[]', space=smem, size = 0x4, offset = 0x4, fixed_abs, tag = 'smem constant byte address 0x4 - core index']
  #allocation1 [shape = 'u32[144,128]{1,0:T(1,128)}', space=vmem, size = 0x12000, scoped, tag = 'internal scratch']
  %s0 = inlined_call_operand.vmem [shape: bf16[2,208,32], index: 0, kind: input, shape index: {}]
  %s1 = inlined_call_operand.vmem [shape: f32[2,1,32], index: 1, kind: input, shape index: {}]
  %s2 = inlined_call_operand.vmem [shape: bf16[32,32], index: 2, kind: input, shape index: {}]
  %s3 = inlined_call_operand.vmem [shape: bf16[32,32], index: 3, kind: input, shape index: {}]
  %s4 = inlined_call_operand.vmem [shape: f32[1,32], index: 4, kind: input, shape index: {}]
  %s5 = inlined_call_operand.vmem [shape: bf16[32,16], index: 5, kind: input, shape index: {}]
  %s6 = inlined_call_operand.vmem [shape: f32[1,16], index: 6, kind: input, shape index: {}]
  %s7 = inlined_call_operand.vmem [shape: bf16[2,208,16], index: 7, kind: output, shape index: {}]
  %s8 = sld [smem:[#allocation0]]
  $region61: #{_lambda_.7} parent=0
    _
  %s10 = ssub.s32 1, %s8
  %s11 = scalar_select 0, %s10, %s8
  loop: start=0, step=1, limit=4
  $region2: #{_lambda_.7} parent=0 // loop_pre_header
    _
  $region3: #{_lambda_.7} parent=0 // loop_header
    %s13 = sphi 0, %s17
    %p14 = scmp.ge.s32.totalorder %s13, 4
    %s20 = sphi 0, %s32
    %s21 = sphi 0, %s28
    %s22 = sphi 0, %s20
    %s23 = sphi 0, %s21
    %s24 = sphi 0, %s22
    %s25 = sphi 0, %s23
    %s37 = sphi 0, %s39
    %s40 = sphi 0, %s37
    %s41 = sphi 0, %s40
    %s57 = sphi 0, %s41
    %s63 = sphi 0, %s65
    %s66 = sphi 0, %s63
    %s67 = sphi 0, %s66
    %s83 = sphi 0, %s67
    %s87 = sphi 0, %s87
    %s89 = sphi 0, %s87
    %s90 = sphi 0, %s89
    %s104 = sphi 0, %s90
    %s108 = sphi 0, %s108
    %s110 = sphi 0, %s108
    %s111 = sphi 0, %s110
    %s125 = sphi 0, %s111
    %s129 = sphi 0, %s129
    %s131 = sphi 0, %s129
    %s132 = sphi 0, %s131
    %s146 = sphi 0, %s132
    %s150 = sphi 0, %s150
    %s152 = sphi 0, %s150
    %s153 = sphi 0, %s152
    %s167 = sphi 0, %s153
    %s171 = sphi 0, %s171
    %s173 = sphi 0, %s171
    %s174 = sphi 0, %s173
    %s188 = sphi 0, %s174
    %s196 = sphi 0, %s198
    %s199 = sphi 0, %s196
    %s200 = sphi 0, %s199
    %s216 = sphi 0, %s200
  $region4: #{_lambda_.7} parent=0 // loop_header_branch
    %16 = sbr.rel (%p14) target = $region8
  $region5: #{_lambda_.7} parent=0 // loop_body
    %s18 = ssub.s32 %s13, 1
    %s19 = ssub.s32 %s13, 2
    %s26 = sadd.s32 1, %s21
    %p27 = scmp.ge.s32.totalorder %s26, 1
    %s28 = scalar_select %p27, 0, %s26
    %s29 = sadd.s32 1, %s20
    %s30 = scalar_select %p27, %s29, %s20
    %p31 = scmp.ge.s32.totalorder %s30, 2
    %s32 = scalar_select %p31, 0, %s30
    %s33 = ssub.s32 %s20, %s32
    %s34 = ssub.s32 %s21, %s28
    %s35 = sor.u32 %s33, %s34
    %p36 = scmp.eq.s32.totalorder %s35, 0
    %s38 = sadd.s32 %s37, 1
    %s39 = scalar_select %p36, %s37, %s38
    %p42 = pneg %p36
    %p43 = scmp.eq.s32.totalorder %s13, 1
    %p44 = por %p42, %p43
    %p45 = scmp.ne.s32.totalorder %s37, %s40
    %p46 = scmp.eq.s32.totalorder %s13, 0
    %p47 = por %p45, %p46
    %p48 = scmp.ne.s32.totalorder %s37, %s40
    %p49 = scmp.eq.s32.totalorder %s18, 1
    %p50 = por %p48, %p49
    %p51 = scmp.ne.s32.totalorder %s40, %s41
    %p52 = scmp.eq.s32.totalorder %s18, 0
    %p53 = por %p51, %p52
    %p54 = scmp.ne.s32.totalorder %s40, %s41
    %p55 = scmp.eq.s32.totalorder %s19, 1
    %p56 = por %p54, %p55
    %p58 = scmp.ne.s32.totalorder %s41, %s57
    %p59 = scmp.eq.s32.totalorder %s19, 0
    %p60 = por %p58, %p59
    %s61 = ssub.s32 %s20, %s32
    %p62 = scmp.eq.s32.totalorder %s61, 0
    %s64 = sadd.s32 %s63, 1
    %s65 = scalar_select %p62, %s63, %s64
    %p68 = pneg %p62
    %p69 = scmp.eq.s32.totalorder %s13, 1
    %p70 = por %p68, %p69
    %p71 = scmp.ne.s32.totalorder %s63, %s66
    %p72 = scmp.eq.s32.totalorder %s13, 0
    %p73 = por %p71, %p72
    %p74 = scmp.ne.s32.totalorder %s63, %s66
    %p75 = scmp.eq.s32.totalorder %s18, 1
    %p76 = por %p74, %p75
    %p77 = scmp.ne.s32.totalorder %s66, %s67
    %p78 = scmp.eq.s32.totalorder %s18, 0
    %p79 = por %p77, %p78
    %p80 = scmp.ne.s32.totalorder %s66, %s67
    %p81 = scmp.eq.s32.totalorder %s19, 1
    %p82 = por %p80, %p81
    %p84 = scmp.ne.s32.totalorder %s67, %s83
    %p85 = scmp.eq.s32.totalorder %s19, 0
    %p86 = por %p84, %p85
    %s88 = sadd.s32 %s87, 1
    %p91 = scmp.eq.s32.totalorder %s13, 1
    %p92 = scmp.ne.s32.totalorder %s87, %s89
    %p93 = scmp.eq.s32.totalorder %s13, 0
    %p94 = por %p92, %p93
    %p95 = scmp.ne.s32.totalorder %s87, %s89
    %p96 = scmp.eq.s32.totalorder %s18, 1
    %p97 = por %p95, %p96
    %p98 = scmp.ne.s32.totalorder %s89, %s90
    %p99 = scmp.eq.s32.totalorder %s18, 0
    %p100 = por %p98, %p99
    %p101 = scmp.ne.s32.totalorder %s89, %s90
    %p102 = scmp.eq.s32.totalorder %s19, 1
    %p103 = por %p101, %p102
    %p105 = scmp.ne.s32.totalorder %s90, %s104
    %p106 = scmp.eq.s32.totalorder %s19, 0
    %p107 = por %p105, %p106
    %s109 = sadd.s32 %s108, 1
    %p112 = scmp.eq.s32.totalorder %s13, 1
    %p113 = scmp.ne.s32.totalorder %s108, %s110
    %p114 = scmp.eq.s32.totalorder %s13, 0
    %p115 = por %p113, %p114
    %p116 = scmp.ne.s32.totalorder %s108, %s110
    %p117 = scmp.eq.s32.totalorder %s18, 1
    %p118 = por %p116, %p117
    %p119 = scmp.ne.s32.totalorder %s110, %s111
    %p120 = scmp.eq.s32.totalorder %s18, 0
    %p121 = por %p119, %p120
    %p122 = scmp.ne.s32.totalorder %s110, %s111
    %p123 = scmp.eq.s32.totalorder %s19, 1
    %p124 = por %p122, %p123
    %p126 = scmp.ne.s32.totalorder %s111, %s125
    %p127 = scmp.eq.s32.totalorder %s19, 0
    %p128 = por %p126, %p127
    %s130 = sadd.s32 %s129, 1
    %p133 = scmp.eq.s32.totalorder %s13, 1
    %p134 = scmp.ne.s32.totalorder %s129, %s131
    %p135 = scmp.eq.s32.totalorder %s13, 0
    %p136 = por %p134, %p135
    %p137 = scmp.ne.s32.totalorder %s129, %s131
    %p138 = scmp.eq.s32.totalorder %s18, 1
    %p139 = por %p137, %p138
    %p140 = scmp.ne.s32.totalorder %s131, %s132
    %p141 = scmp.eq.s32.totalorder %s18, 0
    %p142 = por %p140, %p141
    %p143 = scmp.ne.s32.totalorder %s131, %s132
    %p144 = scmp.eq.s32.totalorder %s19, 1
    %p145 = por %p143, %p144
    %p147 = scmp.ne.s32.totalorder %s132, %s146
    %p148 = scmp.eq.s32.totalorder %s19, 0
    %p149 = por %p147, %p148
    %s151 = sadd.s32 %s150, 1
    %p154 = scmp.eq.s32.totalorder %s13, 1
    %p155 = scmp.ne.s32.totalorder %s150, %s152
    %p156 = scmp.eq.s32.totalorder %s13, 0
    %p157 = por %p155, %p156
    %p158 = scmp.ne.s32.totalorder %s150, %s152
    %p159 = scmp.eq.s32.totalorder %s18, 1
    %p160 = por %p158, %p159
    %p161 = scmp.ne.s32.totalorder %s152, %s153
    %p162 = scmp.eq.s32.totalorder %s18, 0
    %p163 = por %p161, %p162
    %p164 = scmp.ne.s32.totalorder %s152, %s153
    %p165 = scmp.eq.s32.totalorder %s19, 1
    %p166 = por %p164, %p165
    %p168 = scmp.ne.s32.totalorder %s153, %s167
    %p169 = scmp.eq.s32.totalorder %s19, 0
    %p170 = por %p168, %p169
    %s172 = sadd.s32 %s171, 1
    %p175 = scmp.eq.s32.totalorder %s13, 1
    %p176 = scmp.ne.s32.totalorder %s171, %s173
    %p177 = scmp.eq.s32.totalorder %s13, 0
    %p178 = por %p176, %p177
    %p179 = scmp.ne.s32.totalorder %s171, %s173
    %p180 = scmp.eq.s32.totalorder %s18, 1
    %p181 = por %p179, %p180
    %p182 = scmp.ne.s32.totalorder %s173, %s174
    %p183 = scmp.eq.s32.totalorder %s18, 0
    %p184 = por %p182, %p183
    %p185 = scmp.ne.s32.totalorder %s173, %s174
    %p186 = scmp.eq.s32.totalorder %s19, 1
    %p187 = por %p185, %p186
    %p189 = scmp.ne.s32.totalorder %s174, %s188
    %p190 = scmp.eq.s32.totalorder %s19, 0
    %p191 = por %p189, %p190
    %s192 = ssub.s32 %s20, %s32
    %s193 = ssub.s32 %s21, %s28
    %s194 = sor.u32 %s192, %s193
    %p195 = scmp.eq.s32.totalorder %s194, 0
    %s197 = sadd.s32 %s196, 1
    %s198 = scalar_select %p195, %s196, %s197
    %p201 = pneg %p195
    %p202 = scmp.eq.s32.totalorder %s13, 1
    %p203 = por %p201, %p202
    %p204 = scmp.ne.s32.totalorder %s196, %s199
    %p205 = scmp.eq.s32.totalorder %s13, 0
    %p206 = por %p204, %p205
    %p207 = scmp.ne.s32.totalorder %s196, %s199
    %p208 = scmp.eq.s32.totalorder %s18, 1
    %p209 = por %p207, %p208
    %p210 = scmp.ne.s32.totalorder %s199, %s200
    %p211 = scmp.eq.s32.totalorder %s18, 0
    %p212 = por %p210, %p211
    %p213 = scmp.ne.s32.totalorder %s199, %s200
    %p214 = scmp.eq.s32.totalorder %s19, 1
    %p215 = por %p213, %p214
    %p217 = scmp.ne.s32.totalorder %s200, %s216
    %p218 = scmp.eq.s32.totalorder %s19, 0
    %p219 = por %p217, %p218
    %p220 = scmp.le.s32.totalorder 1, %s13
    %p221 = scmp.lt.s32.totalorder %s13, 3
    %p222 = pnand %p220, %p221
    %p223 = pneg %p222
    // Predicated region
    $region9: #{_lambda_.7} parent=5 // pred_check
      _
    $region10: #{_lambda_.7} parent=5 // pred_check_branch
      %225 = sbr.rel (%p222) target = $region12
    $region11: #{_lambda_.7} parent=5 // pred_region
      %s226 = ssub.s32 %s13, 1
      // Predicated region
      $region13: #{_lambda_.7} parent=11 // pred_check
        %p227 = pneg %p100
      $region14: #{_lambda_.7} parent=11 // pred_check_branch
        %229 = sbr.rel (%p227) target = $region16
      $region15: #{_lambda_.7} parent=11 // pred_region
        _
      $region16: #{_lambda_.7} parent=11 // pred_fallthru
        _
      // Predicated region
      $region17: #{_lambda_.7} parent=11 // pred_check
        %p230 = pneg %p121
      $region18: #{_lambda_.7} parent=11 // pred_check_branch
        %232 = sbr.rel (%p230) target = $region20
      $region19: #{_lambda_.7} parent=11 // pred_region
        _
      $region20: #{_lambda_.7} parent=11 // pred_fallthru
        _
      // Predicated region
      $region21: #{_lambda_.7} parent=11 // pred_check
        %p233 = pneg %p142
      $region22: #{_lambda_.7} parent=11 // pred_check_branch
        %235 = sbr.rel (%p233) target = $region24
      $region23: #{_lambda_.7} parent=11 // pred_region
        _
      $region24: #{_lambda_.7} parent=11 // pred_fallthru
        _
      // Predicated region
      $region25: #{_lambda_.7} parent=11 // pred_check
        %p236 = pneg %p163
      $region26: #{_lambda_.7} parent=11 // pred_check_branch
        %238 = sbr.rel (%p236) target = $region28
      $region27: #{_lambda_.7} parent=11 // pred_region
        _
      $region28: #{_lambda_.7} parent=11 // pred_fallthru
        _
      // Predicated region
      $region29: #{_lambda_.7} parent=11 // pred_check
        %p239 = pneg %p184
      $region30: #{_lambda_.7} parent=11 // pred_check_branch
        %241 = sbr.rel (%p239) target = $region32
      $region31: #{_lambda_.7} parent=11 // pred_region
        _
      $region32: #{_lambda_.7} parent=11 // pred_fallthru
        _
    $region12: #{_lambda_.7} parent=5 // pred_fallthru
      _
    %p242 = scmp.lt.s32.totalorder %s13, 2
    // Predicated region
    $region33: #{_lambda_.7} parent=5 // pred_check
      %p243 = pneg %p242
    $region34: #{_lambda_.7} parent=5 // pred_check_branch
      %245 = sbr.rel (%p243) target = $region36
    $region35: #{_lambda_.7} parent=5 // pred_region
      // Predicated region
      $region37: #{_lambda_.7} parent=35 // pred_check
        %p246 = pneg %p47
      $region38: #{_lambda_.7} parent=35 // pred_check_branch
        %248 = sbr.rel (%p246) target = $region40
      $region39: #{_lambda_.7} parent=35 // pred_region
        %s249 = smul.u32 26, %s21
        %p250 = scmp.lt.s32.totalorder %s20, 1
        %s251 = scalar_select %p250, %s20, 1
        %p252 = scmp.lt.s32.totalorder %s249, 25
        %s253 = scalar_select %p252, %s249, 25
        %s254 = smul.addr %s251, 26
        %s255 = sadd.s32 %s253, %s254
        %s256 = smul.addr %s255, 4
        %s257 = scalar_lea.vmem %s0, %s256
        %s258 = smul.u32 26, %s21
      $region40: #{_lambda_.7} parent=35 // pred_fallthru
        _
      // Predicated region
      $region41: #{_lambda_.7} parent=35 // pred_check
        %p259 = pneg %p73
      $region42: #{_lambda_.7} parent=35 // pred_check_branch
        %261 = sbr.rel (%p259) target = $region44
      $region43: #{_lambda_.7} parent=35 // pred_region
        %p262 = scmp.lt.s32.totalorder %s20, 1
        %s263 = scalar_select %p262, %s20, 1
        %s264 = scalar_lea.vmem %s1, %s263
      $region44: #{_lambda_.7} parent=35 // pred_fallthru
        _
    $region36: #{_lambda_.7} parent=5 // pred_fallthru
      _
    %p265 = scmp.le.s32.totalorder 1, %s13
    %p266 = scmp.lt.s32.totalorder %s13, 3
    %p267 = pnand %p265, %p266
    %p268 = pneg %p267
    // Predicated region
    $region45: #{_lambda_.7} parent=5 // pred_check
      _
    $region46: #{_lambda_.7} parent=5 // pred_check_branch
      %270 = sbr.rel (%p267) target = $region48
    $region47: #{_lambda_.7} parent=5 // pred_region
      %s271 = ssub.s32 %s13, 1
      %s272 = smul.u32 26, %s23
      %p273 = scmp.lt.s32.totalorder %s22, 1
      %s274 = scalar_select %p273, %s22, 1
      %p275 = scmp.lt.s32.totalorder %s272, 25
      %s276 = scalar_select %p275, %s272, 25
      %s277 = smul.addr %s274, 26
      %s278 = sadd.s32 %s276, %s277
      %s279 = smul.addr %s278, 4
      %s280 = scalar_lea.vmem %s0, %s279
      %p281 = pneg %p53
      %p282 = pneg %p50
      %p283 = scmp.lt.s32.totalorder %s22, 1
      %s284 = scalar_select %p283, %s22, 1
      %s285 = scalar_lea.vmem %s1, %s284
      %p286 = pneg %p79
      %p287 = pneg %p76
      %p288 = pneg %p100
      %p289 = pneg %p97
      %p290 = pneg %p121
      %p291 = pneg %p118
      %p292 = pneg %p142
      %p293 = pneg %p139
      %p294 = pneg %p163
      %p295 = pneg %p160
      %p296 = pneg %p184
      %p297 = pneg %p181
      %p298 = pneg %p212
      %p299 = pneg %p209
      %s300 = smul.u32 26, %s23
      %p301 = scmp.lt.s32.totalorder %s22, 1
      %s302 = scalar_select %p301, %s22, 1
      %p303 = scmp.lt.s32.totalorder %s300, 25
      %s304 = scalar_select %p303, %s300, 25
      %s305 = smul.addr %s302, 26
      %s306 = sadd.s32 %s304, %s305
      %s307 = smul.addr %s306, 4
      %s308 = scalar_lea.vmem %s7, %s307
      %s309 = smul.u32 26, %s23
      %p310 = scmp.lt.s32.totalorder %s22, 1
      %s311 = scalar_select %p310, %s22, 1
      %p312 = scmp.lt.s32.totalorder %s309, 25
      %s313 = scalar_select %p312, %s309, 25
      %s314 = smul.addr %s311, 26
      %s315 = sadd.s32 %s313, %s314
      %s316 = smul.addr %s315, 4
      %s317 = scalar_lea.vmem %s0, %s316
      %s318 = smul.u32 26, %s23
      %p319 = scmp.lt.s32.totalorder %s22, 1
      %s320 = scalar_select %p319, %s22, 1
      %s321 = scalar_lea.vmem %s1, %s320
      %s322 = smul.u32 26, %s23
      %p323 = scmp.lt.s32.totalorder %s22, 1
      %s324 = scalar_select %p323, %s22, 1
      %p325 = scmp.lt.s32.totalorder %s322, 25
      %s326 = scalar_select %p325, %s322, 25
      %s327 = smul.addr %s324, 26
      %s328 = sadd.s32 %s326, %s327
      %s329 = smul.addr %s328, 4
      %s330 = scalar_lea.vmem %s7, %s329
      %s331 = smul.u32 26, %s23
      %v333 = vld [vmem:[%s317] sm:$0xf]
      %v334 = vld [vmem:[%s317 + $0x4] sm:$0xf]
      %v335 = vld [vmem:[%s317 + $0x8] sm:$0xf]
      %v336 = vld [vmem:[%s317 + $0xc] sm:$0xf]
      %v337 = vld [vmem:[%s317 + $0x10] sm:$0xf]
      %v338 = vld [vmem:[%s317 + $0x14] sm:$0xf]
      %v339 = vld [vmem:[%s317 + $0x18] sm:$0xf]
      %v340 = vld [vmem:[%s317 + $0x1c] sm:$0xf]
      %v341 = vld [vmem:[%s317 + $0x20] sm:$0xf]
      %v342 = vld [vmem:[%s317 + $0x24] sm:$0xf]
      %v343 = vld [vmem:[%s317 + $0x28] sm:$0xf]
      %v344 = vld [vmem:[%s317 + $0x2c] sm:$0xf]
      %v345 = vld [vmem:[%s317 + $0x30] sm:$0xf]
      %v346 = vld [vmem:[%s317 + $0x34] sm:$0xf]
      %v347 = vld [vmem:[%s317 + $0x38] sm:$0xf]
      %v348 = vld [vmem:[%s317 + $0x3c] sm:$0xf]
      %v349 = vld [vmem:[%s317 + $0x40] sm:$0xf]
      %v350 = vld [vmem:[%s317 + $0x44] sm:$0xf]
      %v351 = vld [vmem:[%s317 + $0x48] sm:$0xf]
      %v352 = vld [vmem:[%s317 + $0x4c] sm:$0xf]
      %v353 = vld [vmem:[%s317 + $0x50] sm:$0xf]
      %v354 = vld [vmem:[%s317 + $0x54] sm:$0xf]
      %v355 = vld [vmem:[%s317 + $0x58] sm:$0xf]
      %v356 = vld [vmem:[%s317 + $0x5c] sm:$0xf]
      %v357 = vld [vmem:[%s317 + $0x60] sm:$0xf]
      %v358 = vld [vmem:[%s317 + $0x64] sm:$0xf]
      %v359 = vld [vmem:[%s321] sm:$0x1]
      %v360 = vld [vmem:[%s2] sm:$0xf]
      %v361 = vld [vmem:[%s2 + $0x4] sm:$0xf]
      %v362 = vld [vmem:[%s2 + $0x8] sm:$0xf]
      %v363 = vld [vmem:[%s2 + $0xc] sm:$0xf]
      %v364 = vld [vmem:[%s3] sm:$0xf]
      %v365 = vld [vmem:[%s3 + $0x4] sm:$0xf]
      %v366 = vld [vmem:[%s3 + $0x8] sm:$0xf]
      %v367 = vld [vmem:[%s3 + $0xc] sm:$0xf]
      %v368 = vld [vmem:[%s5] sm:$0xf]
      %v369 = vld [vmem:[%s5 + $0x4] sm:$0xf]
      %v370 = vld [vmem:[%s5 + $0x8] sm:$0xf]
      %v371 = vld [vmem:[%s5 + $0xc] sm:$0xf]
      %v372 = vld [vmem:[%s6] sm:$0x1]
      %v373 = vld [vmem:[%s4] sm:$0x1]
      %v400 = vunpack.c.l.b16 %v333
      %v401 = vunpack.c.l.b16 %v334
      %v402 = vunpack.c.l.b16 %v335
      %v403 = vunpack.c.l.b16 %v336
      %v404 = vunpack.c.l.b16 %v337
      %v405 = vunpack.c.l.b16 %v338
      %v406 = vunpack.c.l.b16 %v339
      %v407 = vunpack.c.l.b16 %v340
      %v408 = vunpack.c.l.b16 %v341
      %v409 = vunpack.c.l.b16 %v342
      %v410 = vunpack.c.l.b16 %v343
      %v411 = vunpack.c.l.b16 %v344
      %v412 = vunpack.c.l.b16 %v345
      %v413 = vunpack.c.l.b16 %v346
      %v414 = vunpack.c.l.b16 %v347
      %v415 = vunpack.c.l.b16 %v348
      %v416 = vunpack.c.l.b16 %v349
      %v417 = vunpack.c.l.b16 %v350
      %v418 = vunpack.c.l.b16 %v351
      %v419 = vunpack.c.l.b16 %v352
      %v420 = vunpack.c.l.b16 %v353
      %v421 = vunpack.c.l.b16 %v354
      %v422 = vunpack.c.l.b16 %v355
      %v423 = vunpack.c.l.b16 %v356
      %v424 = vunpack.c.l.b16 %v357
      %v425 = vunpack.c.l.b16 %v358
      %v426 = vpack.c.b16 %v401, %v400
      %v427 = vpack.c.b16 %v403, %v402
      %v428 = vpack.c.b16 %v405, %v404
      %v429 = vpack.c.b16 %v407, %v406
      %v430 = vpack.c.b16 %v409, %v408
      %v431 = vpack.c.b16 %v411, %v410
      %v432 = vpack.c.b16 %v413, %v412
      %v433 = vpack.c.b16 %v415, %v414
      %v434 = vpack.c.b16 %v417, %v416
      %v435 = vpack.c.b16 %v419, %v418
      %v436 = vpack.c.b16 %v421, %v420
      %v437 = vpack.c.b16 %v423, %v422
      %v438 = vpack.c.b16 %v425, %v424
      %v443 = vunpack.c.l.b16 %v360
      %v444 = vunpack.c.l.b16 %v361
      %v445 = vunpack.c.l.b16 %v362
      %v446 = vunpack.c.l.b16 %v363
      %v447 = vpack.c.b16 %v444, %v443
      %v448 = vpack.c.b16 %v446, %v445
      %vm451 = vcmask 261120
      %v453 = vsel %vm451, %v426, 0
      %v456 = vsel %vm451, %v427, 0
      %v459 = vsel %vm451, %v428, 0
      %v462 = vsel %vm451, %v429, 0
      %v465 = vsel %vm451, %v430, 0
      %v468 = vsel %vm451, %v431, 0
      %v471 = vsel %vm451, %v432, 0
      %v474 = vsel %vm451, %v433, 0
      %v477 = vsel %vm451, %v434, 0
      %v480 = vsel %vm451, %v435, 0
      %v483 = vsel %vm451, %v436, 0
      %v486 = vsel %vm451, %v437, 0
      %v489 = vsel %vm451, %v438, 0
      %491 = vmatprep.subr.bf16.mxu0 0
      %492 = vmatpush1.bf16.msra.mxu0 0
      %493 = vmatprep.subr.bf16.mxu0 0
      %494 = vmatpush1.bf16.msra.mxu0 0
      %495 = vmatprep.subr.bf16.mxu0 0
      %496 = vmatpush1.bf16.msra.mxu0 0
      %497 = vmatprep.subr.bf16.mxu0 0
      %498 = vmatpush1.bf16.msra.mxu0 0
      %499 = vmatprep.subr.bf16.mxu0 0
      %500 = vmatpush1.bf16.msra.mxu0 0
      %501 = vmatprep.subr.bf16.mxu0 0
      %502 = vmatpush1.bf16.msra.mxu0 0
      %503 = vmatprep.subr.bf16.mxu0 0
      %504 = vmatpush1.bf16.msra.mxu0 %v448
      %505 = vmatprep.subr.bf16.mxu0 0
      %506 = vmatpush1.bf16.msra.mxu0 %v447
      %507 = vmatprep.subr.bf16.mxu0 0
      %508 = vmatpush2.bf16.msra.mxu0 0
      %509 = vmatprep.subr.bf16.mxu0 0
      %510 = vmatpush2.bf16.msra.mxu0 0
      %511 = vmatprep.subr.bf16.mxu0 0
      %512 = vmatpush2.bf16.msra.mxu0 0
      %513 = vmatprep.subr.bf16.mxu0 0
      %514 = vmatpush2.bf16.msra.mxu0 0
      %515 = vmatprep.subr.bf16.mxu0 0
      %516 = vmatpush2.bf16.msra.mxu0 0
      %517 = vmatprep.subr.bf16.mxu0 0
      %518 = vmatpush2.bf16.msra.mxu0 0
      %519 = vmatprep.subr.bf16.mxu0 0
      %520 = vmatpush2.bf16.msra.mxu0 0
      %521 = vmatprep.subr.bf16.mxu0 0
      %522 = vmatpush2.bf16.msra.mxu0 0
      %523 = vmatprep.mubr.bf16.mxu0 0
      %524 = vmatmul.mubr.bf16.gmra.mxu0 %v453
      %v525 = vpop.f32.mrf.mxu0
      %v526 = vadd.f32 0.0, %v525
      %v527 = vpop.f32.mrf.mxu0
      %v528 = vpop.f32.mrf.mxu0
      %v529 = vadd.f32 0.0, %v528
      %v530 = vpop.f32.mrf.mxu0
      %531 = vmatprep.mubr.bf16.mxu0 0
      %532 = vmatmul.mubr.bf16.gmra.mxu0 %v456
      %v533 = vpop.f32.mrf.mxu0
      %v534 = vadd.f32 0.0, %v533
      %v535 = vpop.f32.mrf.mxu0
      %v536 = vpop.f32.mrf.mxu0
      %v537 = vadd.f32 0.0, %v536
      %v538 = vpop.f32.mrf.mxu0
      %539 = vmatprep.mubr.bf16.mxu0 0
      %540 = vmatmul.mubr.bf16.gmra.mxu0 %v459
      %v541 = vpop.f32.mrf.mxu0
      %v542 = vadd.f32 0.0, %v541
      %v543 = vpop.f32.mrf.mxu0
      %v544 = vpop.f32.mrf.mxu0
      %v545 = vadd.f32 0.0, %v544
      %v546 = vpop.f32.mrf.mxu0
      %547 = vmatprep.mubr.bf16.mxu0 0
      %548 = vmatmul.mubr.bf16.gmra.mxu0 %v462
      %v549 = vpop.f32.mrf.mxu0
      %v550 = vadd.f32 0.0, %v549
      %v551 = vpop.f32.mrf.mxu0
      %v552 = vpop.f32.mrf.mxu0
      %v553 = vadd.f32 0.0, %v552
      %v554 = vpop.f32.mrf.mxu0
      %555 = vmatprep.mubr.bf16.mxu0 0
      %556 = vmatmul.mubr.bf16.gmra.mxu0 %v465
      %v557 = vpop.f32.mrf.mxu0
      %v558 = vadd.f32 0.0, %v557
      %v559 = vpop.f32.mrf.mxu0
      %v560 = vpop.f32.mrf.mxu0
      %v561 = vadd.f32 0.0, %v560
      %v562 = vpop.f32.mrf.mxu0
      %563 = vmatprep.mubr.bf16.mxu0 0
      %564 = vmatmul.mubr.bf16.gmra.mxu0 %v468
      %v565 = vpop.f32.mrf.mxu0
      %v566 = vadd.f32 0.0, %v565
      %v567 = vpop.f32.mrf.mxu0
      %v568 = vpop.f32.mrf.mxu0
      %v569 = vadd.f32 0.0, %v568
      %v570 = vpop.f32.mrf.mxu0
      %571 = vmatprep.mubr.bf16.mxu0 0
      %572 = vmatmul.mubr.bf16.gmra.mxu0 %v471
      %v573 = vpop.f32.mrf.mxu0
      %v574 = vadd.f32 0.0, %v573
      %v575 = vpop.f32.mrf.mxu0
      %v576 = vpop.f32.mrf.mxu0
      %v577 = vadd.f32 0.0, %v576
      %v578 = vpop.f32.mrf.mxu0
      %579 = vmatprep.mubr.bf16.mxu0 0
      %580 = vmatmul.mubr.bf16.gmra.mxu0 %v474
      %v581 = vpop.f32.mrf.mxu0
      %v582 = vadd.f32 0.0, %v581
      %v583 = vpop.f32.mrf.mxu0
      %v584 = vpop.f32.mrf.mxu0
      %v585 = vadd.f32 0.0, %v584
      %v586 = vpop.f32.mrf.mxu0
      %587 = vmatprep.mubr.bf16.mxu0 0
      %588 = vmatmul.mubr.bf16.gmra.mxu0 %v477
      %v589 = vpop.f32.mrf.mxu0
      %v590 = vadd.f32 0.0, %v589
      %v591 = vpop.f32.mrf.mxu0
      %v592 = vpop.f32.mrf.mxu0
      %v593 = vadd.f32 0.0, %v592
      %v594 = vpop.f32.mrf.mxu0
      %595 = vmatprep.mubr.bf16.mxu0 0
      %596 = vmatmul.mubr.bf16.gmra.mxu0 %v480
      %v597 = vpop.f32.mrf.mxu0
      %v598 = vadd.f32 0.0, %v597
      %v599 = vpop.f32.mrf.mxu0
      %v600 = vpop.f32.mrf.mxu0
      %v601 = vadd.f32 0.0, %v600
      %v602 = vpop.f32.mrf.mxu0
      %603 = vmatprep.mubr.bf16.mxu0 0
      %604 = vmatmul.mubr.bf16.gmra.mxu0 %v483
      %v605 = vpop.f32.mrf.mxu0
      %v606 = vadd.f32 0.0, %v605
      %v607 = vpop.f32.mrf.mxu0
      %v608 = vpop.f32.mrf.mxu0
      %v609 = vadd.f32 0.0, %v608
      %v610 = vpop.f32.mrf.mxu0
      %611 = vmatprep.mubr.bf16.mxu0 0
      %612 = vmatmul.mubr.bf16.gmra.mxu0 %v486
      %v613 = vpop.f32.mrf.mxu0
      %v614 = vadd.f32 0.0, %v613
      %v615 = vpop.f32.mrf.mxu0
      %v616 = vpop.f32.mrf.mxu0
      %v617 = vadd.f32 0.0, %v616
      %v618 = vpop.f32.mrf.mxu0
      %619 = vmatprep.mubr.bf16.mxu0 0
      %620 = vmatmul.mubr.bf16.gmra.mxu0 %v489
      %v621 = vpop.f32.mrf.mxu0
      %v622 = vadd.f32 0.0, %v621
      %v623 = vpop.f32.mrf.mxu0
      %v624 = vpop.f32.mrf.mxu0
      %v625 = vadd.f32 0.0, %v624
      %v626 = vpop.f32.mrf.mxu0
      %627 = vdwg.mxu0
      %v629 = vlaneseq
      %v630 = vshrl.u32 %v629, 7
      %v631 = vsub.s32 0, %v630
      %v632 = vrot.slane %v373, %v631
      %v634 = vadd.f32 %v632, %v526
      %v635 = vadd.f32 %v632, %v529
      %v636 = vadd.f32 %v632, %v534
      %v637 = vadd.f32 %v632, %v537
      %v638 = vadd.f32 %v632, %v542
      %v639 = vadd.f32 %v632, %v545
      %v640 = vadd.f32 %v632, %v550
      %v641 = vadd.f32 %v632, %v553
      %v642 = vadd.f32 %v632, %v558
      %v643 = vadd.f32 %v632, %v561
      %v644 = vadd.f32 %v632, %v566
      %v645 = vadd.f32 %v632, %v569
      %v646 = vadd.f32 %v632, %v574
      %v647 = vadd.f32 %v632, %v577
      %v648 = vadd.f32 %v632, %v582
      %v649 = vadd.f32 %v632, %v585
      %v650 = vadd.f32 %v632, %v590
      %v651 = vadd.f32 %v632, %v593
      %v652 = vadd.f32 %v632, %v598
      %v653 = vadd.f32 %v632, %v601
      %v654 = vadd.f32 %v632, %v606
      %v655 = vadd.f32 %v632, %v609
      %v656 = vadd.f32 %v632, %v614
      %v657 = vadd.f32 %v632, %v617
      %v658 = vadd.f32 %v632, %v622
      %v659 = vadd.f32 %v632, %v625
      %v660 = vpack.c.bf16 %v359, %v359
      %v665 = vunpack.c.l.b16 %v364
      %v666 = vunpack.c.l.b16 %v365
      %v667 = vunpack.c.l.b16 %v366
      %v668 = vunpack.c.l.b16 %v367
      %v669 = vpack.c.b16 %v666, %v665
      %v670 = vpack.c.b16 %v668, %v667
      %v674 = vsel %vm451, %v660, 0
      %676 = vmatprep.subr.bf16.mxu0 0
      %677 = vmatpush1.bf16.msra.mxu0 0
      %678 = vmatprep.subr.bf16.mxu0 0
      %679 = vmatpush1.bf16.msra.mxu0 0
      %680 = vmatprep.subr.bf16.mxu0 0
      %681 = vmatpush1.bf16.msra.mxu0 0
      %682 = vmatprep.subr.bf16.mxu0 0
      %683 = vmatpush1.bf16.msra.mxu0 0
      %684 = vmatprep.subr.bf16.mxu0 0
      %685 = vmatpush1.bf16.msra.mxu0 0
      %686 = vmatprep.subr.bf16.mxu0 0
      %687 = vmatpush1.bf16.msra.mxu0 0
      %688 = vmatprep.subr.bf16.mxu0 0
      %689 = vmatpush1.bf16.msra.mxu0 %v670
      %690 = vmatprep.subr.bf16.mxu0 0
      %691 = vmatpush1.bf16.msra.mxu0 %v669
      %692 = vmatprep.subr.bf16.mxu0 0
      %693 = vmatpush2.bf16.msra.mxu0 0
      %694 = vmatprep.subr.bf16.mxu0 0
      %695 = vmatpush2.bf16.msra.mxu0 0
      %696 = vmatprep.subr.bf16.mxu0 0
      %697 = vmatpush2.bf16.msra.mxu0 0
      %698 = vmatprep.subr.bf16.mxu0 0
      %699 = vmatpush2.bf16.msra.mxu0 0
      %700 = vmatprep.subr.bf16.mxu0 0
      %701 = vmatpush2.bf16.msra.mxu0 0
      %702 = vmatprep.subr.bf16.mxu0 0
      %703 = vmatpush2.bf16.msra.mxu0 0
      %704 = vmatprep.subr.bf16.mxu0 0
      %705 = vmatpush2.bf16.msra.mxu0 0
      %706 = vmatprep.subr.bf16.mxu0 0
      %707 = vmatpush2.bf16.msra.mxu0 0
      %708 = vmatprep.mubr.bf16.mxu0 0
      %709 = vmatmul.mubr.bf16.gmra.mxu0 %v674
      %v710 = vpop.f32.mrf.mxu0
      %v711 = vadd.f32 0.0, %v710
      %v712 = vpop.f32.mrf.mxu0
      %v713 = vpop.f32.mrf.mxu0
      %v714 = vpop.f32.mrf.mxu0
      %715 = vdwg.mxu0
      %v716 = vlaneseq
      %v717 = vshrl.u32 %v716, 7
      %v718 = vsub.s32 0, %v717
      %v719 = vrot.slane %v711, %v718
      %v720 = vadd.f32 %v634, %v719
      %v721 = vadd.f32 %v635, %v719
      %v722 = vadd.f32 %v636, %v719
      %v723 = vadd.f32 %v637, %v719
      %v724 = vadd.f32 %v638, %v719
      %v725 = vadd.f32 %v639, %v719
      %v726 = vadd.f32 %v640, %v719
      %v727 = vadd.f32 %v641, %v719
      %v728 = vadd.f32 %v642, %v719
      %v729 = vadd.f32 %v643, %v719
      %v730 = vadd.f32 %v644, %v719
      %v731 = vadd.f32 %v645, %v719
      %v732 = vadd.f32 %v646, %v719
      %v733 = vadd.f32 %v647, %v719
      %v734 = vadd.f32 %v648, %v719
      %v735 = vadd.f32 %v649, %v719
      %v736 = vadd.f32 %v650, %v719
      %v737 = vadd.f32 %v651, %v719
      %v738 = vadd.f32 %v652, %v719
      %v739 = vadd.f32 %v653, %v719
      %v740 = vadd.f32 %v654, %v719
      %v741 = vadd.f32 %v655, %v719
      %v742 = vadd.f32 %v656, %v719
      %v743 = vadd.f32 %v657, %v719
      %v744 = vadd.f32 %v658, %v719
      %v745 = vadd.f32 %v659, %v719
      %v746 = vmax.f32 %v720, 0.0
      %v747 = vmax.f32 %v721, 0.0
      %v748 = vmax.f32 %v722, 0.0
      %v749 = vmax.f32 %v723, 0.0
      %v750 = vmax.f32 %v724, 0.0
      %v751 = vmax.f32 %v725, 0.0
      %v752 = vmax.f32 %v726, 0.0
      %v753 = vmax.f32 %v727, 0.0
      %v754 = vmax.f32 %v728, 0.0
      %v755 = vmax.f32 %v729, 0.0
      %v756 = vmax.f32 %v730, 0.0
      %v757 = vmax.f32 %v731, 0.0
      %v758 = vmax.f32 %v732, 0.0
      %v759 = vmax.f32 %v733, 0.0
      %v760 = vmax.f32 %v734, 0.0
      %v761 = vmax.f32 %v735, 0.0
      %v762 = vmax.f32 %v736, 0.0
      %v763 = vmax.f32 %v737, 0.0
      %v764 = vmax.f32 %v738, 0.0
      %v765 = vmax.f32 %v739, 0.0
      %v766 = vmax.f32 %v740, 0.0
      %v767 = vmax.f32 %v741, 0.0
      %v768 = vmax.f32 %v742, 0.0
      %v769 = vmax.f32 %v743, 0.0
      %v770 = vmax.f32 %v744, 0.0
      %v771 = vmax.f32 %v745, 0.0
      %v772 = vpack.c.bf16 %v747, %v746
      %v773 = vpack.c.bf16 %v749, %v748
      %v774 = vpack.c.bf16 %v751, %v750
      %v775 = vpack.c.bf16 %v753, %v752
      %v776 = vpack.c.bf16 %v755, %v754
      %v777 = vpack.c.bf16 %v757, %v756
      %v778 = vpack.c.bf16 %v759, %v758
      %v779 = vpack.c.bf16 %v761, %v760
      %v780 = vpack.c.bf16 %v763, %v762
      %v781 = vpack.c.bf16 %v765, %v764
      %v782 = vpack.c.bf16 %v767, %v766
      %v783 = vpack.c.bf16 %v769, %v768
      %v784 = vpack.c.bf16 %v771, %v770
      %v786 = vlaneseq
      %v787 = vshrl.u32 %v786, 7
      %v788 = vsub.s32 0, %v787
      %v789 = vrot.slane %v372, %v788
      %v795 = vunpack.c.l.b16 %v368
      %v796 = vunpack.c.l.b16 %v369
      %v797 = vunpack.c.l.b16 %v370
      %v798 = vunpack.c.l.b16 %v371
      %v799 = vpack.c.b16 %v796, %v795
      %v800 = vpack.c.b16 %v798, %v797
      %v804 = vsel %vm451, %v772, 0
      %v807 = vsel %vm451, %v773, 0
      %v810 = vsel %vm451, %v774, 0
      %v813 = vsel %vm451, %v775, 0
      %v816 = vsel %vm451, %v776, 0
      %v819 = vsel %vm451, %v777, 0
      %v822 = vsel %vm451, %v778, 0
      %v825 = vsel %vm451, %v779, 0
      %v828 = vsel %vm451, %v780, 0
      %v831 = vsel %vm451, %v781, 0
      %v834 = vsel %vm451, %v782, 0
      %v837 = vsel %vm451, %v783, 0
      %v840 = vsel %vm451, %v784, 0
      %842 = vmatprep.subr.bf16.mxu0 0
      %843 = vmatpush1.bf16.msra.mxu0 0
      %844 = vmatprep.subr.bf16.mxu0 0
      %845 = vmatpush1.bf16.msra.mxu0 0
      %846 = vmatprep.subr.bf16.mxu0 0
      %847 = vmatpush1.bf16.msra.mxu0 0
      %848 = vmatprep.subr.bf16.mxu0 0
      %849 = vmatpush1.bf16.msra.mxu0 0
      %850 = vmatprep.subr.bf16.mxu0 0
      %851 = vmatpush1.bf16.msra.mxu0 0
      %852 = vmatprep.subr.bf16.mxu0 0
      %853 = vmatpush1.bf16.msra.mxu0 0
      %854 = vmatprep.subr.bf16.mxu0 0
      %855 = vmatpush1.bf16.msra.mxu0 %v800
      %856 = vmatprep.subr.bf16.mxu0 0
      %857 = vmatpush1.bf16.msra.mxu0 %v799
      %858 = vmatprep.subr.bf16.mxu0 0
      %859 = vmatpush2.bf16.msra.mxu0 0
      %860 = vmatprep.subr.bf16.mxu0 0
      %861 = vmatpush2.bf16.msra.mxu0 0
      %862 = vmatprep.subr.bf16.mxu0 0
      %863 = vmatpush2.bf16.msra.mxu0 0
      %864 = vmatprep.subr.bf16.mxu0 0
      %865 = vmatpush2.bf16.msra.mxu0 0
      %866 = vmatprep.subr.bf16.mxu0 0
      %867 = vmatpush2.bf16.msra.mxu0 0
      %868 = vmatprep.subr.bf16.mxu0 0
      %869 = vmatpush2.bf16.msra.mxu0 0
      %870 = vmatprep.subr.bf16.mxu0 0
      %871 = vmatpush2.bf16.msra.mxu0 0
      %872 = vmatprep.subr.bf16.mxu0 0
      %873 = vmatpush2.bf16.msra.mxu0 0
      %874 = vmatprep.mubr.bf16.mxu0 0
      %875 = vmatmul.mubr.bf16.gmra.mxu0 %v804
      %v876 = vpop.f32.mrf.mxu0
      %v877 = vadd.f32 %v789, %v876
      %v878 = vpop.f32.mrf.mxu0
      %v879 = vpop.f32.mrf.mxu0
      %v880 = vadd.f32 %v789, %v879
      %v881 = vpop.f32.mrf.mxu0
      %882 = vmatprep.mubr.bf16.mxu0 0
      %883 = vmatmul.mubr.bf16.gmra.mxu0 %v807
      %v884 = vpop.f32.mrf.mxu0
      %v885 = vadd.f32 %v789, %v884
      %v886 = vpop.f32.mrf.mxu0
      %v887 = vpop.f32.mrf.mxu0
      %v888 = vadd.f32 %v789, %v887
      %v889 = vpop.f32.mrf.mxu0
      %890 = vmatprep.mubr.bf16.mxu0 0
      %891 = vmatmul.mubr.bf16.gmra.mxu0 %v810
      %v892 = vpop.f32.mrf.mxu0
      %v893 = vadd.f32 %v789, %v892
      %v894 = vpop.f32.mrf.mxu0
      %v895 = vpop.f32.mrf.mxu0
      %v896 = vadd.f32 %v789, %v895
      %v897 = vpop.f32.mrf.mxu0
      %898 = vmatprep.mubr.bf16.mxu0 0
      %899 = vmatmul.mubr.bf16.gmra.mxu0 %v813
      %v900 = vpop.f32.mrf.mxu0
      %v901 = vadd.f32 %v789, %v900
      %v902 = vpop.f32.mrf.mxu0
      %v903 = vpop.f32.mrf.mxu0
      %v904 = vadd.f32 %v789, %v903
      %v905 = vpop.f32.mrf.mxu0
      %906 = vmatprep.mubr.bf16.mxu0 0
      %907 = vmatmul.mubr.bf16.gmra.mxu0 %v816
      %v908 = vpop.f32.mrf.mxu0
      %v909 = vadd.f32 %v789, %v908
      %v910 = vpop.f32.mrf.mxu0
      %v911 = vpop.f32.mrf.mxu0
      %v912 = vadd.f32 %v789, %v911
      %v913 = vpop.f32.mrf.mxu0
      %914 = vmatprep.mubr.bf16.mxu0 0
      %915 = vmatmul.mubr.bf16.gmra.mxu0 %v819
      %v916 = vpop.f32.mrf.mxu0
      %v917 = vadd.f32 %v789, %v916
      %v918 = vpop.f32.mrf.mxu0
      %v919 = vpop.f32.mrf.mxu0
      %v920 = vadd.f32 %v789, %v919
      %v921 = vpop.f32.mrf.mxu0
      %922 = vmatprep.mubr.bf16.mxu0 0
      %923 = vmatmul.mubr.bf16.gmra.mxu0 %v822
      %v924 = vpop.f32.mrf.mxu0
      %v925 = vadd.f32 %v789, %v924
      %v926 = vpop.f32.mrf.mxu0
      %v927 = vpop.f32.mrf.mxu0
      %v928 = vadd.f32 %v789, %v927
      %v929 = vpop.f32.mrf.mxu0
      %930 = vmatprep.mubr.bf16.mxu0 0
      %931 = vmatmul.mubr.bf16.gmra.mxu0 %v825
      %v932 = vpop.f32.mrf.mxu0
      %v933 = vadd.f32 %v789, %v932
      %v934 = vpop.f32.mrf.mxu0
      %v935 = vpop.f32.mrf.mxu0
      %v936 = vadd.f32 %v789, %v935
      %v937 = vpop.f32.mrf.mxu0
      %938 = vmatprep.mubr.bf16.mxu0 0
      %939 = vmatmul.mubr.bf16.gmra.mxu0 %v828
      %v940 = vpop.f32.mrf.mxu0
      %v941 = vadd.f32 %v789, %v940
      %v942 = vpop.f32.mrf.mxu0
      %v943 = vpop.f32.mrf.mxu0
      %v944 = vadd.f32 %v789, %v943
      %v945 = vpop.f32.mrf.mxu0
      %946 = vmatprep.mubr.bf16.mxu0 0
      %947 = vmatmul.mubr.bf16.gmra.mxu0 %v831
      %v948 = vpop.f32.mrf.mxu0
      %v949 = vadd.f32 %v789, %v948
      %v950 = vpop.f32.mrf.mxu0
      %v951 = vpop.f32.mrf.mxu0
      %v952 = vadd.f32 %v789, %v951
      %v953 = vpop.f32.mrf.mxu0
      %954 = vmatprep.mubr.bf16.mxu0 0
      %955 = vmatmul.mubr.bf16.gmra.mxu0 %v834
      %v956 = vpop.f32.mrf.mxu0
      %v957 = vadd.f32 %v789, %v956
      %v958 = vpop.f32.mrf.mxu0
      %v959 = vpop.f32.mrf.mxu0
      %v960 = vadd.f32 %v789, %v959
      %v961 = vpop.f32.mrf.mxu0
      %962 = vmatprep.mubr.bf16.mxu0 0
      %963 = vmatmul.mubr.bf16.gmra.mxu0 %v837
      %v964 = vpop.f32.mrf.mxu0
      %v965 = vadd.f32 %v789, %v964
      %v966 = vpop.f32.mrf.mxu0
      %v967 = vpop.f32.mrf.mxu0
      %v968 = vadd.f32 %v789, %v967
      %v969 = vpop.f32.mrf.mxu0
      %970 = vmatprep.mubr.bf16.mxu0 0
      %971 = vmatmul.mubr.bf16.gmra.mxu0 %v840
      %v972 = vpop.f32.mrf.mxu0
      %v973 = vadd.f32 %v789, %v972
      %v974 = vpop.f32.mrf.mxu0
      %v975 = vpop.f32.mrf.mxu0
      %v976 = vadd.f32 %v789, %v975
      %v977 = vpop.f32.mrf.mxu0
      %978 = vdwg.mxu0
      %v979 = vpack.c.bf16 %v880, %v877
      %v980 = vpack.c.bf16 %v888, %v885
      %v981 = vpack.c.bf16 %v896, %v893
      %v982 = vpack.c.bf16 %v904, %v901
      %v983 = vpack.c.bf16 %v912, %v909
      %v984 = vpack.c.bf16 %v920, %v917
      %v985 = vpack.c.bf16 %v928, %v925
      %v986 = vpack.c.bf16 %v936, %v933
      %v987 = vpack.c.bf16 %v944, %v941
      %v988 = vpack.c.bf16 %v952, %v949
      %v989 = vpack.c.bf16 %v960, %v957
      %v990 = vpack.c.bf16 %v968, %v965
      %v991 = vpack.c.bf16 %v976, %v973
      %v1005 = vunpack.c.l.b16 %v979
      %v1006 = vunpack.c.h.b16 %v979
      %v1007 = vunpack.c.l.b16 %v980
      %v1008 = vunpack.c.h.b16 %v980
      %v1009 = vunpack.c.l.b16 %v981
      %v1010 = vunpack.c.h.b16 %v981
      %v1011 = vunpack.c.l.b16 %v982
      %v1012 = vunpack.c.h.b16 %v982
      %v1013 = vunpack.c.l.b16 %v983
      %v1014 = vunpack.c.h.b16 %v983
      %v1015 = vunpack.c.l.b16 %v984
      %v1016 = vunpack.c.h.b16 %v984
      %v1017 = vunpack.c.l.b16 %v985
      %v1018 = vunpack.c.h.b16 %v985
      %v1019 = vunpack.c.l.b16 %v986
      %v1020 = vunpack.c.h.b16 %v986
      %v1021 = vunpack.c.l.b16 %v987
      %v1022 = vunpack.c.h.b16 %v987
      %v1023 = vunpack.c.l.b16 %v988
      %v1024 = vunpack.c.h.b16 %v988
      %v1025 = vunpack.c.l.b16 %v989
      %v1026 = vunpack.c.h.b16 %v989
      %v1027 = vunpack.c.l.b16 %v990
      %v1028 = vunpack.c.h.b16 %v990
      %v1029 = vunpack.c.l.b16 %v991
      %v1030 = vunpack.c.h.b16 %v991
      %v1031 = vpack.c.b16 %v1005, %v1005
      %v1032 = vpack.c.b16 %v1006, %v1006
      %v1033 = vpack.c.b16 %v1007, %v1007
      %v1034 = vpack.c.b16 %v1008, %v1008
      %v1035 = vpack.c.b16 %v1009, %v1009
      %v1036 = vpack.c.b16 %v1010, %v1010
      %v1037 = vpack.c.b16 %v1011, %v1011
      %v1038 = vpack.c.b16 %v1012, %v1012
      %v1039 = vpack.c.b16 %v1013, %v1013
      %v1040 = vpack.c.b16 %v1014, %v1014
      %v1041 = vpack.c.b16 %v1015, %v1015
      %v1042 = vpack.c.b16 %v1016, %v1016
      %v1043 = vpack.c.b16 %v1017, %v1017
      %v1044 = vpack.c.b16 %v1018, %v1018
      %v1045 = vpack.c.b16 %v1019, %v1019
      %v1046 = vpack.c.b16 %v1020, %v1020
      %v1047 = vpack.c.b16 %v1021, %v1021
      %v1048 = vpack.c.b16 %v1022, %v1022
      %v1049 = vpack.c.b16 %v1023, %v1023
      %v1050 = vpack.c.b16 %v1024, %v1024
      %v1051 = vpack.c.b16 %v1025, %v1025
      %v1052 = vpack.c.b16 %v1026, %v1026
      %v1053 = vpack.c.b16 %v1027, %v1027
      %v1054 = vpack.c.b16 %v1028, %v1028
      %v1055 = vpack.c.b16 %v1029, %v1029
      %v1056 = vpack.c.b16 %v1030, %v1030
      %vm1083 = vcmask 125952
      %1084 = vst.msk [vmem:[%s330] sm:$0xf] %vm1083, %v1031
      %1085 = vst.msk [vmem:[%s330 + $0x4] sm:$0xf] %vm1083, %v1032
      %1086 = vst.msk [vmem:[%s330 + $0x8] sm:$0xf] %vm1083, %v1033
      %1087 = vst.msk [vmem:[%s330 + $0xc] sm:$0xf] %vm1083, %v1034
      %1088 = vst.msk [vmem:[%s330 + $0x10] sm:$0xf] %vm1083, %v1035
      %1089 = vst.msk [vmem:[%s330 + $0x14] sm:$0xf] %vm1083, %v1036
      %1090 = vst.msk [vmem:[%s330 + $0x18] sm:$0xf] %vm1083, %v1037
      %1091 = vst.msk [vmem:[%s330 + $0x1c] sm:$0xf] %vm1083, %v1038
      %1092 = vst.msk [vmem:[%s330 + $0x20] sm:$0xf] %vm1083, %v1039
      %1093 = vst.msk [vmem:[%s330 + $0x24] sm:$0xf] %vm1083, %v1040
      %1094 = vst.msk [vmem:[%s330 + $0x28] sm:$0xf] %vm1083, %v1041
      %1095 = vst.msk [vmem:[%s330 + $0x2c] sm:$0xf] %vm1083, %v1042
      %1096 = vst.msk [vmem:[%s330 + $0x30] sm:$0xf] %vm1083, %v1043
      %1097 = vst.msk [vmem:[%s330 + $0x34] sm:$0xf] %vm1083, %v1044
      %1098 = vst.msk [vmem:[%s330 + $0x38] sm:$0xf] %vm1083, %v1045
      %1099 = vst.msk [vmem:[%s330 + $0x3c] sm:$0xf] %vm1083, %v1046
      %1100 = vst.msk [vmem:[%s330 + $0x40] sm:$0xf] %vm1083, %v1047
      %1101 = vst.msk [vmem:[%s330 + $0x44] sm:$0xf] %vm1083, %v1048
      %1102 = vst.msk [vmem:[%s330 + $0x48] sm:$0xf] %vm1083, %v1049
      %1103 = vst.msk [vmem:[%s330 + $0x4c] sm:$0xf] %vm1083, %v1050
      %1104 = vst.msk [vmem:[%s330 + $0x50] sm:$0xf] %vm1083, %v1051
      %1105 = vst.msk [vmem:[%s330 + $0x54] sm:$0xf] %vm1083, %v1052
      %1106 = vst.msk [vmem:[%s330 + $0x58] sm:$0xf] %vm1083, %v1053
      %1107 = vst.msk [vmem:[%s330 + $0x5c] sm:$0xf] %vm1083, %v1054
      %1108 = vst.msk [vmem:[%s330 + $0x60] sm:$0xf] %vm1083, %v1055
      %1109 = vst.msk [vmem:[%s330 + $0x64] sm:$0xf] %vm1083, %v1056
      %s1110 = smul.u32 26, %s23
      %p1111 = scmp.lt.s32.totalorder %s22, 1
      %s1112 = scalar_select %p1111, %s22, 1
      %p1113 = scmp.lt.s32.totalorder %s1110, 25
      %s1114 = scalar_select %p1113, %s1110, 25
      %s1115 = smul.addr %s1112, 26
      %s1116 = sadd.s32 %s1114, %s1115
      %s1117 = smul.addr %s1116, 4
      %s1118 = scalar_lea.vmem %s7, %s1117
      // Predicated region
      $region49: #{_lambda_.7} parent=47 // pred_check
        %p1119 = pneg %p209
      $region50: #{_lambda_.7} parent=47 // pred_check_branch
        %1121 = sbr.rel (%p1119) target = $region52
      $region51: #{_lambda_.7} parent=47 // pred_region
        %s1122 = smul.u32 26, %s23
      $region52: #{_lambda_.7} parent=47 // pred_fallthru
        _
    $region48: #{_lambda_.7} parent=5 // pred_fallthru
      _
    %p1123 = scmp.le.s32.totalorder 2, %s13
    // Predicated region
    $region53: #{_lambda_.7} parent=5 // pred_check
      %p1124 = pneg %p1123
    $region54: #{_lambda_.7} parent=5 // pred_check_branch
      %1126 = sbr.rel (%p1124) target = $region56
    $region55: #{_lambda_.7} parent=5 // pred_region
      %s1127 = ssub.s32 %s13, 2
      // Predicated region
      $region57: #{_lambda_.7} parent=55 // pred_check
        %p1128 = pneg %p215
      $region58: #{_lambda_.7} parent=55 // pred_check_branch
        %1130 = sbr.rel (%p1128) target = $region60
      $region59: #{_lambda_.7} parent=55 // pred_region
        %s1131 = smul.u32 26, %s25
        %p1132 = scmp.lt.s32.totalorder %s24, 1
        %s1133 = scalar_select %p1132, %s24, 1
        %p1134 = scmp.lt.s32.totalorder %s1131, 25
        %s1135 = scalar_select %p1134, %s1131, 25
        %s1136 = smul.addr %s1133, 26
        %s1137 = sadd.s32 %s1135, %s1136
        %s1138 = smul.addr %s1137, 4
        %s1139 = scalar_lea.vmem %s7, %s1138
      $region60: #{_lambda_.7} parent=55 // pred_fallthru
        _
    $region56: #{_lambda_.7} parent=5 // pred_fallthru
      _
  $region6: #{_lambda_.7} parent=0 // loop_footer
    %s17 = sadd.s32 1, %s13
  $region7: #{_lambda_.7} parent=0 // loop_footer_branch
    %12 = sbr.rel target = $region3
  $region8: #{_lambda_.7} parent=0 // loop_exit
    _

// kernel: _lambda_.5
$region0: #{_lambda_.5}
  #allocation0 [shape = 'u32[]', space=smem, size = 0x4, offset = 0x4, fixed_abs, tag = 'smem constant byte address 0x4 - core index']
  #allocation1 [shape = 'u32[144,128]{1,0:T(1,128)}', space=vmem, size = 0x12000, scoped, tag = 'internal scratch']
  %s0 = inlined_call_operand.vmem [shape: f32[2,208,6], index: 0, kind: input, shape index: {}]
  %s1 = inlined_call_operand.vmem [shape: f32[2,208,2], index: 1, kind: input, shape index: {}]
  %s2 = inlined_call_operand.vmem [shape: f32[2,208,2], index: 2, kind: input, shape index: {}]
  %s3 = inlined_call_operand.vmem [shape: bf16[2,32], index: 3, kind: input, shape index: {}]
  %s4 = inlined_call_operand.vmem [shape: f32[1,32], index: 4, kind: input, shape index: {}]
  %s5 = inlined_call_operand.vmem [shape: bf16[32,16], index: 5, kind: input, shape index: {}]
  %s6 = inlined_call_operand.vmem [shape: f32[1,16], index: 6, kind: input, shape index: {}]
  %s7 = inlined_call_operand.vmem [shape: bf16[6,32], index: 7, kind: input, shape index: {}]
  %s8 = inlined_call_operand.vmem [shape: bf16[8,32], index: 8, kind: input, shape index: {}]
  %s9 = inlined_call_operand.vmem [shape: f32[1,32], index: 9, kind: input, shape index: {}]
  %s10 = inlined_call_operand.vmem [shape: bf16[2,208,32], index: 10, kind: output, shape index: {0}]
  %s11 = inlined_call_operand.vmem [shape: f32[2,1,32], index: 11, kind: output, shape index: {1}]
  %12 = xla_tuple %s10, %s11
  %s13 = sld [smem:[#allocation0]]
  $region89: #{_lambda_.5} parent=0
    _
  %s15 = ssub.s32 1, %s13
  %s16 = scalar_select 0, %s15, %s13
  loop: start=0, step=1, limit=4
  $region2: #{_lambda_.5} parent=0 // loop_pre_header
    _
  $region3: #{_lambda_.5} parent=0 // loop_header
    %s18 = sphi 0, %s22
    %p19 = scmp.ge.s32.totalorder %s18, 4
    %s25 = sphi 0, %s37
    %s26 = sphi 0, %s33
    %s27 = sphi 0, %s25
    %s28 = sphi 0, %s26
    %s29 = sphi 0, %s27
    %s30 = sphi 0, %s28
    %s42 = sphi 0, %s44
    %s45 = sphi 0, %s42
    %s46 = sphi 0, %s45
    %s62 = sphi 0, %s46
    %s70 = sphi 0, %s72
    %s73 = sphi 0, %s70
    %s74 = sphi 0, %s73
    %s90 = sphi 0, %s74
    %s98 = sphi 0, %s100
    %s101 = sphi 0, %s98
    %s102 = sphi 0, %s101
    %s118 = sphi 0, %s102
    %s122 = sphi 0, %s122
    %s124 = sphi 0, %s122
    %s125 = sphi 0, %s124
    %s139 = sphi 0, %s125
    %s143 = sphi 0, %s143
    %s145 = sphi 0, %s143
    %s146 = sphi 0, %s145
    %s160 = sphi 0, %s146
    %s164 = sphi 0, %s164
    %s166 = sphi 0, %s164
    %s167 = sphi 0, %s166
    %s181 = sphi 0, %s167
    %s185 = sphi 0, %s185
    %s187 = sphi 0, %s185
    %s188 = sphi 0, %s187
    %s202 = sphi 0, %s188
    %s206 = sphi 0, %s206
    %s208 = sphi 0, %s206
    %s209 = sphi 0, %s208
    %s223 = sphi 0, %s209
    %s227 = sphi 0, %s227
    %s229 = sphi 0, %s227
    %s230 = sphi 0, %s229
    %s244 = sphi 0, %s230
    %s248 = sphi 0, %s248
    %s250 = sphi 0, %s248
    %s251 = sphi 0, %s250
    %s265 = sphi 0, %s251
    %s273 = sphi 0, %s275
    %s276 = sphi 0, %s273
    %s277 = sphi 0, %s276
    %s293 = sphi 0, %s277
    %s299 = sphi 0, %s301
    %s302 = sphi 0, %s299
    %s303 = sphi 0, %s302
    %s319 = sphi 0, %s303
  $region4: #{_lambda_.5} parent=0 // loop_header_branch
    %21 = sbr.rel (%p19) target = $region8
  $region5: #{_lambda_.5} parent=0 // loop_body
    %s23 = ssub.s32 %s18, 1
    %s24 = ssub.s32 %s18, 2
    %s31 = sadd.s32 1, %s26
    %p32 = scmp.ge.s32.totalorder %s31, 1
    %s33 = scalar_select %p32, 0, %s31
    %s34 = sadd.s32 1, %s25
    %s35 = scalar_select %p32, %s34, %s25
    %p36 = scmp.ge.s32.totalorder %s35, 2
    %s37 = scalar_select %p36, 0, %s35
    %s38 = ssub.s32 %s25, %s37
    %s39 = ssub.s32 %s26, %s33
    %s40 = sor.u32 %s38, %s39
    %p41 = scmp.eq.s32.totalorder %s40, 0
    %s43 = sadd.s32 %s42, 1
    %s44 = scalar_select %p41, %s42, %s43
    %p47 = pneg %p41
    %p48 = scmp.eq.s32.totalorder %s18, 1
    %p49 = por %p47, %p48
    %p50 = scmp.ne.s32.totalorder %s42, %s45
    %p51 = scmp.eq.s32.totalorder %s18, 0
    %p52 = por %p50, %p51
    %p53 = scmp.ne.s32.totalorder %s42, %s45
    %p54 = scmp.eq.s32.totalorder %s23, 1
    %p55 = por %p53, %p54
    %p56 = scmp.ne.s32.totalorder %s45, %s46
    %p57 = scmp.eq.s32.totalorder %s23, 0
    %p58 = por %p56, %p57
    %p59 = scmp.ne.s32.totalorder %s45, %s46
    %p60 = scmp.eq.s32.totalorder %s24, 1
    %p61 = por %p59, %p60
    %p63 = scmp.ne.s32.totalorder %s46, %s62
    %p64 = scmp.eq.s32.totalorder %s24, 0
    %p65 = por %p63, %p64
    %s66 = ssub.s32 %s25, %s37
    %s67 = ssub.s32 %s26, %s33
    %s68 = sor.u32 %s66, %s67
    %p69 = scmp.eq.s32.totalorder %s68, 0
    %s71 = sadd.s32 %s70, 1
    %s72 = scalar_select %p69, %s70, %s71
    %p75 = pneg %p69
    %p76 = scmp.eq.s32.totalorder %s18, 1
    %p77 = por %p75, %p76
    %p78 = scmp.ne.s32.totalorder %s70, %s73
    %p79 = scmp.eq.s32.totalorder %s18, 0
    %p80 = por %p78, %p79
    %p81 = scmp.ne.s32.totalorder %s70, %s73
    %p82 = scmp.eq.s32.totalorder %s23, 1
    %p83 = por %p81, %p82
    %p84 = scmp.ne.s32.totalorder %s73, %s74
    %p85 = scmp.eq.s32.totalorder %s23, 0
    %p86 = por %p84, %p85
    %p87 = scmp.ne.s32.totalorder %s73, %s74
    %p88 = scmp.eq.s32.totalorder %s24, 1
    %p89 = por %p87, %p88
    %p91 = scmp.ne.s32.totalorder %s74, %s90
    %p92 = scmp.eq.s32.totalorder %s24, 0
    %p93 = por %p91, %p92
    %s94 = ssub.s32 %s25, %s37
    %s95 = ssub.s32 %s26, %s33
    %s96 = sor.u32 %s94, %s95
    %p97 = scmp.eq.s32.totalorder %s96, 0
    %s99 = sadd.s32 %s98, 1
    %s100 = scalar_select %p97, %s98, %s99
    %p103 = pneg %p97
    %p104 = scmp.eq.s32.totalorder %s18, 1
    %p105 = por %p103, %p104
    %p106 = scmp.ne.s32.totalorder %s98, %s101
    %p107 = scmp.eq.s32.totalorder %s18, 0
    %p108 = por %p106, %p107
    %p109 = scmp.ne.s32.totalorder %s98, %s101
    %p110 = scmp.eq.s32.totalorder %s23, 1
    %p111 = por %p109, %p110
    %p112 = scmp.ne.s32.totalorder %s101, %s102
    %p113 = scmp.eq.s32.totalorder %s23, 0
    %p114 = por %p112, %p113
    %p115 = scmp.ne.s32.totalorder %s101, %s102
    %p116 = scmp.eq.s32.totalorder %s24, 1
    %p117 = por %p115, %p116
    %p119 = scmp.ne.s32.totalorder %s102, %s118
    %p120 = scmp.eq.s32.totalorder %s24, 0
    %p121 = por %p119, %p120
    %s123 = sadd.s32 %s122, 1
    %p126 = scmp.eq.s32.totalorder %s18, 1
    %p127 = scmp.ne.s32.totalorder %s122, %s124
    %p128 = scmp.eq.s32.totalorder %s18, 0
    %p129 = por %p127, %p128
    %p130 = scmp.ne.s32.totalorder %s122, %s124
    %p131 = scmp.eq.s32.totalorder %s23, 1
    %p132 = por %p130, %p131
    %p133 = scmp.ne.s32.totalorder %s124, %s125
    %p134 = scmp.eq.s32.totalorder %s23, 0
    %p135 = por %p133, %p134
    %p136 = scmp.ne.s32.totalorder %s124, %s125
    %p137 = scmp.eq.s32.totalorder %s24, 1
    %p138 = por %p136, %p137
    %p140 = scmp.ne.s32.totalorder %s125, %s139
    %p141 = scmp.eq.s32.totalorder %s24, 0
    %p142 = por %p140, %p141
    %s144 = sadd.s32 %s143, 1
    %p147 = scmp.eq.s32.totalorder %s18, 1
    %p148 = scmp.ne.s32.totalorder %s143, %s145
    %p149 = scmp.eq.s32.totalorder %s18, 0
    %p150 = por %p148, %p149
    %p151 = scmp.ne.s32.totalorder %s143, %s145
    %p152 = scmp.eq.s32.totalorder %s23, 1
    %p153 = por %p151, %p152
    %p154 = scmp.ne.s32.totalorder %s145, %s146
    %p155 = scmp.eq.s32.totalorder %s23, 0
    %p156 = por %p154, %p155
    %p157 = scmp.ne.s32.totalorder %s145, %s146
    %p158 = scmp.eq.s32.totalorder %s24, 1
    %p159 = por %p157, %p158
    %p161 = scmp.ne.s32.totalorder %s146, %s160
    %p162 = scmp.eq.s32.totalorder %s24, 0
    %p163 = por %p161, %p162
    %s165 = sadd.s32 %s164, 1
    %p168 = scmp.eq.s32.totalorder %s18, 1
    %p169 = scmp.ne.s32.totalorder %s164, %s166
    %p170 = scmp.eq.s32.totalorder %s18, 0
    %p171 = por %p169, %p170
    %p172 = scmp.ne.s32.totalorder %s164, %s166
    %p173 = scmp.eq.s32.totalorder %s23, 1
    %p174 = por %p172, %p173
    %p175 = scmp.ne.s32.totalorder %s166, %s167
    %p176 = scmp.eq.s32.totalorder %s23, 0
    %p177 = por %p175, %p176
    %p178 = scmp.ne.s32.totalorder %s166, %s167
    %p179 = scmp.eq.s32.totalorder %s24, 1
    %p180 = por %p178, %p179
    %p182 = scmp.ne.s32.totalorder %s167, %s181
    %p183 = scmp.eq.s32.totalorder %s24, 0
    %p184 = por %p182, %p183
    %s186 = sadd.s32 %s185, 1
    %p189 = scmp.eq.s32.totalorder %s18, 1
    %p190 = scmp.ne.s32.totalorder %s185, %s187
    %p191 = scmp.eq.s32.totalorder %s18, 0
    %p192 = por %p190, %p191
    %p193 = scmp.ne.s32.totalorder %s185, %s187
    %p194 = scmp.eq.s32.totalorder %s23, 1
    %p195 = por %p193, %p194
    %p196 = scmp.ne.s32.totalorder %s187, %s188
    %p197 = scmp.eq.s32.totalorder %s23, 0
    %p198 = por %p196, %p197
    %p199 = scmp.ne.s32.totalorder %s187, %s188
    %p200 = scmp.eq.s32.totalorder %s24, 1
    %p201 = por %p199, %p200
    %p203 = scmp.ne.s32.totalorder %s188, %s202
    %p204 = scmp.eq.s32.totalorder %s24, 0
    %p205 = por %p203, %p204
    %s207 = sadd.s32 %s206, 1
    %p210 = scmp.eq.s32.totalorder %s18, 1
    %p211 = scmp.ne.s32.totalorder %s206, %s208
    %p212 = scmp.eq.s32.totalorder %s18, 0
    %p213 = por %p211, %p212
    %p214 = scmp.ne.s32.totalorder %s206, %s208
    %p215 = scmp.eq.s32.totalorder %s23, 1
    %p216 = por %p214, %p215
    %p217 = scmp.ne.s32.totalorder %s208, %s209
    %p218 = scmp.eq.s32.totalorder %s23, 0
    %p219 = por %p217, %p218
    %p220 = scmp.ne.s32.totalorder %s208, %s209
    %p221 = scmp.eq.s32.totalorder %s24, 1
    %p222 = por %p220, %p221
    %p224 = scmp.ne.s32.totalorder %s209, %s223
    %p225 = scmp.eq.s32.totalorder %s24, 0
    %p226 = por %p224, %p225
    %s228 = sadd.s32 %s227, 1
    %p231 = scmp.eq.s32.totalorder %s18, 1
    %p232 = scmp.ne.s32.totalorder %s227, %s229
    %p233 = scmp.eq.s32.totalorder %s18, 0
    %p234 = por %p232, %p233
    %p235 = scmp.ne.s32.totalorder %s227, %s229
    %p236 = scmp.eq.s32.totalorder %s23, 1
    %p237 = por %p235, %p236
    %p238 = scmp.ne.s32.totalorder %s229, %s230
    %p239 = scmp.eq.s32.totalorder %s23, 0
    %p240 = por %p238, %p239
    %p241 = scmp.ne.s32.totalorder %s229, %s230
    %p242 = scmp.eq.s32.totalorder %s24, 1
    %p243 = por %p241, %p242
    %p245 = scmp.ne.s32.totalorder %s230, %s244
    %p246 = scmp.eq.s32.totalorder %s24, 0
    %p247 = por %p245, %p246
    %s249 = sadd.s32 %s248, 1
    %p252 = scmp.eq.s32.totalorder %s18, 1
    %p253 = scmp.ne.s32.totalorder %s248, %s250
    %p254 = scmp.eq.s32.totalorder %s18, 0
    %p255 = por %p253, %p254
    %p256 = scmp.ne.s32.totalorder %s248, %s250
    %p257 = scmp.eq.s32.totalorder %s23, 1
    %p258 = por %p256, %p257
    %p259 = scmp.ne.s32.totalorder %s250, %s251
    %p260 = scmp.eq.s32.totalorder %s23, 0
    %p261 = por %p259, %p260
    %p262 = scmp.ne.s32.totalorder %s250, %s251
    %p263 = scmp.eq.s32.totalorder %s24, 1
    %p264 = por %p262, %p263
    %p266 = scmp.ne.s32.totalorder %s251, %s265
    %p267 = scmp.eq.s32.totalorder %s24, 0
    %p268 = por %p266, %p267
    %s269 = ssub.s32 %s25, %s37
    %s270 = ssub.s32 %s26, %s33
    %s271 = sor.u32 %s269, %s270
    %p272 = scmp.eq.s32.totalorder %s271, 0
    %s274 = sadd.s32 %s273, 1
    %s275 = scalar_select %p272, %s273, %s274
    %p278 = pneg %p272
    %p279 = scmp.eq.s32.totalorder %s18, 1
    %p280 = por %p278, %p279
    %p281 = scmp.ne.s32.totalorder %s273, %s276
    %p282 = scmp.eq.s32.totalorder %s18, 0
    %p283 = por %p281, %p282
    %p284 = scmp.ne.s32.totalorder %s273, %s276
    %p285 = scmp.eq.s32.totalorder %s23, 1
    %p286 = por %p284, %p285
    %p287 = scmp.ne.s32.totalorder %s276, %s277
    %p288 = scmp.eq.s32.totalorder %s23, 0
    %p289 = por %p287, %p288
    %p290 = scmp.ne.s32.totalorder %s276, %s277
    %p291 = scmp.eq.s32.totalorder %s24, 1
    %p292 = por %p290, %p291
    %p294 = scmp.ne.s32.totalorder %s277, %s293
    %p295 = scmp.eq.s32.totalorder %s24, 0
    %p296 = por %p294, %p295
    %s297 = ssub.s32 %s25, %s37
    %p298 = scmp.eq.s32.totalorder %s297, 0
    %s300 = sadd.s32 %s299, 1
    %s301 = scalar_select %p298, %s299, %s300
    %p304 = pneg %p298
    %p305 = scmp.eq.s32.totalorder %s18, 1
    %p306 = por %p304, %p305
    %p307 = scmp.ne.s32.totalorder %s299, %s302
    %p308 = scmp.eq.s32.totalorder %s18, 0
    %p309 = por %p307, %p308
    %p310 = scmp.ne.s32.totalorder %s299, %s302
    %p311 = scmp.eq.s32.totalorder %s23, 1
    %p312 = por %p310, %p311
    %p313 = scmp.ne.s32.totalorder %s302, %s303
    %p314 = scmp.eq.s32.totalorder %s23, 0
    %p315 = por %p313, %p314
    %p316 = scmp.ne.s32.totalorder %s302, %s303
    %p317 = scmp.eq.s32.totalorder %s24, 1
    %p318 = por %p316, %p317
    %p320 = scmp.ne.s32.totalorder %s303, %s319
    %p321 = scmp.eq.s32.totalorder %s24, 0
    %p322 = por %p320, %p321
    %p323 = scmp.le.s32.totalorder 1, %s18
    %p324 = scmp.lt.s32.totalorder %s18, 3
    %p325 = pnand %p323, %p324
    %p326 = pneg %p325
    // Predicated region
    $region9: #{_lambda_.5} parent=5 // pred_check
      _
    $region10: #{_lambda_.5} parent=5 // pred_check_branch
      %328 = sbr.rel (%p325) target = $region12
    $region11: #{_lambda_.5} parent=5 // pred_region
      %s329 = ssub.s32 %s18, 1
      // Predicated region
      $region13: #{_lambda_.5} parent=11 // pred_check
        %p330 = pneg %p135
      $region14: #{_lambda_.5} parent=11 // pred_check_branch
        %332 = sbr.rel (%p330) target = $region16
      $region15: #{_lambda_.5} parent=11 // pred_region
        _
      $region16: #{_lambda_.5} parent=11 // pred_fallthru
        _
      // Predicated region
      $region17: #{_lambda_.5} parent=11 // pred_check
        %p333 = pneg %p156
      $region18: #{_lambda_.5} parent=11 // pred_check_branch
        %335 = sbr.rel (%p333) target = $region20
      $region19: #{_lambda_.5} parent=11 // pred_region
        _
      $region20: #{_lambda_.5} parent=11 // pred_fallthru
        _
      // Predicated region
      $region21: #{_lambda_.5} parent=11 // pred_check
        %p336 = pneg %p177
      $region22: #{_lambda_.5} parent=11 // pred_check_branch
        %338 = sbr.rel (%p336) target = $region24
      $region23: #{_lambda_.5} parent=11 // pred_region
        _
      $region24: #{_lambda_.5} parent=11 // pred_fallthru
        _
      // Predicated region
      $region25: #{_lambda_.5} parent=11 // pred_check
        %p339 = pneg %p198
      $region26: #{_lambda_.5} parent=11 // pred_check_branch
        %341 = sbr.rel (%p339) target = $region28
      $region27: #{_lambda_.5} parent=11 // pred_region
        _
      $region28: #{_lambda_.5} parent=11 // pred_fallthru
        _
      // Predicated region
      $region29: #{_lambda_.5} parent=11 // pred_check
        %p342 = pneg %p219
      $region30: #{_lambda_.5} parent=11 // pred_check_branch
        %344 = sbr.rel (%p342) target = $region32
      $region31: #{_lambda_.5} parent=11 // pred_region
        _
      $region32: #{_lambda_.5} parent=11 // pred_fallthru
        _
      // Predicated region
      $region33: #{_lambda_.5} parent=11 // pred_check
        %p345 = pneg %p240
      $region34: #{_lambda_.5} parent=11 // pred_check_branch
        %347 = sbr.rel (%p345) target = $region36
      $region35: #{_lambda_.5} parent=11 // pred_region
        _
      $region36: #{_lambda_.5} parent=11 // pred_fallthru
        _
      // Predicated region
      $region37: #{_lambda_.5} parent=11 // pred_check
        %p348 = pneg %p261
      $region38: #{_lambda_.5} parent=11 // pred_check_branch
        %350 = sbr.rel (%p348) target = $region40
      $region39: #{_lambda_.5} parent=11 // pred_region
        _
      $region40: #{_lambda_.5} parent=11 // pred_fallthru
        _
    $region12: #{_lambda_.5} parent=5 // pred_fallthru
      _
    %p351 = scmp.lt.s32.totalorder %s18, 2
    // Predicated region
    $region41: #{_lambda_.5} parent=5 // pred_check
      %p352 = pneg %p351
    $region42: #{_lambda_.5} parent=5 // pred_check_branch
      %354 = sbr.rel (%p352) target = $region44
    $region43: #{_lambda_.5} parent=5 // pred_region
      // Predicated region
      $region45: #{_lambda_.5} parent=43 // pred_check
        %p355 = pneg %p52
      $region46: #{_lambda_.5} parent=43 // pred_check_branch
        %357 = sbr.rel (%p355) target = $region48
      $region47: #{_lambda_.5} parent=43 // pred_region
        %s358 = smul.u32 26, %s26
        %p359 = scmp.lt.s32.totalorder %s25, 1
        %s360 = scalar_select %p359, %s25, 1
        %p361 = scmp.lt.s32.totalorder %s358, 25
        %s362 = scalar_select %p361, %s358, 25
        %s363 = smul.addr %s360, 26
        %s364 = sadd.s32 %s362, %s363
        %s365 = smul.addr %s364, 8
        %s366 = scalar_lea.vmem %s0, %s365
        %s367 = smul.u32 26, %s26
      $region48: #{_lambda_.5} parent=43 // pred_fallthru
        _
      // Predicated region
      $region49: #{_lambda_.5} parent=43 // pred_check
        %p368 = pneg %p80
      $region50: #{_lambda_.5} parent=43 // pred_check_branch
        %370 = sbr.rel (%p368) target = $region52
      $region51: #{_lambda_.5} parent=43 // pred_region
        %s371 = smul.u32 26, %s26
        %p372 = scmp.lt.s32.totalorder %s25, 1
        %s373 = scalar_select %p372, %s25, 1
        %p374 = scmp.lt.s32.totalorder %s371, 25
        %s375 = scalar_select %p374, %s371, 25
        %s376 = smul.addr %s373, 26
        %s377 = sadd.s32 %s375, %s376
        %s378 = smul.addr %s377, 8
        %s379 = scalar_lea.vmem %s1, %s378
        %s380 = smul.u32 26, %s26
      $region52: #{_lambda_.5} parent=43 // pred_fallthru
        _
      // Predicated region
      $region53: #{_lambda_.5} parent=43 // pred_check
        %p381 = pneg %p108
      $region54: #{_lambda_.5} parent=43 // pred_check_branch
        %383 = sbr.rel (%p381) target = $region56
      $region55: #{_lambda_.5} parent=43 // pred_region
        %s384 = smul.u32 26, %s26
        %p385 = scmp.lt.s32.totalorder %s25, 1
        %s386 = scalar_select %p385, %s25, 1
        %p387 = scmp.lt.s32.totalorder %s384, 25
        %s388 = scalar_select %p387, %s384, 25
        %s389 = smul.addr %s386, 26
        %s390 = sadd.s32 %s388, %s389
        %s391 = smul.addr %s390, 8
        %s392 = scalar_lea.vmem %s2, %s391
        %s393 = smul.u32 26, %s26
      $region56: #{_lambda_.5} parent=43 // pred_fallthru
        _
    $region44: #{_lambda_.5} parent=5 // pred_fallthru
      _
    %p394 = scmp.le.s32.totalorder 1, %s18
    %p395 = scmp.lt.s32.totalorder %s18, 3
    %p396 = pnand %p394, %p395
    %p397 = pneg %p396
    // Predicated region
    $region57: #{_lambda_.5} parent=5 // pred_check
      _
    $region58: #{_lambda_.5} parent=5 // pred_check_branch
      %399 = sbr.rel (%p396) target = $region60
    $region59: #{_lambda_.5} parent=5 // pred_region
      %s400 = ssub.s32 %s18, 1
      %s401 = smul.u32 26, %s28
      %p402 = scmp.lt.s32.totalorder %s27, 1
      %s403 = scalar_select %p402, %s27, 1
      %p404 = scmp.lt.s32.totalorder %s401, 25
      %s405 = scalar_select %p404, %s401, 25
      %s406 = smul.addr %s403, 26
      %s407 = sadd.s32 %s405, %s406
      %s408 = smul.addr %s407, 8
      %s409 = scalar_lea.vmem %s0, %s408
      %p410 = pneg %p58
      %p411 = pneg %p55
      %s412 = smul.u32 26, %s28
      %p413 = scmp.lt.s32.totalorder %s27, 1
      %s414 = scalar_select %p413, %s27, 1
      %p415 = scmp.lt.s32.totalorder %s412, 25
      %s416 = scalar_select %p415, %s412, 25
      %s417 = smul.addr %s414, 26
      %s418 = sadd.s32 %s416, %s417
      %s419 = smul.addr %s418, 8
      %s420 = scalar_lea.vmem %s1, %s419
      %p421 = pneg %p86
      %p422 = pneg %p83
      %s423 = smul.u32 26, %s28
      %p424 = scmp.lt.s32.totalorder %s27, 1
      %s425 = scalar_select %p424, %s27, 1
      %p426 = scmp.lt.s32.totalorder %s423, 25
      %s427 = scalar_select %p426, %s423, 25
      %s428 = smul.addr %s425, 26
      %s429 = sadd.s32 %s427, %s428
      %s430 = smul.addr %s429, 8
      %s431 = scalar_lea.vmem %s2, %s430
      %p432 = pneg %p114
      %p433 = pneg %p111
      %p434 = pneg %p135
      %p435 = pneg %p132
      %p436 = pneg %p156
      %p437 = pneg %p153
      %p438 = pneg %p177
      %p439 = pneg %p174
      %p440 = pneg %p198
      %p441 = pneg %p195
      %p442 = pneg %p219
      %p443 = pneg %p216
      %p444 = pneg %p240
      %p445 = pneg %p237
      %p446 = pneg %p261
      %p447 = pneg %p258
      %p448 = pneg %p289
      %p449 = pneg %p286
      %s450 = smul.u32 26, %s28
      %p451 = scmp.lt.s32.totalorder %s27, 1
      %s452 = scalar_select %p451, %s27, 1
      %p453 = scmp.lt.s32.totalorder %s450, 25
      %s454 = scalar_select %p453, %s450, 25
      %s455 = smul.addr %s452, 26
      %s456 = sadd.s32 %s454, %s455
      %s457 = smul.addr %s456, 4
      %s458 = scalar_lea.vmem %s10, %s457
      %p459 = pneg %p315
      %p460 = pneg %p312
      %p461 = scmp.lt.s32.totalorder %s27, 1
      %s462 = scalar_select %p461, %s27, 1
      %s463 = scalar_lea.vmem %s11, %s462
      %s464 = smul.u32 26, %s28
      %p465 = scmp.lt.s32.totalorder %s27, 1
      %s466 = scalar_select %p465, %s27, 1
      %p467 = scmp.lt.s32.totalorder %s464, 25
      %s468 = scalar_select %p467, %s464, 25
      %s469 = smul.addr %s466, 26
      %s470 = sadd.s32 %s468, %s469
      %s471 = smul.addr %s470, 8
      %s472 = scalar_lea.vmem %s0, %s471
      %s473 = smul.u32 26, %s28
      %s474 = smul.u32 26, %s28
      %p475 = scmp.lt.s32.totalorder %s27, 1
      %s476 = scalar_select %p475, %s27, 1
      %p477 = scmp.lt.s32.totalorder %s474, 25
      %s478 = scalar_select %p477, %s474, 25
      %s479 = smul.addr %s476, 26
      %s480 = sadd.s32 %s478, %s479
      %s481 = smul.addr %s480, 8
      %s482 = scalar_lea.vmem %s1, %s481
      %s483 = smul.u32 26, %s28
      %s484 = smul.u32 26, %s28
      %p485 = scmp.lt.s32.totalorder %s27, 1
      %s486 = scalar_select %p485, %s27, 1
      %p487 = scmp.lt.s32.totalorder %s484, 25
      %s488 = scalar_select %p487, %s484, 25
      %s489 = smul.addr %s486, 26
      %s490 = sadd.s32 %s488, %s489
      %s491 = smul.addr %s490, 8
      %s492 = scalar_lea.vmem %s2, %s491
      %s493 = smul.u32 26, %s28
      %s494 = smul.u32 26, %s28
      %p495 = scmp.lt.s32.totalorder %s27, 1
      %s496 = scalar_select %p495, %s27, 1
      %p497 = scmp.lt.s32.totalorder %s494, 25
      %s498 = scalar_select %p497, %s494, 25
      %s499 = smul.addr %s496, 26
      %s500 = sadd.s32 %s498, %s499
      %s501 = smul.addr %s500, 4
      %s502 = scalar_lea.vmem %s10, %s501
      %s503 = smul.u32 26, %s28
      %p504 = scmp.lt.s32.totalorder %s27, 1
      %s505 = scalar_select %p504, %s27, 1
      %s506 = scalar_lea.vmem %s11, %s505
      %v508 = vld [vmem:[%s482] sm:$0xff]
      %v509 = vld [vmem:[%s482 + $0x8] sm:$0xff]
      %v510 = vld [vmem:[%s482 + $0x10] sm:$0xff]
      %v511 = vld [vmem:[%s482 + $0x18] sm:$0xff]
      %v512 = vld [vmem:[%s482 + $0x20] sm:$0xff]
      %v513 = vld [vmem:[%s482 + $0x28] sm:$0xff]
      %v514 = vld [vmem:[%s482 + $0x30] sm:$0xff]
      %v515 = vld [vmem:[%s482 + $0x38] sm:$0xff]
      %v516 = vld [vmem:[%s482 + $0x40] sm:$0xff]
      %v517 = vld [vmem:[%s482 + $0x48] sm:$0xff]
      %v518 = vld [vmem:[%s482 + $0x50] sm:$0xff]
      %v519 = vld [vmem:[%s482 + $0x58] sm:$0xff]
      %v520 = vld [vmem:[%s482 + $0x60] sm:$0xff]
      %v521 = vld [vmem:[%s482 + $0x68] sm:$0xff]
      %v522 = vld [vmem:[%s482 + $0x70] sm:$0xff]
      %v523 = vld [vmem:[%s482 + $0x78] sm:$0xff]
      %v524 = vld [vmem:[%s482 + $0x80] sm:$0xff]
      %v525 = vld [vmem:[%s482 + $0x88] sm:$0xff]
      %v526 = vld [vmem:[%s482 + $0x90] sm:$0xff]
      %v527 = vld [vmem:[%s482 + $0x98] sm:$0xff]
      %v528 = vld [vmem:[%s482 + $0xa0] sm:$0xff]
      %v529 = vld [vmem:[%s482 + $0xa8] sm:$0xff]
      %v530 = vld [vmem:[%s482 + $0xb0] sm:$0xff]
      %v531 = vld [vmem:[%s482 + $0xb8] sm:$0xff]
      %v532 = vld [vmem:[%s482 + $0xc0] sm:$0xff]
      %v533 = vld [vmem:[%s482 + $0xc8] sm:$0xff]
      %v534 = vld [vmem:[%s492] sm:$0xff]
      %v535 = vld [vmem:[%s492 + $0x8] sm:$0xff]
      %v536 = vld [vmem:[%s492 + $0x10] sm:$0xff]
      %v537 = vld [vmem:[%s492 + $0x18] sm:$0xff]
      %v538 = vld [vmem:[%s492 + $0x20] sm:$0xff]
      %v539 = vld [vmem:[%s492 + $0x28] sm:$0xff]
      %v540 = vld [vmem:[%s492 + $0x30] sm:$0xff]
      %v541 = vld [vmem:[%s492 + $0x38] sm:$0xff]
      %v542 = vld [vmem:[%s492 + $0x40] sm:$0xff]
      %v543 = vld [vmem:[%s492 + $0x48] sm:$0xff]
      %v544 = vld [vmem:[%s492 + $0x50] sm:$0xff]
      %v545 = vld [vmem:[%s492 + $0x58] sm:$0xff]
      %v546 = vld [vmem:[%s492 + $0x60] sm:$0xff]
      %v547 = vld [vmem:[%s492 + $0x68] sm:$0xff]
      %v548 = vld [vmem:[%s492 + $0x70] sm:$0xff]
      %v549 = vld [vmem:[%s492 + $0x78] sm:$0xff]
      %v550 = vld [vmem:[%s492 + $0x80] sm:$0xff]
      %v551 = vld [vmem:[%s492 + $0x88] sm:$0xff]
      %v552 = vld [vmem:[%s492 + $0x90] sm:$0xff]
      %v553 = vld [vmem:[%s492 + $0x98] sm:$0xff]
      %v554 = vld [vmem:[%s492 + $0xa0] sm:$0xff]
      %v555 = vld [vmem:[%s492 + $0xa8] sm:$0xff]
      %v556 = vld [vmem:[%s492 + $0xb0] sm:$0xff]
      %v557 = vld [vmem:[%s492 + $0xb8] sm:$0xff]
      %v558 = vld [vmem:[%s492 + $0xc0] sm:$0xff]
      %v559 = vld [vmem:[%s492 + $0xc8] sm:$0xff]
      %v560 = vld [vmem:[%s3] sm:$0x1]
      %v561 = vpack.c.bf16 %v509, %v508
      %v562 = vpack.c.bf16 %v511, %v510
      %v563 = vpack.c.bf16 %v513, %v512
      %v564 = vpack.c.bf16 %v515, %v514
      %v565 = vpack.c.bf16 %v517, %v516
      %v566 = vpack.c.bf16 %v519, %v518
      %v567 = vpack.c.bf16 %v521, %v520
      %v568 = vpack.c.bf16 %v523, %v522
      %v569 = vpack.c.bf16 %v525, %v524
      %v570 = vpack.c.bf16 %v527, %v526
      %v571 = vpack.c.bf16 %v529, %v528
      %v572 = vpack.c.bf16 %v531, %v530
      %v573 = vpack.c.bf16 %v533, %v532
      %v574 = vld [vmem:[%s4] sm:$0x1]
      %v576 = vlaneseq
      %v577 = vshrl.u32 %v576, 7
      %v578 = vsub.s32 0, %v577
      %v579 = vrot.slane %v574, %v578
      %vm581 = vcmask 15360
      %v583 = vsel %vm581, %v561, 0
      %v586 = vsel %vm581, %v562, 0
      %v589 = vsel %vm581, %v563, 0
      %v592 = vsel %vm581, %v564, 0
      %v595 = vsel %vm581, %v565, 0
      %v598 = vsel %vm581, %v566, 0
      %v601 = vsel %vm581, %v567, 0
      %v604 = vsel %vm581, %v568, 0
      %v607 = vsel %vm581, %v569, 0
      %v610 = vsel %vm581, %v570, 0
      %v613 = vsel %vm581, %v571, 0
      %v616 = vsel %vm581, %v572, 0
      %v619 = vsel %vm581, %v573, 0
      %vm621 = vcmask 1040384
      %v623 = vsel %vm621, %v560, 0
      %625 = vmatprep.subr.bf16.mxu0 0
      %626 = vmatpush1.bf16.msra.mxu0 0
      %627 = vmatprep.subr.bf16.mxu0 0
      %628 = vmatpush1.bf16.msra.mxu0 0
      %629 = vmatprep.subr.bf16.mxu0 0
      %630 = vmatpush1.bf16.msra.mxu0 0
      %631 = vmatprep.subr.bf16.mxu0 0
      %632 = vmatpush1.bf16.msra.mxu0 0
      %633 = vmatprep.subr.bf16.mxu0 0
      %634 = vmatpush1.bf16.msra.mxu0 0
      %635 = vmatprep.subr.bf16.mxu0 0
      %636 = vmatpush1.bf16.msra.mxu0 0
      %637 = vmatprep.subr.bf16.mxu0 0
      %638 = vmatpush1.bf16.msra.mxu0 0
      %639 = vmatprep.subr.bf16.mxu0 0
      %640 = vmatpush1.bf16.msra.mxu0 %v623
      %641 = vmatprep.subr.bf16.mxu0 0
      %642 = vmatpush2.bf16.msra.mxu0 0
      %643 = vmatprep.subr.bf16.mxu0 0
      %644 = vmatpush2.bf16.msra.mxu0 0
      %645 = vmatprep.subr.bf16.mxu0 0
      %646 = vmatpush2.bf16.msra.mxu0 0
      %647 = vmatprep.subr.bf16.mxu0 0
      %648 = vmatpush2.bf16.msra.mxu0 0
      %649 = vmatprep.subr.bf16.mxu0 0
      %650 = vmatpush2.bf16.msra.mxu0 0
      %651 = vmatprep.subr.bf16.mxu0 0
      %652 = vmatpush2.bf16.msra.mxu0 0
      %653 = vmatprep.subr.bf16.mxu0 0
      %654 = vmatpush2.bf16.msra.mxu0 0
      %655 = vmatprep.subr.bf16.mxu0 0
      %656 = vmatpush2.bf16.msra.mxu0 0
      %657 = vmatprep.mubr.bf16.mxu0 0
      %658 = vmatmul.mubr.bf16.gmra.mxu0 %v583
      %v659 = vpop.f32.mrf.mxu0
      %v660 = vadd.f32 %v579, %v659
      %v661 = vpop.f32.mrf.mxu0
      %v662 = vpop.f32.mrf.mxu0
      %v663 = vadd.f32 %v579, %v662
      %v664 = vpop.f32.mrf.mxu0
      %665 = vmatprep.mubr.bf16.mxu0 0
      %666 = vmatmul.mubr.bf16.gmra.mxu0 %v586
      %v667 = vpop.f32.mrf.mxu0
      %v668 = vadd.f32 %v579, %v667
      %v669 = vpop.f32.mrf.mxu0
      %v670 = vpop.f32.mrf.mxu0
      %v671 = vadd.f32 %v579, %v670
      %v672 = vpop.f32.mrf.mxu0
      %673 = vmatprep.mubr.bf16.mxu0 0
      %674 = vmatmul.mubr.bf16.gmra.mxu0 %v589
      %v675 = vpop.f32.mrf.mxu0
      %v676 = vadd.f32 %v579, %v675
      %v677 = vpop.f32.mrf.mxu0
      %v678 = vpop.f32.mrf.mxu0
      %v679 = vadd.f32 %v579, %v678
      %v680 = vpop.f32.mrf.mxu0
      %681 = vmatprep.mubr.bf16.mxu0 0
      %682 = vmatmul.mubr.bf16.gmra.mxu0 %v592
      %v683 = vpop.f32.mrf.mxu0
      %v684 = vadd.f32 %v579, %v683
      %v685 = vpop.f32.mrf.mxu0
      %v686 = vpop.f32.mrf.mxu0
      %v687 = vadd.f32 %v579, %v686
      %v688 = vpop.f32.mrf.mxu0
      %689 = vmatprep.mubr.bf16.mxu0 0
      %690 = vmatmul.mubr.bf16.gmra.mxu0 %v595
      %v691 = vpop.f32.mrf.mxu0
      %v692 = vadd.f32 %v579, %v691
      %v693 = vpop.f32.mrf.mxu0
      %v694 = vpop.f32.mrf.mxu0
      %v695 = vadd.f32 %v579, %v694
      %v696 = vpop.f32.mrf.mxu0
      %697 = vmatprep.mubr.bf16.mxu0 0
      %698 = vmatmul.mubr.bf16.gmra.mxu0 %v598
      %v699 = vpop.f32.mrf.mxu0
      %v700 = vadd.f32 %v579, %v699
      %v701 = vpop.f32.mrf.mxu0
      %v702 = vpop.f32.mrf.mxu0
      %v703 = vadd.f32 %v579, %v702
      %v704 = vpop.f32.mrf.mxu0
      %705 = vmatprep.mubr.bf16.mxu0 0
      %706 = vmatmul.mubr.bf16.gmra.mxu0 %v601
      %v707 = vpop.f32.mrf.mxu0
      %v708 = vadd.f32 %v579, %v707
      %v709 = vpop.f32.mrf.mxu0
      %v710 = vpop.f32.mrf.mxu0
      %v711 = vadd.f32 %v579, %v710
      %v712 = vpop.f32.mrf.mxu0
      %713 = vmatprep.mubr.bf16.mxu0 0
      %714 = vmatmul.mubr.bf16.gmra.mxu0 %v604
      %v715 = vpop.f32.mrf.mxu0
      %v716 = vadd.f32 %v579, %v715
      %v717 = vpop.f32.mrf.mxu0
      %v718 = vpop.f32.mrf.mxu0
      %v719 = vadd.f32 %v579, %v718
      %v720 = vpop.f32.mrf.mxu0
      %721 = vmatprep.mubr.bf16.mxu0 0
      %722 = vmatmul.mubr.bf16.gmra.mxu0 %v607
      %v723 = vpop.f32.mrf.mxu0
      %v724 = vadd.f32 %v579, %v723
      %v725 = vpop.f32.mrf.mxu0
      %v726 = vpop.f32.mrf.mxu0
      %v727 = vadd.f32 %v579, %v726
      %v728 = vpop.f32.mrf.mxu0
      %729 = vmatprep.mubr.bf16.mxu0 0
      %730 = vmatmul.mubr.bf16.gmra.mxu0 %v610
      %v731 = vpop.f32.mrf.mxu0
      %v732 = vadd.f32 %v579, %v731
      %v733 = vpop.f32.mrf.mxu0
      %v734 = vpop.f32.mrf.mxu0
      %v735 = vadd.f32 %v579, %v734
      %v736 = vpop.f32.mrf.mxu0
      %737 = vmatprep.mubr.bf16.mxu0 0
      %738 = vmatmul.mubr.bf16.gmra.mxu0 %v613
      %v739 = vpop.f32.mrf.mxu0
      %v740 = vadd.f32 %v579, %v739
      %v741 = vpop.f32.mrf.mxu0
      %v742 = vpop.f32.mrf.mxu0
      %v743 = vadd.f32 %v579, %v742
      %v744 = vpop.f32.mrf.mxu0
      %745 = vmatprep.mubr.bf16.mxu0 0
      %746 = vmatmul.mubr.bf16.gmra.mxu0 %v616
      %v747 = vpop.f32.mrf.mxu0
      %v748 = vadd.f32 %v579, %v747
      %v749 = vpop.f32.mrf.mxu0
      %v750 = vpop.f32.mrf.mxu0
      %v751 = vadd.f32 %v579, %v750
      %v752 = vpop.f32.mrf.mxu0
      %753 = vmatprep.mubr.bf16.mxu0 0
      %754 = vmatmul.mubr.bf16.gmra.mxu0 %v619
      %v755 = vpop.f32.mrf.mxu0
      %v756 = vadd.f32 %v579, %v755
      %v757 = vpop.f32.mrf.mxu0
      %v758 = vpop.f32.mrf.mxu0
      %v759 = vadd.f32 %v579, %v758
      %v760 = vpop.f32.mrf.mxu0
      %761 = vdwg.mxu0
      %v762 = vmax.f32 %v660, 0.0
      %v763 = vmax.f32 %v663, 0.0
      %v764 = vmax.f32 %v668, 0.0
      %v765 = vmax.f32 %v671, 0.0
      %v766 = vmax.f32 %v676, 0.0
      %v767 = vmax.f32 %v679, 0.0
      %v768 = vmax.f32 %v684, 0.0
      %v769 = vmax.f32 %v687, 0.0
      %v770 = vmax.f32 %v692, 0.0
      %v771 = vmax.f32 %v695, 0.0
      %v772 = vmax.f32 %v700, 0.0
      %v773 = vmax.f32 %v703, 0.0
      %v774 = vmax.f32 %v708, 0.0
      %v775 = vmax.f32 %v711, 0.0
      %v776 = vmax.f32 %v716, 0.0
      %v777 = vmax.f32 %v719, 0.0
      %v778 = vmax.f32 %v724, 0.0
      %v779 = vmax.f32 %v727, 0.0
      %v780 = vmax.f32 %v732, 0.0
      %v781 = vmax.f32 %v735, 0.0
      %v782 = vmax.f32 %v740, 0.0
      %v783 = vmax.f32 %v743, 0.0
      %v784 = vmax.f32 %v748, 0.0
      %v785 = vmax.f32 %v751, 0.0
      %v786 = vmax.f32 %v756, 0.0
      %v787 = vmax.f32 %v759, 0.0
      %v788 = vld [vmem:[%s5] sm:$0xf]
      %v789 = vld [vmem:[%s5 + $0x4] sm:$0xf]
      %v790 = vld [vmem:[%s5 + $0x8] sm:$0xf]
      %v791 = vld [vmem:[%s5 + $0xc] sm:$0xf]
      %v792 = vpack.c.bf16 %v763, %v762
      %v793 = vpack.c.bf16 %v765, %v764
      %v794 = vpack.c.bf16 %v767, %v766
      %v795 = vpack.c.bf16 %v769, %v768
      %v796 = vpack.c.bf16 %v771, %v770
      %v797 = vpack.c.bf16 %v773, %v772
      %v798 = vpack.c.bf16 %v775, %v774
      %v799 = vpack.c.bf16 %v777, %v776
      %v800 = vpack.c.bf16 %v779, %v778
      %v801 = vpack.c.bf16 %v781, %v780
      %v802 = vpack.c.bf16 %v783, %v782
      %v803 = vpack.c.bf16 %v785, %v784
      %v804 = vpack.c.bf16 %v787, %v786
      %v805 = vld [vmem:[%s6] sm:$0x1]
      %v807 = vlaneseq
      %v808 = vshrl.u32 %v807, 7
      %v809 = vsub.s32 0, %v808
      %v810 = vrot.slane %v805, %v809
      %v816 = vunpack.c.l.b16 %v788
      %v817 = vunpack.c.l.b16 %v789
      %v818 = vunpack.c.l.b16 %v790
      %v819 = vunpack.c.l.b16 %v791
      %v820 = vpack.c.b16 %v817, %v816
      %v821 = vpack.c.b16 %v819, %v818
      %vm824 = vcmask 261120
      %v826 = vsel %vm824, %v792, 0
      %v829 = vsel %vm824, %v793, 0
      %v832 = vsel %vm824, %v794, 0
      %v835 = vsel %vm824, %v795, 0
      %v838 = vsel %vm824, %v796, 0
      %v841 = vsel %vm824, %v797, 0
      %v844 = vsel %vm824, %v798, 0
      %v847 = vsel %vm824, %v799, 0
      %v850 = vsel %vm824, %v800, 0
      %v853 = vsel %vm824, %v801, 0
      %v856 = vsel %vm824, %v802, 0
      %v859 = vsel %vm824, %v803, 0
      %v862 = vsel %vm824, %v804, 0
      %864 = vmatprep.subr.bf16.mxu0 0
      %865 = vmatpush1.bf16.msra.mxu0 0
      %866 = vmatprep.subr.bf16.mxu0 0
      %867 = vmatpush1.bf16.msra.mxu0 0
      %868 = vmatprep.subr.bf16.mxu0 0
      %869 = vmatpush1.bf16.msra.mxu0 0
      %870 = vmatprep.subr.bf16.mxu0 0
      %871 = vmatpush1.bf16.msra.mxu0 0
      %872 = vmatprep.subr.bf16.mxu0 0
      %873 = vmatpush1.bf16.msra.mxu0 0
      %874 = vmatprep.subr.bf16.mxu0 0
      %875 = vmatpush1.bf16.msra.mxu0 0
      %876 = vmatprep.subr.bf16.mxu0 0
      %877 = vmatpush1.bf16.msra.mxu0 %v821
      %878 = vmatprep.subr.bf16.mxu0 0
      %879 = vmatpush1.bf16.msra.mxu0 %v820
      %880 = vmatprep.subr.bf16.mxu0 0
      %881 = vmatpush2.bf16.msra.mxu0 0
      %882 = vmatprep.subr.bf16.mxu0 0
      %883 = vmatpush2.bf16.msra.mxu0 0
      %884 = vmatprep.subr.bf16.mxu0 0
      %885 = vmatpush2.bf16.msra.mxu0 0
      %886 = vmatprep.subr.bf16.mxu0 0
      %887 = vmatpush2.bf16.msra.mxu0 0
      %888 = vmatprep.subr.bf16.mxu0 0
      %889 = vmatpush2.bf16.msra.mxu0 0
      %890 = vmatprep.subr.bf16.mxu0 0
      %891 = vmatpush2.bf16.msra.mxu0 0
      %892 = vmatprep.subr.bf16.mxu0 0
      %893 = vmatpush2.bf16.msra.mxu0 0
      %894 = vmatprep.subr.bf16.mxu0 0
      %895 = vmatpush2.bf16.msra.mxu0 0
      %896 = vmatprep.mubr.bf16.mxu0 0
      %897 = vmatmul.mubr.bf16.gmra.mxu0 %v826
      %v898 = vpop.f32.mrf.mxu0
      %v899 = vadd.f32 %v810, %v898
      %v900 = vpop.f32.mrf.mxu0
      %v901 = vpop.f32.mrf.mxu0
      %v902 = vadd.f32 %v810, %v901
      %v903 = vpop.f32.mrf.mxu0
      %904 = vmatprep.mubr.bf16.mxu0 0
      %905 = vmatmul.mubr.bf16.gmra.mxu0 %v829
      %v906 = vpop.f32.mrf.mxu0
      %v907 = vadd.f32 %v810, %v906
      %v908 = vpop.f32.mrf.mxu0
      %v909 = vpop.f32.mrf.mxu0
      %v910 = vadd.f32 %v810, %v909
      %v911 = vpop.f32.mrf.mxu0
      %912 = vmatprep.mubr.bf16.mxu0 0
      %913 = vmatmul.mubr.bf16.gmra.mxu0 %v832
      %v914 = vpop.f32.mrf.mxu0
      %v915 = vadd.f32 %v810, %v914
      %v916 = vpop.f32.mrf.mxu0
      %v917 = vpop.f32.mrf.mxu0
      %v918 = vadd.f32 %v810, %v917
      %v919 = vpop.f32.mrf.mxu0
      %920 = vmatprep.mubr.bf16.mxu0 0
      %921 = vmatmul.mubr.bf16.gmra.mxu0 %v835
      %v922 = vpop.f32.mrf.mxu0
      %v923 = vadd.f32 %v810, %v922
      %v924 = vpop.f32.mrf.mxu0
      %v925 = vpop.f32.mrf.mxu0
      %v926 = vadd.f32 %v810, %v925
      %v927 = vpop.f32.mrf.mxu0
      %928 = vmatprep.mubr.bf16.mxu0 0
      %929 = vmatmul.mubr.bf16.gmra.mxu0 %v838
      %v930 = vpop.f32.mrf.mxu0
      %v931 = vadd.f32 %v810, %v930
      %v932 = vpop.f32.mrf.mxu0
      %v933 = vpop.f32.mrf.mxu0
      %v934 = vadd.f32 %v810, %v933
      %v935 = vpop.f32.mrf.mxu0
      %936 = vmatprep.mubr.bf16.mxu0 0
      %937 = vmatmul.mubr.bf16.gmra.mxu0 %v841
      %v938 = vpop.f32.mrf.mxu0
      %v939 = vadd.f32 %v810, %v938
      %v940 = vpop.f32.mrf.mxu0
      %v941 = vpop.f32.mrf.mxu0
      %v942 = vadd.f32 %v810, %v941
      %v943 = vpop.f32.mrf.mxu0
      %944 = vmatprep.mubr.bf16.mxu0 0
      %945 = vmatmul.mubr.bf16.gmra.mxu0 %v844
      %v946 = vpop.f32.mrf.mxu0
      %v947 = vadd.f32 %v810, %v946
      %v948 = vpop.f32.mrf.mxu0
      %v949 = vpop.f32.mrf.mxu0
      %v950 = vadd.f32 %v810, %v949
      %v951 = vpop.f32.mrf.mxu0
      %952 = vmatprep.mubr.bf16.mxu0 0
      %953 = vmatmul.mubr.bf16.gmra.mxu0 %v847
      %v954 = vpop.f32.mrf.mxu0
      %v955 = vadd.f32 %v810, %v954
      %v956 = vpop.f32.mrf.mxu0
      %v957 = vpop.f32.mrf.mxu0
      %v958 = vadd.f32 %v810, %v957
      %v959 = vpop.f32.mrf.mxu0
      %960 = vmatprep.mubr.bf16.mxu0 0
      %961 = vmatmul.mubr.bf16.gmra.mxu0 %v850
      %v962 = vpop.f32.mrf.mxu0
      %v963 = vadd.f32 %v810, %v962
      %v964 = vpop.f32.mrf.mxu0
      %v965 = vpop.f32.mrf.mxu0
      %v966 = vadd.f32 %v810, %v965
      %v967 = vpop.f32.mrf.mxu0
      %968 = vmatprep.mubr.bf16.mxu0 0
      %969 = vmatmul.mubr.bf16.gmra.mxu0 %v853
      %v970 = vpop.f32.mrf.mxu0
      %v971 = vadd.f32 %v810, %v970
      %v972 = vpop.f32.mrf.mxu0
      %v973 = vpop.f32.mrf.mxu0
      %v974 = vadd.f32 %v810, %v973
      %v975 = vpop.f32.mrf.mxu0
      %976 = vmatprep.mubr.bf16.mxu0 0
      %977 = vmatmul.mubr.bf16.gmra.mxu0 %v856
      %v978 = vpop.f32.mrf.mxu0
      %v979 = vadd.f32 %v810, %v978
      %v980 = vpop.f32.mrf.mxu0
      %v981 = vpop.f32.mrf.mxu0
      %v982 = vadd.f32 %v810, %v981
      %v983 = vpop.f32.mrf.mxu0
      %984 = vmatprep.mubr.bf16.mxu0 0
      %985 = vmatmul.mubr.bf16.gmra.mxu0 %v859
      %v986 = vpop.f32.mrf.mxu0
      %v987 = vadd.f32 %v810, %v986
      %v988 = vpop.f32.mrf.mxu0
      %v989 = vpop.f32.mrf.mxu0
      %v990 = vadd.f32 %v810, %v989
      %v991 = vpop.f32.mrf.mxu0
      %992 = vmatprep.mubr.bf16.mxu0 0
      %993 = vmatmul.mubr.bf16.gmra.mxu0 %v862
      %v994 = vpop.f32.mrf.mxu0
      %v995 = vadd.f32 %v810, %v994
      %v996 = vpop.f32.mrf.mxu0
      %v997 = vpop.f32.mrf.mxu0
      %v998 = vadd.f32 %v810, %v997
      %v999 = vpop.f32.mrf.mxu0
      %1000 = vdwg.mxu0
      %1002 = vset.pattern.permute.xlu0 0
      %1003 = vperm.xlu0 %1002, %v534
      %v1004 = vpop.permute.xlu0 %1003
      %1007 = vset.pattern.permute.xlu0 0
      %1008 = vperm.xlu0 %1007, %v535
      %v1009 = vpop.permute.xlu0 %1008
      %1012 = vset.pattern.permute.xlu0 0
      %1013 = vperm.xlu0 %1012, %v536
      %v1014 = vpop.permute.xlu0 %1013
      %1017 = vset.pattern.permute.xlu0 0
      %1018 = vperm.xlu0 %1017, %v537
      %v1019 = vpop.permute.xlu0 %1018
      %1022 = vset.pattern.permute.xlu0 0
      %1023 = vperm.xlu0 %1022, %v538
      %v1024 = vpop.permute.xlu0 %1023
      %1027 = vset.pattern.permute.xlu0 0
      %1028 = vperm.xlu0 %1027, %v539
      %v1029 = vpop.permute.xlu0 %1028
      %1032 = vset.pattern.permute.xlu0 0
      %1033 = vperm.xlu0 %1032, %v540
      %v1034 = vpop.permute.xlu0 %1033
      %1037 = vset.pattern.permute.xlu0 0
      %1038 = vperm.xlu0 %1037, %v541
      %v1039 = vpop.permute.xlu0 %1038
      %1042 = vset.pattern.permute.xlu0 0
      %1043 = vperm.xlu0 %1042, %v542
      %v1044 = vpop.permute.xlu0 %1043
      %1047 = vset.pattern.permute.xlu0 0
      %1048 = vperm.xlu0 %1047, %v543
      %v1049 = vpop.permute.xlu0 %1048
      %1052 = vset.pattern.permute.xlu0 0
      %1053 = vperm.xlu0 %1052, %v544
      %v1054 = vpop.permute.xlu0 %1053
      %1057 = vset.pattern.permute.xlu0 0
      %1058 = vperm.xlu0 %1057, %v545
      %v1059 = vpop.permute.xlu0 %1058
      %1062 = vset.pattern.permute.xlu0 0
      %1063 = vperm.xlu0 %1062, %v546
      %v1064 = vpop.permute.xlu0 %1063
      %1067 = vset.pattern.permute.xlu0 0
      %1068 = vperm.xlu0 %1067, %v547
      %v1069 = vpop.permute.xlu0 %1068
      %1072 = vset.pattern.permute.xlu0 0
      %1073 = vperm.xlu0 %1072, %v548
      %v1074 = vpop.permute.xlu0 %1073
      %1077 = vset.pattern.permute.xlu0 0
      %1078 = vperm.xlu0 %1077, %v549
      %v1079 = vpop.permute.xlu0 %1078
      %1082 = vset.pattern.permute.xlu0 0
      %1083 = vperm.xlu0 %1082, %v550
      %v1084 = vpop.permute.xlu0 %1083
      %1087 = vset.pattern.permute.xlu0 0
      %1088 = vperm.xlu0 %1087, %v551
      %v1089 = vpop.permute.xlu0 %1088
      %1092 = vset.pattern.permute.xlu0 0
      %1093 = vperm.xlu0 %1092, %v552
      %v1094 = vpop.permute.xlu0 %1093
      %1097 = vset.pattern.permute.xlu0 0
      %1098 = vperm.xlu0 %1097, %v553
      %v1099 = vpop.permute.xlu0 %1098
      %1102 = vset.pattern.permute.xlu0 0
      %1103 = vperm.xlu0 %1102, %v554
      %v1104 = vpop.permute.xlu0 %1103
      %1107 = vset.pattern.permute.xlu0 0
      %1108 = vperm.xlu0 %1107, %v555
      %v1109 = vpop.permute.xlu0 %1108
      %1112 = vset.pattern.permute.xlu0 0
      %1113 = vperm.xlu0 %1112, %v556
      %v1114 = vpop.permute.xlu0 %1113
      %1117 = vset.pattern.permute.xlu0 0
      %1118 = vperm.xlu0 %1117, %v557
      %v1119 = vpop.permute.xlu0 %1118
      %1122 = vset.pattern.permute.xlu0 0
      %1123 = vperm.xlu0 %1122, %v558
      %v1124 = vpop.permute.xlu0 %1123
      %1127 = vset.pattern.permute.xlu0 0
      %1128 = vperm.xlu0 %1127, %v559
      %v1129 = vpop.permute.xlu0 %1128
      %v1131 = vmul.f32 %v899, %v1004
      %v1132 = vmul.f32 %v902, %v1009
      %v1133 = vmul.f32 %v907, %v1014
      %v1134 = vmul.f32 %v910, %v1019
      %v1135 = vmul.f32 %v915, %v1024
      %v1136 = vmul.f32 %v918, %v1029
      %v1137 = vmul.f32 %v923, %v1034
      %v1138 = vmul.f32 %v926, %v1039
      %v1139 = vmul.f32 %v931, %v1044
      %v1140 = vmul.f32 %v934, %v1049
      %v1141 = vmul.f32 %v939, %v1054
      %v1142 = vmul.f32 %v942, %v1059
      %v1143 = vmul.f32 %v947, %v1064
      %v1144 = vmul.f32 %v950, %v1069
      %v1145 = vmul.f32 %v955, %v1074
      %v1146 = vmul.f32 %v958, %v1079
      %v1147 = vmul.f32 %v963, %v1084
      %v1148 = vmul.f32 %v966, %v1089
      %v1149 = vmul.f32 %v971, %v1094
      %v1150 = vmul.f32 %v974, %v1099
      %v1151 = vmul.f32 %v979, %v1104
      %v1152 = vmul.f32 %v982, %v1109
      %v1153 = vmul.f32 %v987, %v1114
      %v1154 = vmul.f32 %v990, %v1119
      %v1155 = vmul.f32 %v995, %v1124
      %v1156 = vmul.f32 %v998, %v1129
      %1157 = vset.pattern.permute.xlu0 1
      %1158 = vperm.xlu0 %1157, %v534
      %v1159 = vpop.permute.xlu0 %1158
      %1161 = vset.pattern.permute.xlu0 1
      %1162 = vperm.xlu0 %1161, %v535
      %v1163 = vpop.permute.xlu0 %1162
      %1165 = vset.pattern.permute.xlu0 1
      %1166 = vperm.xlu0 %1165, %v536
      %v1167 = vpop.permute.xlu0 %1166
      %1169 = vset.pattern.permute.xlu0 1
      %1170 = vperm.xlu0 %1169, %v537
      %v1171 = vpop.permute.xlu0 %1170
      %1173 = vset.pattern.permute.xlu0 1
      %1174 = vperm.xlu0 %1173, %v538
      %v1175 = vpop.permute.xlu0 %1174
      %1177 = vset.pattern.permute.xlu0 1
      %1178 = vperm.xlu0 %1177, %v539
      %v1179 = vpop.permute.xlu0 %1178
      %1181 = vset.pattern.permute.xlu0 1
      %1182 = vperm.xlu0 %1181, %v540
      %v1183 = vpop.permute.xlu0 %1182
      %1185 = vset.pattern.permute.xlu0 1
      %1186 = vperm.xlu0 %1185, %v541
      %v1187 = vpop.permute.xlu0 %1186
      %1189 = vset.pattern.permute.xlu0 1
      %1190 = vperm.xlu0 %1189, %v542
      %v1191 = vpop.permute.xlu0 %1190
      %1193 = vset.pattern.permute.xlu0 1
      %1194 = vperm.xlu0 %1193, %v543
      %v1195 = vpop.permute.xlu0 %1194
      %1197 = vset.pattern.permute.xlu0 1
      %1198 = vperm.xlu0 %1197, %v544
      %v1199 = vpop.permute.xlu0 %1198
      %1201 = vset.pattern.permute.xlu0 1
      %1202 = vperm.xlu0 %1201, %v545
      %v1203 = vpop.permute.xlu0 %1202
      %1205 = vset.pattern.permute.xlu0 1
      %1206 = vperm.xlu0 %1205, %v546
      %v1207 = vpop.permute.xlu0 %1206
      %1209 = vset.pattern.permute.xlu0 1
      %1210 = vperm.xlu0 %1209, %v547
      %v1211 = vpop.permute.xlu0 %1210
      %1213 = vset.pattern.permute.xlu0 1
      %1214 = vperm.xlu0 %1213, %v548
      %v1215 = vpop.permute.xlu0 %1214
      %1217 = vset.pattern.permute.xlu0 1
      %1218 = vperm.xlu0 %1217, %v549
      %v1219 = vpop.permute.xlu0 %1218
      %1221 = vset.pattern.permute.xlu0 1
      %1222 = vperm.xlu0 %1221, %v550
      %v1223 = vpop.permute.xlu0 %1222
      %1225 = vset.pattern.permute.xlu0 1
      %1226 = vperm.xlu0 %1225, %v551
      %v1227 = vpop.permute.xlu0 %1226
      %1229 = vset.pattern.permute.xlu0 1
      %1230 = vperm.xlu0 %1229, %v552
      %v1231 = vpop.permute.xlu0 %1230
      %1233 = vset.pattern.permute.xlu0 1
      %1234 = vperm.xlu0 %1233, %v553
      %v1235 = vpop.permute.xlu0 %1234
      %1237 = vset.pattern.permute.xlu0 1
      %1238 = vperm.xlu0 %1237, %v554
      %v1239 = vpop.permute.xlu0 %1238
      %1241 = vset.pattern.permute.xlu0 1
      %1242 = vperm.xlu0 %1241, %v555
      %v1243 = vpop.permute.xlu0 %1242
      %1245 = vset.pattern.permute.xlu0 1
      %1246 = vperm.xlu0 %1245, %v556
      %v1247 = vpop.permute.xlu0 %1246
      %1249 = vset.pattern.permute.xlu0 1
      %1250 = vperm.xlu0 %1249, %v557
      %v1251 = vpop.permute.xlu0 %1250
      %1253 = vset.pattern.permute.xlu0 1
      %1254 = vperm.xlu0 %1253, %v558
      %v1255 = vpop.permute.xlu0 %1254
      %1257 = vset.pattern.permute.xlu0 1
      %1258 = vperm.xlu0 %1257, %v559
      %v1259 = vpop.permute.xlu0 %1258
      %v1261 = vmul.f32 %v899, %v1159
      %v1262 = vmul.f32 %v902, %v1163
      %v1263 = vmul.f32 %v907, %v1167
      %v1264 = vmul.f32 %v910, %v1171
      %v1265 = vmul.f32 %v915, %v1175
      %v1266 = vmul.f32 %v918, %v1179
      %v1267 = vmul.f32 %v923, %v1183
      %v1268 = vmul.f32 %v926, %v1187
      %v1269 = vmul.f32 %v931, %v1191
      %v1270 = vmul.f32 %v934, %v1195
      %v1271 = vmul.f32 %v939, %v1199
      %v1272 = vmul.f32 %v942, %v1203
      %v1273 = vmul.f32 %v947, %v1207
      %v1274 = vmul.f32 %v950, %v1211
      %v1275 = vmul.f32 %v955, %v1215
      %v1276 = vmul.f32 %v958, %v1219
      %v1277 = vmul.f32 %v963, %v1223
      %v1278 = vmul.f32 %v966, %v1227
      %v1279 = vmul.f32 %v971, %v1231
      %v1280 = vmul.f32 %v974, %v1235
      %v1281 = vmul.f32 %v979, %v1239
      %v1282 = vmul.f32 %v982, %v1243
      %v1283 = vmul.f32 %v987, %v1247
      %v1284 = vmul.f32 %v990, %v1251
      %v1285 = vmul.f32 %v995, %v1255
      %v1286 = vmul.f32 %v998, %v1259
      %1313 = vrot.lane.b32.xlu0 %v1261, 120
      %v1314 = vpop.permute.xlu0 %1313
      %1315 = vrot.lane.b32.xlu0 %v1262, 120
      %v1316 = vpop.permute.xlu0 %1315
      %1317 = vrot.lane.b32.xlu0 %v1263, 120
      %v1318 = vpop.permute.xlu0 %1317
      %1319 = vrot.lane.b32.xlu0 %v1264, 120
      %v1320 = vpop.permute.xlu0 %1319
      %1321 = vrot.lane.b32.xlu0 %v1265, 120
      %v1322 = vpop.permute.xlu0 %1321
      %1323 = vrot.lane.b32.xlu0 %v1266, 120
      %v1324 = vpop.permute.xlu0 %1323
      %1325 = vrot.lane.b32.xlu0 %v1267, 120
      %v1326 = vpop.permute.xlu0 %1325
      %1327 = vrot.lane.b32.xlu0 %v1268, 120
      %v1328 = vpop.permute.xlu0 %1327
      %1329 = vrot.lane.b32.xlu0 %v1269, 120
      %v1330 = vpop.permute.xlu0 %1329
      %1331 = vrot.lane.b32.xlu0 %v1270, 120
      %v1332 = vpop.permute.xlu0 %1331
      %1333 = vrot.lane.b32.xlu0 %v1271, 120
      %v1334 = vpop.permute.xlu0 %1333
      %1335 = vrot.lane.b32.xlu0 %v1272, 120
      %v1336 = vpop.permute.xlu0 %1335
      %1337 = vrot.lane.b32.xlu0 %v1273, 120
      %v1338 = vpop.permute.xlu0 %1337
      %1339 = vrot.lane.b32.xlu0 %v1274, 120
      %v1340 = vpop.permute.xlu0 %1339
      %1341 = vrot.lane.b32.xlu0 %v1275, 120
      %v1342 = vpop.permute.xlu0 %1341
      %1343 = vrot.lane.b32.xlu0 %v1276, 120
      %v1344 = vpop.permute.xlu0 %1343
      %1345 = vrot.lane.b32.xlu0 %v1277, 120
      %v1346 = vpop.permute.xlu0 %1345
      %1347 = vrot.lane.b32.xlu0 %v1278, 120
      %v1348 = vpop.permute.xlu0 %1347
      %1349 = vrot.lane.b32.xlu0 %v1279, 120
      %v1350 = vpop.permute.xlu0 %1349
      %1351 = vrot.lane.b32.xlu0 %v1280, 120
      %v1352 = vpop.permute.xlu0 %1351
      %1353 = vrot.lane.b32.xlu0 %v1281, 120
      %v1354 = vpop.permute.xlu0 %1353
      %1355 = vrot.lane.b32.xlu0 %v1282, 120
      %v1356 = vpop.permute.xlu0 %1355
      %1357 = vrot.lane.b32.xlu0 %v1283, 120
      %v1358 = vpop.permute.xlu0 %1357
      %1359 = vrot.lane.b32.xlu0 %v1284, 120
      %v1360 = vpop.permute.xlu0 %1359
      %1361 = vrot.lane.b32.xlu0 %v1285, 120
      %v1362 = vpop.permute.xlu0 %1361
      %1363 = vrot.lane.b32.xlu0 %v1286, 120
      %v1364 = vpop.permute.xlu0 %1363
      %v1391 = vadd.f32 %v1131, %v1314
      %v1392 = vadd.f32 %v1132, %v1316
      %v1393 = vadd.f32 %v1133, %v1318
      %v1394 = vadd.f32 %v1134, %v1320
      %v1395 = vadd.f32 %v1135, %v1322
      %v1396 = vadd.f32 %v1136, %v1324
      %v1397 = vadd.f32 %v1137, %v1326
      %v1398 = vadd.f32 %v1138, %v1328
      %v1399 = vadd.f32 %v1139, %v1330
      %v1400 = vadd.f32 %v1140, %v1332
      %v1401 = vadd.f32 %v1141, %v1334
      %v1402 = vadd.f32 %v1142, %v1336
      %v1403 = vadd.f32 %v1143, %v1338
      %v1404 = vadd.f32 %v1144, %v1340
      %v1405 = vadd.f32 %v1145, %v1342
      %v1406 = vadd.f32 %v1146, %v1344
      %v1407 = vadd.f32 %v1147, %v1346
      %v1408 = vadd.f32 %v1148, %v1348
      %v1409 = vadd.f32 %v1149, %v1350
      %v1410 = vadd.f32 %v1150, %v1352
      %v1411 = vadd.f32 %v1151, %v1354
      %v1412 = vadd.f32 %v1152, %v1356
      %v1413 = vadd.f32 %v1153, %v1358
      %v1414 = vadd.f32 %v1154, %v1360
      %v1415 = vadd.f32 %v1155, %v1362
      %v1416 = vadd.f32 %v1156, %v1364
      %v1417 = vsel %vm581, %v534, 0.0
      %1418 = vadd.xlane.f32.xlu0 %v1417
      %v1419 = vpop.xlane.xlu0 %1418
      %v1420 = vsel %vm581, %v535, 0.0
      %1421 = vadd.xlane.f32.xlu0 %v1420
      %v1422 = vpop.xlane.xlu0 %1421
      %v1423 = vsel %vm581, %v536, 0.0
      %1424 = vadd.xlane.f32.xlu0 %v1423
      %v1425 = vpop.xlane.xlu0 %1424
      %v1426 = vsel %vm581, %v537, 0.0
      %1427 = vadd.xlane.f32.xlu0 %v1426
      %v1428 = vpop.xlane.xlu0 %1427
      %v1429 = vsel %vm581, %v538, 0.0
      %1430 = vadd.xlane.f32.xlu0 %v1429
      %v1431 = vpop.xlane.xlu0 %1430
      %v1432 = vsel %vm581, %v539, 0.0
      %1433 = vadd.xlane.f32.xlu0 %v1432
      %v1434 = vpop.xlane.xlu0 %1433
      %v1435 = vsel %vm581, %v540, 0.0
      %1436 = vadd.xlane.f32.xlu0 %v1435
      %v1437 = vpop.xlane.xlu0 %1436
      %v1438 = vsel %vm581, %v541, 0.0
      %1439 = vadd.xlane.f32.xlu0 %v1438
      %v1440 = vpop.xlane.xlu0 %1439
      %v1441 = vsel %vm581, %v542, 0.0
      %1442 = vadd.xlane.f32.xlu0 %v1441
      %v1443 = vpop.xlane.xlu0 %1442
      %v1444 = vsel %vm581, %v543, 0.0
      %1445 = vadd.xlane.f32.xlu0 %v1444
      %v1446 = vpop.xlane.xlu0 %1445
      %v1447 = vsel %vm581, %v544, 0.0
      %1448 = vadd.xlane.f32.xlu0 %v1447
      %v1449 = vpop.xlane.xlu0 %1448
      %v1450 = vsel %vm581, %v545, 0.0
      %1451 = vadd.xlane.f32.xlu0 %v1450
      %v1452 = vpop.xlane.xlu0 %1451
      %v1453 = vsel %vm581, %v546, 0.0
      %1454 = vadd.xlane.f32.xlu0 %v1453
      %v1455 = vpop.xlane.xlu0 %1454
      %v1456 = vsel %vm581, %v547, 0.0
      %1457 = vadd.xlane.f32.xlu0 %v1456
      %v1458 = vpop.xlane.xlu0 %1457
      %v1459 = vsel %vm581, %v548, 0.0
      %1460 = vadd.xlane.f32.xlu0 %v1459
      %v1461 = vpop.xlane.xlu0 %1460
      %v1462 = vsel %vm581, %v549, 0.0
      %1463 = vadd.xlane.f32.xlu0 %v1462
      %v1464 = vpop.xlane.xlu0 %1463
      %v1465 = vsel %vm581, %v550, 0.0
      %1466 = vadd.xlane.f32.xlu0 %v1465
      %v1467 = vpop.xlane.xlu0 %1466
      %v1468 = vsel %vm581, %v551, 0.0
      %1469 = vadd.xlane.f32.xlu0 %v1468
      %v1470 = vpop.xlane.xlu0 %1469
      %v1471 = vsel %vm581, %v552, 0.0
      %1472 = vadd.xlane.f32.xlu0 %v1471
      %v1473 = vpop.xlane.xlu0 %1472
      %v1474 = vsel %vm581, %v553, 0.0
      %1475 = vadd.xlane.f32.xlu0 %v1474
      %v1476 = vpop.xlane.xlu0 %1475
      %v1477 = vsel %vm581, %v554, 0.0
      %1478 = vadd.xlane.f32.xlu0 %v1477
      %v1479 = vpop.xlane.xlu0 %1478
      %v1480 = vsel %vm581, %v555, 0.0
      %1481 = vadd.xlane.f32.xlu0 %v1480
      %v1482 = vpop.xlane.xlu0 %1481
      %v1483 = vsel %vm581, %v556, 0.0
      %1484 = vadd.xlane.f32.xlu0 %v1483
      %v1485 = vpop.xlane.xlu0 %1484
      %v1486 = vsel %vm581, %v557, 0.0
      %1487 = vadd.xlane.f32.xlu0 %v1486
      %v1488 = vpop.xlane.xlu0 %1487
      %v1489 = vsel %vm581, %v558, 0.0
      %1490 = vadd.xlane.f32.xlu0 %v1489
      %v1491 = vpop.xlane.xlu0 %1490
      %v1492 = vsel %vm581, %v559, 0.0
      %1493 = vadd.xlane.f32.xlu0 %v1492
      %v1494 = vpop.xlane.xlu0 %1493
      %vm1495 = vcmp.eq.f32.partialorder %v1419, 0.0
      %vm1496 = vcmp.eq.f32.partialorder %v1422, 0.0
      %vm1497 = vcmp.eq.f32.partialorder %v1425, 0.0
      %vm1498 = vcmp.eq.f32.partialorder %v1428, 0.0
      %vm1499 = vcmp.eq.f32.partialorder %v1431, 0.0
      %vm1500 = vcmp.eq.f32.partialorder %v1434, 0.0
      %vm1501 = vcmp.eq.f32.partialorder %v1437, 0.0
      %vm1502 = vcmp.eq.f32.partialorder %v1440, 0.0
      %vm1503 = vcmp.eq.f32.partialorder %v1443, 0.0
      %vm1504 = vcmp.eq.f32.partialorder %v1446, 0.0
      %vm1505 = vcmp.eq.f32.partialorder %v1449, 0.0
      %vm1506 = vcmp.eq.f32.partialorder %v1452, 0.0
      %vm1507 = vcmp.eq.f32.partialorder %v1455, 0.0
      %vm1508 = vcmp.eq.f32.partialorder %v1458, 0.0
      %vm1509 = vcmp.eq.f32.partialorder %v1461, 0.0
      %vm1510 = vcmp.eq.f32.partialorder %v1464, 0.0
      %vm1511 = vcmp.eq.f32.partialorder %v1467, 0.0
      %vm1512 = vcmp.eq.f32.partialorder %v1470, 0.0
      %vm1513 = vcmp.eq.f32.partialorder %v1473, 0.0
      %vm1514 = vcmp.eq.f32.partialorder %v1476, 0.0
      %vm1515 = vcmp.eq.f32.partialorder %v1479, 0.0
      %vm1516 = vcmp.eq.f32.partialorder %v1482, 0.0
      %vm1517 = vcmp.eq.f32.partialorder %v1485, 0.0
      %vm1518 = vcmp.eq.f32.partialorder %v1488, 0.0
      %vm1519 = vcmp.eq.f32.partialorder %v1491, 0.0
      %vm1520 = vcmp.eq.f32.partialorder %v1494, 0.0
      %v1521 = vsel %vm1495, 1.0, %v1419
      %v1522 = vsel %vm1496, 1.0, %v1422
      %v1523 = vsel %vm1497, 1.0, %v1425
      %v1524 = vsel %vm1498, 1.0, %v1428
      %v1525 = vsel %vm1499, 1.0, %v1431
      %v1526 = vsel %vm1500, 1.0, %v1434
      %v1527 = vsel %vm1501, 1.0, %v1437
      %v1528 = vsel %vm1502, 1.0, %v1440
      %v1529 = vsel %vm1503, 1.0, %v1443
      %v1530 = vsel %vm1504, 1.0, %v1446
      %v1531 = vsel %vm1505, 1.0, %v1449
      %v1532 = vsel %vm1506, 1.0, %v1452
      %v1533 = vsel %vm1507, 1.0, %v1455
      %v1534 = vsel %vm1508, 1.0, %v1458
      %v1535 = vsel %vm1509, 1.0, %v1461
      %v1536 = vsel %vm1510, 1.0, %v1464
      %v1537 = vsel %vm1511, 1.0, %v1467
      %v1538 = vsel %vm1512, 1.0, %v1470
      %v1539 = vsel %vm1513, 1.0, %v1473
      %v1540 = vsel %vm1514, 1.0, %v1476
      %v1541 = vsel %vm1515, 1.0, %v1479
      %v1542 = vsel %vm1516, 1.0, %v1482
      %v1543 = vsel %vm1517, 1.0, %v1485
      %v1544 = vsel %vm1518, 1.0, %v1488
      %v1545 = vsel %vm1519, 1.0, %v1491
      %v1546 = vsel %vm1520, 1.0, %v1494
      %v1547 = vrcp.pop %v1521
      %v1548 = vmul.f32 %v1391, %v1547
      %v1549 = vrcp.pop %v1522
      %v1550 = vmul.f32 %v1392, %v1549
      %v1551 = vrcp.pop %v1523
      %v1552 = vmul.f32 %v1393, %v1551
      %v1553 = vrcp.pop %v1524
      %v1554 = vmul.f32 %v1394, %v1553
      %v1555 = vrcp.pop %v1525
      %v1556 = vmul.f32 %v1395, %v1555
      %v1557 = vrcp.pop %v1526
      %v1558 = vmul.f32 %v1396, %v1557
      %v1559 = vrcp.pop %v1527
      %v1560 = vmul.f32 %v1397, %v1559
      %v1561 = vrcp.pop %v1528
      %v1562 = vmul.f32 %v1398, %v1561
      %v1563 = vrcp.pop %v1529
      %v1564 = vmul.f32 %v1399, %v1563
      %v1565 = vrcp.pop %v1530
      %v1566 = vmul.f32 %v1400, %v1565
      %v1567 = vrcp.pop %v1531
      %v1568 = vmul.f32 %v1401, %v1567
      %v1569 = vrcp.pop %v1532
      %v1570 = vmul.f32 %v1402, %v1569
      %v1571 = vrcp.pop %v1533
      %v1572 = vmul.f32 %v1403, %v1571
      %v1573 = vrcp.pop %v1534
      %v1574 = vmul.f32 %v1404, %v1573
      %v1575 = vrcp.pop %v1535
      %v1576 = vmul.f32 %v1405, %v1575
      %v1577 = vrcp.pop %v1536
      %v1578 = vmul.f32 %v1406, %v1577
      %v1579 = vrcp.pop %v1537
      %v1580 = vmul.f32 %v1407, %v1579
      %v1581 = vrcp.pop %v1538
      %v1582 = vmul.f32 %v1408, %v1581
      %v1583 = vrcp.pop %v1539
      %v1584 = vmul.f32 %v1409, %v1583
      %v1585 = vrcp.pop %v1540
      %v1586 = vmul.f32 %v1410, %v1585
      %v1587 = vrcp.pop %v1541
      %v1588 = vmul.f32 %v1411, %v1587
      %v1589 = vrcp.pop %v1542
      %v1590 = vmul.f32 %v1412, %v1589
      %v1591 = vrcp.pop %v1543
      %v1592 = vmul.f32 %v1413, %v1591
      %v1593 = vrcp.pop %v1544
      %v1594 = vmul.f32 %v1414, %v1593
      %v1595 = vrcp.pop %v1545
      %v1596 = vmul.f32 %v1415, %v1595
      %v1597 = vrcp.pop %v1546
      %v1598 = vmul.f32 %v1416, %v1597
      %v1599 = vld [vmem:[%s472] sm:$0xff]
      %v1600 = vld [vmem:[%s472 + $0x8] sm:$0xff]
      %v1601 = vld [vmem:[%s472 + $0x10] sm:$0xff]
      %v1602 = vld [vmem:[%s472 + $0x18] sm:$0xff]
      %v1603 = vld [vmem:[%s472 + $0x20] sm:$0xff]
      %v1604 = vld [vmem:[%s472 + $0x28] sm:$0xff]
      %v1605 = vld [vmem:[%s472 + $0x30] sm:$0xff]
      %v1606 = vld [vmem:[%s472 + $0x38] sm:$0xff]
      %v1607 = vld [vmem:[%s472 + $0x40] sm:$0xff]
      %v1608 = vld [vmem:[%s472 + $0x48] sm:$0xff]
      %v1609 = vld [vmem:[%s472 + $0x50] sm:$0xff]
      %v1610 = vld [vmem:[%s472 + $0x58] sm:$0xff]
      %v1611 = vld [vmem:[%s472 + $0x60] sm:$0xff]
      %v1612 = vld [vmem:[%s472 + $0x68] sm:$0xff]
      %v1613 = vld [vmem:[%s472 + $0x70] sm:$0xff]
      %v1614 = vld [vmem:[%s472 + $0x78] sm:$0xff]
      %v1615 = vld [vmem:[%s472 + $0x80] sm:$0xff]
      %v1616 = vld [vmem:[%s472 + $0x88] sm:$0xff]
      %v1617 = vld [vmem:[%s472 + $0x90] sm:$0xff]
      %v1618 = vld [vmem:[%s472 + $0x98] sm:$0xff]
      %v1619 = vld [vmem:[%s472 + $0xa0] sm:$0xff]
      %v1620 = vld [vmem:[%s472 + $0xa8] sm:$0xff]
      %v1621 = vld [vmem:[%s472 + $0xb0] sm:$0xff]
      %v1622 = vld [vmem:[%s472 + $0xb8] sm:$0xff]
      %v1623 = vld [vmem:[%s472 + $0xc0] sm:$0xff]
      %v1624 = vld [vmem:[%s472 + $0xc8] sm:$0xff]
      %v1625 = vld [vmem:[%s7] sm:$0x7]
      %v1626 = vpack.c.bf16 %v1600, %v1599
      %v1627 = vpack.c.bf16 %v1602, %v1601
      %v1628 = vpack.c.bf16 %v1604, %v1603
      %v1629 = vpack.c.bf16 %v1606, %v1605
      %v1630 = vpack.c.bf16 %v1608, %v1607
      %v1631 = vpack.c.bf16 %v1610, %v1609
      %v1632 = vpack.c.bf16 %v1612, %v1611
      %v1633 = vpack.c.bf16 %v1614, %v1613
      %v1634 = vpack.c.bf16 %v1616, %v1615
      %v1635 = vpack.c.bf16 %v1618, %v1617
      %v1636 = vpack.c.bf16 %v1620, %v1619
      %v1637 = vpack.c.bf16 %v1622, %v1621
      %v1638 = vpack.c.bf16 %v1624, %v1623
      %v1639 = vld [vmem:[%s8] sm:$0xf]
      %v1640 = vpack.c.bf16 %v1550, %v1548
      %v1641 = vpack.c.bf16 %v1554, %v1552
      %v1642 = vpack.c.bf16 %v1558, %v1556
      %v1643 = vpack.c.bf16 %v1562, %v1560
      %v1644 = vpack.c.bf16 %v1566, %v1564
      %v1645 = vpack.c.bf16 %v1570, %v1568
      %v1646 = vpack.c.bf16 %v1574, %v1572
      %v1647 = vpack.c.bf16 %v1578, %v1576
      %v1648 = vpack.c.bf16 %v1582, %v1580
      %v1649 = vpack.c.bf16 %v1586, %v1584
      %v1650 = vpack.c.bf16 %v1590, %v1588
      %v1651 = vpack.c.bf16 %v1594, %v1592
      %v1652 = vpack.c.bf16 %v1598, %v1596
      %vm1653 = vcmask 64512
      %v1655 = vsel %vm1653, %v1640, 0
      %v1658 = vsel %vm1653, %v1641, 0
      %v1661 = vsel %vm1653, %v1642, 0
      %v1664 = vsel %vm1653, %v1643, 0
      %v1667 = vsel %vm1653, %v1644, 0
      %v1670 = vsel %vm1653, %v1645, 0
      %v1673 = vsel %vm1653, %v1646, 0
      %v1676 = vsel %vm1653, %v1647, 0
      %v1679 = vsel %vm1653, %v1648, 0
      %v1682 = vsel %vm1653, %v1649, 0
      %v1685 = vsel %vm1653, %v1650, 0
      %v1688 = vsel %vm1653, %v1651, 0
      %v1691 = vsel %vm1653, %v1652, 0
      %vm1693 = vcmask 1043456
      %v1695 = vsel %vm1693, %v1639, 0
      %1697 = vmatprep.subr.bf16.mxu0 0
      %1698 = vmatpush1.bf16.msra.mxu0 0
      %1699 = vmatprep.subr.bf16.mxu0 0
      %1700 = vmatpush1.bf16.msra.mxu0 0
      %1701 = vmatprep.subr.bf16.mxu0 0
      %1702 = vmatpush1.bf16.msra.mxu0 0
      %1703 = vmatprep.subr.bf16.mxu0 0
      %1704 = vmatpush1.bf16.msra.mxu0 0
      %1705 = vmatprep.subr.bf16.mxu0 0
      %1706 = vmatpush1.bf16.msra.mxu0 0
      %1707 = vmatprep.subr.bf16.mxu0 0
      %1708 = vmatpush1.bf16.msra.mxu0 0
      %1709 = vmatprep.subr.bf16.mxu0 0
      %1710 = vmatpush1.bf16.msra.mxu0 0
      %1711 = vmatprep.subr.bf16.mxu0 0
      %1712 = vmatpush1.bf16.msra.mxu0 %v1695
      %1713 = vmatprep.subr.bf16.mxu0 0
      %1714 = vmatpush2.bf16.msra.mxu0 0
      %1715 = vmatprep.subr.bf16.mxu0 0
      %1716 = vmatpush2.bf16.msra.mxu0 0
      %1717 = vmatprep.subr.bf16.mxu0 0
      %1718 = vmatpush2.bf16.msra.mxu0 0
      %1719 = vmatprep.subr.bf16.mxu0 0
      %1720 = vmatpush2.bf16.msra.mxu0 0
      %1721 = vmatprep.subr.bf16.mxu0 0
      %1722 = vmatpush2.bf16.msra.mxu0 0
      %1723 = vmatprep.subr.bf16.mxu0 0
      %1724 = vmatpush2.bf16.msra.mxu0 0
      %1725 = vmatprep.subr.bf16.mxu0 0
      %1726 = vmatpush2.bf16.msra.mxu0 0
      %1727 = vmatprep.subr.bf16.mxu0 0
      %1728 = vmatpush2.bf16.msra.mxu0 0
      %1729 = vmatprep.mubr.bf16.mxu0 0
      %1730 = vmatmul.mubr.bf16.gmra.mxu0 %v1655
      %v1731 = vpop.f32.mrf.mxu0
      %v1732 = vadd.f32 0.0, %v1731
      %v1733 = vpop.f32.mrf.mxu0
      %v1734 = vpop.f32.mrf.mxu0
      %v1735 = vadd.f32 0.0, %v1734
      %v1736 = vpop.f32.mrf.mxu0
      %1737 = vmatprep.mubr.bf16.mxu0 0
      %1738 = vmatmul.mubr.bf16.gmra.mxu0 %v1658
      %v1739 = vpop.f32.mrf.mxu0
      %v1740 = vadd.f32 0.0, %v1739
      %v1741 = vpop.f32.mrf.mxu0
      %v1742 = vpop.f32.mrf.mxu0
      %v1743 = vadd.f32 0.0, %v1742
      %v1744 = vpop.f32.mrf.mxu0
      %1745 = vmatprep.mubr.bf16.mxu0 0
      %1746 = vmatmul.mubr.bf16.gmra.mxu0 %v1661
      %v1747 = vpop.f32.mrf.mxu0
      %v1748 = vadd.f32 0.0, %v1747
      %v1749 = vpop.f32.mrf.mxu0
      %v1750 = vpop.f32.mrf.mxu0
      %v1751 = vadd.f32 0.0, %v1750
      %v1752 = vpop.f32.mrf.mxu0
      %1753 = vmatprep.mubr.bf16.mxu0 0
      %1754 = vmatmul.mubr.bf16.gmra.mxu0 %v1664
      %v1755 = vpop.f32.mrf.mxu0
      %v1756 = vadd.f32 0.0, %v1755
      %v1757 = vpop.f32.mrf.mxu0
      %v1758 = vpop.f32.mrf.mxu0
      %v1759 = vadd.f32 0.0, %v1758
      %v1760 = vpop.f32.mrf.mxu0
      %1761 = vmatprep.mubr.bf16.mxu0 0
      %1762 = vmatmul.mubr.bf16.gmra.mxu0 %v1667
      %v1763 = vpop.f32.mrf.mxu0
      %v1764 = vadd.f32 0.0, %v1763
      %v1765 = vpop.f32.mrf.mxu0
      %v1766 = vpop.f32.mrf.mxu0
      %v1767 = vadd.f32 0.0, %v1766
      %v1768 = vpop.f32.mrf.mxu0
      %1769 = vmatprep.mubr.bf16.mxu0 0
      %1770 = vmatmul.mubr.bf16.gmra.mxu0 %v1670
      %v1771 = vpop.f32.mrf.mxu0
      %v1772 = vadd.f32 0.0, %v1771
      %v1773 = vpop.f32.mrf.mxu0
      %v1774 = vpop.f32.mrf.mxu0
      %v1775 = vadd.f32 0.0, %v1774
      %v1776 = vpop.f32.mrf.mxu0
      %1777 = vmatprep.mubr.bf16.mxu0 0
      %1778 = vmatmul.mubr.bf16.gmra.mxu0 %v1673
      %v1779 = vpop.f32.mrf.mxu0
      %v1780 = vadd.f32 0.0, %v1779
      %v1781 = vpop.f32.mrf.mxu0
      %v1782 = vpop.f32.mrf.mxu0
      %v1783 = vadd.f32 0.0, %v1782
      %v1784 = vpop.f32.mrf.mxu0
      %1785 = vmatprep.mubr.bf16.mxu0 0
      %1786 = vmatmul.mubr.bf16.gmra.mxu0 %v1676
      %v1787 = vpop.f32.mrf.mxu0
      %v1788 = vadd.f32 0.0, %v1787
      %v1789 = vpop.f32.mrf.mxu0
      %v1790 = vpop.f32.mrf.mxu0
      %v1791 = vadd.f32 0.0, %v1790
      %v1792 = vpop.f32.mrf.mxu0
      %1793 = vmatprep.mubr.bf16.mxu0 0
      %1794 = vmatmul.mubr.bf16.gmra.mxu0 %v1679
      %v1795 = vpop.f32.mrf.mxu0
      %v1796 = vadd.f32 0.0, %v1795
      %v1797 = vpop.f32.mrf.mxu0
      %v1798 = vpop.f32.mrf.mxu0
      %v1799 = vadd.f32 0.0, %v1798
      %v1800 = vpop.f32.mrf.mxu0
      %1801 = vmatprep.mubr.bf16.mxu0 0
      %1802 = vmatmul.mubr.bf16.gmra.mxu0 %v1682
      %v1803 = vpop.f32.mrf.mxu0
      %v1804 = vadd.f32 0.0, %v1803
      %v1805 = vpop.f32.mrf.mxu0
      %v1806 = vpop.f32.mrf.mxu0
      %v1807 = vadd.f32 0.0, %v1806
      %v1808 = vpop.f32.mrf.mxu0
      %1809 = vmatprep.mubr.bf16.mxu0 0
      %1810 = vmatmul.mubr.bf16.gmra.mxu0 %v1685
      %v1811 = vpop.f32.mrf.mxu0
      %v1812 = vadd.f32 0.0, %v1811
      %v1813 = vpop.f32.mrf.mxu0
      %v1814 = vpop.f32.mrf.mxu0
      %v1815 = vadd.f32 0.0, %v1814
      %v1816 = vpop.f32.mrf.mxu0
      %1817 = vmatprep.mubr.bf16.mxu0 0
      %1818 = vmatmul.mubr.bf16.gmra.mxu0 %v1688
      %v1819 = vpop.f32.mrf.mxu0
      %v1820 = vadd.f32 0.0, %v1819
      %v1821 = vpop.f32.mrf.mxu0
      %v1822 = vpop.f32.mrf.mxu0
      %v1823 = vadd.f32 0.0, %v1822
      %v1824 = vpop.f32.mrf.mxu0
      %1825 = vmatprep.mubr.bf16.mxu0 0
      %1826 = vmatmul.mubr.bf16.gmra.mxu0 %v1691
      %v1827 = vpop.f32.mrf.mxu0
      %v1828 = vadd.f32 0.0, %v1827
      %v1829 = vpop.f32.mrf.mxu0
      %v1830 = vpop.f32.mrf.mxu0
      %v1831 = vadd.f32 0.0, %v1830
      %v1832 = vpop.f32.mrf.mxu0
      %1833 = vdwg.mxu0
      %vm1834 = vcmask 48128
      %v1836 = vsel %vm1834, %v1626, 0
      %v1839 = vsel %vm1834, %v1627, 0
      %v1842 = vsel %vm1834, %v1628, 0
      %v1845 = vsel %vm1834, %v1629, 0
      %v1848 = vsel %vm1834, %v1630, 0
      %v1851 = vsel %vm1834, %v1631, 0
      %v1854 = vsel %vm1834, %v1632, 0
      %v1857 = vsel %vm1834, %v1633, 0
      %v1860 = vsel %vm1834, %v1634, 0
      %v1863 = vsel %vm1834, %v1635, 0
      %v1866 = vsel %vm1834, %v1636, 0
      %v1869 = vsel %vm1834, %v1637, 0
      %v1872 = vsel %vm1834, %v1638, 0
      %vm1874 = vcmask 1042432
      %v1876 = vsel %vm1874, %v1625, 0
      %1878 = vmatprep.subr.bf16.mxu0 0
      %1879 = vmatpush1.bf16.msra.mxu0 0
      %1880 = vmatprep.subr.bf16.mxu0 0
      %1881 = vmatpush1.bf16.msra.mxu0 0
      %1882 = vmatprep.subr.bf16.mxu0 0
      %1883 = vmatpush1.bf16.msra.mxu0 0
      %1884 = vmatprep.subr.bf16.mxu0 0
      %1885 = vmatpush1.bf16.msra.mxu0 0
      %1886 = vmatprep.subr.bf16.mxu0 0
      %1887 = vmatpush1.bf16.msra.mxu0 0
      %1888 = vmatprep.subr.bf16.mxu0 0
      %1889 = vmatpush1.bf16.msra.mxu0 0
      %1890 = vmatprep.subr.bf16.mxu0 0
      %1891 = vmatpush1.bf16.msra.mxu0 0
      %1892 = vmatprep.subr.bf16.mxu0 0
      %1893 = vmatpush1.bf16.msra.mxu0 %v1876
      %1894 = vmatprep.subr.bf16.mxu0 0
      %1895 = vmatpush2.bf16.msra.mxu0 0
      %1896 = vmatprep.subr.bf16.mxu0 0
      %1897 = vmatpush2.bf16.msra.mxu0 0
      %1898 = vmatprep.subr.bf16.mxu0 0
      %1899 = vmatpush2.bf16.msra.mxu0 0
      %1900 = vmatprep.subr.bf16.mxu0 0
      %1901 = vmatpush2.bf16.msra.mxu0 0
      %1902 = vmatprep.subr.bf16.mxu0 0
      %1903 = vmatpush2.bf16.msra.mxu0 0
      %1904 = vmatprep.subr.bf16.mxu0 0
      %1905 = vmatpush2.bf16.msra.mxu0 0
      %1906 = vmatprep.subr.bf16.mxu0 0
      %1907 = vmatpush2.bf16.msra.mxu0 0
      %1908 = vmatprep.subr.bf16.mxu0 0
      %1909 = vmatpush2.bf16.msra.mxu0 0
      %1910 = vmatprep.mubr.bf16.mxu0 0
      %1911 = vmatmul.mubr.bf16.gmra.mxu0 %v1836
      %v1912 = vpop.f32.mrf.mxu0
      %v1913 = vadd.f32 %v1732, %v1912
      %v1914 = vpop.f32.mrf.mxu0
      %v1915 = vpop.f32.mrf.mxu0
      %v1916 = vadd.f32 %v1735, %v1915
      %v1917 = vpop.f32.mrf.mxu0
      %1918 = vmatprep.mubr.bf16.mxu0 0
      %1919 = vmatmul.mubr.bf16.gmra.mxu0 %v1839
      %v1920 = vpop.f32.mrf.mxu0
      %v1921 = vadd.f32 %v1740, %v1920
      %v1922 = vpop.f32.mrf.mxu0
      %v1923 = vpop.f32.mrf.mxu0
      %v1924 = vadd.f32 %v1743, %v1923
      %v1925 = vpop.f32.mrf.mxu0
      %1926 = vmatprep.mubr.bf16.mxu0 0
      %1927 = vmatmul.mubr.bf16.gmra.mxu0 %v1842
      %v1928 = vpop.f32.mrf.mxu0
      %v1929 = vadd.f32 %v1748, %v1928
      %v1930 = vpop.f32.mrf.mxu0
      %v1931 = vpop.f32.mrf.mxu0
      %v1932 = vadd.f32 %v1751, %v1931
      %v1933 = vpop.f32.mrf.mxu0
      %1934 = vmatprep.mubr.bf16.mxu0 0
      %1935 = vmatmul.mubr.bf16.gmra.mxu0 %v1845
      %v1936 = vpop.f32.mrf.mxu0
      %v1937 = vadd.f32 %v1756, %v1936
      %v1938 = vpop.f32.mrf.mxu0
      %v1939 = vpop.f32.mrf.mxu0
      %v1940 = vadd.f32 %v1759, %v1939
      %v1941 = vpop.f32.mrf.mxu0
      %1942 = vmatprep.mubr.bf16.mxu0 0
      %1943 = vmatmul.mubr.bf16.gmra.mxu0 %v1848
      %v1944 = vpop.f32.mrf.mxu0
      %v1945 = vadd.f32 %v1764, %v1944
      %v1946 = vpop.f32.mrf.mxu0
      %v1947 = vpop.f32.mrf.mxu0
      %v1948 = vadd.f32 %v1767, %v1947
      %v1949 = vpop.f32.mrf.mxu0
      %1950 = vmatprep.mubr.bf16.mxu0 0
      %1951 = vmatmul.mubr.bf16.gmra.mxu0 %v1851
      %v1952 = vpop.f32.mrf.mxu0
      %v1953 = vadd.f32 %v1772, %v1952
      %v1954 = vpop.f32.mrf.mxu0
      %v1955 = vpop.f32.mrf.mxu0
      %v1956 = vadd.f32 %v1775, %v1955
      %v1957 = vpop.f32.mrf.mxu0
      %1958 = vmatprep.mubr.bf16.mxu0 0
      %1959 = vmatmul.mubr.bf16.gmra.mxu0 %v1854
      %v1960 = vpop.f32.mrf.mxu0
      %v1961 = vadd.f32 %v1780, %v1960
      %v1962 = vpop.f32.mrf.mxu0
      %v1963 = vpop.f32.mrf.mxu0
      %v1964 = vadd.f32 %v1783, %v1963
      %v1965 = vpop.f32.mrf.mxu0
      %1966 = vmatprep.mubr.bf16.mxu0 0
      %1967 = vmatmul.mubr.bf16.gmra.mxu0 %v1857
      %v1968 = vpop.f32.mrf.mxu0
      %v1969 = vadd.f32 %v1788, %v1968
      %v1970 = vpop.f32.mrf.mxu0
      %v1971 = vpop.f32.mrf.mxu0
      %v1972 = vadd.f32 %v1791, %v1971
      %v1973 = vpop.f32.mrf.mxu0
      %1974 = vmatprep.mubr.bf16.mxu0 0
      %1975 = vmatmul.mubr.bf16.gmra.mxu0 %v1860
      %v1976 = vpop.f32.mrf.mxu0
      %v1977 = vadd.f32 %v1796, %v1976
      %v1978 = vpop.f32.mrf.mxu0
      %v1979 = vpop.f32.mrf.mxu0
      %v1980 = vadd.f32 %v1799, %v1979
      %v1981 = vpop.f32.mrf.mxu0
      %1982 = vmatprep.mubr.bf16.mxu0 0
      %1983 = vmatmul.mubr.bf16.gmra.mxu0 %v1863
      %v1984 = vpop.f32.mrf.mxu0
      %v1985 = vadd.f32 %v1804, %v1984
      %v1986 = vpop.f32.mrf.mxu0
      %v1987 = vpop.f32.mrf.mxu0
      %v1988 = vadd.f32 %v1807, %v1987
      %v1989 = vpop.f32.mrf.mxu0
      %1990 = vmatprep.mubr.bf16.mxu0 0
      %1991 = vmatmul.mubr.bf16.gmra.mxu0 %v1866
      %v1992 = vpop.f32.mrf.mxu0
      %v1993 = vadd.f32 %v1812, %v1992
      %v1994 = vpop.f32.mrf.mxu0
      %v1995 = vpop.f32.mrf.mxu0
      %v1996 = vadd.f32 %v1815, %v1995
      %v1997 = vpop.f32.mrf.mxu0
      %1998 = vmatprep.mubr.bf16.mxu0 0
      %1999 = vmatmul.mubr.bf16.gmra.mxu0 %v1869
      %v2000 = vpop.f32.mrf.mxu0
      %v2001 = vadd.f32 %v1820, %v2000
      %v2002 = vpop.f32.mrf.mxu0
      %v2003 = vpop.f32.mrf.mxu0
      %v2004 = vadd.f32 %v1823, %v2003
      %v2005 = vpop.f32.mrf.mxu0
      %2006 = vmatprep.mubr.bf16.mxu0 0
      %2007 = vmatmul.mubr.bf16.gmra.mxu0 %v1872
      %v2008 = vpop.f32.mrf.mxu0
      %v2009 = vadd.f32 %v1828, %v2008
      %v2010 = vpop.f32.mrf.mxu0
      %v2011 = vpop.f32.mrf.mxu0
      %v2012 = vadd.f32 %v1831, %v2011
      %v2013 = vpop.f32.mrf.mxu0
      %2014 = vdwg.mxu0
      %v2015 = vld [vmem:[%s9] sm:$0x1]
      %v2017 = vlaneseq
      %v2018 = vshrl.u32 %v2017, 7
      %v2019 = vsub.s32 0, %v2018
      %v2020 = vrot.slane %v2015, %v2019
      %v2022 = vadd.f32 %v1913, %v2020
      %v2023 = vadd.f32 %v1916, %v2020
      %v2024 = vadd.f32 %v1921, %v2020
      %v2025 = vadd.f32 %v1924, %v2020
      %v2026 = vadd.f32 %v1929, %v2020
      %v2027 = vadd.f32 %v1932, %v2020
      %v2028 = vadd.f32 %v1937, %v2020
      %v2029 = vadd.f32 %v1940, %v2020
      %v2030 = vadd.f32 %v1945, %v2020
      %v2031 = vadd.f32 %v1948, %v2020
      %v2032 = vadd.f32 %v1953, %v2020
      %v2033 = vadd.f32 %v1956, %v2020
      %v2034 = vadd.f32 %v1961, %v2020
      %v2035 = vadd.f32 %v1964, %v2020
      %v2036 = vadd.f32 %v1969, %v2020
      %v2037 = vadd.f32 %v1972, %v2020
      %v2038 = vadd.f32 %v1977, %v2020
      %v2039 = vadd.f32 %v1980, %v2020
      %v2040 = vadd.f32 %v1985, %v2020
      %v2041 = vadd.f32 %v1988, %v2020
      %v2042 = vadd.f32 %v1993, %v2020
      %v2043 = vadd.f32 %v1996, %v2020
      %v2044 = vadd.f32 %v2001, %v2020
      %v2045 = vadd.f32 %v2004, %v2020
      %v2046 = vadd.f32 %v2009, %v2020
      %v2047 = vadd.f32 %v2012, %v2020
      %v2048 = vmax.f32 %v2022, 0.0
      %v2049 = vmax.f32 %v2023, 0.0
      %v2050 = vmax.f32 %v2024, 0.0
      %v2051 = vmax.f32 %v2025, 0.0
      %v2052 = vmax.f32 %v2026, 0.0
      %v2053 = vmax.f32 %v2027, 0.0
      %v2054 = vmax.f32 %v2028, 0.0
      %v2055 = vmax.f32 %v2029, 0.0
      %v2056 = vmax.f32 %v2030, 0.0
      %v2057 = vmax.f32 %v2031, 0.0
      %v2058 = vmax.f32 %v2032, 0.0
      %v2059 = vmax.f32 %v2033, 0.0
      %v2060 = vmax.f32 %v2034, 0.0
      %v2061 = vmax.f32 %v2035, 0.0
      %v2062 = vmax.f32 %v2036, 0.0
      %v2063 = vmax.f32 %v2037, 0.0
      %v2064 = vmax.f32 %v2038, 0.0
      %v2065 = vmax.f32 %v2039, 0.0
      %v2066 = vmax.f32 %v2040, 0.0
      %v2067 = vmax.f32 %v2041, 0.0
      %v2068 = vmax.f32 %v2042, 0.0
      %v2069 = vmax.f32 %v2043, 0.0
      %v2070 = vmax.f32 %v2044, 0.0
      %v2071 = vmax.f32 %v2045, 0.0
      %v2072 = vmax.f32 %v2046, 0.0
      %v2073 = vmax.f32 %v2047, 0.0
      %v2074 = vpack.c.bf16 %v2049, %v2048
      %v2075 = vpack.c.bf16 %v2051, %v2050
      %v2076 = vpack.c.bf16 %v2053, %v2052
      %v2077 = vpack.c.bf16 %v2055, %v2054
      %v2078 = vpack.c.bf16 %v2057, %v2056
      %v2079 = vpack.c.bf16 %v2059, %v2058
      %v2080 = vpack.c.bf16 %v2061, %v2060
      %v2081 = vpack.c.bf16 %v2063, %v2062
      %v2082 = vpack.c.bf16 %v2065, %v2064
      %v2083 = vpack.c.bf16 %v2067, %v2066
      %v2084 = vpack.c.bf16 %v2069, %v2068
      %v2085 = vpack.c.bf16 %v2071, %v2070
      %v2086 = vpack.c.bf16 %v2073, %v2072
      %v2100 = vunpack.c.l.b16 %v2074
      %v2101 = vunpack.c.h.b16 %v2074
      %v2102 = vunpack.c.l.b16 %v2075
      %v2103 = vunpack.c.h.b16 %v2075
      %v2104 = vunpack.c.l.b16 %v2076
      %v2105 = vunpack.c.h.b16 %v2076
      %v2106 = vunpack.c.l.b16 %v2077
      %v2107 = vunpack.c.h.b16 %v2077
      %v2108 = vunpack.c.l.b16 %v2078
      %v2109 = vunpack.c.h.b16 %v2078
      %v2110 = vunpack.c.l.b16 %v2079
      %v2111 = vunpack.c.h.b16 %v2079
      %v2112 = vunpack.c.l.b16 %v2080
      %v2113 = vunpack.c.h.b16 %v2080
      %v2114 = vunpack.c.l.b16 %v2081
      %v2115 = vunpack.c.h.b16 %v2081
      %v2116 = vunpack.c.l.b16 %v2082
      %v2117 = vunpack.c.h.b16 %v2082
      %v2118 = vunpack.c.l.b16 %v2083
      %v2119 = vunpack.c.h.b16 %v2083
      %v2120 = vunpack.c.l.b16 %v2084
      %v2121 = vunpack.c.h.b16 %v2084
      %v2122 = vunpack.c.l.b16 %v2085
      %v2123 = vunpack.c.h.b16 %v2085
      %v2124 = vunpack.c.l.b16 %v2086
      %v2125 = vunpack.c.h.b16 %v2086
      %v2126 = vpack.c.b16 %v2100, %v2100
      %v2127 = vpack.c.b16 %v2101, %v2101
      %v2128 = vpack.c.b16 %v2102, %v2102
      %v2129 = vpack.c.b16 %v2103, %v2103
      %v2130 = vpack.c.b16 %v2104, %v2104
      %v2131 = vpack.c.b16 %v2105, %v2105
      %v2132 = vpack.c.b16 %v2106, %v2106
      %v2133 = vpack.c.b16 %v2107, %v2107
      %v2134 = vpack.c.b16 %v2108, %v2108
      %v2135 = vpack.c.b16 %v2109, %v2109
      %v2136 = vpack.c.b16 %v2110, %v2110
      %v2137 = vpack.c.b16 %v2111, %v2111
      %v2138 = vpack.c.b16 %v2112, %v2112
      %v2139 = vpack.c.b16 %v2113, %v2113
      %v2140 = vpack.c.b16 %v2114, %v2114
      %v2141 = vpack.c.b16 %v2115, %v2115
      %v2142 = vpack.c.b16 %v2116, %v2116
      %v2143 = vpack.c.b16 %v2117, %v2117
      %v2144 = vpack.c.b16 %v2118, %v2118
      %v2145 = vpack.c.b16 %v2119, %v2119
      %v2146 = vpack.c.b16 %v2120, %v2120
      %v2147 = vpack.c.b16 %v2121, %v2121
      %v2148 = vpack.c.b16 %v2122, %v2122
      %v2149 = vpack.c.b16 %v2123, %v2123
      %v2150 = vpack.c.b16 %v2124, %v2124
      %v2151 = vpack.c.b16 %v2125, %v2125
      %vm2178 = vcmask 257024
      %2179 = vst.msk [vmem:[%s502] sm:$0xf] %vm2178, %v2126
      %2180 = vst.msk [vmem:[%s502 + $0x4] sm:$0xf] %vm2178, %v2127
      %2181 = vst.msk [vmem:[%s502 + $0x8] sm:$0xf] %vm2178, %v2128
      %2182 = vst.msk [vmem:[%s502 + $0xc] sm:$0xf] %vm2178, %v2129
      %2183 = vst.msk [vmem:[%s502 + $0x10] sm:$0xf] %vm2178, %v2130
      %2184 = vst.msk [vmem:[%s502 + $0x14] sm:$0xf] %vm2178, %v2131
      %2185 = vst.msk [vmem:[%s502 + $0x18] sm:$0xf] %vm2178, %v2132
      %2186 = vst.msk [vmem:[%s502 + $0x1c] sm:$0xf] %vm2178, %v2133
      %2187 = vst.msk [vmem:[%s502 + $0x20] sm:$0xf] %vm2178, %v2134
      %2188 = vst.msk [vmem:[%s502 + $0x24] sm:$0xf] %vm2178, %v2135
      %2189 = vst.msk [vmem:[%s502 + $0x28] sm:$0xf] %vm2178, %v2136
      %2190 = vst.msk [vmem:[%s502 + $0x2c] sm:$0xf] %vm2178, %v2137
      %2191 = vst.msk [vmem:[%s502 + $0x30] sm:$0xf] %vm2178, %v2138
      %2192 = vst.msk [vmem:[%s502 + $0x34] sm:$0xf] %vm2178, %v2139
      %2193 = vst.msk [vmem:[%s502 + $0x38] sm:$0xf] %vm2178, %v2140
      %2194 = vst.msk [vmem:[%s502 + $0x3c] sm:$0xf] %vm2178, %v2141
      %2195 = vst.msk [vmem:[%s502 + $0x40] sm:$0xf] %vm2178, %v2142
      %2196 = vst.msk [vmem:[%s502 + $0x44] sm:$0xf] %vm2178, %v2143
      %2197 = vst.msk [vmem:[%s502 + $0x48] sm:$0xf] %vm2178, %v2144
      %2198 = vst.msk [vmem:[%s502 + $0x4c] sm:$0xf] %vm2178, %v2145
      %2199 = vst.msk [vmem:[%s502 + $0x50] sm:$0xf] %vm2178, %v2146
      %2200 = vst.msk [vmem:[%s502 + $0x54] sm:$0xf] %vm2178, %v2147
      %2201 = vst.msk [vmem:[%s502 + $0x58] sm:$0xf] %vm2178, %v2148
      %2202 = vst.msk [vmem:[%s502 + $0x5c] sm:$0xf] %vm2178, %v2149
      %2203 = vst.msk [vmem:[%s502 + $0x60] sm:$0xf] %vm2178, %v2150
      %2204 = vst.msk [vmem:[%s502 + $0x64] sm:$0xf] %vm2178, %v2151
      %s2205 = smul.u32 %s28, 208
      %v2206 = vlaneseq
      %v2207 = vshrl.u32 %v2206, 7
      %v2208 = vadd.s32 %v2207, 8
      %v2209 = vadd.s32 %v2207, 16
      %v2210 = vadd.s32 %v2207, 24
      %v2211 = vadd.s32 %v2207, 32
      %v2212 = vadd.s32 %v2207, 40
      %v2213 = vadd.s32 %v2207, 48
      %v2214 = vadd.s32 %v2207, 56
      %v2215 = vadd.s32 %v2207, 64
      %v2216 = vadd.s32 %v2207, 72
      %v2217 = vadd.s32 %v2207, 80
      %v2218 = vadd.s32 %v2207, 88
      %v2219 = vadd.s32 %v2207, 96
      %v2220 = vadd.s32 %v2207, 104
      %v2221 = vadd.s32 %v2207, 112
      %v2222 = vadd.s32 %v2207, 120
      %v2223 = vadd.s32 %v2207, 128
      %v2224 = vadd.s32 %v2207, 136
      %v2225 = vadd.s32 %v2207, 144
      %v2226 = vadd.s32 %v2207, 152
      %v2227 = vadd.s32 %v2207, 160
      %v2228 = vadd.s32 %v2207, 168
      %v2229 = vadd.s32 %v2207, 176
      %v2230 = vadd.s32 %v2207, 184
      %v2231 = vadd.s32 %v2207, 192
      %v2232 = vadd.s32 %v2207, 200
      %v2233 = vstv %s2205
      %v2234 = vadd.s32 %v2233, %v2207
      %v2235 = vadd.s32 %v2233, %v2208
      %v2236 = vadd.s32 %v2233, %v2209
      %v2237 = vadd.s32 %v2233, %v2210
      %v2238 = vadd.s32 %v2233, %v2211
      %v2239 = vadd.s32 %v2233, %v2212
      %v2240 = vadd.s32 %v2233, %v2213
      %v2241 = vadd.s32 %v2233, %v2214
      %v2242 = vadd.s32 %v2233, %v2215
      %v2243 = vadd.s32 %v2233, %v2216
      %v2244 = vadd.s32 %v2233, %v2217
      %v2245 = vadd.s32 %v2233, %v2218
      %v2246 = vadd.s32 %v2233, %v2219
      %v2247 = vadd.s32 %v2233, %v2220
      %v2248 = vadd.s32 %v2233, %v2221
      %v2249 = vadd.s32 %v2233, %v2222
      %v2250 = vadd.s32 %v2233, %v2223
      %v2251 = vadd.s32 %v2233, %v2224
      %v2252 = vadd.s32 %v2233, %v2225
      %v2253 = vadd.s32 %v2233, %v2226
      %v2254 = vadd.s32 %v2233, %v2227
      %v2255 = vadd.s32 %v2233, %v2228
      %v2256 = vadd.s32 %v2233, %v2229
      %v2257 = vadd.s32 %v2233, %v2230
      %v2258 = vadd.s32 %v2233, %v2231
      %v2259 = vadd.s32 %v2233, %v2232
      %vm2260 = vcmp.lt.s32.totalorder %v2234, 203
      %vm2261 = vcmp.lt.s32.totalorder %v2235, 203
      %vm2262 = vcmp.lt.s32.totalorder %v2236, 203
      %vm2263 = vcmp.lt.s32.totalorder %v2237, 203
      %vm2264 = vcmp.lt.s32.totalorder %v2238, 203
      %vm2265 = vcmp.lt.s32.totalorder %v2239, 203
      %vm2266 = vcmp.lt.s32.totalorder %v2240, 203
      %vm2267 = vcmp.lt.s32.totalorder %v2241, 203
      %vm2268 = vcmp.lt.s32.totalorder %v2242, 203
      %vm2269 = vcmp.lt.s32.totalorder %v2243, 203
      %vm2270 = vcmp.lt.s32.totalorder %v2244, 203
      %vm2271 = vcmp.lt.s32.totalorder %v2245, 203
      %vm2272 = vcmp.lt.s32.totalorder %v2246, 203
      %vm2273 = vcmp.lt.s32.totalorder %v2247, 203
      %vm2274 = vcmp.lt.s32.totalorder %v2248, 203
      %vm2275 = vcmp.lt.s32.totalorder %v2249, 203
      %vm2276 = vcmp.lt.s32.totalorder %v2250, 203
      %vm2277 = vcmp.lt.s32.totalorder %v2251, 203
      %vm2278 = vcmp.lt.s32.totalorder %v2252, 203
      %vm2279 = vcmp.lt.s32.totalorder %v2253, 203
      %vm2280 = vcmp.lt.s32.totalorder %v2254, 203
      %vm2281 = vcmp.lt.s32.totalorder %v2255, 203
      %vm2282 = vcmp.lt.s32.totalorder %v2256, 203
      %vm2283 = vcmp.lt.s32.totalorder %v2257, 203
      %vm2284 = vcmp.lt.s32.totalorder %v2258, 203
      %vm2285 = vcmp.lt.s32.totalorder %v2259, 203
      %v2286 = vsel %vm2260, %v2048, -inf
      %v2287 = vsel %vm2261, %v2049, -inf
      %v2288 = vsel %vm2262, %v2050, -inf
      %v2289 = vsel %vm2263, %v2051, -inf
      %v2290 = vsel %vm2264, %v2052, -inf
      %v2291 = vsel %vm2265, %v2053, -inf
      %v2292 = vsel %vm2266, %v2054, -inf
      %v2293 = vsel %vm2267, %v2055, -inf
      %v2294 = vsel %vm2268, %v2056, -inf
      %v2295 = vsel %vm2269, %v2057, -inf
      %v2296 = vsel %vm2270, %v2058, -inf
      %v2297 = vsel %vm2271, %v2059, -inf
      %v2298 = vsel %vm2272, %v2060, -inf
      %v2299 = vsel %vm2273, %v2061, -inf
      %v2300 = vsel %vm2274, %v2062, -inf
      %v2301 = vsel %vm2275, %v2063, -inf
      %v2302 = vsel %vm2276, %v2064, -inf
      %v2303 = vsel %vm2277, %v2065, -inf
      %v2304 = vsel %vm2278, %v2066, -inf
      %v2305 = vsel %vm2279, %v2067, -inf
      %v2306 = vsel %vm2280, %v2068, -inf
      %v2307 = vsel %vm2281, %v2069, -inf
      %v2308 = vsel %vm2282, %v2070, -inf
      %v2309 = vsel %vm2283, %v2071, -inf
      %v2310 = vsel %vm2284, %v2072, -inf
      %v2311 = vsel %vm2285, %v2073, -inf
      %v2312 = vsel %vm824, %v2286, -inf
      %v2313 = vsel %vm824, %v2287, -inf
      %v2314 = vsel %vm824, %v2288, -inf
      %v2315 = vsel %vm824, %v2289, -inf
      %v2316 = vsel %vm824, %v2290, -inf
      %v2317 = vmax.f32 %v2312, %v2316
      %v2318 = vsel %vm824, %v2291, -inf
      %v2319 = vmax.f32 %v2313, %v2318
      %v2320 = vsel %vm824, %v2292, -inf
      %v2321 = vmax.f32 %v2314, %v2320
      %v2322 = vsel %vm824, %v2293, -inf
      %v2323 = vmax.f32 %v2315, %v2322
      %v2324 = vsel %vm824, %v2294, -inf
      %v2325 = vmax.f32 %v2317, %v2324
      %v2326 = vsel %vm824, %v2295, -inf
      %v2327 = vmax.f32 %v2319, %v2326
      %v2328 = vsel %vm824, %v2296, -inf
      %v2329 = vmax.f32 %v2321, %v2328
      %v2330 = vsel %vm824, %v2297, -inf
      %v2331 = vmax.f32 %v2323, %v2330
      %v2332 = vsel %vm824, %v2298, -inf
      %v2333 = vmax.f32 %v2325, %v2332
      %v2334 = vsel %vm824, %v2299, -inf
      %v2335 = vmax.f32 %v2327, %v2334
      %v2336 = vsel %vm824, %v2300, -inf
      %v2337 = vmax.f32 %v2329, %v2336
      %v2338 = vsel %vm824, %v2301, -inf
      %v2339 = vmax.f32 %v2331, %v2338
      %v2340 = vsel %vm824, %v2302, -inf
      %v2341 = vmax.f32 %v2333, %v2340
      %v2342 = vsel %vm824, %v2303, -inf
      %v2343 = vmax.f32 %v2335, %v2342
      %v2344 = vsel %vm824, %v2304, -inf
      %v2345 = vmax.f32 %v2337, %v2344
      %v2346 = vsel %vm824, %v2305, -inf
      %v2347 = vmax.f32 %v2339, %v2346
      %v2348 = vsel %vm824, %v2306, -inf
      %v2349 = vmax.f32 %v2341, %v2348
      %v2350 = vsel %vm824, %v2307, -inf
      %v2351 = vmax.f32 %v2343, %v2350
      %v2352 = vsel %vm824, %v2308, -inf
      %v2353 = vmax.f32 %v2345, %v2352
      %v2354 = vsel %vm824, %v2309, -inf
      %v2355 = vmax.f32 %v2347, %v2354
      %v2356 = vsel %vm824, %v2310, -inf
      %v2357 = vmax.f32 %v2349, %v2356
      %v2358 = vsel %vm824, %v2311, -inf
      %v2359 = vmax.f32 %v2351, %v2358
      %v2360 = vmax.f32 %v2357, %v2359
      %v2361 = vmax.f32 %v2353, %v2355
      %v2362 = vmax.f32 %v2360, %v2361
      %v2363 = vrot.slane %v2362, 4
      %v2364 = vmax.f32 %v2362, %v2363
      %v2365 = vrot.slane %v2364, 2
      %v2366 = vmax.f32 %v2364, %v2365
      %v2367 = vrot.slane %v2366, 1
      %v2368 = vmax.f32 %v2366, %v2367
      %p2369 = scmp.eq.s32.totalorder %s28, 0
      // Predicated region
      $region61: #{_lambda_.5} parent=59 // pred_check
        %p2370 = pneg %p2369
      $region62: #{_lambda_.5} parent=59 // pred_check_branch
        %2372 = sbr.rel (%p2370) target = $region64
      $region63: #{_lambda_.5} parent=59 // pred_region
        %vm2373 = vcmask 253952
        %2374 = vst.msk [vmem:[%s506] sm:$0x1] %vm2373, %v2368
      $region64: #{_lambda_.5} parent=59 // pred_fallthru
        _
      %p2375 = scmp.gt.s32.totalorder %s28, 0
      // Predicated region
      $region65: #{_lambda_.5} parent=59 // pred_check
        %p2376 = pneg %p2375
      $region66: #{_lambda_.5} parent=59 // pred_check_branch
        %2378 = sbr.rel (%p2376) target = $region68
      $region67: #{_lambda_.5} parent=59 // pred_region
        %v2379 = vld [vmem:[%s506] sm:$0x1]
        %v2380 = vmax.f32 %v2379, %v2368
        %vm2381 = vcmask 253952
        %2382 = vst.msk [vmem:[%s506] sm:$0x1] %vm2381, %v2380
      $region68: #{_lambda_.5} parent=59 // pred_fallthru
        _
      %s2383 = smul.u32 26, %s28
      %p2384 = scmp.lt.s32.totalorder %s27, 1
      %s2385 = scalar_select %p2384, %s27, 1
      %p2386 = scmp.lt.s32.totalorder %s2383, 25
      %s2387 = scalar_select %p2386, %s2383, 25
      %s2388 = smul.addr %s2385, 26
      %s2389 = sadd.s32 %s2387, %s2388
      %s2390 = smul.addr %s2389, 4
      %s2391 = scalar_lea.vmem %s10, %s2390
      %p2392 = scmp.lt.s32.totalorder %s27, 1
      %s2393 = scalar_select %p2392, %s27, 1
      %s2394 = scalar_lea.vmem %s11, %s2393
      // Predicated region
      $region69: #{_lambda_.5} parent=59 // pred_check
        %p2395 = pneg %p286
      $region70: #{_lambda_.5} parent=59 // pred_check_branch
        %2397 = sbr.rel (%p2395) target = $region72
      $region71: #{_lambda_.5} parent=59 // pred_region
        %s2398 = smul.u32 26, %s28
      $region72: #{_lambda_.5} parent=59 // pred_fallthru
        _
      // Predicated region
      $region73: #{_lambda_.5} parent=59 // pred_check
        %p2399 = pneg %p312
      $region74: #{_lambda_.5} parent=59 // pred_check_branch
        %2401 = sbr.rel (%p2399) target = $region76
      $region75: #{_lambda_.5} parent=59 // pred_region
        _
      $region76: #{_lambda_.5} parent=59 // pred_fallthru
        _
    $region60: #{_lambda_.5} parent=5 // pred_fallthru
      _
    %p2402 = scmp.le.s32.totalorder 2, %s18
    // Predicated region
    $region77: #{_lambda_.5} parent=5 // pred_check
      %p2403 = pneg %p2402
    $region78: #{_lambda_.5} parent=5 // pred_check_branch
      %2405 = sbr.rel (%p2403) target = $region80
    $region79: #{_lambda_.5} parent=5 // pred_region
      %s2406 = ssub.s32 %s18, 2
      // Predicated region
      $region81: #{_lambda_.5} parent=79 // pred_check
        %p2407 = pneg %p292
      $region82: #{_lambda_.5} parent=79 // pred_check_branch
        %2409 = sbr.rel (%p2407) target = $region84
      $region83: #{_lambda_.5} parent=79 // pred_region
        %s2410 = smul.u32 26, %s30
        %p2411 = scmp.lt.s32.totalorder %s29, 1
        %s2412 = scalar_select %p2411, %s29, 1
        %p2413 = scmp.lt.s32.totalorder %s2410, 25
        %s2414 = scalar_select %p2413, %s2410, 25
        %s2415 = smul.addr %s2412, 26
        %s2416 = sadd.s32 %s2414, %s2415
        %s2417 = smul.addr %s2416, 4
        %s2418 = scalar_lea.vmem %s10, %s2417
      $region84: #{_lambda_.5} parent=79 // pred_fallthru
        _
      // Predicated region
      $region85: #{_lambda_.5} parent=79 // pred_check
        %p2419 = pneg %p318
      $region86: #{_lambda_.5} parent=79 // pred_check_branch
        %2421 = sbr.rel (%p2419) target = $region88
      $region87: #{_lambda_.5} parent=79 // pred_region
        %p2422 = scmp.lt.s32.totalorder %s29, 1
        %s2423 = scalar_select %p2422, %s29, 1
        %s2424 = scalar_lea.vmem %s11, %s2423
      $region88: #{_lambda_.5} parent=79 // pred_fallthru
        _
    $region80: #{_lambda_.5} parent=5 // pred_fallthru
      _
  $region6: #{_lambda_.5} parent=0 // loop_footer
    %s22 = sadd.s32 1, %s18
  $region7: #{_lambda_.5} parent=0 // loop_footer_branch
    %17 = sbr.rel target = $region3
  $region8: #{_lambda_.5} parent=0 // loop_exit
    _

// kernel: _lambda_.8
$region0: #{_lambda_.8}
  #allocation0 [shape = 'u32[]', space=smem, size = 0x4, offset = 0x4, fixed_abs, tag = 'smem constant byte address 0x4 - core index']
  #allocation1 [shape = 'u32[144,128]{1,0:T(1,128)}', space=vmem, size = 0x12000, scoped, tag = 'internal scratch']
  #allocation2 [shape = 'f32[1,32]{1,0:T(1,128)}', space=vmem, size = 0x200, scoped, tag = 'scratch operand']
  %s0 = inlined_call_operand.vmem [shape: f32[2,208,3], index: 0, kind: input, shape index: {}]
  %s1 = inlined_call_operand.vmem [shape: bf16[2,208,16], index: 1, kind: input, shape index: {}]
  %s2 = inlined_call_operand.vmem [shape: f32[2,208,1], index: 2, kind: input, shape index: {}]
  %s3 = inlined_call_operand.vmem [shape: f32[2,1,16], index: 3, kind: input, shape index: {}]
  %s4 = inlined_call_operand.vmem [shape: f32[2,1,8], index: 4, kind: input, shape index: {}]
  %s5 = inlined_call_operand.vmem [shape: bf16[3,32], index: 5, kind: input, shape index: {}]
  %s6 = inlined_call_operand.vmem [shape: bf16[16,32], index: 6, kind: input, shape index: {}]
  %s7 = inlined_call_operand.vmem [shape: bf16[16,32], index: 7, kind: input, shape index: {}]
  %s8 = inlined_call_operand.vmem [shape: bf16[1,32], index: 8, kind: input, shape index: {}]
  %s9 = inlined_call_operand.vmem [shape: f32[1,32], index: 9, kind: input, shape index: {}]
  %s10 = inlined_call_operand.vmem [shape: bf16[32,32], index: 10, kind: input, shape index: {}]
  %s11 = inlined_call_operand.vmem [shape: f32[1,32], index: 11, kind: input, shape index: {}]
  %s12 = inlined_call_operand.vmem [shape: f32[32,32], index: 12, kind: input, shape index: {}]
  %s13 = inlined_call_operand.vmem [shape: f32[1,32], index: 13, kind: input, shape index: {}]
  %s14 = inlined_call_operand.vmem [shape: f32[32,32], index: 14, kind: input, shape index: {}]
  %s15 = inlined_call_operand.vmem [shape: f32[1,32], index: 15, kind: input, shape index: {}]
  %s16 = inlined_call_operand.vmem [shape: f32[32,32], index: 16, kind: input, shape index: {}]
  %s17 = inlined_call_operand.vmem [shape: f32[1,32], index: 17, kind: input, shape index: {}]
  %s18 = inlined_call_operand.vmem [shape: f32[32,16], index: 18, kind: input, shape index: {}]
  %s19 = inlined_call_operand.vmem [shape: f32[1,16], index: 19, kind: input, shape index: {}]
  %s20 = inlined_call_operand.vmem [shape: f32[2,1,24], index: 20, kind: output, shape index: {}]
  %s21 = sld [smem:[#allocation0]]
  $region125: #{_lambda_.8} parent=0
    _
  %s23 = ssub.s32 1, %s21
  %s24 = scalar_select 0, %s23, %s21
  loop: start=0, step=1, limit=4
  $region2: #{_lambda_.8} parent=0 // loop_pre_header
    _
  $region3: #{_lambda_.8} parent=0 // loop_header
    %s26 = sphi 0, %s30
    %p27 = scmp.ge.s32.totalorder %s26, 4
    %s33 = sphi 0, %s45
    %s34 = sphi 0, %s41
    %s35 = sphi 0, %s33
    %s36 = sphi 0, %s34
    %s37 = sphi 0, %s35
    %s38 = sphi 0, %s36
    %s50 = sphi 0, %s52
    %s53 = sphi 0, %s50
    %s54 = sphi 0, %s53
    %s70 = sphi 0, %s54
    %s78 = sphi 0, %s80
    %s81 = sphi 0, %s78
    %s82 = sphi 0, %s81
    %s98 = sphi 0, %s82
    %s106 = sphi 0, %s108
    %s109 = sphi 0, %s106
    %s110 = sphi 0, %s109
    %s126 = sphi 0, %s110
    %s132 = sphi 0, %s134
    %s135 = sphi 0, %s132
    %s136 = sphi 0, %s135
    %s152 = sphi 0, %s136
    %s158 = sphi 0, %s160
    %s161 = sphi 0, %s158
    %s162 = sphi 0, %s161
    %s178 = sphi 0, %s162
    %s182 = sphi 0, %s182
    %s184 = sphi 0, %s182
    %s185 = sphi 0, %s184
    %s199 = sphi 0, %s185
    %s203 = sphi 0, %s203
    %s205 = sphi 0, %s203
    %s206 = sphi 0, %s205
    %s220 = sphi 0, %s206
    %s224 = sphi 0, %s224
    %s226 = sphi 0, %s224
    %s227 = sphi 0, %s226
    %s241 = sphi 0, %s227
    %s245 = sphi 0, %s245
    %s247 = sphi 0, %s245
    %s248 = sphi 0, %s247
    %s262 = sphi 0, %s248
    %s266 = sphi 0, %s266
    %s268 = sphi 0, %s266
    %s269 = sphi 0, %s268
    %s283 = sphi 0, %s269
    %s287 = sphi 0, %s287
    %s289 = sphi 0, %s287
    %s290 = sphi 0, %s289
    %s304 = sphi 0, %s290
    %s308 = sphi 0, %s308
    %s310 = sphi 0, %s308
    %s311 = sphi 0, %s310
    %s325 = sphi 0, %s311
    %s329 = sphi 0, %s329
    %s331 = sphi 0, %s329
    %s332 = sphi 0, %s331
    %s346 = sphi 0, %s332
    %s350 = sphi 0, %s350
    %s352 = sphi 0, %s350
    %s353 = sphi 0, %s352
    %s367 = sphi 0, %s353
    %s371 = sphi 0, %s371
    %s373 = sphi 0, %s371
    %s374 = sphi 0, %s373
    %s388 = sphi 0, %s374
    %s392 = sphi 0, %s392
    %s394 = sphi 0, %s392
    %s395 = sphi 0, %s394
    %s409 = sphi 0, %s395
    %s413 = sphi 0, %s413
    %s415 = sphi 0, %s413
    %s416 = sphi 0, %s415
    %s430 = sphi 0, %s416
    %s434 = sphi 0, %s434
    %s436 = sphi 0, %s434
    %s437 = sphi 0, %s436
    %s451 = sphi 0, %s437
    %s455 = sphi 0, %s455
    %s457 = sphi 0, %s455
    %s458 = sphi 0, %s457
    %s472 = sphi 0, %s458
    %s476 = sphi 0, %s476
    %s478 = sphi 0, %s476
    %s479 = sphi 0, %s478
    %s493 = sphi 0, %s479
    %s499 = sphi 0, %s501
    %s502 = sphi 0, %s499
    %s503 = sphi 0, %s502
    %s519 = sphi 0, %s503
  $region4: #{_lambda_.8} parent=0 // loop_header_branch
    %29 = sbr.rel (%p27) target = $region8
  $region5: #{_lambda_.8} parent=0 // loop_body
    %s31 = ssub.s32 %s26, 1
    %s32 = ssub.s32 %s26, 2
    %s39 = sadd.s32 1, %s34
    %p40 = scmp.ge.s32.totalorder %s39, 1
    %s41 = scalar_select %p40, 0, %s39
    %s42 = sadd.s32 1, %s33
    %s43 = scalar_select %p40, %s42, %s33
    %p44 = scmp.ge.s32.totalorder %s43, 2
    %s45 = scalar_select %p44, 0, %s43
    %s46 = ssub.s32 %s33, %s45
    %s47 = ssub.s32 %s34, %s41
    %s48 = sor.u32 %s46, %s47
    %p49 = scmp.eq.s32.totalorder %s48, 0
    %s51 = sadd.s32 %s50, 1
    %s52 = scalar_select %p49, %s50, %s51
    %p55 = pneg %p49
    %p56 = scmp.eq.s32.totalorder %s26, 1
    %p57 = por %p55, %p56
    %p58 = scmp.ne.s32.totalorder %s50, %s53
    %p59 = scmp.eq.s32.totalorder %s26, 0
    %p60 = por %p58, %p59
    %p61 = scmp.ne.s32.totalorder %s50, %s53
    %p62 = scmp.eq.s32.totalorder %s31, 1
    %p63 = por %p61, %p62
    %p64 = scmp.ne.s32.totalorder %s53, %s54
    %p65 = scmp.eq.s32.totalorder %s31, 0
    %p66 = por %p64, %p65
    %p67 = scmp.ne.s32.totalorder %s53, %s54
    %p68 = scmp.eq.s32.totalorder %s32, 1
    %p69 = por %p67, %p68
    %p71 = scmp.ne.s32.totalorder %s54, %s70
    %p72 = scmp.eq.s32.totalorder %s32, 0
    %p73 = por %p71, %p72
    %s74 = ssub.s32 %s33, %s45
    %s75 = ssub.s32 %s34, %s41
    %s76 = sor.u32 %s74, %s75
    %p77 = scmp.eq.s32.totalorder %s76, 0
    %s79 = sadd.s32 %s78, 1
    %s80 = scalar_select %p77, %s78, %s79
    %p83 = pneg %p77
    %p84 = scmp.eq.s32.totalorder %s26, 1
    %p85 = por %p83, %p84
    %p86 = scmp.ne.s32.totalorder %s78, %s81
    %p87 = scmp.eq.s32.totalorder %s26, 0
    %p88 = por %p86, %p87
    %p89 = scmp.ne.s32.totalorder %s78, %s81
    %p90 = scmp.eq.s32.totalorder %s31, 1
    %p91 = por %p89, %p90
    %p92 = scmp.ne.s32.totalorder %s81, %s82
    %p93 = scmp.eq.s32.totalorder %s31, 0
    %p94 = por %p92, %p93
    %p95 = scmp.ne.s32.totalorder %s81, %s82
    %p96 = scmp.eq.s32.totalorder %s32, 1
    %p97 = por %p95, %p96
    %p99 = scmp.ne.s32.totalorder %s82, %s98
    %p100 = scmp.eq.s32.totalorder %s32, 0
    %p101 = por %p99, %p100
    %s102 = ssub.s32 %s33, %s45
    %s103 = ssub.s32 %s34, %s41
    %s104 = sor.u32 %s102, %s103
    %p105 = scmp.eq.s32.totalorder %s104, 0
    %s107 = sadd.s32 %s106, 1
    %s108 = scalar_select %p105, %s106, %s107
    %p111 = pneg %p105
    %p112 = scmp.eq.s32.totalorder %s26, 1
    %p113 = por %p111, %p112
    %p114 = scmp.ne.s32.totalorder %s106, %s109
    %p115 = scmp.eq.s32.totalorder %s26, 0
    %p116 = por %p114, %p115
    %p117 = scmp.ne.s32.totalorder %s106, %s109
    %p118 = scmp.eq.s32.totalorder %s31, 1
    %p119 = por %p117, %p118
    %p120 = scmp.ne.s32.totalorder %s109, %s110
    %p121 = scmp.eq.s32.totalorder %s31, 0
    %p122 = por %p120, %p121
    %p123 = scmp.ne.s32.totalorder %s109, %s110
    %p124 = scmp.eq.s32.totalorder %s32, 1
    %p125 = por %p123, %p124
    %p127 = scmp.ne.s32.totalorder %s110, %s126
    %p128 = scmp.eq.s32.totalorder %s32, 0
    %p129 = por %p127, %p128
    %s130 = ssub.s32 %s33, %s45
    %p131 = scmp.eq.s32.totalorder %s130, 0
    %s133 = sadd.s32 %s132, 1
    %s134 = scalar_select %p131, %s132, %s133
    %p137 = pneg %p131
    %p138 = scmp.eq.s32.totalorder %s26, 1
    %p139 = por %p137, %p138
    %p140 = scmp.ne.s32.totalorder %s132, %s135
    %p141 = scmp.eq.s32.totalorder %s26, 0
    %p142 = por %p140, %p141
    %p143 = scmp.ne.s32.totalorder %s132, %s135
    %p144 = scmp.eq.s32.totalorder %s31, 1
    %p145 = por %p143, %p144
    %p146 = scmp.ne.s32.totalorder %s135, %s136
    %p147 = scmp.eq.s32.totalorder %s31, 0
    %p148 = por %p146, %p147
    %p149 = scmp.ne.s32.totalorder %s135, %s136
    %p150 = scmp.eq.s32.totalorder %s32, 1
    %p151 = por %p149, %p150
    %p153 = scmp.ne.s32.totalorder %s136, %s152
    %p154 = scmp.eq.s32.totalorder %s32, 0
    %p155 = por %p153, %p154
    %s156 = ssub.s32 %s33, %s45
    %p157 = scmp.eq.s32.totalorder %s156, 0
    %s159 = sadd.s32 %s158, 1
    %s160 = scalar_select %p157, %s158, %s159
    %p163 = pneg %p157
    %p164 = scmp.eq.s32.totalorder %s26, 1
    %p165 = por %p163, %p164
    %p166 = scmp.ne.s32.totalorder %s158, %s161
    %p167 = scmp.eq.s32.totalorder %s26, 0
    %p168 = por %p166, %p167
    %p169 = scmp.ne.s32.totalorder %s158, %s161
    %p170 = scmp.eq.s32.totalorder %s31, 1
    %p171 = por %p169, %p170
    %p172 = scmp.ne.s32.totalorder %s161, %s162
    %p173 = scmp.eq.s32.totalorder %s31, 0
    %p174 = por %p172, %p173
    %p175 = scmp.ne.s32.totalorder %s161, %s162
    %p176 = scmp.eq.s32.totalorder %s32, 1
    %p177 = por %p175, %p176
    %p179 = scmp.ne.s32.totalorder %s162, %s178
    %p180 = scmp.eq.s32.totalorder %s32, 0
    %p181 = por %p179, %p180
    %s183 = sadd.s32 %s182, 1
    %p186 = scmp.eq.s32.totalorder %s26, 1
    %p187 = scmp.ne.s32.totalorder %s182, %s184
    %p188 = scmp.eq.s32.totalorder %s26, 0
    %p189 = por %p187, %p188
    %p190 = scmp.ne.s32.totalorder %s182, %s184
    %p191 = scmp.eq.s32.totalorder %s31, 1
    %p192 = por %p190, %p191
    %p193 = scmp.ne.s32.totalorder %s184, %s185
    %p194 = scmp.eq.s32.totalorder %s31, 0
    %p195 = por %p193, %p194
    %p196 = scmp.ne.s32.totalorder %s184, %s185
    %p197 = scmp.eq.s32.totalorder %s32, 1
    %p198 = por %p196, %p197
    %p200 = scmp.ne.s32.totalorder %s185, %s199
    %p201 = scmp.eq.s32.totalorder %s32, 0
    %p202 = por %p200, %p201
    %s204 = sadd.s32 %s203, 1
    %p207 = scmp.eq.s32.totalorder %s26, 1
    %p208 = scmp.ne.s32.totalorder %s203, %s205
    %p209 = scmp.eq.s32.totalorder %s26, 0
    %p210 = por %p208, %p209
    %p211 = scmp.ne.s32.totalorder %s203, %s205
    %p212 = scmp.eq.s32.totalorder %s31, 1
    %p213 = por %p211, %p212
    %p214 = scmp.ne.s32.totalorder %s205, %s206
    %p215 = scmp.eq.s32.totalorder %s31, 0
    %p216 = por %p214, %p215
    %p217 = scmp.ne.s32.totalorder %s205, %s206
    %p218 = scmp.eq.s32.totalorder %s32, 1
    %p219 = por %p217, %p218
    %p221 = scmp.ne.s32.totalorder %s206, %s220
    %p222 = scmp.eq.s32.totalorder %s32, 0
    %p223 = por %p221, %p222
    %s225 = sadd.s32 %s224, 1
    %p228 = scmp.eq.s32.totalorder %s26, 1
    %p229 = scmp.ne.s32.totalorder %s224, %s226
    %p230 = scmp.eq.s32.totalorder %s26, 0
    %p231 = por %p229, %p230
    %p232 = scmp.ne.s32.totalorder %s224, %s226
    %p233 = scmp.eq.s32.totalorder %s31, 1
    %p234 = por %p232, %p233
    %p235 = scmp.ne.s32.totalorder %s226, %s227
    %p236 = scmp.eq.s32.totalorder %s31, 0
    %p237 = por %p235, %p236
    %p238 = scmp.ne.s32.totalorder %s226, %s227
    %p239 = scmp.eq.s32.totalorder %s32, 1
    %p240 = por %p238, %p239
    %p242 = scmp.ne.s32.totalorder %s227, %s241
    %p243 = scmp.eq.s32.totalorder %s32, 0
    %p244 = por %p242, %p243
    %s246 = sadd.s32 %s245, 1
    %p249 = scmp.eq.s32.totalorder %s26, 1
    %p250 = scmp.ne.s32.totalorder %s245, %s247
    %p251 = scmp.eq.s32.totalorder %s26, 0
    %p252 = por %p250, %p251
    %p253 = scmp.ne.s32.totalorder %s245, %s247
    %p254 = scmp.eq.s32.totalorder %s31, 1
    %p255 = por %p253, %p254
    %p256 = scmp.ne.s32.totalorder %s247, %s248
    %p257 = scmp.eq.s32.totalorder %s31, 0
    %p258 = por %p256, %p257
    %p259 = scmp.ne.s32.totalorder %s247, %s248
    %p260 = scmp.eq.s32.totalorder %s32, 1
    %p261 = por %p259, %p260
    %p263 = scmp.ne.s32.totalorder %s248, %s262
    %p264 = scmp.eq.s32.totalorder %s32, 0
    %p265 = por %p263, %p264
    %s267 = sadd.s32 %s266, 1
    %p270 = scmp.eq.s32.totalorder %s26, 1
    %p271 = scmp.ne.s32.totalorder %s266, %s268
    %p272 = scmp.eq.s32.totalorder %s26, 0
    %p273 = por %p271, %p272
    %p274 = scmp.ne.s32.totalorder %s266, %s268
    %p275 = scmp.eq.s32.totalorder %s31, 1
    %p276 = por %p274, %p275
    %p277 = scmp.ne.s32.totalorder %s268, %s269
    %p278 = scmp.eq.s32.totalorder %s31, 0
    %p279 = por %p277, %p278
    %p280 = scmp.ne.s32.totalorder %s268, %s269
    %p281 = scmp.eq.s32.totalorder %s32, 1
    %p282 = por %p280, %p281
    %p284 = scmp.ne.s32.totalorder %s269, %s283
    %p285 = scmp.eq.s32.totalorder %s32, 0
    %p286 = por %p284, %p285
    %s288 = sadd.s32 %s287, 1
    %p291 = scmp.eq.s32.totalorder %s26, 1
    %p292 = scmp.ne.s32.totalorder %s287, %s289
    %p293 = scmp.eq.s32.totalorder %s26, 0
    %p294 = por %p292, %p293
    %p295 = scmp.ne.s32.totalorder %s287, %s289
    %p296 = scmp.eq.s32.totalorder %s31, 1
    %p297 = por %p295, %p296
    %p298 = scmp.ne.s32.totalorder %s289, %s290
    %p299 = scmp.eq.s32.totalorder %s31, 0
    %p300 = por %p298, %p299
    %p301 = scmp.ne.s32.totalorder %s289, %s290
    %p302 = scmp.eq.s32.totalorder %s32, 1
    %p303 = por %p301, %p302
    %p305 = scmp.ne.s32.totalorder %s290, %s304
    %p306 = scmp.eq.s32.totalorder %s32, 0
    %p307 = por %p305, %p306
    %s309 = sadd.s32 %s308, 1
    %p312 = scmp.eq.s32.totalorder %s26, 1
    %p313 = scmp.ne.s32.totalorder %s308, %s310
    %p314 = scmp.eq.s32.totalorder %s26, 0
    %p315 = por %p313, %p314
    %p316 = scmp.ne.s32.totalorder %s308, %s310
    %p317 = scmp.eq.s32.totalorder %s31, 1
    %p318 = por %p316, %p317
    %p319 = scmp.ne.s32.totalorder %s310, %s311
    %p320 = scmp.eq.s32.totalorder %s31, 0
    %p321 = por %p319, %p320
    %p322 = scmp.ne.s32.totalorder %s310, %s311
    %p323 = scmp.eq.s32.totalorder %s32, 1
    %p324 = por %p322, %p323
    %p326 = scmp.ne.s32.totalorder %s311, %s325
    %p327 = scmp.eq.s32.totalorder %s32, 0
    %p328 = por %p326, %p327
    %s330 = sadd.s32 %s329, 1
    %p333 = scmp.eq.s32.totalorder %s26, 1
    %p334 = scmp.ne.s32.totalorder %s329, %s331
    %p335 = scmp.eq.s32.totalorder %s26, 0
    %p336 = por %p334, %p335
    %p337 = scmp.ne.s32.totalorder %s329, %s331
    %p338 = scmp.eq.s32.totalorder %s31, 1
    %p339 = por %p337, %p338
    %p340 = scmp.ne.s32.totalorder %s331, %s332
    %p341 = scmp.eq.s32.totalorder %s31, 0
    %p342 = por %p340, %p341
    %p343 = scmp.ne.s32.totalorder %s331, %s332
    %p344 = scmp.eq.s32.totalorder %s32, 1
    %p345 = por %p343, %p344
    %p347 = scmp.ne.s32.totalorder %s332, %s346
    %p348 = scmp.eq.s32.totalorder %s32, 0
    %p349 = por %p347, %p348
    %s351 = sadd.s32 %s350, 1
    %p354 = scmp.eq.s32.totalorder %s26, 1
    %p355 = scmp.ne.s32.totalorder %s350, %s352
    %p356 = scmp.eq.s32.totalorder %s26, 0
    %p357 = por %p355, %p356
    %p358 = scmp.ne.s32.totalorder %s350, %s352
    %p359 = scmp.eq.s32.totalorder %s31, 1
    %p360 = por %p358, %p359
    %p361 = scmp.ne.s32.totalorder %s352, %s353
    %p362 = scmp.eq.s32.totalorder %s31, 0
    %p363 = por %p361, %p362
    %p364 = scmp.ne.s32.totalorder %s352, %s353
    %p365 = scmp.eq.s32.totalorder %s32, 1
    %p366 = por %p364, %p365
    %p368 = scmp.ne.s32.totalorder %s353, %s367
    %p369 = scmp.eq.s32.totalorder %s32, 0
    %p370 = por %p368, %p369
    %s372 = sadd.s32 %s371, 1
    %p375 = scmp.eq.s32.totalorder %s26, 1
    %p376 = scmp.ne.s32.totalorder %s371, %s373
    %p377 = scmp.eq.s32.totalorder %s26, 0
    %p378 = por %p376, %p377
    %p379 = scmp.ne.s32.totalorder %s371, %s373
    %p380 = scmp.eq.s32.totalorder %s31, 1
    %p381 = por %p379, %p380
    %p382 = scmp.ne.s32.totalorder %s373, %s374
    %p383 = scmp.eq.s32.totalorder %s31, 0
    %p384 = por %p382, %p383
    %p385 = scmp.ne.s32.totalorder %s373, %s374
    %p386 = scmp.eq.s32.totalorder %s32, 1
    %p387 = por %p385, %p386
    %p389 = scmp.ne.s32.totalorder %s374, %s388
    %p390 = scmp.eq.s32.totalorder %s32, 0
    %p391 = por %p389, %p390
    %s393 = sadd.s32 %s392, 1
    %p396 = scmp.eq.s32.totalorder %s26, 1
    %p397 = scmp.ne.s32.totalorder %s392, %s394
    %p398 = scmp.eq.s32.totalorder %s26, 0
    %p399 = por %p397, %p398
    %p400 = scmp.ne.s32.totalorder %s392, %s394
    %p401 = scmp.eq.s32.totalorder %s31, 1
    %p402 = por %p400, %p401
    %p403 = scmp.ne.s32.totalorder %s394, %s395
    %p404 = scmp.eq.s32.totalorder %s31, 0
    %p405 = por %p403, %p404
    %p406 = scmp.ne.s32.totalorder %s394, %s395
    %p407 = scmp.eq.s32.totalorder %s32, 1
    %p408 = por %p406, %p407
    %p410 = scmp.ne.s32.totalorder %s395, %s409
    %p411 = scmp.eq.s32.totalorder %s32, 0
    %p412 = por %p410, %p411
    %s414 = sadd.s32 %s413, 1
    %p417 = scmp.eq.s32.totalorder %s26, 1
    %p418 = scmp.ne.s32.totalorder %s413, %s415
    %p419 = scmp.eq.s32.totalorder %s26, 0
    %p420 = por %p418, %p419
    %p421 = scmp.ne.s32.totalorder %s413, %s415
    %p422 = scmp.eq.s32.totalorder %s31, 1
    %p423 = por %p421, %p422
    %p424 = scmp.ne.s32.totalorder %s415, %s416
    %p425 = scmp.eq.s32.totalorder %s31, 0
    %p426 = por %p424, %p425
    %p427 = scmp.ne.s32.totalorder %s415, %s416
    %p428 = scmp.eq.s32.totalorder %s32, 1
    %p429 = por %p427, %p428
    %p431 = scmp.ne.s32.totalorder %s416, %s430
    %p432 = scmp.eq.s32.totalorder %s32, 0
    %p433 = por %p431, %p432
    %s435 = sadd.s32 %s434, 1
    %p438 = scmp.eq.s32.totalorder %s26, 1
    %p439 = scmp.ne.s32.totalorder %s434, %s436
    %p440 = scmp.eq.s32.totalorder %s26, 0
    %p441 = por %p439, %p440
    %p442 = scmp.ne.s32.totalorder %s434, %s436
    %p443 = scmp.eq.s32.totalorder %s31, 1
    %p444 = por %p442, %p443
    %p445 = scmp.ne.s32.totalorder %s436, %s437
    %p446 = scmp.eq.s32.totalorder %s31, 0
    %p447 = por %p445, %p446
    %p448 = scmp.ne.s32.totalorder %s436, %s437
    %p449 = scmp.eq.s32.totalorder %s32, 1
    %p450 = por %p448, %p449
    %p452 = scmp.ne.s32.totalorder %s437, %s451
    %p453 = scmp.eq.s32.totalorder %s32, 0
    %p454 = por %p452, %p453
    %s456 = sadd.s32 %s455, 1
    %p459 = scmp.eq.s32.totalorder %s26, 1
    %p460 = scmp.ne.s32.totalorder %s455, %s457
    %p461 = scmp.eq.s32.totalorder %s26, 0
    %p462 = por %p460, %p461
    %p463 = scmp.ne.s32.totalorder %s455, %s457
    %p464 = scmp.eq.s32.totalorder %s31, 1
    %p465 = por %p463, %p464
    %p466 = scmp.ne.s32.totalorder %s457, %s458
    %p467 = scmp.eq.s32.totalorder %s31, 0
    %p468 = por %p466, %p467
    %p469 = scmp.ne.s32.totalorder %s457, %s458
    %p470 = scmp.eq.s32.totalorder %s32, 1
    %p471 = por %p469, %p470
    %p473 = scmp.ne.s32.totalorder %s458, %s472
    %p474 = scmp.eq.s32.totalorder %s32, 0
    %p475 = por %p473, %p474
    %s477 = sadd.s32 %s476, 1
    %p480 = scmp.eq.s32.totalorder %s26, 1
    %p481 = scmp.ne.s32.totalorder %s476, %s478
    %p482 = scmp.eq.s32.totalorder %s26, 0
    %p483 = por %p481, %p482
    %p484 = scmp.ne.s32.totalorder %s476, %s478
    %p485 = scmp.eq.s32.totalorder %s31, 1
    %p486 = por %p484, %p485
    %p487 = scmp.ne.s32.totalorder %s478, %s479
    %p488 = scmp.eq.s32.totalorder %s31, 0
    %p489 = por %p487, %p488
    %p490 = scmp.ne.s32.totalorder %s478, %s479
    %p491 = scmp.eq.s32.totalorder %s32, 1
    %p492 = por %p490, %p491
    %p494 = scmp.ne.s32.totalorder %s479, %s493
    %p495 = scmp.eq.s32.totalorder %s32, 0
    %p496 = por %p494, %p495
    %s497 = ssub.s32 %s33, %s45
    %p498 = scmp.eq.s32.totalorder %s497, 0
    %s500 = sadd.s32 %s499, 1
    %s501 = scalar_select %p498, %s499, %s500
    %p504 = pneg %p498
    %p505 = scmp.eq.s32.totalorder %s26, 1
    %p506 = por %p504, %p505
    %p507 = scmp.ne.s32.totalorder %s499, %s502
    %p508 = scmp.eq.s32.totalorder %s26, 0
    %p509 = por %p507, %p508
    %p510 = scmp.ne.s32.totalorder %s499, %s502
    %p511 = scmp.eq.s32.totalorder %s31, 1
    %p512 = por %p510, %p511
    %p513 = scmp.ne.s32.totalorder %s502, %s503
    %p514 = scmp.eq.s32.totalorder %s31, 0
    %p515 = por %p513, %p514
    %p516 = scmp.ne.s32.totalorder %s502, %s503
    %p517 = scmp.eq.s32.totalorder %s32, 1
    %p518 = por %p516, %p517
    %p520 = scmp.ne.s32.totalorder %s503, %s519
    %p521 = scmp.eq.s32.totalorder %s32, 0
    %p522 = por %p520, %p521
    %p523 = scmp.le.s32.totalorder 1, %s26
    %p524 = scmp.lt.s32.totalorder %s26, 3
    %p525 = pnand %p523, %p524
    %p526 = pneg %p525
    // Predicated region
    $region9: #{_lambda_.8} parent=5 // pred_check
      _
    $region10: #{_lambda_.8} parent=5 // pred_check_branch
      %528 = sbr.rel (%p525) target = $region12
    $region11: #{_lambda_.8} parent=5 // pred_region
      %s529 = ssub.s32 %s26, 1
      // Predicated region
      $region13: #{_lambda_.8} parent=11 // pred_check
        %p530 = pneg %p195
      $region14: #{_lambda_.8} parent=11 // pred_check_branch
        %532 = sbr.rel (%p530) target = $region16
      $region15: #{_lambda_.8} parent=11 // pred_region
        _
      $region16: #{_lambda_.8} parent=11 // pred_fallthru
        _
      // Predicated region
      $region17: #{_lambda_.8} parent=11 // pred_check
        %p533 = pneg %p216
      $region18: #{_lambda_.8} parent=11 // pred_check_branch
        %535 = sbr.rel (%p533) target = $region20
      $region19: #{_lambda_.8} parent=11 // pred_region
        _
      $region20: #{_lambda_.8} parent=11 // pred_fallthru
        _
      // Predicated region
      $region21: #{_lambda_.8} parent=11 // pred_check
        %p536 = pneg %p237
      $region22: #{_lambda_.8} parent=11 // pred_check_branch
        %538 = sbr.rel (%p536) target = $region24
      $region23: #{_lambda_.8} parent=11 // pred_region
        _
      $region24: #{_lambda_.8} parent=11 // pred_fallthru
        _
      // Predicated region
      $region25: #{_lambda_.8} parent=11 // pred_check
        %p539 = pneg %p258
      $region26: #{_lambda_.8} parent=11 // pred_check_branch
        %541 = sbr.rel (%p539) target = $region28
      $region27: #{_lambda_.8} parent=11 // pred_region
        _
      $region28: #{_lambda_.8} parent=11 // pred_fallthru
        _
      // Predicated region
      $region29: #{_lambda_.8} parent=11 // pred_check
        %p542 = pneg %p279
      $region30: #{_lambda_.8} parent=11 // pred_check_branch
        %544 = sbr.rel (%p542) target = $region32
      $region31: #{_lambda_.8} parent=11 // pred_region
        _
      $region32: #{_lambda_.8} parent=11 // pred_fallthru
        _
      // Predicated region
      $region33: #{_lambda_.8} parent=11 // pred_check
        %p545 = pneg %p300
      $region34: #{_lambda_.8} parent=11 // pred_check_branch
        %547 = sbr.rel (%p545) target = $region36
      $region35: #{_lambda_.8} parent=11 // pred_region
        _
      $region36: #{_lambda_.8} parent=11 // pred_fallthru
        _
      // Predicated region
      $region37: #{_lambda_.8} parent=11 // pred_check
        %p548 = pneg %p321
      $region38: #{_lambda_.8} parent=11 // pred_check_branch
        %550 = sbr.rel (%p548) target = $region40
      $region39: #{_lambda_.8} parent=11 // pred_region
        _
      $region40: #{_lambda_.8} parent=11 // pred_fallthru
        _
      // Predicated region
      $region41: #{_lambda_.8} parent=11 // pred_check
        %p551 = pneg %p342
      $region42: #{_lambda_.8} parent=11 // pred_check_branch
        %553 = sbr.rel (%p551) target = $region44
      $region43: #{_lambda_.8} parent=11 // pred_region
        _
      $region44: #{_lambda_.8} parent=11 // pred_fallthru
        _
      // Predicated region
      $region45: #{_lambda_.8} parent=11 // pred_check
        %p554 = pneg %p363
      $region46: #{_lambda_.8} parent=11 // pred_check_branch
        %556 = sbr.rel (%p554) target = $region48
      $region47: #{_lambda_.8} parent=11 // pred_region
        _
      $region48: #{_lambda_.8} parent=11 // pred_fallthru
        _
      // Predicated region
      $region49: #{_lambda_.8} parent=11 // pred_check
        %p557 = pneg %p384
      $region50: #{_lambda_.8} parent=11 // pred_check_branch
        %559 = sbr.rel (%p557) target = $region52
      $region51: #{_lambda_.8} parent=11 // pred_region
        _
      $region52: #{_lambda_.8} parent=11 // pred_fallthru
        _
      // Predicated region
      $region53: #{_lambda_.8} parent=11 // pred_check
        %p560 = pneg %p405
      $region54: #{_lambda_.8} parent=11 // pred_check_branch
        %562 = sbr.rel (%p560) target = $region56
      $region55: #{_lambda_.8} parent=11 // pred_region
        _
      $region56: #{_lambda_.8} parent=11 // pred_fallthru
        _
      // Predicated region
      $region57: #{_lambda_.8} parent=11 // pred_check
        %p563 = pneg %p426
      $region58: #{_lambda_.8} parent=11 // pred_check_branch
        %565 = sbr.rel (%p563) target = $region60
      $region59: #{_lambda_.8} parent=11 // pred_region
        _
      $region60: #{_lambda_.8} parent=11 // pred_fallthru
        _
      // Predicated region
      $region61: #{_lambda_.8} parent=11 // pred_check
        %p566 = pneg %p447
      $region62: #{_lambda_.8} parent=11 // pred_check_branch
        %568 = sbr.rel (%p566) target = $region64
      $region63: #{_lambda_.8} parent=11 // pred_region
        _
      $region64: #{_lambda_.8} parent=11 // pred_fallthru
        _
      // Predicated region
      $region65: #{_lambda_.8} parent=11 // pred_check
        %p569 = pneg %p468
      $region66: #{_lambda_.8} parent=11 // pred_check_branch
        %571 = sbr.rel (%p569) target = $region68
      $region67: #{_lambda_.8} parent=11 // pred_region
        _
      $region68: #{_lambda_.8} parent=11 // pred_fallthru
        _
      // Predicated region
      $region69: #{_lambda_.8} parent=11 // pred_check
        %p572 = pneg %p489
      $region70: #{_lambda_.8} parent=11 // pred_check_branch
        %574 = sbr.rel (%p572) target = $region72
      $region71: #{_lambda_.8} parent=11 // pred_region
        _
      $region72: #{_lambda_.8} parent=11 // pred_fallthru
        _
    $region12: #{_lambda_.8} parent=5 // pred_fallthru
      _
    %p575 = scmp.lt.s32.totalorder %s26, 2
    // Predicated region
    $region73: #{_lambda_.8} parent=5 // pred_check
      %p576 = pneg %p575
    $region74: #{_lambda_.8} parent=5 // pred_check_branch
      %578 = sbr.rel (%p576) target = $region76
    $region75: #{_lambda_.8} parent=5 // pred_region
      // Predicated region
      $region77: #{_lambda_.8} parent=75 // pred_check
        %p579 = pneg %p60
      $region78: #{_lambda_.8} parent=75 // pred_check_branch
        %581 = sbr.rel (%p579) target = $region80
      $region79: #{_lambda_.8} parent=75 // pred_region
        %s582 = smul.u32 26, %s34
        %p583 = scmp.lt.s32.totalorder %s33, 1
        %s584 = scalar_select %p583, %s33, 1
        %p585 = scmp.lt.s32.totalorder %s582, 25
        %s586 = scalar_select %p585, %s582, 25
        %s587 = smul.addr %s584, 26
        %s588 = sadd.s32 %s586, %s587
        %s589 = smul.addr %s588, 8
        %s590 = scalar_lea.vmem %s0, %s589
        %s591 = smul.u32 26, %s34
      $region80: #{_lambda_.8} parent=75 // pred_fallthru
        _
      // Predicated region
      $region81: #{_lambda_.8} parent=75 // pred_check
        %p592 = pneg %p88
      $region82: #{_lambda_.8} parent=75 // pred_check_branch
        %594 = sbr.rel (%p592) target = $region84
      $region83: #{_lambda_.8} parent=75 // pred_region
        %s595 = smul.u32 26, %s34
        %p596 = scmp.lt.s32.totalorder %s33, 1
        %s597 = scalar_select %p596, %s33, 1
        %p598 = scmp.lt.s32.totalorder %s595, 25
        %s599 = scalar_select %p598, %s595, 25
        %s600 = smul.addr %s597, 26
        %s601 = sadd.s32 %s599, %s600
        %s602 = smul.addr %s601, 4
        %s603 = scalar_lea.vmem %s1, %s602
        %s604 = smul.u32 26, %s34
      $region84: #{_lambda_.8} parent=75 // pred_fallthru
        _
      // Predicated region
      $region85: #{_lambda_.8} parent=75 // pred_check
        %p605 = pneg %p116
      $region86: #{_lambda_.8} parent=75 // pred_check_branch
        %607 = sbr.rel (%p605) target = $region88
      $region87: #{_lambda_.8} parent=75 // pred_region
        %s608 = smul.u32 26, %s34
        %p609 = scmp.lt.s32.totalorder %s33, 1
        %s610 = scalar_select %p609, %s33, 1
        %p611 = scmp.lt.s32.totalorder %s608, 25
        %s612 = scalar_select %p611, %s608, 25
        %s613 = smul.addr %s610, 26
        %s614 = sadd.s32 %s612, %s613
        %s615 = smul.addr %s614, 8
        %s616 = scalar_lea.vmem %s2, %s615
        %s617 = smul.u32 26, %s34
      $region88: #{_lambda_.8} parent=75 // pred_fallthru
        _
      // Predicated region
      $region89: #{_lambda_.8} parent=75 // pred_check
        %p618 = pneg %p142
      $region90: #{_lambda_.8} parent=75 // pred_check_branch
        %620 = sbr.rel (%p618) target = $region92
      $region91: #{_lambda_.8} parent=75 // pred_region
        %p621 = scmp.lt.s32.totalorder %s33, 1
        %s622 = scalar_select %p621, %s33, 1
        %s623 = scalar_lea.vmem %s3, %s622
      $region92: #{_lambda_.8} parent=75 // pred_fallthru
        _
      // Predicated region
      $region93: #{_lambda_.8} parent=75 // pred_check
        %p624 = pneg %p168
      $region94: #{_lambda_.8} parent=75 // pred_check_branch
        %626 = sbr.rel (%p624) target = $region96
      $region95: #{_lambda_.8} parent=75 // pred_region
        %p627 = scmp.lt.s32.totalorder %s33, 1
        %s628 = scalar_select %p627, %s33, 1
        %s629 = scalar_lea.vmem %s4, %s628
      $region96: #{_lambda_.8} parent=75 // pred_fallthru
        _
    $region76: #{_lambda_.8} parent=5 // pred_fallthru
      _
    %p630 = scmp.le.s32.totalorder 1, %s26
    %p631 = scmp.lt.s32.totalorder %s26, 3
    %p632 = pnand %p630, %p631
    %p633 = pneg %p632
    // Predicated region
    $region97: #{_lambda_.8} parent=5 // pred_check
      _
    $region98: #{_lambda_.8} parent=5 // pred_check_branch
      %635 = sbr.rel (%p632) target = $region100
    $region99: #{_lambda_.8} parent=5 // pred_region
      %s636 = ssub.s32 %s26, 1
      %s637 = smul.u32 26, %s36
      %p638 = scmp.lt.s32.totalorder %s35, 1
      %s639 = scalar_select %p638, %s35, 1
      %p640 = scmp.lt.s32.totalorder %s637, 25
      %s641 = scalar_select %p640, %s637, 25
      %s642 = smul.addr %s639, 26
      %s643 = sadd.s32 %s641, %s642
      %s644 = smul.addr %s643, 8
      %s645 = scalar_lea.vmem %s0, %s644
      %p646 = pneg %p66
      %p647 = pneg %p63
      %s648 = smul.u32 26, %s36
      %p649 = scmp.lt.s32.totalorder %s35, 1
      %s650 = scalar_select %p649, %s35, 1
      %p651 = scmp.lt.s32.totalorder %s648, 25
      %s652 = scalar_select %p651, %s648, 25
      %s653 = smul.addr %s650, 26
      %s654 = sadd.s32 %s652, %s653
      %s655 = smul.addr %s654, 4
      %s656 = scalar_lea.vmem %s1, %s655
      %p657 = pneg %p94
      %p658 = pneg %p91
      %s659 = smul.u32 26, %s36
      %p660 = scmp.lt.s32.totalorder %s35, 1
      %s661 = scalar_select %p660, %s35, 1
      %p662 = scmp.lt.s32.totalorder %s659, 25
      %s663 = scalar_select %p662, %s659, 25
      %s664 = smul.addr %s661, 26
      %s665 = sadd.s32 %s663, %s664
      %s666 = smul.addr %s665, 8
      %s667 = scalar_lea.vmem %s2, %s666
      %p668 = pneg %p122
      %p669 = pneg %p119
      %p670 = scmp.lt.s32.totalorder %s35, 1
      %s671 = scalar_select %p670, %s35, 1
      %s672 = scalar_lea.vmem %s3, %s671
      %p673 = pneg %p148
      %p674 = pneg %p145
      %p675 = scmp.lt.s32.totalorder %s35, 1
      %s676 = scalar_select %p675, %s35, 1
      %s677 = scalar_lea.vmem %s4, %s676
      %p678 = pneg %p174
      %p679 = pneg %p171
      %p680 = pneg %p195
      %p681 = pneg %p192
      %p682 = pneg %p216
      %p683 = pneg %p213
      %p684 = pneg %p237
      %p685 = pneg %p234
      %p686 = pneg %p258
      %p687 = pneg %p255
      %p688 = pneg %p279
      %p689 = pneg %p276
      %p690 = pneg %p300
      %p691 = pneg %p297
      %p692 = pneg %p321
      %p693 = pneg %p318
      %p694 = pneg %p342
      %p695 = pneg %p339
      %p696 = pneg %p363
      %p697 = pneg %p360
      %p698 = pneg %p384
      %p699 = pneg %p381
      %p700 = pneg %p405
      %p701 = pneg %p402
      %p702 = pneg %p426
      %p703 = pneg %p423
      %p704 = pneg %p447
      %p705 = pneg %p444
      %p706 = pneg %p468
      %p707 = pneg %p465
      %p708 = pneg %p489
      %p709 = pneg %p486
      %p710 = pneg %p515
      %p711 = pneg %p512
      %p712 = scmp.lt.s32.totalorder %s35, 1
      %s713 = scalar_select %p712, %s35, 1
      %s714 = scalar_lea.vmem %s20, %s713
      %s715 = smul.u32 26, %s36
      %p716 = scmp.lt.s32.totalorder %s35, 1
      %s717 = scalar_select %p716, %s35, 1
      %p718 = scmp.lt.s32.totalorder %s715, 25
      %s719 = scalar_select %p718, %s715, 25
      %s720 = smul.addr %s717, 26
      %s721 = sadd.s32 %s719, %s720
      %s722 = smul.addr %s721, 8
      %s723 = scalar_lea.vmem %s0, %s722
      %s724 = smul.u32 26, %s36
      %s725 = smul.u32 26, %s36
      %p726 = scmp.lt.s32.totalorder %s35, 1
      %s727 = scalar_select %p726, %s35, 1
      %p728 = scmp.lt.s32.totalorder %s725, 25
      %s729 = scalar_select %p728, %s725, 25
      %s730 = smul.addr %s727, 26
      %s731 = sadd.s32 %s729, %s730
      %s732 = smul.addr %s731, 4
      %s733 = scalar_lea.vmem %s1, %s732
      %s734 = smul.u32 26, %s36
      %s735 = smul.u32 26, %s36
      %p736 = scmp.lt.s32.totalorder %s35, 1
      %s737 = scalar_select %p736, %s35, 1
      %p738 = scmp.lt.s32.totalorder %s735, 25
      %s739 = scalar_select %p738, %s735, 25
      %s740 = smul.addr %s737, 26
      %s741 = sadd.s32 %s739, %s740
      %s742 = smul.addr %s741, 8
      %s743 = scalar_lea.vmem %s2, %s742
      %s744 = smul.u32 26, %s36
      %p745 = scmp.lt.s32.totalorder %s35, 1
      %s746 = scalar_select %p745, %s35, 1
      %s747 = scalar_lea.vmem %s3, %s746
      %p748 = scmp.lt.s32.totalorder %s35, 1
      %s749 = scalar_select %p748, %s35, 1
      %s750 = scalar_lea.vmem %s4, %s749
      %p751 = scmp.lt.s32.totalorder %s35, 1
      %s752 = scalar_select %p751, %s35, 1
      %s753 = scalar_lea.vmem %s20, %s752
      %v755 = vld [vmem:[%s723] sm:$0xff]
      %v756 = vld [vmem:[%s723 + $0x8] sm:$0xff]
      %v757 = vld [vmem:[%s723 + $0x10] sm:$0xff]
      %v758 = vld [vmem:[%s723 + $0x18] sm:$0xff]
      %v759 = vld [vmem:[%s723 + $0x20] sm:$0xff]
      %v760 = vld [vmem:[%s723 + $0x28] sm:$0xff]
      %v761 = vld [vmem:[%s723 + $0x30] sm:$0xff]
      %v762 = vld [vmem:[%s723 + $0x38] sm:$0xff]
      %v763 = vld [vmem:[%s723 + $0x40] sm:$0xff]
      %v764 = vld [vmem:[%s723 + $0x48] sm:$0xff]
      %v765 = vld [vmem:[%s723 + $0x50] sm:$0xff]
      %v766 = vld [vmem:[%s723 + $0x58] sm:$0xff]
      %v767 = vld [vmem:[%s723 + $0x60] sm:$0xff]
      %v768 = vld [vmem:[%s723 + $0x68] sm:$0xff]
      %v769 = vld [vmem:[%s723 + $0x70] sm:$0xff]
      %v770 = vld [vmem:[%s723 + $0x78] sm:$0xff]
      %v771 = vld [vmem:[%s723 + $0x80] sm:$0xff]
      %v772 = vld [vmem:[%s723 + $0x88] sm:$0xff]
      %v773 = vld [vmem:[%s723 + $0x90] sm:$0xff]
      %v774 = vld [vmem:[%s723 + $0x98] sm:$0xff]
      %v775 = vld [vmem:[%s723 + $0xa0] sm:$0xff]
      %v776 = vld [vmem:[%s723 + $0xa8] sm:$0xff]
      %v777 = vld [vmem:[%s723 + $0xb0] sm:$0xff]
      %v778 = vld [vmem:[%s723 + $0xb8] sm:$0xff]
      %v779 = vld [vmem:[%s723 + $0xc0] sm:$0xff]
      %v780 = vld [vmem:[%s723 + $0xc8] sm:$0xff]
      %v781 = vld [vmem:[%s733] sm:$0xf]
      %v782 = vld [vmem:[%s733 + $0x4] sm:$0xf]
      %v783 = vld [vmem:[%s733 + $0x8] sm:$0xf]
      %v784 = vld [vmem:[%s733 + $0xc] sm:$0xf]
      %v785 = vld [vmem:[%s733 + $0x10] sm:$0xf]
      %v786 = vld [vmem:[%s733 + $0x14] sm:$0xf]
      %v787 = vld [vmem:[%s733 + $0x18] sm:$0xf]
      %v788 = vld [vmem:[%s733 + $0x1c] sm:$0xf]
      %v789 = vld [vmem:[%s733 + $0x20] sm:$0xf]
      %v790 = vld [vmem:[%s733 + $0x24] sm:$0xf]
      %v791 = vld [vmem:[%s733 + $0x28] sm:$0xf]
      %v792 = vld [vmem:[%s733 + $0x2c] sm:$0xf]
      %v793 = vld [vmem:[%s733 + $0x30] sm:$0xf]
      %v794 = vld [vmem:[%s733 + $0x34] sm:$0xf]
      %v795 = vld [vmem:[%s733 + $0x38] sm:$0xf]
      %v796 = vld [vmem:[%s733 + $0x3c] sm:$0xf]
      %v797 = vld [vmem:[%s733 + $0x40] sm:$0xf]
      %v798 = vld [vmem:[%s733 + $0x44] sm:$0xf]
      %v799 = vld [vmem:[%s733 + $0x48] sm:$0xf]
      %v800 = vld [vmem:[%s733 + $0x4c] sm:$0xf]
      %v801 = vld [vmem:[%s733 + $0x50] sm:$0xf]
      %v802 = vld [vmem:[%s733 + $0x54] sm:$0xf]
      %v803 = vld [vmem:[%s733 + $0x58] sm:$0xf]
      %v804 = vld [vmem:[%s733 + $0x5c] sm:$0xf]
      %v805 = vld [vmem:[%s733 + $0x60] sm:$0xf]
      %v806 = vld [vmem:[%s733 + $0x64] sm:$0xf]
      %v807 = vld [vmem:[%s747] sm:$0x1]
      %v808 = vld [vmem:[%s743] sm:$0xff]
      %v809 = vld [vmem:[%s743 + $0x8] sm:$0xff]
      %v810 = vld [vmem:[%s743 + $0x10] sm:$0xff]
      %v811 = vld [vmem:[%s743 + $0x18] sm:$0xff]
      %v812 = vld [vmem:[%s743 + $0x20] sm:$0xff]
      %v813 = vld [vmem:[%s743 + $0x28] sm:$0xff]
      %v814 = vld [vmem:[%s743 + $0x30] sm:$0xff]
      %v815 = vld [vmem:[%s743 + $0x38] sm:$0xff]
      %v816 = vld [vmem:[%s743 + $0x40] sm:$0xff]
      %v817 = vld [vmem:[%s743 + $0x48] sm:$0xff]
      %v818 = vld [vmem:[%s743 + $0x50] sm:$0xff]
      %v819 = vld [vmem:[%s743 + $0x58] sm:$0xff]
      %v820 = vld [vmem:[%s743 + $0x60] sm:$0xff]
      %v821 = vld [vmem:[%s743 + $0x68] sm:$0xff]
      %v822 = vld [vmem:[%s743 + $0x70] sm:$0xff]
      %v823 = vld [vmem:[%s743 + $0x78] sm:$0xff]
      %v824 = vld [vmem:[%s743 + $0x80] sm:$0xff]
      %v825 = vld [vmem:[%s743 + $0x88] sm:$0xff]
      %v826 = vld [vmem:[%s743 + $0x90] sm:$0xff]
      %v827 = vld [vmem:[%s743 + $0x98] sm:$0xff]
      %v828 = vld [vmem:[%s743 + $0xa0] sm:$0xff]
      %v829 = vld [vmem:[%s743 + $0xa8] sm:$0xff]
      %v830 = vld [vmem:[%s743 + $0xb0] sm:$0xff]
      %v831 = vld [vmem:[%s743 + $0xb8] sm:$0xff]
      %v832 = vld [vmem:[%s743 + $0xc0] sm:$0xff]
      %v833 = vld [vmem:[%s743 + $0xc8] sm:$0xff]
      %v834 = vld [vmem:[%s5] sm:$0x3]
      %v835 = vld [vmem:[%s6] sm:$0xf]
      %v836 = vld [vmem:[%s6 + $0x4] sm:$0xf]
      %v837 = vld [vmem:[%s7] sm:$0xf]
      %v838 = vld [vmem:[%s7 + $0x4] sm:$0xf]
      %v839 = vld [vmem:[%s8] sm:$0x1]
      %v840 = vld [vmem:[%s9] sm:$0x1]
      %v841 = vld [vmem:[%s10] sm:$0xf]
      %v842 = vld [vmem:[%s10 + $0x4] sm:$0xf]
      %v843 = vld [vmem:[%s10 + $0x8] sm:$0xf]
      %v844 = vld [vmem:[%s10 + $0xc] sm:$0xf]
      %v845 = vld [vmem:[%s11] sm:$0x1]
      %v846 = vpack.c.bf16 %v756, %v755
      %v847 = vpack.c.bf16 %v758, %v757
      %v848 = vpack.c.bf16 %v760, %v759
      %v849 = vpack.c.bf16 %v762, %v761
      %v850 = vpack.c.bf16 %v764, %v763
      %v851 = vpack.c.bf16 %v766, %v765
      %v852 = vpack.c.bf16 %v768, %v767
      %v853 = vpack.c.bf16 %v770, %v769
      %v854 = vpack.c.bf16 %v772, %v771
      %v855 = vpack.c.bf16 %v774, %v773
      %v856 = vpack.c.bf16 %v776, %v775
      %v857 = vpack.c.bf16 %v778, %v777
      %v858 = vpack.c.bf16 %v780, %v779
      %vm859 = vcmask 23552
      %v861 = vsel %vm859, %v846, 0
      %v864 = vsel %vm859, %v847, 0
      %v867 = vsel %vm859, %v848, 0
      %v870 = vsel %vm859, %v849, 0
      %v873 = vsel %vm859, %v850, 0
      %v876 = vsel %vm859, %v851, 0
      %v879 = vsel %vm859, %v852, 0
      %v882 = vsel %vm859, %v853, 0
      %v885 = vsel %vm859, %v854, 0
      %v888 = vsel %vm859, %v855, 0
      %v891 = vsel %vm859, %v856, 0
      %v894 = vsel %vm859, %v857, 0
      %v897 = vsel %vm859, %v858, 0
      %vm899 = vcmask 1040384
      %vm900 = vcmask 1041408
      %v901 = vsel %vm899, 4294967295, 65535
      %v902 = vsel %vm900, %v901, 0
      %v904 = vand.u32 %v834, %v902
      %906 = vmatprep.subr.bf16.mxu0 0
      %907 = vmatpush1.bf16.msra.mxu0 0
      %908 = vmatprep.subr.bf16.mxu0 0
      %909 = vmatpush1.bf16.msra.mxu0 0
      %910 = vmatprep.subr.bf16.mxu0 0
      %911 = vmatpush1.bf16.msra.mxu0 0
      %912 = vmatprep.subr.bf16.mxu0 0
      %913 = vmatpush1.bf16.msra.mxu0 0
      %914 = vmatprep.subr.bf16.mxu0 0
      %915 = vmatpush1.bf16.msra.mxu0 0
      %916 = vmatprep.subr.bf16.mxu0 0
      %917 = vmatpush1.bf16.msra.mxu0 0
      %918 = vmatprep.subr.bf16.mxu0 0
      %919 = vmatpush1.bf16.msra.mxu0 0
      %920 = vmatprep.subr.bf16.mxu0 0
      %921 = vmatpush1.bf16.msra.mxu0 %v904
      %922 = vmatprep.subr.bf16.mxu0 0
      %923 = vmatpush2.bf16.msra.mxu0 0
      %924 = vmatprep.subr.bf16.mxu0 0
      %925 = vmatpush2.bf16.msra.mxu0 0
      %926 = vmatprep.subr.bf16.mxu0 0
      %927 = vmatpush2.bf16.msra.mxu0 0
      %928 = vmatprep.subr.bf16.mxu0 0
      %929 = vmatpush2.bf16.msra.mxu0 0
      %930 = vmatprep.subr.bf16.mxu0 0
      %931 = vmatpush2.bf16.msra.mxu0 0
      %932 = vmatprep.subr.bf16.mxu0 0
      %933 = vmatpush2.bf16.msra.mxu0 0
      %934 = vmatprep.subr.bf16.mxu0 0
      %935 = vmatpush2.bf16.msra.mxu0 0
      %936 = vmatprep.subr.bf16.mxu0 0
      %937 = vmatpush2.bf16.msra.mxu0 0
      %938 = vmatprep.mubr.bf16.mxu0 0
      %939 = vmatmul.mubr.bf16.gmra.mxu0 %v861
      %v940 = vpop.f32.mrf.mxu0
      %v941 = vadd.f32 0.0, %v940
      %v942 = vpop.f32.mrf.mxu0
      %v943 = vpop.f32.mrf.mxu0
      %v944 = vadd.f32 0.0, %v943
      %v945 = vpop.f32.mrf.mxu0
      %946 = vmatprep.mubr.bf16.mxu0 0
      %947 = vmatmul.mubr.bf16.gmra.mxu0 %v864
      %v948 = vpop.f32.mrf.mxu0
      %v949 = vadd.f32 0.0, %v948
      %v950 = vpop.f32.mrf.mxu0
      %v951 = vpop.f32.mrf.mxu0
      %v952 = vadd.f32 0.0, %v951
      %v953 = vpop.f32.mrf.mxu0
      %954 = vmatprep.mubr.bf16.mxu0 0
      %955 = vmatmul.mubr.bf16.gmra.mxu0 %v867
      %v956 = vpop.f32.mrf.mxu0
      %v957 = vadd.f32 0.0, %v956
      %v958 = vpop.f32.mrf.mxu0
      %v959 = vpop.f32.mrf.mxu0
      %v960 = vadd.f32 0.0, %v959
      %v961 = vpop.f32.mrf.mxu0
      %962 = vmatprep.mubr.bf16.mxu0 0
      %963 = vmatmul.mubr.bf16.gmra.mxu0 %v870
      %v964 = vpop.f32.mrf.mxu0
      %v965 = vadd.f32 0.0, %v964
      %v966 = vpop.f32.mrf.mxu0
      %v967 = vpop.f32.mrf.mxu0
      %v968 = vadd.f32 0.0, %v967
      %v969 = vpop.f32.mrf.mxu0
      %970 = vmatprep.mubr.bf16.mxu0 0
      %971 = vmatmul.mubr.bf16.gmra.mxu0 %v873
      %v972 = vpop.f32.mrf.mxu0
      %v973 = vadd.f32 0.0, %v972
      %v974 = vpop.f32.mrf.mxu0
      %v975 = vpop.f32.mrf.mxu0
      %v976 = vadd.f32 0.0, %v975
      %v977 = vpop.f32.mrf.mxu0
      %978 = vmatprep.mubr.bf16.mxu0 0
      %979 = vmatmul.mubr.bf16.gmra.mxu0 %v876
      %v980 = vpop.f32.mrf.mxu0
      %v981 = vadd.f32 0.0, %v980
      %v982 = vpop.f32.mrf.mxu0
      %v983 = vpop.f32.mrf.mxu0
      %v984 = vadd.f32 0.0, %v983
      %v985 = vpop.f32.mrf.mxu0
      %986 = vmatprep.mubr.bf16.mxu0 0
      %987 = vmatmul.mubr.bf16.gmra.mxu0 %v879
      %v988 = vpop.f32.mrf.mxu0
      %v989 = vadd.f32 0.0, %v988
      %v990 = vpop.f32.mrf.mxu0
      %v991 = vpop.f32.mrf.mxu0
      %v992 = vadd.f32 0.0, %v991
      %v993 = vpop.f32.mrf.mxu0
      %994 = vmatprep.mubr.bf16.mxu0 0
      %995 = vmatmul.mubr.bf16.gmra.mxu0 %v882
      %v996 = vpop.f32.mrf.mxu0
      %v997 = vadd.f32 0.0, %v996
      %v998 = vpop.f32.mrf.mxu0
      %v999 = vpop.f32.mrf.mxu0
      %v1000 = vadd.f32 0.0, %v999
      %v1001 = vpop.f32.mrf.mxu0
      %1002 = vmatprep.mubr.bf16.mxu0 0
      %1003 = vmatmul.mubr.bf16.gmra.mxu0 %v885
      %v1004 = vpop.f32.mrf.mxu0
      %v1005 = vadd.f32 0.0, %v1004
      %v1006 = vpop.f32.mrf.mxu0
      %v1007 = vpop.f32.mrf.mxu0
      %v1008 = vadd.f32 0.0, %v1007
      %v1009 = vpop.f32.mrf.mxu0
      %1010 = vmatprep.mubr.bf16.mxu0 0
      %1011 = vmatmul.mubr.bf16.gmra.mxu0 %v888
      %v1012 = vpop.f32.mrf.mxu0
      %v1013 = vadd.f32 0.0, %v1012
      %v1014 = vpop.f32.mrf.mxu0
      %v1015 = vpop.f32.mrf.mxu0
      %v1016 = vadd.f32 0.0, %v1015
      %v1017 = vpop.f32.mrf.mxu0
      %1018 = vmatprep.mubr.bf16.mxu0 0
      %1019 = vmatmul.mubr.bf16.gmra.mxu0 %v891
      %v1020 = vpop.f32.mrf.mxu0
      %v1021 = vadd.f32 0.0, %v1020
      %v1022 = vpop.f32.mrf.mxu0
      %v1023 = vpop.f32.mrf.mxu0
      %v1024 = vadd.f32 0.0, %v1023
      %v1025 = vpop.f32.mrf.mxu0
      %1026 = vmatprep.mubr.bf16.mxu0 0
      %1027 = vmatmul.mubr.bf16.gmra.mxu0 %v894
      %v1028 = vpop.f32.mrf.mxu0
      %v1029 = vadd.f32 0.0, %v1028
      %v1030 = vpop.f32.mrf.mxu0
      %v1031 = vpop.f32.mrf.mxu0
      %v1032 = vadd.f32 0.0, %v1031
      %v1033 = vpop.f32.mrf.mxu0
      %1034 = vmatprep.mubr.bf16.mxu0 0
      %1035 = vmatmul.mubr.bf16.gmra.mxu0 %v897
      %v1036 = vpop.f32.mrf.mxu0
      %v1037 = vadd.f32 0.0, %v1036
      %v1038 = vpop.f32.mrf.mxu0
      %v1039 = vpop.f32.mrf.mxu0
      %v1040 = vadd.f32 0.0, %v1039
      %v1041 = vpop.f32.mrf.mxu0
      %1042 = vdwg.mxu0
      %v1044 = vlaneseq
      %v1045 = vshrl.u32 %v1044, 7
      %v1046 = vsub.s32 0, %v1045
      %v1047 = vrot.slane %v840, %v1046
      %v1049 = vadd.f32 %v1047, %v941
      %v1050 = vadd.f32 %v1047, %v944
      %v1051 = vadd.f32 %v1047, %v949
      %v1052 = vadd.f32 %v1047, %v952
      %v1053 = vadd.f32 %v1047, %v957
      %v1054 = vadd.f32 %v1047, %v960
      %v1055 = vadd.f32 %v1047, %v965
      %v1056 = vadd.f32 %v1047, %v968
      %v1057 = vadd.f32 %v1047, %v973
      %v1058 = vadd.f32 %v1047, %v976
      %v1059 = vadd.f32 %v1047, %v981
      %v1060 = vadd.f32 %v1047, %v984
      %v1061 = vadd.f32 %v1047, %v989
      %v1062 = vadd.f32 %v1047, %v992
      %v1063 = vadd.f32 %v1047, %v997
      %v1064 = vadd.f32 %v1047, %v1000
      %v1065 = vadd.f32 %v1047, %v1005
      %v1066 = vadd.f32 %v1047, %v1008
      %v1067 = vadd.f32 %v1047, %v1013
      %v1068 = vadd.f32 %v1047, %v1016
      %v1069 = vadd.f32 %v1047, %v1021
      %v1070 = vadd.f32 %v1047, %v1024
      %v1071 = vadd.f32 %v1047, %v1029
      %v1072 = vadd.f32 %v1047, %v1032
      %v1073 = vadd.f32 %v1047, %v1037
      %v1074 = vadd.f32 %v1047, %v1040
      %v1101 = vunpack.c.l.b16 %v781
      %v1102 = vunpack.c.l.b16 %v782
      %v1103 = vunpack.c.l.b16 %v783
      %v1104 = vunpack.c.l.b16 %v784
      %v1105 = vunpack.c.l.b16 %v785
      %v1106 = vunpack.c.l.b16 %v786
      %v1107 = vunpack.c.l.b16 %v787
      %v1108 = vunpack.c.l.b16 %v788
      %v1109 = vunpack.c.l.b16 %v789
      %v1110 = vunpack.c.l.b16 %v790
      %v1111 = vunpack.c.l.b16 %v791
      %v1112 = vunpack.c.l.b16 %v792
      %v1113 = vunpack.c.l.b16 %v793
      %v1114 = vunpack.c.l.b16 %v794
      %v1115 = vunpack.c.l.b16 %v795
      %v1116 = vunpack.c.l.b16 %v796
      %v1117 = vunpack.c.l.b16 %v797
      %v1118 = vunpack.c.l.b16 %v798
      %v1119 = vunpack.c.l.b16 %v799
      %v1120 = vunpack.c.l.b16 %v800
      %v1121 = vunpack.c.l.b16 %v801
      %v1122 = vunpack.c.l.b16 %v802
      %v1123 = vunpack.c.l.b16 %v803
      %v1124 = vunpack.c.l.b16 %v804
      %v1125 = vunpack.c.l.b16 %v805
      %v1126 = vunpack.c.l.b16 %v806
      %v1127 = vpack.c.b16 %v1102, %v1101
      %v1128 = vpack.c.b16 %v1104, %v1103
      %v1129 = vpack.c.b16 %v1106, %v1105
      %v1130 = vpack.c.b16 %v1108, %v1107
      %v1131 = vpack.c.b16 %v1110, %v1109
      %v1132 = vpack.c.b16 %v1112, %v1111
      %v1133 = vpack.c.b16 %v1114, %v1113
      %v1134 = vpack.c.b16 %v1116, %v1115
      %v1135 = vpack.c.b16 %v1118, %v1117
      %v1136 = vpack.c.b16 %v1120, %v1119
      %v1137 = vpack.c.b16 %v1122, %v1121
      %v1138 = vpack.c.b16 %v1124, %v1123
      %v1139 = vpack.c.b16 %v1126, %v1125
      %v1142 = vunpack.c.l.b16 %v835
      %v1143 = vunpack.c.l.b16 %v836
      %v1144 = vpack.c.b16 %v1143, %v1142
      %vm1146 = vcmask 130048
      %v1148 = vsel %vm1146, %v1127, 0
      %v1151 = vsel %vm1146, %v1128, 0
      %v1154 = vsel %vm1146, %v1129, 0
      %v1157 = vsel %vm1146, %v1130, 0
      %v1160 = vsel %vm1146, %v1131, 0
      %v1163 = vsel %vm1146, %v1132, 0
      %v1166 = vsel %vm1146, %v1133, 0
      %v1169 = vsel %vm1146, %v1134, 0
      %v1172 = vsel %vm1146, %v1135, 0
      %v1175 = vsel %vm1146, %v1136, 0
      %v1178 = vsel %vm1146, %v1137, 0
      %v1181 = vsel %vm1146, %v1138, 0
      %v1184 = vsel %vm1146, %v1139, 0
      %1186 = vmatprep.subr.bf16.mxu0 0
      %1187 = vmatpush1.bf16.msra.mxu0 0
      %1188 = vmatprep.subr.bf16.mxu0 0
      %1189 = vmatpush1.bf16.msra.mxu0 0
      %1190 = vmatprep.subr.bf16.mxu0 0
      %1191 = vmatpush1.bf16.msra.mxu0 0
      %1192 = vmatprep.subr.bf16.mxu0 0
      %1193 = vmatpush1.bf16.msra.mxu0 0
      %1194 = vmatprep.subr.bf16.mxu0 0
      %1195 = vmatpush1.bf16.msra.mxu0 0
      %1196 = vmatprep.subr.bf16.mxu0 0
      %1197 = vmatpush1.bf16.msra.mxu0 0
      %1198 = vmatprep.subr.bf16.mxu0 0
      %1199 = vmatpush1.bf16.msra.mxu0 0
      %1200 = vmatprep.subr.bf16.mxu0 0
      %1201 = vmatpush1.bf16.msra.mxu0 %v1144
      %1202 = vmatprep.subr.bf16.mxu0 0
      %1203 = vmatpush2.bf16.msra.mxu0 0
      %1204 = vmatprep.subr.bf16.mxu0 0
      %1205 = vmatpush2.bf16.msra.mxu0 0
      %1206 = vmatprep.subr.bf16.mxu0 0
      %1207 = vmatpush2.bf16.msra.mxu0 0
      %1208 = vmatprep.subr.bf16.mxu0 0
      %1209 = vmatpush2.bf16.msra.mxu0 0
      %1210 = vmatprep.subr.bf16.mxu0 0
      %1211 = vmatpush2.bf16.msra.mxu0 0
      %1212 = vmatprep.subr.bf16.mxu0 0
      %1213 = vmatpush2.bf16.msra.mxu0 0
      %1214 = vmatprep.subr.bf16.mxu0 0
      %1215 = vmatpush2.bf16.msra.mxu0 0
      %1216 = vmatprep.subr.bf16.mxu0 0
      %1217 = vmatpush2.bf16.msra.mxu0 0
      %1218 = vmatprep.mubr.bf16.mxu0 0
      %1219 = vmatmul.mubr.bf16.gmra.mxu0 %v1148
      %v1220 = vpop.f32.mrf.mxu0
      %v1221 = vadd.f32 0.0, %v1220
      %v1222 = vpop.f32.mrf.mxu0
      %v1223 = vpop.f32.mrf.mxu0
      %v1224 = vadd.f32 0.0, %v1223
      %v1225 = vpop.f32.mrf.mxu0
      %1226 = vmatprep.mubr.bf16.mxu0 0
      %1227 = vmatmul.mubr.bf16.gmra.mxu0 %v1151
      %v1228 = vpop.f32.mrf.mxu0
      %v1229 = vadd.f32 0.0, %v1228
      %v1230 = vpop.f32.mrf.mxu0
      %v1231 = vpop.f32.mrf.mxu0
      %v1232 = vadd.f32 0.0, %v1231
      %v1233 = vpop.f32.mrf.mxu0
      %1234 = vmatprep.mubr.bf16.mxu0 0
      %1235 = vmatmul.mubr.bf16.gmra.mxu0 %v1154
      %v1236 = vpop.f32.mrf.mxu0
      %v1237 = vadd.f32 0.0, %v1236
      %v1238 = vpop.f32.mrf.mxu0
      %v1239 = vpop.f32.mrf.mxu0
      %v1240 = vadd.f32 0.0, %v1239
      %v1241 = vpop.f32.mrf.mxu0
      %1242 = vmatprep.mubr.bf16.mxu0 0
      %1243 = vmatmul.mubr.bf16.gmra.mxu0 %v1157
      %v1244 = vpop.f32.mrf.mxu0
      %v1245 = vadd.f32 0.0, %v1244
      %v1246 = vpop.f32.mrf.mxu0
      %v1247 = vpop.f32.mrf.mxu0
      %v1248 = vadd.f32 0.0, %v1247
      %v1249 = vpop.f32.mrf.mxu0
      %1250 = vmatprep.mubr.bf16.mxu0 0
      %1251 = vmatmul.mubr.bf16.gmra.mxu0 %v1160
      %v1252 = vpop.f32.mrf.mxu0
      %v1253 = vadd.f32 0.0, %v1252
      %v1254 = vpop.f32.mrf.mxu0
      %v1255 = vpop.f32.mrf.mxu0
      %v1256 = vadd.f32 0.0, %v1255
      %v1257 = vpop.f32.mrf.mxu0
      %1258 = vmatprep.mubr.bf16.mxu0 0
      %1259 = vmatmul.mubr.bf16.gmra.mxu0 %v1163
      %v1260 = vpop.f32.mrf.mxu0
      %v1261 = vadd.f32 0.0, %v1260
      %v1262 = vpop.f32.mrf.mxu0
      %v1263 = vpop.f32.mrf.mxu0
      %v1264 = vadd.f32 0.0, %v1263
      %v1265 = vpop.f32.mrf.mxu0
      %1266 = vmatprep.mubr.bf16.mxu0 0
      %1267 = vmatmul.mubr.bf16.gmra.mxu0 %v1166
      %v1268 = vpop.f32.mrf.mxu0
      %v1269 = vadd.f32 0.0, %v1268
      %v1270 = vpop.f32.mrf.mxu0
      %v1271 = vpop.f32.mrf.mxu0
      %v1272 = vadd.f32 0.0, %v1271
      %v1273 = vpop.f32.mrf.mxu0
      %1274 = vmatprep.mubr.bf16.mxu0 0
      %1275 = vmatmul.mubr.bf16.gmra.mxu0 %v1169
      %v1276 = vpop.f32.mrf.mxu0
      %v1277 = vadd.f32 0.0, %v1276
      %v1278 = vpop.f32.mrf.mxu0
      %v1279 = vpop.f32.mrf.mxu0
      %v1280 = vadd.f32 0.0, %v1279
      %v1281 = vpop.f32.mrf.mxu0
      %1282 = vmatprep.mubr.bf16.mxu0 0
      %1283 = vmatmul.mubr.bf16.gmra.mxu0 %v1172
      %v1284 = vpop.f32.mrf.mxu0
      %v1285 = vadd.f32 0.0, %v1284
      %v1286 = vpop.f32.mrf.mxu0
      %v1287 = vpop.f32.mrf.mxu0
      %v1288 = vadd.f32 0.0, %v1287
      %v1289 = vpop.f32.mrf.mxu0
      %1290 = vmatprep.mubr.bf16.mxu0 0
      %1291 = vmatmul.mubr.bf16.gmra.mxu0 %v1175
      %v1292 = vpop.f32.mrf.mxu0
      %v1293 = vadd.f32 0.0, %v1292
      %v1294 = vpop.f32.mrf.mxu0
      %v1295 = vpop.f32.mrf.mxu0
      %v1296 = vadd.f32 0.0, %v1295
      %v1297 = vpop.f32.mrf.mxu0
      %1298 = vmatprep.mubr.bf16.mxu0 0
      %1299 = vmatmul.mubr.bf16.gmra.mxu0 %v1178
      %v1300 = vpop.f32.mrf.mxu0
      %v1301 = vadd.f32 0.0, %v1300
      %v1302 = vpop.f32.mrf.mxu0
      %v1303 = vpop.f32.mrf.mxu0
      %v1304 = vadd.f32 0.0, %v1303
      %v1305 = vpop.f32.mrf.mxu0
      %1306 = vmatprep.mubr.bf16.mxu0 0
      %1307 = vmatmul.mubr.bf16.gmra.mxu0 %v1181
      %v1308 = vpop.f32.mrf.mxu0
      %v1309 = vadd.f32 0.0, %v1308
      %v1310 = vpop.f32.mrf.mxu0
      %v1311 = vpop.f32.mrf.mxu0
      %v1312 = vadd.f32 0.0, %v1311
      %v1313 = vpop.f32.mrf.mxu0
      %1314 = vmatprep.mubr.bf16.mxu0 0
      %1315 = vmatmul.mubr.bf16.gmra.mxu0 %v1184
      %v1316 = vpop.f32.mrf.mxu0
      %v1317 = vadd.f32 0.0, %v1316
      %v1318 = vpop.f32.mrf.mxu0
      %v1319 = vpop.f32.mrf.mxu0
      %v1320 = vadd.f32 0.0, %v1319
      %v1321 = vpop.f32.mrf.mxu0
      %1322 = vdwg.mxu0
      %v1323 = vadd.f32 %v1049, %v1221
      %v1324 = vadd.f32 %v1050, %v1224
      %v1325 = vadd.f32 %v1051, %v1229
      %v1326 = vadd.f32 %v1052, %v1232
      %v1327 = vadd.f32 %v1053, %v1237
      %v1328 = vadd.f32 %v1054, %v1240
      %v1329 = vadd.f32 %v1055, %v1245
      %v1330 = vadd.f32 %v1056, %v1248
      %v1331 = vadd.f32 %v1057, %v1253
      %v1332 = vadd.f32 %v1058, %v1256
      %v1333 = vadd.f32 %v1059, %v1261
      %v1334 = vadd.f32 %v1060, %v1264
      %v1335 = vadd.f32 %v1061, %v1269
      %v1336 = vadd.f32 %v1062, %v1272
      %v1337 = vadd.f32 %v1063, %v1277
      %v1338 = vadd.f32 %v1064, %v1280
      %v1339 = vadd.f32 %v1065, %v1285
      %v1340 = vadd.f32 %v1066, %v1288
      %v1341 = vadd.f32 %v1067, %v1293
      %v1342 = vadd.f32 %v1068, %v1296
      %v1343 = vadd.f32 %v1069, %v1301
      %v1344 = vadd.f32 %v1070, %v1304
      %v1345 = vadd.f32 %v1071, %v1309
      %v1346 = vadd.f32 %v1072, %v1312
      %v1347 = vadd.f32 %v1073, %v1317
      %v1348 = vadd.f32 %v1074, %v1320
      %v1349 = vpack.c.bf16 %v807, %v807
      %v1352 = vunpack.c.l.b16 %v837
      %v1353 = vunpack.c.l.b16 %v838
      %v1354 = vpack.c.b16 %v1353, %v1352
      %v1357 = vsel %vm1146, %v1349, 0
      %1359 = vmatprep.subr.bf16.mxu0 0
      %1360 = vmatpush1.bf16.msra.mxu0 0
      %1361 = vmatprep.subr.bf16.mxu0 0
      %1362 = vmatpush1.bf16.msra.mxu0 0
      %1363 = vmatprep.subr.bf16.mxu0 0
      %1364 = vmatpush1.bf16.msra.mxu0 0
      %1365 = vmatprep.subr.bf16.mxu0 0
      %1366 = vmatpush1.bf16.msra.mxu0 0
      %1367 = vmatprep.subr.bf16.mxu0 0
      %1368 = vmatpush1.bf16.msra.mxu0 0
      %1369 = vmatprep.subr.bf16.mxu0 0
      %1370 = vmatpush1.bf16.msra.mxu0 0
      %1371 = vmatprep.subr.bf16.mxu0 0
      %1372 = vmatpush1.bf16.msra.mxu0 0
      %1373 = vmatprep.subr.bf16.mxu0 0
      %1374 = vmatpush1.bf16.msra.mxu0 %v1354
      %1375 = vmatprep.subr.bf16.mxu0 0
      %1376 = vmatpush2.bf16.msra.mxu0 0
      %1377 = vmatprep.subr.bf16.mxu0 0
      %1378 = vmatpush2.bf16.msra.mxu0 0
      %1379 = vmatprep.subr.bf16.mxu0 0
      %1380 = vmatpush2.bf16.msra.mxu0 0
      %1381 = vmatprep.subr.bf16.mxu0 0
      %1382 = vmatpush2.bf16.msra.mxu0 0
      %1383 = vmatprep.subr.bf16.mxu0 0
      %1384 = vmatpush2.bf16.msra.mxu0 0
      %1385 = vmatprep.subr.bf16.mxu0 0
      %1386 = vmatpush2.bf16.msra.mxu0 0
      %1387 = vmatprep.subr.bf16.mxu0 0
      %1388 = vmatpush2.bf16.msra.mxu0 0
      %1389 = vmatprep.subr.bf16.mxu0 0
      %1390 = vmatpush2.bf16.msra.mxu0 0
      %1391 = vmatprep.mubr.bf16.mxu0 0
      %1392 = vmatmul.mubr.bf16.gmra.mxu0 %v1357
      %v1393 = vpop.f32.mrf.mxu0
      %v1394 = vadd.f32 0.0, %v1393
      %v1395 = vpop.f32.mrf.mxu0
      %v1396 = vpop.f32.mrf.mxu0
      %v1397 = vpop.f32.mrf.mxu0
      %1398 = vdwg.mxu0
      %v1399 = vlaneseq
      %v1400 = vshrl.u32 %v1399, 7
      %v1401 = vsub.s32 0, %v1400
      %v1402 = vrot.slane %v1394, %v1401
      %v1403 = vadd.f32 %v1323, %v1402
      %v1404 = vadd.f32 %v1324, %v1402
      %v1405 = vadd.f32 %v1325, %v1402
      %v1406 = vadd.f32 %v1326, %v1402
      %v1407 = vadd.f32 %v1327, %v1402
      %v1408 = vadd.f32 %v1328, %v1402
      %v1409 = vadd.f32 %v1329, %v1402
      %v1410 = vadd.f32 %v1330, %v1402
      %v1411 = vadd.f32 %v1331, %v1402
      %v1412 = vadd.f32 %v1332, %v1402
      %v1413 = vadd.f32 %v1333, %v1402
      %v1414 = vadd.f32 %v1334, %v1402
      %v1415 = vadd.f32 %v1335, %v1402
      %v1416 = vadd.f32 %v1336, %v1402
      %v1417 = vadd.f32 %v1337, %v1402
      %v1418 = vadd.f32 %v1338, %v1402
      %v1419 = vadd.f32 %v1339, %v1402
      %v1420 = vadd.f32 %v1340, %v1402
      %v1421 = vadd.f32 %v1341, %v1402
      %v1422 = vadd.f32 %v1342, %v1402
      %v1423 = vadd.f32 %v1343, %v1402
      %v1424 = vadd.f32 %v1344, %v1402
      %v1425 = vadd.f32 %v1345, %v1402
      %v1426 = vadd.f32 %v1346, %v1402
      %v1427 = vadd.f32 %v1347, %v1402
      %v1428 = vadd.f32 %v1348, %v1402
      %v1429 = vpack.c.bf16 %v809, %v808
      %v1430 = vpack.c.bf16 %v811, %v810
      %v1431 = vpack.c.bf16 %v813, %v812
      %v1432 = vpack.c.bf16 %v815, %v814
      %v1433 = vpack.c.bf16 %v817, %v816
      %v1434 = vpack.c.bf16 %v819, %v818
      %v1435 = vpack.c.bf16 %v821, %v820
      %v1436 = vpack.c.bf16 %v823, %v822
      %v1437 = vpack.c.bf16 %v825, %v824
      %v1438 = vpack.c.bf16 %v827, %v826
      %v1439 = vpack.c.bf16 %v829, %v828
      %v1440 = vpack.c.bf16 %v831, %v830
      %v1441 = vpack.c.bf16 %v833, %v832
      %vm1442 = vcmask 7168
      %v1444 = vsel %vm1442, %v1429, 0
      %v1447 = vsel %vm1442, %v1430, 0
      %v1450 = vsel %vm1442, %v1431, 0
      %v1453 = vsel %vm1442, %v1432, 0
      %v1456 = vsel %vm1442, %v1433, 0
      %v1459 = vsel %vm1442, %v1434, 0
      %v1462 = vsel %vm1442, %v1435, 0
      %v1465 = vsel %vm1442, %v1436, 0
      %v1468 = vsel %vm1442, %v1437, 0
      %v1471 = vsel %vm1442, %v1438, 0
      %v1474 = vsel %vm1442, %v1439, 0
      %v1477 = vsel %vm1442, %v1440, 0
      %v1480 = vsel %vm1442, %v1441, 0
      %v1482 = vsel 0, 4294967295, 65535
      %v1483 = vsel %vm899, %v1482, 0
      %v1485 = vand.u32 %v839, %v1483
      %1487 = vmatprep.subr.bf16.mxu0 0
      %1488 = vmatpush1.bf16.msra.mxu0 0
      %1489 = vmatprep.subr.bf16.mxu0 0
      %1490 = vmatpush1.bf16.msra.mxu0 0
      %1491 = vmatprep.subr.bf16.mxu0 0
      %1492 = vmatpush1.bf16.msra.mxu0 0
      %1493 = vmatprep.subr.bf16.mxu0 0
      %1494 = vmatpush1.bf16.msra.mxu0 0
      %1495 = vmatprep.subr.bf16.mxu0 0
      %1496 = vmatpush1.bf16.msra.mxu0 0
      %1497 = vmatprep.subr.bf16.mxu0 0
      %1498 = vmatpush1.bf16.msra.mxu0 0
      %1499 = vmatprep.subr.bf16.mxu0 0
      %1500 = vmatpush1.bf16.msra.mxu0 0
      %1501 = vmatprep.subr.bf16.mxu0 0
      %1502 = vmatpush1.bf16.msra.mxu0 %v1485
      %1503 = vmatprep.subr.bf16.mxu0 0
      %1504 = vmatpush2.bf16.msra.mxu0 0
      %1505 = vmatprep.subr.bf16.mxu0 0
      %1506 = vmatpush2.bf16.msra.mxu0 0
      %1507 = vmatprep.subr.bf16.mxu0 0
      %1508 = vmatpush2.bf16.msra.mxu0 0
      %1509 = vmatprep.subr.bf16.mxu0 0
      %1510 = vmatpush2.bf16.msra.mxu0 0
      %1511 = vmatprep.subr.bf16.mxu0 0
      %1512 = vmatpush2.bf16.msra.mxu0 0
      %1513 = vmatprep.subr.bf16.mxu0 0
      %1514 = vmatpush2.bf16.msra.mxu0 0
      %1515 = vmatprep.subr.bf16.mxu0 0
      %1516 = vmatpush2.bf16.msra.mxu0 0
      %1517 = vmatprep.subr.bf16.mxu0 0
      %1518 = vmatpush2.bf16.msra.mxu0 0
      %1519 = vmatprep.mubr.bf16.mxu0 0
      %1520 = vmatmul.mubr.bf16.gmra.mxu0 %v1444
      %v1521 = vpop.f32.mrf.mxu0
      %v1522 = vadd.f32 0.0, %v1521
      %v1523 = vpop.f32.mrf.mxu0
      %v1524 = vpop.f32.mrf.mxu0
      %v1525 = vadd.f32 0.0, %v1524
      %v1526 = vpop.f32.mrf.mxu0
      %1527 = vmatprep.mubr.bf16.mxu0 0
      %1528 = vmatmul.mubr.bf16.gmra.mxu0 %v1447
      %v1529 = vpop.f32.mrf.mxu0
      %v1530 = vadd.f32 0.0, %v1529
      %v1531 = vpop.f32.mrf.mxu0
      %v1532 = vpop.f32.mrf.mxu0
      %v1533 = vadd.f32 0.0, %v1532
      %v1534 = vpop.f32.mrf.mxu0
      %1535 = vmatprep.mubr.bf16.mxu0 0
      %1536 = vmatmul.mubr.bf16.gmra.mxu0 %v1450
      %v1537 = vpop.f32.mrf.mxu0
      %v1538 = vadd.f32 0.0, %v1537
      %v1539 = vpop.f32.mrf.mxu0
      %v1540 = vpop.f32.mrf.mxu0
      %v1541 = vadd.f32 0.0, %v1540
      %v1542 = vpop.f32.mrf.mxu0
      %1543 = vmatprep.mubr.bf16.mxu0 0
      %1544 = vmatmul.mubr.bf16.gmra.mxu0 %v1453
      %v1545 = vpop.f32.mrf.mxu0
      %v1546 = vadd.f32 0.0, %v1545
      %v1547 = vpop.f32.mrf.mxu0
      %v1548 = vpop.f32.mrf.mxu0
      %v1549 = vadd.f32 0.0, %v1548
      %v1550 = vpop.f32.mrf.mxu0
      %1551 = vmatprep.mubr.bf16.mxu0 0
      %1552 = vmatmul.mubr.bf16.gmra.mxu0 %v1456
      %v1553 = vpop.f32.mrf.mxu0
      %v1554 = vadd.f32 0.0, %v1553
      %v1555 = vpop.f32.mrf.mxu0
      %v1556 = vpop.f32.mrf.mxu0
      %v1557 = vadd.f32 0.0, %v1556
      %v1558 = vpop.f32.mrf.mxu0
      %1559 = vmatprep.mubr.bf16.mxu0 0
      %1560 = vmatmul.mubr.bf16.gmra.mxu0 %v1459
      %v1561 = vpop.f32.mrf.mxu0
      %v1562 = vadd.f32 0.0, %v1561
      %v1563 = vpop.f32.mrf.mxu0
      %v1564 = vpop.f32.mrf.mxu0
      %v1565 = vadd.f32 0.0, %v1564
      %v1566 = vpop.f32.mrf.mxu0
      %1567 = vmatprep.mubr.bf16.mxu0 0
      %1568 = vmatmul.mubr.bf16.gmra.mxu0 %v1462
      %v1569 = vpop.f32.mrf.mxu0
      %v1570 = vadd.f32 0.0, %v1569
      %v1571 = vpop.f32.mrf.mxu0
      %v1572 = vpop.f32.mrf.mxu0
      %v1573 = vadd.f32 0.0, %v1572
      %v1574 = vpop.f32.mrf.mxu0
      %1575 = vmatprep.mubr.bf16.mxu0 0
      %1576 = vmatmul.mubr.bf16.gmra.mxu0 %v1465
      %v1577 = vpop.f32.mrf.mxu0
      %v1578 = vadd.f32 0.0, %v1577
      %v1579 = vpop.f32.mrf.mxu0
      %v1580 = vpop.f32.mrf.mxu0
      %v1581 = vadd.f32 0.0, %v1580
      %v1582 = vpop.f32.mrf.mxu0
      %1583 = vmatprep.mubr.bf16.mxu0 0
      %1584 = vmatmul.mubr.bf16.gmra.mxu0 %v1468
      %v1585 = vpop.f32.mrf.mxu0
      %v1586 = vadd.f32 0.0, %v1585
      %v1587 = vpop.f32.mrf.mxu0
      %v1588 = vpop.f32.mrf.mxu0
      %v1589 = vadd.f32 0.0, %v1588
      %v1590 = vpop.f32.mrf.mxu0
      %1591 = vmatprep.mubr.bf16.mxu0 0
      %1592 = vmatmul.mubr.bf16.gmra.mxu0 %v1471
      %v1593 = vpop.f32.mrf.mxu0
      %v1594 = vadd.f32 0.0, %v1593
      %v1595 = vpop.f32.mrf.mxu0
      %v1596 = vpop.f32.mrf.mxu0
      %v1597 = vadd.f32 0.0, %v1596
      %v1598 = vpop.f32.mrf.mxu0
      %1599 = vmatprep.mubr.bf16.mxu0 0
      %1600 = vmatmul.mubr.bf16.gmra.mxu0 %v1474
      %v1601 = vpop.f32.mrf.mxu0
      %v1602 = vadd.f32 0.0, %v1601
      %v1603 = vpop.f32.mrf.mxu0
      %v1604 = vpop.f32.mrf.mxu0
      %v1605 = vadd.f32 0.0, %v1604
      %v1606 = vpop.f32.mrf.mxu0
      %1607 = vmatprep.mubr.bf16.mxu0 0
      %1608 = vmatmul.mubr.bf16.gmra.mxu0 %v1477
      %v1609 = vpop.f32.mrf.mxu0
      %v1610 = vadd.f32 0.0, %v1609
      %v1611 = vpop.f32.mrf.mxu0
      %v1612 = vpop.f32.mrf.mxu0
      %v1613 = vadd.f32 0.0, %v1612
      %v1614 = vpop.f32.mrf.mxu0
      %1615 = vmatprep.mubr.bf16.mxu0 0
      %1616 = vmatmul.mubr.bf16.gmra.mxu0 %v1480
      %v1617 = vpop.f32.mrf.mxu0
      %v1618 = vadd.f32 0.0, %v1617
      %v1619 = vpop.f32.mrf.mxu0
      %v1620 = vpop.f32.mrf.mxu0
      %v1621 = vadd.f32 0.0, %v1620
      %v1622 = vpop.f32.mrf.mxu0
      %1623 = vdwg.mxu0
      %v1624 = vadd.f32 %v1403, %v1522
      %v1625 = vadd.f32 %v1404, %v1525
      %v1626 = vadd.f32 %v1405, %v1530
      %v1627 = vadd.f32 %v1406, %v1533
      %v1628 = vadd.f32 %v1407, %v1538
      %v1629 = vadd.f32 %v1408, %v1541
      %v1630 = vadd.f32 %v1409, %v1546
      %v1631 = vadd.f32 %v1410, %v1549
      %v1632 = vadd.f32 %v1411, %v1554
      %v1633 = vadd.f32 %v1412, %v1557
      %v1634 = vadd.f32 %v1413, %v1562
      %v1635 = vadd.f32 %v1414, %v1565
      %v1636 = vadd.f32 %v1415, %v1570
      %v1637 = vadd.f32 %v1416, %v1573
      %v1638 = vadd.f32 %v1417, %v1578
      %v1639 = vadd.f32 %v1418, %v1581
      %v1640 = vadd.f32 %v1419, %v1586
      %v1641 = vadd.f32 %v1420, %v1589
      %v1642 = vadd.f32 %v1421, %v1594
      %v1643 = vadd.f32 %v1422, %v1597
      %v1644 = vadd.f32 %v1423, %v1602
      %v1645 = vadd.f32 %v1424, %v1605
      %v1646 = vadd.f32 %v1425, %v1610
      %v1647 = vadd.f32 %v1426, %v1613
      %v1648 = vadd.f32 %v1427, %v1618
      %v1649 = vadd.f32 %v1428, %v1621
      %v1650 = vmax.f32 %v1624, 0.0
      %v1651 = vmax.f32 %v1625, 0.0
      %v1652 = vmax.f32 %v1626, 0.0
      %v1653 = vmax.f32 %v1627, 0.0
      %v1654 = vmax.f32 %v1628, 0.0
      %v1655 = vmax.f32 %v1629, 0.0
      %v1656 = vmax.f32 %v1630, 0.0
      %v1657 = vmax.f32 %v1631, 0.0
      %v1658 = vmax.f32 %v1632, 0.0
      %v1659 = vmax.f32 %v1633, 0.0
      %v1660 = vmax.f32 %v1634, 0.0
      %v1661 = vmax.f32 %v1635, 0.0
      %v1662 = vmax.f32 %v1636, 0.0
      %v1663 = vmax.f32 %v1637, 0.0
      %v1664 = vmax.f32 %v1638, 0.0
      %v1665 = vmax.f32 %v1639, 0.0
      %v1666 = vmax.f32 %v1640, 0.0
      %v1667 = vmax.f32 %v1641, 0.0
      %v1668 = vmax.f32 %v1642, 0.0
      %v1669 = vmax.f32 %v1643, 0.0
      %v1670 = vmax.f32 %v1644, 0.0
      %v1671 = vmax.f32 %v1645, 0.0
      %v1672 = vmax.f32 %v1646, 0.0
      %v1673 = vmax.f32 %v1647, 0.0
      %v1674 = vmax.f32 %v1648, 0.0
      %v1675 = vmax.f32 %v1649, 0.0
      %v1676 = vpack.c.bf16 %v1651, %v1650
      %v1677 = vpack.c.bf16 %v1653, %v1652
      %v1678 = vpack.c.bf16 %v1655, %v1654
      %v1679 = vpack.c.bf16 %v1657, %v1656
      %v1680 = vpack.c.bf16 %v1659, %v1658
      %v1681 = vpack.c.bf16 %v1661, %v1660
      %v1682 = vpack.c.bf16 %v1663, %v1662
      %v1683 = vpack.c.bf16 %v1665, %v1664
      %v1684 = vpack.c.bf16 %v1667, %v1666
      %v1685 = vpack.c.bf16 %v1669, %v1668
      %v1686 = vpack.c.bf16 %v1671, %v1670
      %v1687 = vpack.c.bf16 %v1673, %v1672
      %v1688 = vpack.c.bf16 %v1675, %v1674
      %v1690 = vlaneseq
      %v1691 = vshrl.u32 %v1690, 7
      %v1692 = vsub.s32 0, %v1691
      %v1693 = vrot.slane %v845, %v1692
      %v1699 = vunpack.c.l.b16 %v841
      %v1700 = vunpack.c.l.b16 %v842
      %v1701 = vunpack.c.l.b16 %v843
      %v1702 = vunpack.c.l.b16 %v844
      %v1703 = vpack.c.b16 %v1700, %v1699
      %v1704 = vpack.c.b16 %v1702, %v1701
      %vm1707 = vcmask 261120
      %v1709 = vsel %vm1707, %v1676, 0
      %v1712 = vsel %vm1707, %v1677, 0
      %v1715 = vsel %vm1707, %v1678, 0
      %v1718 = vsel %vm1707, %v1679, 0
      %v1721 = vsel %vm1707, %v1680, 0
      %v1724 = vsel %vm1707, %v1681, 0
      %v1727 = vsel %vm1707, %v1682, 0
      %v1730 = vsel %vm1707, %v1683, 0
      %v1733 = vsel %vm1707, %v1684, 0
      %v1736 = vsel %vm1707, %v1685, 0
      %v1739 = vsel %vm1707, %v1686, 0
      %v1742 = vsel %vm1707, %v1687, 0
      %v1745 = vsel %vm1707, %v1688, 0
      %1747 = vmatprep.subr.bf16.mxu0 0
      %1748 = vmatpush1.bf16.msra.mxu0 0
      %1749 = vmatprep.subr.bf16.mxu0 0
      %1750 = vmatpush1.bf16.msra.mxu0 0
      %1751 = vmatprep.subr.bf16.mxu0 0
      %1752 = vmatpush1.bf16.msra.mxu0 0
      %1753 = vmatprep.subr.bf16.mxu0 0
      %1754 = vmatpush1.bf16.msra.mxu0 0
      %1755 = vmatprep.subr.bf16.mxu0 0
      %1756 = vmatpush1.bf16.msra.mxu0 0
      %1757 = vmatprep.subr.bf16.mxu0 0
      %1758 = vmatpush1.bf16.msra.mxu0 0
      %1759 = vmatprep.subr.bf16.mxu0 0
      %1760 = vmatpush1.bf16.msra.mxu0 %v1704
      %1761 = vmatprep.subr.bf16.mxu0 0
      %1762 = vmatpush1.bf16.msra.mxu0 %v1703
      %1763 = vmatprep.subr.bf16.mxu0 0
      %1764 = vmatpush2.bf16.msra.mxu0 0
      %1765 = vmatprep.subr.bf16.mxu0 0
      %1766 = vmatpush2.bf16.msra.mxu0 0
      %1767 = vmatprep.subr.bf16.mxu0 0
      %1768 = vmatpush2.bf16.msra.mxu0 0
      %1769 = vmatprep.subr.bf16.mxu0 0
      %1770 = vmatpush2.bf16.msra.mxu0 0
      %1771 = vmatprep.subr.bf16.mxu0 0
      %1772 = vmatpush2.bf16.msra.mxu0 0
      %1773 = vmatprep.subr.bf16.mxu0 0
      %1774 = vmatpush2.bf16.msra.mxu0 0
      %1775 = vmatprep.subr.bf16.mxu0 0
      %1776 = vmatpush2.bf16.msra.mxu0 0
      %1777 = vmatprep.subr.bf16.mxu0 0
      %1778 = vmatpush2.bf16.msra.mxu0 0
      %1779 = vmatprep.mubr.bf16.mxu0 0
      %1780 = vmatmul.mubr.bf16.gmra.mxu0 %v1709
      %v1781 = vpop.f32.mrf.mxu0
      %v1782 = vadd.f32 %v1693, %v1781
      %v1783 = vpop.f32.mrf.mxu0
      %v1784 = vpop.f32.mrf.mxu0
      %v1785 = vadd.f32 %v1693, %v1784
      %v1786 = vpop.f32.mrf.mxu0
      %1787 = vmatprep.mubr.bf16.mxu0 0
      %1788 = vmatmul.mubr.bf16.gmra.mxu0 %v1712
      %v1789 = vpop.f32.mrf.mxu0
      %v1790 = vadd.f32 %v1693, %v1789
      %v1791 = vpop.f32.mrf.mxu0
      %v1792 = vpop.f32.mrf.mxu0
      %v1793 = vadd.f32 %v1693, %v1792
      %v1794 = vpop.f32.mrf.mxu0
      %1795 = vmatprep.mubr.bf16.mxu0 0
      %1796 = vmatmul.mubr.bf16.gmra.mxu0 %v1715
      %v1797 = vpop.f32.mrf.mxu0
      %v1798 = vadd.f32 %v1693, %v1797
      %v1799 = vpop.f32.mrf.mxu0
      %v1800 = vpop.f32.mrf.mxu0
      %v1801 = vadd.f32 %v1693, %v1800
      %v1802 = vpop.f32.mrf.mxu0
      %1803 = vmatprep.mubr.bf16.mxu0 0
      %1804 = vmatmul.mubr.bf16.gmra.mxu0 %v1718
      %v1805 = vpop.f32.mrf.mxu0
      %v1806 = vadd.f32 %v1693, %v1805
      %v1807 = vpop.f32.mrf.mxu0
      %v1808 = vpop.f32.mrf.mxu0
      %v1809 = vadd.f32 %v1693, %v1808
      %v1810 = vpop.f32.mrf.mxu0
      %1811 = vmatprep.mubr.bf16.mxu0 0
      %1812 = vmatmul.mubr.bf16.gmra.mxu0 %v1721
      %v1813 = vpop.f32.mrf.mxu0
      %v1814 = vadd.f32 %v1693, %v1813
      %v1815 = vpop.f32.mrf.mxu0
      %v1816 = vpop.f32.mrf.mxu0
      %v1817 = vadd.f32 %v1693, %v1816
      %v1818 = vpop.f32.mrf.mxu0
      %1819 = vmatprep.mubr.bf16.mxu0 0
      %1820 = vmatmul.mubr.bf16.gmra.mxu0 %v1724
      %v1821 = vpop.f32.mrf.mxu0
      %v1822 = vadd.f32 %v1693, %v1821
      %v1823 = vpop.f32.mrf.mxu0
      %v1824 = vpop.f32.mrf.mxu0
      %v1825 = vadd.f32 %v1693, %v1824
      %v1826 = vpop.f32.mrf.mxu0
      %1827 = vmatprep.mubr.bf16.mxu0 0
      %1828 = vmatmul.mubr.bf16.gmra.mxu0 %v1727
      %v1829 = vpop.f32.mrf.mxu0
      %v1830 = vadd.f32 %v1693, %v1829
      %v1831 = vpop.f32.mrf.mxu0
      %v1832 = vpop.f32.mrf.mxu0
      %v1833 = vadd.f32 %v1693, %v1832
      %v1834 = vpop.f32.mrf.mxu0
      %1835 = vmatprep.mubr.bf16.mxu0 0
      %1836 = vmatmul.mubr.bf16.gmra.mxu0 %v1730
      %v1837 = vpop.f32.mrf.mxu0
      %v1838 = vadd.f32 %v1693, %v1837
      %v1839 = vpop.f32.mrf.mxu0
      %v1840 = vpop.f32.mrf.mxu0
      %v1841 = vadd.f32 %v1693, %v1840
      %v1842 = vpop.f32.mrf.mxu0
      %1843 = vmatprep.mubr.bf16.mxu0 0
      %1844 = vmatmul.mubr.bf16.gmra.mxu0 %v1733
      %v1845 = vpop.f32.mrf.mxu0
      %v1846 = vadd.f32 %v1693, %v1845
      %v1847 = vpop.f32.mrf.mxu0
      %v1848 = vpop.f32.mrf.mxu0
      %v1849 = vadd.f32 %v1693, %v1848
      %v1850 = vpop.f32.mrf.mxu0
      %1851 = vmatprep.mubr.bf16.mxu0 0
      %1852 = vmatmul.mubr.bf16.gmra.mxu0 %v1736
      %v1853 = vpop.f32.mrf.mxu0
      %v1854 = vadd.f32 %v1693, %v1853
      %v1855 = vpop.f32.mrf.mxu0
      %v1856 = vpop.f32.mrf.mxu0
      %v1857 = vadd.f32 %v1693, %v1856
      %v1858 = vpop.f32.mrf.mxu0
      %1859 = vmatprep.mubr.bf16.mxu0 0
      %1860 = vmatmul.mubr.bf16.gmra.mxu0 %v1739
      %v1861 = vpop.f32.mrf.mxu0
      %v1862 = vadd.f32 %v1693, %v1861
      %v1863 = vpop.f32.mrf.mxu0
      %v1864 = vpop.f32.mrf.mxu0
      %v1865 = vadd.f32 %v1693, %v1864
      %v1866 = vpop.f32.mrf.mxu0
      %1867 = vmatprep.mubr.bf16.mxu0 0
      %1868 = vmatmul.mubr.bf16.gmra.mxu0 %v1742
      %v1869 = vpop.f32.mrf.mxu0
      %v1870 = vadd.f32 %v1693, %v1869
      %v1871 = vpop.f32.mrf.mxu0
      %v1872 = vpop.f32.mrf.mxu0
      %v1873 = vadd.f32 %v1693, %v1872
      %v1874 = vpop.f32.mrf.mxu0
      %1875 = vmatprep.mubr.bf16.mxu0 0
      %1876 = vmatmul.mubr.bf16.gmra.mxu0 %v1745
      %v1877 = vpop.f32.mrf.mxu0
      %v1878 = vadd.f32 %v1693, %v1877
      %v1879 = vpop.f32.mrf.mxu0
      %v1880 = vpop.f32.mrf.mxu0
      %v1881 = vadd.f32 %v1693, %v1880
      %v1882 = vpop.f32.mrf.mxu0
      %1883 = vdwg.mxu0
      %v1884 = vmax.f32 %v1782, 0.0
      %v1885 = vmax.f32 %v1785, 0.0
      %v1886 = vmax.f32 %v1790, 0.0
      %v1887 = vmax.f32 %v1793, 0.0
      %v1888 = vmax.f32 %v1798, 0.0
      %v1889 = vmax.f32 %v1801, 0.0
      %v1890 = vmax.f32 %v1806, 0.0
      %v1891 = vmax.f32 %v1809, 0.0
      %v1892 = vmax.f32 %v1814, 0.0
      %v1893 = vmax.f32 %v1817, 0.0
      %v1894 = vmax.f32 %v1822, 0.0
      %v1895 = vmax.f32 %v1825, 0.0
      %v1896 = vmax.f32 %v1830, 0.0
      %v1897 = vmax.f32 %v1833, 0.0
      %v1898 = vmax.f32 %v1838, 0.0
      %v1899 = vmax.f32 %v1841, 0.0
      %v1900 = vmax.f32 %v1846, 0.0
      %v1901 = vmax.f32 %v1849, 0.0
      %v1902 = vmax.f32 %v1854, 0.0
      %v1903 = vmax.f32 %v1857, 0.0
      %v1904 = vmax.f32 %v1862, 0.0
      %v1905 = vmax.f32 %v1865, 0.0
      %v1906 = vmax.f32 %v1870, 0.0
      %v1907 = vmax.f32 %v1873, 0.0
      %v1908 = vmax.f32 %v1878, 0.0
      %v1909 = vmax.f32 %v1881, 0.0
      %s1910 = smul.u32 %s36, 208
      %v1911 = vlaneseq
      %v1912 = vshrl.u32 %v1911, 7
      %v1913 = vadd.s32 %v1912, 8
      %v1914 = vadd.s32 %v1912, 16
      %v1915 = vadd.s32 %v1912, 24
      %v1916 = vadd.s32 %v1912, 32
      %v1917 = vadd.s32 %v1912, 40
      %v1918 = vadd.s32 %v1912, 48
      %v1919 = vadd.s32 %v1912, 56
      %v1920 = vadd.s32 %v1912, 64
      %v1921 = vadd.s32 %v1912, 72
      %v1922 = vadd.s32 %v1912, 80
      %v1923 = vadd.s32 %v1912, 88
      %v1924 = vadd.s32 %v1912, 96
      %v1925 = vadd.s32 %v1912, 104
      %v1926 = vadd.s32 %v1912, 112
      %v1927 = vadd.s32 %v1912, 120
      %v1928 = vadd.s32 %v1912, 128
      %v1929 = vadd.s32 %v1912, 136
      %v1930 = vadd.s32 %v1912, 144
      %v1931 = vadd.s32 %v1912, 152
      %v1932 = vadd.s32 %v1912, 160
      %v1933 = vadd.s32 %v1912, 168
      %v1934 = vadd.s32 %v1912, 176
      %v1935 = vadd.s32 %v1912, 184
      %v1936 = vadd.s32 %v1912, 192
      %v1937 = vadd.s32 %v1912, 200
      %v1938 = vstv %s1910
      %v1939 = vadd.s32 %v1938, %v1912
      %v1940 = vadd.s32 %v1938, %v1913
      %v1941 = vadd.s32 %v1938, %v1914
      %v1942 = vadd.s32 %v1938, %v1915
      %v1943 = vadd.s32 %v1938, %v1916
      %v1944 = vadd.s32 %v1938, %v1917
      %v1945 = vadd.s32 %v1938, %v1918
      %v1946 = vadd.s32 %v1938, %v1919
      %v1947 = vadd.s32 %v1938, %v1920
      %v1948 = vadd.s32 %v1938, %v1921
      %v1949 = vadd.s32 %v1938, %v1922
      %v1950 = vadd.s32 %v1938, %v1923
      %v1951 = vadd.s32 %v1938, %v1924
      %v1952 = vadd.s32 %v1938, %v1925
      %v1953 = vadd.s32 %v1938, %v1926
      %v1954 = vadd.s32 %v1938, %v1927
      %v1955 = vadd.s32 %v1938, %v1928
      %v1956 = vadd.s32 %v1938, %v1929
      %v1957 = vadd.s32 %v1938, %v1930
      %v1958 = vadd.s32 %v1938, %v1931
      %v1959 = vadd.s32 %v1938, %v1932
      %v1960 = vadd.s32 %v1938, %v1933
      %v1961 = vadd.s32 %v1938, %v1934
      %v1962 = vadd.s32 %v1938, %v1935
      %v1963 = vadd.s32 %v1938, %v1936
      %v1964 = vadd.s32 %v1938, %v1937
      %vm1965 = vcmp.lt.s32.totalorder %v1939, 203
      %vm1966 = vcmp.lt.s32.totalorder %v1940, 203
      %vm1967 = vcmp.lt.s32.totalorder %v1941, 203
      %vm1968 = vcmp.lt.s32.totalorder %v1942, 203
      %vm1969 = vcmp.lt.s32.totalorder %v1943, 203
      %vm1970 = vcmp.lt.s32.totalorder %v1944, 203
      %vm1971 = vcmp.lt.s32.totalorder %v1945, 203
      %vm1972 = vcmp.lt.s32.totalorder %v1946, 203
      %vm1973 = vcmp.lt.s32.totalorder %v1947, 203
      %vm1974 = vcmp.lt.s32.totalorder %v1948, 203
      %vm1975 = vcmp.lt.s32.totalorder %v1949, 203
      %vm1976 = vcmp.lt.s32.totalorder %v1950, 203
      %vm1977 = vcmp.lt.s32.totalorder %v1951, 203
      %vm1978 = vcmp.lt.s32.totalorder %v1952, 203
      %vm1979 = vcmp.lt.s32.totalorder %v1953, 203
      %vm1980 = vcmp.lt.s32.totalorder %v1954, 203
      %vm1981 = vcmp.lt.s32.totalorder %v1955, 203
      %vm1982 = vcmp.lt.s32.totalorder %v1956, 203
      %vm1983 = vcmp.lt.s32.totalorder %v1957, 203
      %vm1984 = vcmp.lt.s32.totalorder %v1958, 203
      %vm1985 = vcmp.lt.s32.totalorder %v1959, 203
      %vm1986 = vcmp.lt.s32.totalorder %v1960, 203
      %vm1987 = vcmp.lt.s32.totalorder %v1961, 203
      %vm1988 = vcmp.lt.s32.totalorder %v1962, 203
      %vm1989 = vcmp.lt.s32.totalorder %v1963, 203
      %vm1990 = vcmp.lt.s32.totalorder %v1964, 203
      %v1991 = vsel %vm1965, %v1884, -inf
      %v1992 = vsel %vm1966, %v1885, -inf
      %v1993 = vsel %vm1967, %v1886, -inf
      %v1994 = vsel %vm1968, %v1887, -inf
      %v1995 = vsel %vm1969, %v1888, -inf
      %v1996 = vsel %vm1970, %v1889, -inf
      %v1997 = vsel %vm1971, %v1890, -inf
      %v1998 = vsel %vm1972, %v1891, -inf
      %v1999 = vsel %vm1973, %v1892, -inf
      %v2000 = vsel %vm1974, %v1893, -inf
      %v2001 = vsel %vm1975, %v1894, -inf
      %v2002 = vsel %vm1976, %v1895, -inf
      %v2003 = vsel %vm1977, %v1896, -inf
      %v2004 = vsel %vm1978, %v1897, -inf
      %v2005 = vsel %vm1979, %v1898, -inf
      %v2006 = vsel %vm1980, %v1899, -inf
      %v2007 = vsel %vm1981, %v1900, -inf
      %v2008 = vsel %vm1982, %v1901, -inf
      %v2009 = vsel %vm1983, %v1902, -inf
      %v2010 = vsel %vm1984, %v1903, -inf
      %v2011 = vsel %vm1985, %v1904, -inf
      %v2012 = vsel %vm1986, %v1905, -inf
      %v2013 = vsel %vm1987, %v1906, -inf
      %v2014 = vsel %vm1988, %v1907, -inf
      %v2015 = vsel %vm1989, %v1908, -inf
      %v2016 = vsel %vm1990, %v1909, -inf
      %v2017 = vsel %vm1707, %v1991, -inf
      %v2018 = vsel %vm1707, %v1992, -inf
      %v2019 = vsel %vm1707, %v1993, -inf
      %v2020 = vsel %vm1707, %v1994, -inf
      %v2021 = vsel %vm1707, %v1995, -inf
      %v2022 = vmax.f32 %v2017, %v2021
      %v2023 = vsel %vm1707, %v1996, -inf
      %v2024 = vmax.f32 %v2018, %v2023
      %v2025 = vsel %vm1707, %v1997, -inf
      %v2026 = vmax.f32 %v2019, %v2025
      %v2027 = vsel %vm1707, %v1998, -inf
      %v2028 = vmax.f32 %v2020, %v2027
      %v2029 = vsel %vm1707, %v1999, -inf
      %v2030 = vmax.f32 %v2022, %v2029
      %v2031 = vsel %vm1707, %v2000, -inf
      %v2032 = vmax.f32 %v2024, %v2031
      %v2033 = vsel %vm1707, %v2001, -inf
      %v2034 = vmax.f32 %v2026, %v2033
      %v2035 = vsel %vm1707, %v2002, -inf
      %v2036 = vmax.f32 %v2028, %v2035
      %v2037 = vsel %vm1707, %v2003, -inf
      %v2038 = vmax.f32 %v2030, %v2037
      %v2039 = vsel %vm1707, %v2004, -inf
      %v2040 = vmax.f32 %v2032, %v2039
      %v2041 = vsel %vm1707, %v2005, -inf
      %v2042 = vmax.f32 %v2034, %v2041
      %v2043 = vsel %vm1707, %v2006, -inf
      %v2044 = vmax.f32 %v2036, %v2043
      %v2045 = vsel %vm1707, %v2007, -inf
      %v2046 = vmax.f32 %v2038, %v2045
      %v2047 = vsel %vm1707, %v2008, -inf
      %v2048 = vmax.f32 %v2040, %v2047
      %v2049 = vsel %vm1707, %v2009, -inf
      %v2050 = vmax.f32 %v2042, %v2049
      %v2051 = vsel %vm1707, %v2010, -inf
      %v2052 = vmax.f32 %v2044, %v2051
      %v2053 = vsel %vm1707, %v2011, -inf
      %v2054 = vmax.f32 %v2046, %v2053
      %v2055 = vsel %vm1707, %v2012, -inf
      %v2056 = vmax.f32 %v2048, %v2055
      %v2057 = vsel %vm1707, %v2013, -inf
      %v2058 = vmax.f32 %v2050, %v2057
      %v2059 = vsel %vm1707, %v2014, -inf
      %v2060 = vmax.f32 %v2052, %v2059
      %v2061 = vsel %vm1707, %v2015, -inf
      %v2062 = vmax.f32 %v2054, %v2061
      %v2063 = vsel %vm1707, %v2016, -inf
      %v2064 = vmax.f32 %v2056, %v2063
      %v2065 = vmax.f32 %v2062, %v2064
      %v2066 = vmax.f32 %v2058, %v2060
      %v2067 = vmax.f32 %v2065, %v2066
      %v2068 = vrot.slane %v2067, 4
      %v2069 = vmax.f32 %v2067, %v2068
      %v2070 = vrot.slane %v2069, 2
      %v2071 = vmax.f32 %v2069, %v2070
      %v2072 = vrot.slane %v2071, 1
      %v2073 = vmax.f32 %v2071, %v2072
      %p2074 = scmp.eq.s32.totalorder %s36, 0
      // Predicated region
      $region101: #{_lambda_.8} parent=99 // pred_check
        %p2075 = pneg %p2074
      $region102: #{_lambda_.8} parent=99 // pred_check_branch
        %2077 = sbr.rel (%p2075) target = $region104
      $region103: #{_lambda_.8} parent=99 // pred_region
        %vm2078 = vcmask 253952
        %2079 = vst.msk [vmem:[#allocation2] sm:$0x1] %vm2078, %v2073
      $region104: #{_lambda_.8} parent=99 // pred_fallthru
        _
      %p2080 = scmp.gt.s32.totalorder %s36, 0
      // Predicated region
      $region105: #{_lambda_.8} parent=99 // pred_check
        %p2081 = pneg %p2080
      $region106: #{_lambda_.8} parent=99 // pred_check_branch
        %2083 = sbr.rel (%p2081) target = $region108
      $region107: #{_lambda_.8} parent=99 // pred_region
        %v2084 = vld [vmem:[#allocation2] sm:$0x1]
        %v2085 = vmax.f32 %v2084, %v2073
        %vm2086 = vcmask 253952
        %2087 = vst.msk [vmem:[#allocation2] sm:$0x1] %vm2086, %v2085
      $region108: #{_lambda_.8} parent=99 // pred_fallthru
        _
      // Predicated region
      $region109: #{_lambda_.8} parent=99 // pred_check
        %p2088 = pneg %p2074
      $region110: #{_lambda_.8} parent=99 // pred_check_branch
        %2090 = sbr.rel (%p2088) target = $region112
      $region111: #{_lambda_.8} parent=99 // pred_region
        %v2091 = vld [vmem:[#allocation2] sm:$0x1]
        %v2092 = vld [vmem:[%s12] sm:$0xff]
        %v2093 = vld [vmem:[%s12 + $0x8] sm:$0xff]
        %v2094 = vld [vmem:[%s12 + $0x10] sm:$0xff]
        %v2095 = vld [vmem:[%s12 + $0x18] sm:$0xff]
        %v2096 = vld [vmem:[%s13] sm:$0x1]
        %v2097 = vld [vmem:[%s14] sm:$0xff]
        %v2098 = vld [vmem:[%s14 + $0x8] sm:$0xff]
        %v2099 = vld [vmem:[%s14 + $0x10] sm:$0xff]
        %v2100 = vld [vmem:[%s14 + $0x18] sm:$0xff]
        %v2101 = vld [vmem:[%s15] sm:$0x1]
        %v2102 = vld [vmem:[%s16] sm:$0xff]
        %v2103 = vld [vmem:[%s16 + $0x8] sm:$0xff]
        %v2104 = vld [vmem:[%s16 + $0x10] sm:$0xff]
        %v2105 = vld [vmem:[%s16 + $0x18] sm:$0xff]
        %v2106 = vld [vmem:[%s17] sm:$0x1]
        %v2107 = vld [vmem:[%s18] sm:$0xff]
        %v2108 = vld [vmem:[%s18 + $0x8] sm:$0xff]
        %v2109 = vld [vmem:[%s18 + $0x10] sm:$0xff]
        %v2110 = vld [vmem:[%s18 + $0x18] sm:$0xff]
        %v2111 = vld [vmem:[%s19] sm:$0x1]
        %v2113 = vsel %vm1707, %v2091, 0
        %2115 = vmatprep.subr.mxu0 0.0
        %2116 = vmatpush1.msra.mxu0 0.0
        %2117 = vmatprep.subr.mxu0 0.0
        %2118 = vmatpush1.msra.mxu0 0.0
        %2119 = vmatprep.subr.mxu0 0.0
        %2120 = vmatpush1.msra.mxu0 0.0
        %2121 = vmatprep.subr.mxu0 0.0
        %2122 = vmatpush1.msra.mxu0 0.0
        %2123 = vmatprep.subr.mxu0 0.0
        %2124 = vmatpush1.msra.mxu0 0.0
        %2125 = vmatprep.subr.mxu0 0.0
        %2126 = vmatpush1.msra.mxu0 0.0
        %2127 = vmatprep.subr.mxu0 0.0
        %2128 = vmatpush1.msra.mxu0 0.0
        %2129 = vmatprep.subr.mxu0 0.0
        %2130 = vmatpush1.msra.mxu0 0.0
        %2131 = vmatprep.subr.mxu0 0.0
        %2132 = vmatpush1.msra.mxu0 0.0
        %2133 = vmatprep.subr.mxu0 0.0
        %2134 = vmatpush1.msra.mxu0 0.0
        %2135 = vmatprep.subr.mxu0 0.0
        %2136 = vmatpush1.msra.mxu0 0.0
        %2137 = vmatprep.subr.mxu0 0.0
        %2138 = vmatpush1.msra.mxu0 0.0
        %2139 = vmatprep.subr.mxu0 0.0
        %2140 = vmatpush1.msra.mxu0 %v2095
        %2141 = vmatprep.subr.mxu0 0.0
        %2142 = vmatpush1.msra.mxu0 %v2094
        %2143 = vmatprep.subr.mxu0 0.0
        %2144 = vmatpush1.msra.mxu0 %v2093
        %2145 = vmatprep.subr.mxu0 0.0
        %2146 = vmatpush1.msra.mxu0 %v2092
        %2147 = vmatprep.subr.mxu0 0.0
        %2148 = vmatpush2.msra.mxu0 0.0
        %2149 = vmatprep.subr.mxu0 0.0
        %2150 = vmatpush2.msra.mxu0 0.0
        %2151 = vmatprep.subr.mxu0 0.0
        %2152 = vmatpush2.msra.mxu0 0.0
        %2153 = vmatprep.subr.mxu0 0.0
        %2154 = vmatpush2.msra.mxu0 0.0
        %2155 = vmatprep.subr.mxu0 0.0
        %2156 = vmatpush2.msra.mxu0 0.0
        %2157 = vmatprep.subr.mxu0 0.0
        %2158 = vmatpush2.msra.mxu0 0.0
        %2159 = vmatprep.subr.mxu0 0.0
        %2160 = vmatpush2.msra.mxu0 0.0
        %2161 = vmatprep.subr.mxu0 0.0
        %2162 = vmatpush2.msra.mxu0 0.0
        %2163 = vmatprep.subr.mxu0 0.0
        %2164 = vmatpush2.msra.mxu0 0.0
        %2165 = vmatprep.subr.mxu0 0.0
        %2166 = vmatpush2.msra.mxu0 0.0
        %2167 = vmatprep.subr.mxu0 0.0
        %2168 = vmatpush2.msra.mxu0 0.0
        %2169 = vmatprep.subr.mxu0 0.0
        %2170 = vmatpush2.msra.mxu0 0.0
        %2171 = vmatprep.subr.mxu0 0.0
        %2172 = vmatpush2.msra.mxu0 0.0
        %2173 = vmatprep.subr.mxu0 0.0
        %2174 = vmatpush2.msra.mxu0 0.0
        %2175 = vmatprep.subr.mxu0 0.0
        %2176 = vmatpush2.msra.mxu0 0.0
        %2177 = vmatprep.subr.mxu0 0.0
        %2178 = vmatpush2.msra.mxu0 0.0
        %2179 = vmatprep.mubr.f32.mxu0 0.0
        %2180 = vmatmul.mubr.f32.gmra.mxu0 %v2113
        %v2181 = vpop.f32.mrf.mxu0
        %v2182 = vadd.f32 %v2096, %v2181
        %v2183 = vpop.f32.mrf.mxu0
        %2184 = vdwg.mxu0
        %v2185 = vmax.f32 %v2182, 0.0
        %v2187 = vsel %vm1707, %v2185, 0
        %2189 = vmatprep.subr.mxu0 0.0
        %2190 = vmatpush1.msra.mxu0 0.0
        %2191 = vmatprep.subr.mxu0 0.0
        %2192 = vmatpush1.msra.mxu0 0.0
        %2193 = vmatprep.subr.mxu0 0.0
        %2194 = vmatpush1.msra.mxu0 0.0
        %2195 = vmatprep.subr.mxu0 0.0
        %2196 = vmatpush1.msra.mxu0 0.0
        %2197 = vmatprep.subr.mxu0 0.0
        %2198 = vmatpush1.msra.mxu0 0.0
        %2199 = vmatprep.subr.mxu0 0.0
        %2200 = vmatpush1.msra.mxu0 0.0
        %2201 = vmatprep.subr.mxu0 0.0
        %2202 = vmatpush1.msra.mxu0 0.0
        %2203 = vmatprep.subr.mxu0 0.0
        %2204 = vmatpush1.msra.mxu0 0.0
        %2205 = vmatprep.subr.mxu0 0.0
        %2206 = vmatpush1.msra.mxu0 0.0
        %2207 = vmatprep.subr.mxu0 0.0
        %2208 = vmatpush1.msra.mxu0 0.0
        %2209 = vmatprep.subr.mxu0 0.0
        %2210 = vmatpush1.msra.mxu0 0.0
        %2211 = vmatprep.subr.mxu0 0.0
        %2212 = vmatpush1.msra.mxu0 0.0
        %2213 = vmatprep.subr.mxu0 0.0
        %2214 = vmatpush1.msra.mxu0 %v2100
        %2215 = vmatprep.subr.mxu0 0.0
        %2216 = vmatpush1.msra.mxu0 %v2099
        %2217 = vmatprep.subr.mxu0 0.0
        %2218 = vmatpush1.msra.mxu0 %v2098
        %2219 = vmatprep.subr.mxu0 0.0
        %2220 = vmatpush1.msra.mxu0 %v2097
        %2221 = vmatprep.subr.mxu0 0.0
        %2222 = vmatpush2.msra.mxu0 0.0
        %2223 = vmatprep.subr.mxu0 0.0
        %2224 = vmatpush2.msra.mxu0 0.0
        %2225 = vmatprep.subr.mxu0 0.0
        %2226 = vmatpush2.msra.mxu0 0.0
        %2227 = vmatprep.subr.mxu0 0.0
        %2228 = vmatpush2.msra.mxu0 0.0
        %2229 = vmatprep.subr.mxu0 0.0
        %2230 = vmatpush2.msra.mxu0 0.0
        %2231 = vmatprep.subr.mxu0 0.0
        %2232 = vmatpush2.msra.mxu0 0.0
        %2233 = vmatprep.subr.mxu0 0.0
        %2234 = vmatpush2.msra.mxu0 0.0
        %2235 = vmatprep.subr.mxu0 0.0
        %2236 = vmatpush2.msra.mxu0 0.0
        %2237 = vmatprep.subr.mxu0 0.0
        %2238 = vmatpush2.msra.mxu0 0.0
        %2239 = vmatprep.subr.mxu0 0.0
        %2240 = vmatpush2.msra.mxu0 0.0
        %2241 = vmatprep.subr.mxu0 0.0
        %2242 = vmatpush2.msra.mxu0 0.0
        %2243 = vmatprep.subr.mxu0 0.0
        %2244 = vmatpush2.msra.mxu0 0.0
        %2245 = vmatprep.subr.mxu0 0.0
        %2246 = vmatpush2.msra.mxu0 0.0
        %2247 = vmatprep.subr.mxu0 0.0
        %2248 = vmatpush2.msra.mxu0 0.0
        %2249 = vmatprep.subr.mxu0 0.0
        %2250 = vmatpush2.msra.mxu0 0.0
        %2251 = vmatprep.subr.mxu0 0.0
        %2252 = vmatpush2.msra.mxu0 0.0
        %2253 = vmatprep.mubr.f32.mxu0 0.0
        %2254 = vmatmul.mubr.f32.gmra.mxu0 %v2187
        %v2255 = vpop.f32.mrf.mxu0
        %v2256 = vadd.f32 %v2101, %v2255
        %v2257 = vpop.f32.mrf.mxu0
        %2258 = vdwg.mxu0
        %v2259 = vmax.f32 %v2256, 0.0
        %v2261 = vsel %vm1707, %v2259, 0
        %2263 = vmatprep.subr.mxu0 0.0
        %2264 = vmatpush1.msra.mxu0 0.0
        %2265 = vmatprep.subr.mxu0 0.0
        %2266 = vmatpush1.msra.mxu0 0.0
        %2267 = vmatprep.subr.mxu0 0.0
        %2268 = vmatpush1.msra.mxu0 0.0
        %2269 = vmatprep.subr.mxu0 0.0
        %2270 = vmatpush1.msra.mxu0 0.0
        %2271 = vmatprep.subr.mxu0 0.0
        %2272 = vmatpush1.msra.mxu0 0.0
        %2273 = vmatprep.subr.mxu0 0.0
        %2274 = vmatpush1.msra.mxu0 0.0
        %2275 = vmatprep.subr.mxu0 0.0
        %2276 = vmatpush1.msra.mxu0 0.0
        %2277 = vmatprep.subr.mxu0 0.0
        %2278 = vmatpush1.msra.mxu0 0.0
        %2279 = vmatprep.subr.mxu0 0.0
        %2280 = vmatpush1.msra.mxu0 0.0
        %2281 = vmatprep.subr.mxu0 0.0
        %2282 = vmatpush1.msra.mxu0 0.0
        %2283 = vmatprep.subr.mxu0 0.0
        %2284 = vmatpush1.msra.mxu0 0.0
        %2285 = vmatprep.subr.mxu0 0.0
        %2286 = vmatpush1.msra.mxu0 0.0
        %2287 = vmatprep.subr.mxu0 0.0
        %2288 = vmatpush1.msra.mxu0 %v2105
        %2289 = vmatprep.subr.mxu0 0.0
        %2290 = vmatpush1.msra.mxu0 %v2104
        %2291 = vmatprep.subr.mxu0 0.0
        %2292 = vmatpush1.msra.mxu0 %v2103
        %2293 = vmatprep.subr.mxu0 0.0
        %2294 = vmatpush1.msra.mxu0 %v2102
        %2295 = vmatprep.subr.mxu0 0.0
        %2296 = vmatpush2.msra.mxu0 0.0
        %2297 = vmatprep.subr.mxu0 0.0
        %2298 = vmatpush2.msra.mxu0 0.0
        %2299 = vmatprep.subr.mxu0 0.0
        %2300 = vmatpush2.msra.mxu0 0.0
        %2301 = vmatprep.subr.mxu0 0.0
        %2302 = vmatpush2.msra.mxu0 0.0
        %2303 = vmatprep.subr.mxu0 0.0
        %2304 = vmatpush2.msra.mxu0 0.0
        %2305 = vmatprep.subr.mxu0 0.0
        %2306 = vmatpush2.msra.mxu0 0.0
        %2307 = vmatprep.subr.mxu0 0.0
        %2308 = vmatpush2.msra.mxu0 0.0
        %2309 = vmatprep.subr.mxu0 0.0
        %2310 = vmatpush2.msra.mxu0 0.0
        %2311 = vmatprep.subr.mxu0 0.0
        %2312 = vmatpush2.msra.mxu0 0.0
        %2313 = vmatprep.subr.mxu0 0.0
        %2314 = vmatpush2.msra.mxu0 0.0
        %2315 = vmatprep.subr.mxu0 0.0
        %2316 = vmatpush2.msra.mxu0 0.0
        %2317 = vmatprep.subr.mxu0 0.0
        %2318 = vmatpush2.msra.mxu0 0.0
        %2319 = vmatprep.subr.mxu0 0.0
        %2320 = vmatpush2.msra.mxu0 0.0
        %2321 = vmatprep.subr.mxu0 0.0
        %2322 = vmatpush2.msra.mxu0 0.0
        %2323 = vmatprep.subr.mxu0 0.0
        %2324 = vmatpush2.msra.mxu0 0.0
        %2325 = vmatprep.subr.mxu0 0.0
        %2326 = vmatpush2.msra.mxu0 0.0
        %2327 = vmatprep.mubr.f32.mxu0 0.0
        %2328 = vmatmul.mubr.f32.gmra.mxu0 %v2261
        %v2329 = vpop.f32.mrf.mxu0
        %v2330 = vadd.f32 %v2106, %v2329
        %v2331 = vpop.f32.mrf.mxu0
        %2332 = vdwg.mxu0
        %v2333 = vadd.f32 %v2182, %v2330
        %vm2334 = vcmp.gt.f32.partialorder %v2333, 0.0
        %v2335 = vmul.f32 %v2333, 0.2
        %v2336 = vsel %vm2334, %v2333, %v2335
        %v2338 = vsel %vm1707, %v2336, 0
        %2340 = vmatprep.subr.mxu0 0.0
        %2341 = vmatpush1.msra.mxu0 0.0
        %2342 = vmatprep.subr.mxu0 0.0
        %2343 = vmatpush1.msra.mxu0 0.0
        %2344 = vmatprep.subr.mxu0 0.0
        %2345 = vmatpush1.msra.mxu0 0.0
        %2346 = vmatprep.subr.mxu0 0.0
        %2347 = vmatpush1.msra.mxu0 0.0
        %2348 = vmatprep.subr.mxu0 0.0
        %2349 = vmatpush1.msra.mxu0 0.0
        %2350 = vmatprep.subr.mxu0 0.0
        %2351 = vmatpush1.msra.mxu0 0.0
        %2352 = vmatprep.subr.mxu0 0.0
        %2353 = vmatpush1.msra.mxu0 0.0
        %2354 = vmatprep.subr.mxu0 0.0
        %2355 = vmatpush1.msra.mxu0 0.0
        %2356 = vmatprep.subr.mxu0 0.0
        %2357 = vmatpush1.msra.mxu0 0.0
        %2358 = vmatprep.subr.mxu0 0.0
        %2359 = vmatpush1.msra.mxu0 0.0
        %2360 = vmatprep.subr.mxu0 0.0
        %2361 = vmatpush1.msra.mxu0 0.0
        %2362 = vmatprep.subr.mxu0 0.0
        %2363 = vmatpush1.msra.mxu0 0.0
        %2364 = vmatprep.subr.mxu0 0.0
        %2365 = vmatpush1.msra.mxu0 %v2110
        %2366 = vmatprep.subr.mxu0 0.0
        %2367 = vmatpush1.msra.mxu0 %v2109
        %2368 = vmatprep.subr.mxu0 0.0
        %2369 = vmatpush1.msra.mxu0 %v2108
        %2370 = vmatprep.subr.mxu0 0.0
        %2371 = vmatpush1.msra.mxu0 %v2107
        %2372 = vmatprep.subr.mxu0 0.0
        %2373 = vmatpush2.msra.mxu0 0.0
        %2374 = vmatprep.subr.mxu0 0.0
        %2375 = vmatpush2.msra.mxu0 0.0
        %2376 = vmatprep.subr.mxu0 0.0
        %2377 = vmatpush2.msra.mxu0 0.0
        %2378 = vmatprep.subr.mxu0 0.0
        %2379 = vmatpush2.msra.mxu0 0.0
        %2380 = vmatprep.subr.mxu0 0.0
        %2381 = vmatpush2.msra.mxu0 0.0
        %2382 = vmatprep.subr.mxu0 0.0
        %2383 = vmatpush2.msra.mxu0 0.0
        %2384 = vmatprep.subr.mxu0 0.0
        %2385 = vmatpush2.msra.mxu0 0.0
        %2386 = vmatprep.subr.mxu0 0.0
        %2387 = vmatpush2.msra.mxu0 0.0
        %2388 = vmatprep.subr.mxu0 0.0
        %2389 = vmatpush2.msra.mxu0 0.0
        %2390 = vmatprep.subr.mxu0 0.0
        %2391 = vmatpush2.msra.mxu0 0.0
        %2392 = vmatprep.subr.mxu0 0.0
        %2393 = vmatpush2.msra.mxu0 0.0
        %2394 = vmatprep.subr.mxu0 0.0
        %2395 = vmatpush2.msra.mxu0 0.0
        %2396 = vmatprep.subr.mxu0 0.0
        %2397 = vmatpush2.msra.mxu0 0.0
        %2398 = vmatprep.subr.mxu0 0.0
        %2399 = vmatpush2.msra.mxu0 0.0
        %2400 = vmatprep.subr.mxu0 0.0
        %2401 = vmatpush2.msra.mxu0 0.0
        %2402 = vmatprep.subr.mxu0 0.0
        %2403 = vmatpush2.msra.mxu0 0.0
        %2404 = vmatprep.mubr.f32.mxu0 0.0
        %2405 = vmatmul.mubr.f32.gmra.mxu0 %v2338
        %v2406 = vpop.f32.mrf.mxu0
        %v2407 = vadd.f32 %v2111, %v2406
        %v2408 = vpop.f32.mrf.mxu0
        %2409 = vdwg.mxu0
        %v2410 = vmul.f32 %v2407, 1.442695
        %v2411 = vpow.pop %v2410
        %v2412 = vld [vmem:[%s750] sm:$0x1]
        %v2414 = vlaneseq
        %v2415 = vshrl.u32 %v2414, 7
        %v2416 = vsub.s32 0, %v2415
        %v2417 = vrot.slane %v2412, %v2416
        %2418 = vrot.lane.b32.xlu0 %v2417, 8
        %v2419 = vpop.permute.xlu0 %2418
        %v2421 = vmul.f32 %v2411, %v2419
        %2423 = vrot.lane.b32.xlu0 %v2421, 120
        %v2424 = vpop.permute.xlu0 %2423
        %v2426 = vadd.f32 %v2407, %v2424
        %2428 = vrot.lane.b32.xlu0 %v2426, 16
        %v2429 = vpop.permute.xlu0 %2428
        %vm2431 = vcmask 64512
        %v2432 = vsel %vm2431, %v2407, %v2411
        %v2433 = vsel %vm1146, %v2432, %v2429
        %vm2434 = vcmask 188416
        %2435 = vst.msk [vmem:[%s753] sm:$0x1] %vm2434, %v2433
      $region112: #{_lambda_.8} parent=99 // pred_fallthru
        _
      %p2436 = scmp.lt.s32.totalorder %s35, 1
      %s2437 = scalar_select %p2436, %s35, 1
      %s2438 = scalar_lea.vmem %s20, %s2437
      // Predicated region
      $region113: #{_lambda_.8} parent=99 // pred_check
        %p2439 = pneg %p512
      $region114: #{_lambda_.8} parent=99 // pred_check_branch
        %2441 = sbr.rel (%p2439) target = $region116
      $region115: #{_lambda_.8} parent=99 // pred_region
        _
      $region116: #{_lambda_.8} parent=99 // pred_fallthru
        _
    $region100: #{_lambda_.8} parent=5 // pred_fallthru
      _
    %p2442 = scmp.le.s32.totalorder 2, %s26
    // Predicated region
    $region117: #{_lambda_.8} parent=5 // pred_check
      %p2443 = pneg %p2442
    $region118: #{_lambda_.8} parent=5 // pred_check_branch
      %2445 = sbr.rel (%p2443) target = $region120
    $region119: #{_lambda_.8} parent=5 // pred_region
      %s2446 = ssub.s32 %s26, 2
      // Predicated region
      $region121: #{_lambda_.8} parent=119 // pred_check
        %p2447 = pneg %p518
      $region122: #{_lambda_.8} parent=119 // pred_check_branch
        %2449 = sbr.rel (%p2447) target = $region124
      $region123: #{_lambda_.8} parent=119 // pred_region
        %p2450 = scmp.lt.s32.totalorder %s37, 1
        %s2451 = scalar_select %p2450, %s37, 1
        %s2452 = scalar_lea.vmem %s20, %s2451
      $region124: #{_lambda_.8} parent=119 // pred_fallthru
        _
    $region120: #{_lambda_.8} parent=5 // pred_fallthru
      _
  $region6: #{_lambda_.8} parent=0 // loop_footer
    %s30 = sadd.s32 1, %s26
  $region7: #{_lambda_.8} parent=0 // loop_footer_branch
    %25 = sbr.rel target = $region3
  $region8: #{_lambda_.8} parent=0 // loop_exit
    _

// kernel: _lambda_.9
$region0: #{_lambda_.9}
  #allocation0 [shape = 'u32[]', space=smem, size = 0x4, offset = 0x4, fixed_abs, tag = 'smem constant byte address 0x4 - core index']
  #allocation1 [shape = 'u32[144,128]{1,0:T(1,128)}', space=vmem, size = 0x12000, scoped, tag = 'internal scratch']
  #allocation2 [shape = 'f32[1,1]{1,0:T(1,128)S(1)}', space=vmem, size = 0x200, scoped, tag = 'scoped memory for _lambda_.9']
  %s0 = inlined_call_operand.vmem [shape: f32[2,208,3], index: 0, kind: input, shape index: {}]
  %s1 = inlined_call_operand.vmem [shape: bf16[2,208,16], index: 1, kind: input, shape index: {}]
  %s2 = inlined_call_operand.vmem [shape: f32[2,1,16], index: 2, kind: input, shape index: {}]
  %s3 = inlined_call_operand.vmem [shape: f32[2,1,8], index: 3, kind: input, shape index: {}]
  %s4 = inlined_call_operand.vmem [shape: bf16[3,32], index: 4, kind: input, shape index: {}]
  %s5 = inlined_call_operand.vmem [shape: bf16[16,32], index: 5, kind: input, shape index: {}]
  %s6 = inlined_call_operand.vmem [shape: bf16[16,32], index: 6, kind: input, shape index: {}]
  %s7 = inlined_call_operand.vmem [shape: bf16[8,32], index: 7, kind: input, shape index: {}]
  %s8 = inlined_call_operand.vmem [shape: f32[1,32], index: 8, kind: input, shape index: {}]
  %s9 = inlined_call_operand.vmem [shape: bf16[32,32], index: 9, kind: input, shape index: {}]
  %s10 = inlined_call_operand.vmem [shape: f32[1,32], index: 10, kind: input, shape index: {}]
  %s11 = inlined_call_operand.vmem [shape: bf16[32,1], index: 11, kind: input, shape index: {}]
  %s12 = inlined_call_operand.<no memory space> [shape: f32[1,1], index: 12, kind: input, shape index: {}]
  %s13 = inlined_call_operand.vmem [shape: bf16[3,32], index: 13, kind: input, shape index: {}]
  %s14 = inlined_call_operand.vmem [shape: bf16[16,32], index: 14, kind: input, shape index: {}]
  %s15 = inlined_call_operand.vmem [shape: bf16[16,32], index: 15, kind: input, shape index: {}]
  %s16 = inlined_call_operand.vmem [shape: bf16[8,32], index: 16, kind: input, shape index: {}]
  %s17 = inlined_call_operand.vmem [shape: bf16[1,32], index: 17, kind: input, shape index: {}]
  %s18 = inlined_call_operand.vmem [shape: f32[1,32], index: 18, kind: input, shape index: {}]
  %s19 = inlined_call_operand.vmem [shape: bf16[32,32], index: 19, kind: input, shape index: {}]
  %s20 = inlined_call_operand.vmem [shape: f32[1,32], index: 20, kind: input, shape index: {}]
  %s21 = inlined_call_operand.vmem [shape: bf16[32,3], index: 21, kind: input, shape index: {}]
  %s22 = inlined_call_operand.vmem [shape: f32[1,3], index: 22, kind: input, shape index: {}]
  %s23 = inlined_call_operand.vmem [shape: f32[2,208,4], index: 23, kind: output, shape index: {}]
  %s24 = sld [smem:[#allocation0]]
  $region125: #{_lambda_.9} parent=0
    _
  %s26 = ssub.s32 1, %s24
  %s27 = scalar_select 0, %s26, %s24
  %v28 = vstv %s12
  %29 = vst [vmem:[#allocation2] sm:$0x1] %v28
  loop: start=0, step=1, limit=4
  $region2: #{_lambda_.9} parent=0 // loop_pre_header
    _
  $region3: #{_lambda_.9} parent=0 // loop_header
    %s31 = sphi 0, %s35
    %p32 = scmp.ge.s32.totalorder %s31, 4
    %s38 = sphi 0, %s50
    %s39 = sphi 0, %s46
    %s40 = sphi 0, %s38
    %s41 = sphi 0, %s39
    %s42 = sphi 0, %s40
    %s43 = sphi 0, %s41
    %s55 = sphi 0, %s57
    %s58 = sphi 0, %s55
    %s59 = sphi 0, %s58
    %s75 = sphi 0, %s59
    %s83 = sphi 0, %s85
    %s86 = sphi 0, %s83
    %s87 = sphi 0, %s86
    %s103 = sphi 0, %s87
    %s109 = sphi 0, %s111
    %s112 = sphi 0, %s109
    %s113 = sphi 0, %s112
    %s129 = sphi 0, %s113
    %s135 = sphi 0, %s137
    %s138 = sphi 0, %s135
    %s139 = sphi 0, %s138
    %s155 = sphi 0, %s139
    %s159 = sphi 0, %s159
    %s161 = sphi 0, %s159
    %s162 = sphi 0, %s161
    %s176 = sphi 0, %s162
    %s180 = sphi 0, %s180
    %s182 = sphi 0, %s180
    %s183 = sphi 0, %s182
    %s197 = sphi 0, %s183
    %s201 = sphi 0, %s201
    %s203 = sphi 0, %s201
    %s204 = sphi 0, %s203
    %s218 = sphi 0, %s204
    %s222 = sphi 0, %s222
    %s224 = sphi 0, %s222
    %s225 = sphi 0, %s224
    %s239 = sphi 0, %s225
    %s243 = sphi 0, %s243
    %s245 = sphi 0, %s243
    %s246 = sphi 0, %s245
    %s260 = sphi 0, %s246
    %s264 = sphi 0, %s264
    %s266 = sphi 0, %s264
    %s267 = sphi 0, %s266
    %s281 = sphi 0, %s267
    %s285 = sphi 0, %s285
    %s287 = sphi 0, %s285
    %s288 = sphi 0, %s287
    %s302 = sphi 0, %s288
    %s306 = sphi 0, %s306
    %s308 = sphi 0, %s306
    %s309 = sphi 0, %s308
    %s323 = sphi 0, %s309
    %s327 = sphi 0, %s327
    %s329 = sphi 0, %s327
    %s330 = sphi 0, %s329
    %s344 = sphi 0, %s330
    %s348 = sphi 0, %s348
    %s350 = sphi 0, %s348
    %s351 = sphi 0, %s350
    %s365 = sphi 0, %s351
    %s369 = sphi 0, %s369
    %s371 = sphi 0, %s369
    %s372 = sphi 0, %s371
    %s386 = sphi 0, %s372
    %s390 = sphi 0, %s390
    %s392 = sphi 0, %s390
    %s393 = sphi 0, %s392
    %s407 = sphi 0, %s393
    %s411 = sphi 0, %s411
    %s413 = sphi 0, %s411
    %s414 = sphi 0, %s413
    %s428 = sphi 0, %s414
    %s432 = sphi 0, %s432
    %s434 = sphi 0, %s432
    %s435 = sphi 0, %s434
    %s449 = sphi 0, %s435
    %s453 = sphi 0, %s453
    %s455 = sphi 0, %s453
    %s456 = sphi 0, %s455
    %s470 = sphi 0, %s456
    %s474 = sphi 0, %s474
    %s476 = sphi 0, %s474
    %s477 = sphi 0, %s476
    %s491 = sphi 0, %s477
    %s495 = sphi 0, %s495
    %s497 = sphi 0, %s495
    %s498 = sphi 0, %s497
    %s512 = sphi 0, %s498
    %s516 = sphi 0, %s516
    %s518 = sphi 0, %s516
    %s519 = sphi 0, %s518
    %s533 = sphi 0, %s519
    %s537 = sphi 0, %s537
    %s539 = sphi 0, %s537
    %s540 = sphi 0, %s539
    %s554 = sphi 0, %s540
    %s562 = sphi 0, %s564
    %s565 = sphi 0, %s562
    %s566 = sphi 0, %s565
    %s582 = sphi 0, %s566
  $region4: #{_lambda_.9} parent=0 // loop_header_branch
    %34 = sbr.rel (%p32) target = $region8
  $region5: #{_lambda_.9} parent=0 // loop_body
    %s36 = ssub.s32 %s31, 1
    %s37 = ssub.s32 %s31, 2
    %s44 = sadd.s32 1, %s39
    %p45 = scmp.ge.s32.totalorder %s44, 1
    %s46 = scalar_select %p45, 0, %s44
    %s47 = sadd.s32 1, %s38
    %s48 = scalar_select %p45, %s47, %s38
    %p49 = scmp.ge.s32.totalorder %s48, 2
    %s50 = scalar_select %p49, 0, %s48
    %s51 = ssub.s32 %s38, %s50
    %s52 = ssub.s32 %s39, %s46
    %s53 = sor.u32 %s51, %s52
    %p54 = scmp.eq.s32.totalorder %s53, 0
    %s56 = sadd.s32 %s55, 1
    %s57 = scalar_select %p54, %s55, %s56
    %p60 = pneg %p54
    %p61 = scmp.eq.s32.totalorder %s31, 1
    %p62 = por %p60, %p61
    %p63 = scmp.ne.s32.totalorder %s55, %s58
    %p64 = scmp.eq.s32.totalorder %s31, 0
    %p65 = por %p63, %p64
    %p66 = scmp.ne.s32.totalorder %s55, %s58
    %p67 = scmp.eq.s32.totalorder %s36, 1
    %p68 = por %p66, %p67
    %p69 = scmp.ne.s32.totalorder %s58, %s59
    %p70 = scmp.eq.s32.totalorder %s36, 0
    %p71 = por %p69, %p70
    %p72 = scmp.ne.s32.totalorder %s58, %s59
    %p73 = scmp.eq.s32.totalorder %s37, 1
    %p74 = por %p72, %p73
    %p76 = scmp.ne.s32.totalorder %s59, %s75
    %p77 = scmp.eq.s32.totalorder %s37, 0
    %p78 = por %p76, %p77
    %s79 = ssub.s32 %s38, %s50
    %s80 = ssub.s32 %s39, %s46
    %s81 = sor.u32 %s79, %s80
    %p82 = scmp.eq.s32.totalorder %s81, 0
    %s84 = sadd.s32 %s83, 1
    %s85 = scalar_select %p82, %s83, %s84
    %p88 = pneg %p82
    %p89 = scmp.eq.s32.totalorder %s31, 1
    %p90 = por %p88, %p89
    %p91 = scmp.ne.s32.totalorder %s83, %s86
    %p92 = scmp.eq.s32.totalorder %s31, 0
    %p93 = por %p91, %p92
    %p94 = scmp.ne.s32.totalorder %s83, %s86
    %p95 = scmp.eq.s32.totalorder %s36, 1
    %p96 = por %p94, %p95
    %p97 = scmp.ne.s32.totalorder %s86, %s87
    %p98 = scmp.eq.s32.totalorder %s36, 0
    %p99 = por %p97, %p98
    %p100 = scmp.ne.s32.totalorder %s86, %s87
    %p101 = scmp.eq.s32.totalorder %s37, 1
    %p102 = por %p100, %p101
    %p104 = scmp.ne.s32.totalorder %s87, %s103
    %p105 = scmp.eq.s32.totalorder %s37, 0
    %p106 = por %p104, %p105
    %s107 = ssub.s32 %s38, %s50
    %p108 = scmp.eq.s32.totalorder %s107, 0
    %s110 = sadd.s32 %s109, 1
    %s111 = scalar_select %p108, %s109, %s110
    %p114 = pneg %p108
    %p115 = scmp.eq.s32.totalorder %s31, 1
    %p116 = por %p114, %p115
    %p117 = scmp.ne.s32.totalorder %s109, %s112
    %p118 = scmp.eq.s32.totalorder %s31, 0
    %p119 = por %p117, %p118
    %p120 = scmp.ne.s32.totalorder %s109, %s112
    %p121 = scmp.eq.s32.totalorder %s36, 1
    %p122 = por %p120, %p121
    %p123 = scmp.ne.s32.totalorder %s112, %s113
    %p124 = scmp.eq.s32.totalorder %s36, 0
    %p125 = por %p123, %p124
    %p126 = scmp.ne.s32.totalorder %s112, %s113
    %p127 = scmp.eq.s32.totalorder %s37, 1
    %p128 = por %p126, %p127
    %p130 = scmp.ne.s32.totalorder %s113, %s129
    %p131 = scmp.eq.s32.totalorder %s37, 0
    %p132 = por %p130, %p131
    %s133 = ssub.s32 %s38, %s50
    %p134 = scmp.eq.s32.totalorder %s133, 0
    %s136 = sadd.s32 %s135, 1
    %s137 = scalar_select %p134, %s135, %s136
    %p140 = pneg %p134
    %p141 = scmp.eq.s32.totalorder %s31, 1
    %p142 = por %p140, %p141
    %p143 = scmp.ne.s32.totalorder %s135, %s138
    %p144 = scmp.eq.s32.totalorder %s31, 0
    %p145 = por %p143, %p144
    %p146 = scmp.ne.s32.totalorder %s135, %s138
    %p147 = scmp.eq.s32.totalorder %s36, 1
    %p148 = por %p146, %p147
    %p149 = scmp.ne.s32.totalorder %s138, %s139
    %p150 = scmp.eq.s32.totalorder %s36, 0
    %p151 = por %p149, %p150
    %p152 = scmp.ne.s32.totalorder %s138, %s139
    %p153 = scmp.eq.s32.totalorder %s37, 1
    %p154 = por %p152, %p153
    %p156 = scmp.ne.s32.totalorder %s139, %s155
    %p157 = scmp.eq.s32.totalorder %s37, 0
    %p158 = por %p156, %p157
    %s160 = sadd.s32 %s159, 1
    %p163 = scmp.eq.s32.totalorder %s31, 1
    %p164 = scmp.ne.s32.totalorder %s159, %s161
    %p165 = scmp.eq.s32.totalorder %s31, 0
    %p166 = por %p164, %p165
    %p167 = scmp.ne.s32.totalorder %s159, %s161
    %p168 = scmp.eq.s32.totalorder %s36, 1
    %p169 = por %p167, %p168
    %p170 = scmp.ne.s32.totalorder %s161, %s162
    %p171 = scmp.eq.s32.totalorder %s36, 0
    %p172 = por %p170, %p171
    %p173 = scmp.ne.s32.totalorder %s161, %s162
    %p174 = scmp.eq.s32.totalorder %s37, 1
    %p175 = por %p173, %p174
    %p177 = scmp.ne.s32.totalorder %s162, %s176
    %p178 = scmp.eq.s32.totalorder %s37, 0
    %p179 = por %p177, %p178
    %s181 = sadd.s32 %s180, 1
    %p184 = scmp.eq.s32.totalorder %s31, 1
    %p185 = scmp.ne.s32.totalorder %s180, %s182
    %p186 = scmp.eq.s32.totalorder %s31, 0
    %p187 = por %p185, %p186
    %p188 = scmp.ne.s32.totalorder %s180, %s182
    %p189 = scmp.eq.s32.totalorder %s36, 1
    %p190 = por %p188, %p189
    %p191 = scmp.ne.s32.totalorder %s182, %s183
    %p192 = scmp.eq.s32.totalorder %s36, 0
    %p193 = por %p191, %p192
    %p194 = scmp.ne.s32.totalorder %s182, %s183
    %p195 = scmp.eq.s32.totalorder %s37, 1
    %p196 = por %p194, %p195
    %p198 = scmp.ne.s32.totalorder %s183, %s197
    %p199 = scmp.eq.s32.totalorder %s37, 0
    %p200 = por %p198, %p199
    %s202 = sadd.s32 %s201, 1
    %p205 = scmp.eq.s32.totalorder %s31, 1
    %p206 = scmp.ne.s32.totalorder %s201, %s203
    %p207 = scmp.eq.s32.totalorder %s31, 0
    %p208 = por %p206, %p207
    %p209 = scmp.ne.s32.totalorder %s201, %s203
    %p210 = scmp.eq.s32.totalorder %s36, 1
    %p211 = por %p209, %p210
    %p212 = scmp.ne.s32.totalorder %s203, %s204
    %p213 = scmp.eq.s32.totalorder %s36, 0
    %p214 = por %p212, %p213
    %p215 = scmp.ne.s32.totalorder %s203, %s204
    %p216 = scmp.eq.s32.totalorder %s37, 1
    %p217 = por %p215, %p216
    %p219 = scmp.ne.s32.totalorder %s204, %s218
    %p220 = scmp.eq.s32.totalorder %s37, 0
    %p221 = por %p219, %p220
    %s223 = sadd.s32 %s222, 1
    %p226 = scmp.eq.s32.totalorder %s31, 1
    %p227 = scmp.ne.s32.totalorder %s222, %s224
    %p228 = scmp.eq.s32.totalorder %s31, 0
    %p229 = por %p227, %p228
    %p230 = scmp.ne.s32.totalorder %s222, %s224
    %p231 = scmp.eq.s32.totalorder %s36, 1
    %p232 = por %p230, %p231
    %p233 = scmp.ne.s32.totalorder %s224, %s225
    %p234 = scmp.eq.s32.totalorder %s36, 0
    %p235 = por %p233, %p234
    %p236 = scmp.ne.s32.totalorder %s224, %s225
    %p237 = scmp.eq.s32.totalorder %s37, 1
    %p238 = por %p236, %p237
    %p240 = scmp.ne.s32.totalorder %s225, %s239
    %p241 = scmp.eq.s32.totalorder %s37, 0
    %p242 = por %p240, %p241
    %s244 = sadd.s32 %s243, 1
    %p247 = scmp.eq.s32.totalorder %s31, 1
    %p248 = scmp.ne.s32.totalorder %s243, %s245
    %p249 = scmp.eq.s32.totalorder %s31, 0
    %p250 = por %p248, %p249
    %p251 = scmp.ne.s32.totalorder %s243, %s245
    %p252 = scmp.eq.s32.totalorder %s36, 1
    %p253 = por %p251, %p252
    %p254 = scmp.ne.s32.totalorder %s245, %s246
    %p255 = scmp.eq.s32.totalorder %s36, 0
    %p256 = por %p254, %p255
    %p257 = scmp.ne.s32.totalorder %s245, %s246
    %p258 = scmp.eq.s32.totalorder %s37, 1
    %p259 = por %p257, %p258
    %p261 = scmp.ne.s32.totalorder %s246, %s260
    %p262 = scmp.eq.s32.totalorder %s37, 0
    %p263 = por %p261, %p262
    %s265 = sadd.s32 %s264, 1
    %p268 = scmp.eq.s32.totalorder %s31, 1
    %p269 = scmp.ne.s32.totalorder %s264, %s266
    %p270 = scmp.eq.s32.totalorder %s31, 0
    %p271 = por %p269, %p270
    %p272 = scmp.ne.s32.totalorder %s264, %s266
    %p273 = scmp.eq.s32.totalorder %s36, 1
    %p274 = por %p272, %p273
    %p275 = scmp.ne.s32.totalorder %s266, %s267
    %p276 = scmp.eq.s32.totalorder %s36, 0
    %p277 = por %p275, %p276
    %p278 = scmp.ne.s32.totalorder %s266, %s267
    %p279 = scmp.eq.s32.totalorder %s37, 1
    %p280 = por %p278, %p279
    %p282 = scmp.ne.s32.totalorder %s267, %s281
    %p283 = scmp.eq.s32.totalorder %s37, 0
    %p284 = por %p282, %p283
    %s286 = sadd.s32 %s285, 1
    %p289 = scmp.eq.s32.totalorder %s31, 1
    %p290 = scmp.ne.s32.totalorder %s285, %s287
    %p291 = scmp.eq.s32.totalorder %s31, 0
    %p292 = por %p290, %p291
    %p293 = scmp.ne.s32.totalorder %s285, %s287
    %p294 = scmp.eq.s32.totalorder %s36, 1
    %p295 = por %p293, %p294
    %p296 = scmp.ne.s32.totalorder %s287, %s288
    %p297 = scmp.eq.s32.totalorder %s36, 0
    %p298 = por %p296, %p297
    %p299 = scmp.ne.s32.totalorder %s287, %s288
    %p300 = scmp.eq.s32.totalorder %s37, 1
    %p301 = por %p299, %p300
    %p303 = scmp.ne.s32.totalorder %s288, %s302
    %p304 = scmp.eq.s32.totalorder %s37, 0
    %p305 = por %p303, %p304
    %s307 = sadd.s32 %s306, 1
    %p310 = scmp.eq.s32.totalorder %s31, 1
    %p311 = scmp.ne.s32.totalorder %s306, %s308
    %p312 = scmp.eq.s32.totalorder %s31, 0
    %p313 = por %p311, %p312
    %p314 = scmp.ne.s32.totalorder %s306, %s308
    %p315 = scmp.eq.s32.totalorder %s36, 1
    %p316 = por %p314, %p315
    %p317 = scmp.ne.s32.totalorder %s308, %s309
    %p318 = scmp.eq.s32.totalorder %s36, 0
    %p319 = por %p317, %p318
    %p320 = scmp.ne.s32.totalorder %s308, %s309
    %p321 = scmp.eq.s32.totalorder %s37, 1
    %p322 = por %p320, %p321
    %p324 = scmp.ne.s32.totalorder %s309, %s323
    %p325 = scmp.eq.s32.totalorder %s37, 0
    %p326 = por %p324, %p325
    %s328 = sadd.s32 %s327, 1
    %p331 = scmp.eq.s32.totalorder %s31, 1
    %p332 = scmp.ne.s32.totalorder %s327, %s329
    %p333 = scmp.eq.s32.totalorder %s31, 0
    %p334 = por %p332, %p333
    %p335 = scmp.ne.s32.totalorder %s327, %s329
    %p336 = scmp.eq.s32.totalorder %s36, 1
    %p337 = por %p335, %p336
    %p338 = scmp.ne.s32.totalorder %s329, %s330
    %p339 = scmp.eq.s32.totalorder %s36, 0
    %p340 = por %p338, %p339
    %p341 = scmp.ne.s32.totalorder %s329, %s330
    %p342 = scmp.eq.s32.totalorder %s37, 1
    %p343 = por %p341, %p342
    %p345 = scmp.ne.s32.totalorder %s330, %s344
    %p346 = scmp.eq.s32.totalorder %s37, 0
    %p347 = por %p345, %p346
    %s349 = sadd.s32 %s348, 1
    %p352 = scmp.eq.s32.totalorder %s31, 1
    %p353 = scmp.ne.s32.totalorder %s348, %s350
    %p354 = scmp.eq.s32.totalorder %s31, 0
    %p355 = por %p353, %p354
    %p356 = scmp.ne.s32.totalorder %s348, %s350
    %p357 = scmp.eq.s32.totalorder %s36, 1
    %p358 = por %p356, %p357
    %p359 = scmp.ne.s32.totalorder %s350, %s351
    %p360 = scmp.eq.s32.totalorder %s36, 0
    %p361 = por %p359, %p360
    %p362 = scmp.ne.s32.totalorder %s350, %s351
    %p363 = scmp.eq.s32.totalorder %s37, 1
    %p364 = por %p362, %p363
    %p366 = scmp.ne.s32.totalorder %s351, %s365
    %p367 = scmp.eq.s32.totalorder %s37, 0
    %p368 = por %p366, %p367
    %s370 = sadd.s32 %s369, 1
    %p373 = scmp.eq.s32.totalorder %s31, 1
    %p374 = scmp.ne.s32.totalorder %s369, %s371
    %p375 = scmp.eq.s32.totalorder %s31, 0
    %p376 = por %p374, %p375
    %p377 = scmp.ne.s32.totalorder %s369, %s371
    %p378 = scmp.eq.s32.totalorder %s36, 1
    %p379 = por %p377, %p378
    %p380 = scmp.ne.s32.totalorder %s371, %s372
    %p381 = scmp.eq.s32.totalorder %s36, 0
    %p382 = por %p380, %p381
    %p383 = scmp.ne.s32.totalorder %s371, %s372
    %p384 = scmp.eq.s32.totalorder %s37, 1
    %p385 = por %p383, %p384
    %p387 = scmp.ne.s32.totalorder %s372, %s386
    %p388 = scmp.eq.s32.totalorder %s37, 0
    %p389 = por %p387, %p388
    %s391 = sadd.s32 %s390, 1
    %p394 = scmp.eq.s32.totalorder %s31, 1
    %p395 = scmp.ne.s32.totalorder %s390, %s392
    %p396 = scmp.eq.s32.totalorder %s31, 0
    %p397 = por %p395, %p396
    %p398 = scmp.ne.s32.totalorder %s390, %s392
    %p399 = scmp.eq.s32.totalorder %s36, 1
    %p400 = por %p398, %p399
    %p401 = scmp.ne.s32.totalorder %s392, %s393
    %p402 = scmp.eq.s32.totalorder %s36, 0
    %p403 = por %p401, %p402
    %p404 = scmp.ne.s32.totalorder %s392, %s393
    %p405 = scmp.eq.s32.totalorder %s37, 1
    %p406 = por %p404, %p405
    %p408 = scmp.ne.s32.totalorder %s393, %s407
    %p409 = scmp.eq.s32.totalorder %s37, 0
    %p410 = por %p408, %p409
    %s412 = sadd.s32 %s411, 1
    %p415 = scmp.eq.s32.totalorder %s31, 1
    %p416 = scmp.ne.s32.totalorder %s411, %s413
    %p417 = scmp.eq.s32.totalorder %s31, 0
    %p418 = por %p416, %p417
    %p419 = scmp.ne.s32.totalorder %s411, %s413
    %p420 = scmp.eq.s32.totalorder %s36, 1
    %p421 = por %p419, %p420
    %p422 = scmp.ne.s32.totalorder %s413, %s414
    %p423 = scmp.eq.s32.totalorder %s36, 0
    %p424 = por %p422, %p423
    %p425 = scmp.ne.s32.totalorder %s413, %s414
    %p426 = scmp.eq.s32.totalorder %s37, 1
    %p427 = por %p425, %p426
    %p429 = scmp.ne.s32.totalorder %s414, %s428
    %p430 = scmp.eq.s32.totalorder %s37, 0
    %p431 = por %p429, %p430
    %s433 = sadd.s32 %s432, 1
    %p436 = scmp.eq.s32.totalorder %s31, 1
    %p437 = scmp.ne.s32.totalorder %s432, %s434
    %p438 = scmp.eq.s32.totalorder %s31, 0
    %p439 = por %p437, %p438
    %p440 = scmp.ne.s32.totalorder %s432, %s434
    %p441 = scmp.eq.s32.totalorder %s36, 1
    %p442 = por %p440, %p441
    %p443 = scmp.ne.s32.totalorder %s434, %s435
    %p444 = scmp.eq.s32.totalorder %s36, 0
    %p445 = por %p443, %p444
    %p446 = scmp.ne.s32.totalorder %s434, %s435
    %p447 = scmp.eq.s32.totalorder %s37, 1
    %p448 = por %p446, %p447
    %p450 = scmp.ne.s32.totalorder %s435, %s449
    %p451 = scmp.eq.s32.totalorder %s37, 0
    %p452 = por %p450, %p451
    %s454 = sadd.s32 %s453, 1
    %p457 = scmp.eq.s32.totalorder %s31, 1
    %p458 = scmp.ne.s32.totalorder %s453, %s455
    %p459 = scmp.eq.s32.totalorder %s31, 0
    %p460 = por %p458, %p459
    %p461 = scmp.ne.s32.totalorder %s453, %s455
    %p462 = scmp.eq.s32.totalorder %s36, 1
    %p463 = por %p461, %p462
    %p464 = scmp.ne.s32.totalorder %s455, %s456
    %p465 = scmp.eq.s32.totalorder %s36, 0
    %p466 = por %p464, %p465
    %p467 = scmp.ne.s32.totalorder %s455, %s456
    %p468 = scmp.eq.s32.totalorder %s37, 1
    %p469 = por %p467, %p468
    %p471 = scmp.ne.s32.totalorder %s456, %s470
    %p472 = scmp.eq.s32.totalorder %s37, 0
    %p473 = por %p471, %p472
    %s475 = sadd.s32 %s474, 1
    %p478 = scmp.eq.s32.totalorder %s31, 1
    %p479 = scmp.ne.s32.totalorder %s474, %s476
    %p480 = scmp.eq.s32.totalorder %s31, 0
    %p481 = por %p479, %p480
    %p482 = scmp.ne.s32.totalorder %s474, %s476
    %p483 = scmp.eq.s32.totalorder %s36, 1
    %p484 = por %p482, %p483
    %p485 = scmp.ne.s32.totalorder %s476, %s477
    %p486 = scmp.eq.s32.totalorder %s36, 0
    %p487 = por %p485, %p486
    %p488 = scmp.ne.s32.totalorder %s476, %s477
    %p489 = scmp.eq.s32.totalorder %s37, 1
    %p490 = por %p488, %p489
    %p492 = scmp.ne.s32.totalorder %s477, %s491
    %p493 = scmp.eq.s32.totalorder %s37, 0
    %p494 = por %p492, %p493
    %s496 = sadd.s32 %s495, 1
    %p499 = scmp.eq.s32.totalorder %s31, 1
    %p500 = scmp.ne.s32.totalorder %s495, %s497
    %p501 = scmp.eq.s32.totalorder %s31, 0
    %p502 = por %p500, %p501
    %p503 = scmp.ne.s32.totalorder %s495, %s497
    %p504 = scmp.eq.s32.totalorder %s36, 1
    %p505 = por %p503, %p504
    %p506 = scmp.ne.s32.totalorder %s497, %s498
    %p507 = scmp.eq.s32.totalorder %s36, 0
    %p508 = por %p506, %p507
    %p509 = scmp.ne.s32.totalorder %s497, %s498
    %p510 = scmp.eq.s32.totalorder %s37, 1
    %p511 = por %p509, %p510
    %p513 = scmp.ne.s32.totalorder %s498, %s512
    %p514 = scmp.eq.s32.totalorder %s37, 0
    %p515 = por %p513, %p514
    %s517 = sadd.s32 %s516, 1
    %p520 = scmp.eq.s32.totalorder %s31, 1
    %p521 = scmp.ne.s32.totalorder %s516, %s518
    %p522 = scmp.eq.s32.totalorder %s31, 0
    %p523 = por %p521, %p522
    %p524 = scmp.ne.s32.totalorder %s516, %s518
    %p525 = scmp.eq.s32.totalorder %s36, 1
    %p526 = por %p524, %p525
    %p527 = scmp.ne.s32.totalorder %s518, %s519
    %p528 = scmp.eq.s32.totalorder %s36, 0
    %p529 = por %p527, %p528
    %p530 = scmp.ne.s32.totalorder %s518, %s519
    %p531 = scmp.eq.s32.totalorder %s37, 1
    %p532 = por %p530, %p531
    %p534 = scmp.ne.s32.totalorder %s519, %s533
    %p535 = scmp.eq.s32.totalorder %s37, 0
    %p536 = por %p534, %p535
    %s538 = sadd.s32 %s537, 1
    %p541 = scmp.eq.s32.totalorder %s31, 1
    %p542 = scmp.ne.s32.totalorder %s537, %s539
    %p543 = scmp.eq.s32.totalorder %s31, 0
    %p544 = por %p542, %p543
    %p545 = scmp.ne.s32.totalorder %s537, %s539
    %p546 = scmp.eq.s32.totalorder %s36, 1
    %p547 = por %p545, %p546
    %p548 = scmp.ne.s32.totalorder %s539, %s540
    %p549 = scmp.eq.s32.totalorder %s36, 0
    %p550 = por %p548, %p549
    %p551 = scmp.ne.s32.totalorder %s539, %s540
    %p552 = scmp.eq.s32.totalorder %s37, 1
    %p553 = por %p551, %p552
    %p555 = scmp.ne.s32.totalorder %s540, %s554
    %p556 = scmp.eq.s32.totalorder %s37, 0
    %p557 = por %p555, %p556
    %s558 = ssub.s32 %s38, %s50
    %s559 = ssub.s32 %s39, %s46
    %s560 = sor.u32 %s558, %s559
    %p561 = scmp.eq.s32.totalorder %s560, 0
    %s563 = sadd.s32 %s562, 1
    %s564 = scalar_select %p561, %s562, %s563
    %p567 = pneg %p561
    %p568 = scmp.eq.s32.totalorder %s31, 1
    %p569 = por %p567, %p568
    %p570 = scmp.ne.s32.totalorder %s562, %s565
    %p571 = scmp.eq.s32.totalorder %s31, 0
    %p572 = por %p570, %p571
    %p573 = scmp.ne.s32.totalorder %s562, %s565
    %p574 = scmp.eq.s32.totalorder %s36, 1
    %p575 = por %p573, %p574
    %p576 = scmp.ne.s32.totalorder %s565, %s566
    %p577 = scmp.eq.s32.totalorder %s36, 0
    %p578 = por %p576, %p577
    %p579 = scmp.ne.s32.totalorder %s565, %s566
    %p580 = scmp.eq.s32.totalorder %s37, 1
    %p581 = por %p579, %p580
    %p583 = scmp.ne.s32.totalorder %s566, %s582
    %p584 = scmp.eq.s32.totalorder %s37, 0
    %p585 = por %p583, %p584
    %p586 = scmp.le.s32.totalorder 1, %s31
    %p587 = scmp.lt.s32.totalorder %s31, 3
    %p588 = pnand %p586, %p587
    %p589 = pneg %p588
    // Predicated region
    $region9: #{_lambda_.9} parent=5 // pred_check
      _
    $region10: #{_lambda_.9} parent=5 // pred_check_branch
      %591 = sbr.rel (%p588) target = $region12
    $region11: #{_lambda_.9} parent=5 // pred_region
      %s592 = ssub.s32 %s31, 1
      // Predicated region
      $region13: #{_lambda_.9} parent=11 // pred_check
        %p593 = pneg %p172
      $region14: #{_lambda_.9} parent=11 // pred_check_branch
        %595 = sbr.rel (%p593) target = $region16
      $region15: #{_lambda_.9} parent=11 // pred_region
        _
      $region16: #{_lambda_.9} parent=11 // pred_fallthru
        _
      // Predicated region
      $region17: #{_lambda_.9} parent=11 // pred_check
        %p596 = pneg %p193
      $region18: #{_lambda_.9} parent=11 // pred_check_branch
        %598 = sbr.rel (%p596) target = $region20
      $region19: #{_lambda_.9} parent=11 // pred_region
        _
      $region20: #{_lambda_.9} parent=11 // pred_fallthru
        _
      // Predicated region
      $region21: #{_lambda_.9} parent=11 // pred_check
        %p599 = pneg %p214
      $region22: #{_lambda_.9} parent=11 // pred_check_branch
        %601 = sbr.rel (%p599) target = $region24
      $region23: #{_lambda_.9} parent=11 // pred_region
        _
      $region24: #{_lambda_.9} parent=11 // pred_fallthru
        _
      // Predicated region
      $region25: #{_lambda_.9} parent=11 // pred_check
        %p602 = pneg %p235
      $region26: #{_lambda_.9} parent=11 // pred_check_branch
        %604 = sbr.rel (%p602) target = $region28
      $region27: #{_lambda_.9} parent=11 // pred_region
        _
      $region28: #{_lambda_.9} parent=11 // pred_fallthru
        _
      // Predicated region
      $region29: #{_lambda_.9} parent=11 // pred_check
        %p605 = pneg %p256
      $region30: #{_lambda_.9} parent=11 // pred_check_branch
        %607 = sbr.rel (%p605) target = $region32
      $region31: #{_lambda_.9} parent=11 // pred_region
        _
      $region32: #{_lambda_.9} parent=11 // pred_fallthru
        _
      // Predicated region
      $region33: #{_lambda_.9} parent=11 // pred_check
        %p608 = pneg %p277
      $region34: #{_lambda_.9} parent=11 // pred_check_branch
        %610 = sbr.rel (%p608) target = $region36
      $region35: #{_lambda_.9} parent=11 // pred_region
        _
      $region36: #{_lambda_.9} parent=11 // pred_fallthru
        _
      // Predicated region
      $region37: #{_lambda_.9} parent=11 // pred_check
        %p611 = pneg %p298
      $region38: #{_lambda_.9} parent=11 // pred_check_branch
        %613 = sbr.rel (%p611) target = $region40
      $region39: #{_lambda_.9} parent=11 // pred_region
        _
      $region40: #{_lambda_.9} parent=11 // pred_fallthru
        _
      // Predicated region
      $region41: #{_lambda_.9} parent=11 // pred_check
        %p614 = pneg %p319
      $region42: #{_lambda_.9} parent=11 // pred_check_branch
        %616 = sbr.rel (%p614) target = $region44
      $region43: #{_lambda_.9} parent=11 // pred_region
        _
      $region44: #{_lambda_.9} parent=11 // pred_fallthru
        _
      // Predicated region
      $region45: #{_lambda_.9} parent=11 // pred_check
        %p617 = pneg %p340
      $region46: #{_lambda_.9} parent=11 // pred_check_branch
        %619 = sbr.rel (%p617) target = $region48
      $region47: #{_lambda_.9} parent=11 // pred_region
        _
      $region48: #{_lambda_.9} parent=11 // pred_fallthru
        _
      // Predicated region
      $region49: #{_lambda_.9} parent=11 // pred_check
        %p620 = pneg %p361
      $region50: #{_lambda_.9} parent=11 // pred_check_branch
        %622 = sbr.rel (%p620) target = $region52
      $region51: #{_lambda_.9} parent=11 // pred_region
        _
      $region52: #{_lambda_.9} parent=11 // pred_fallthru
        _
      // Predicated region
      $region53: #{_lambda_.9} parent=11 // pred_check
        %p623 = pneg %p382
      $region54: #{_lambda_.9} parent=11 // pred_check_branch
        %625 = sbr.rel (%p623) target = $region56
      $region55: #{_lambda_.9} parent=11 // pred_region
        _
      $region56: #{_lambda_.9} parent=11 // pred_fallthru
        _
      // Predicated region
      $region57: #{_lambda_.9} parent=11 // pred_check
        %p626 = pneg %p403
      $region58: #{_lambda_.9} parent=11 // pred_check_branch
        %628 = sbr.rel (%p626) target = $region60
      $region59: #{_lambda_.9} parent=11 // pred_region
        _
      $region60: #{_lambda_.9} parent=11 // pred_fallthru
        _
      // Predicated region
      $region61: #{_lambda_.9} parent=11 // pred_check
        %p629 = pneg %p424
      $region62: #{_lambda_.9} parent=11 // pred_check_branch
        %631 = sbr.rel (%p629) target = $region64
      $region63: #{_lambda_.9} parent=11 // pred_region
        _
      $region64: #{_lambda_.9} parent=11 // pred_fallthru
        _
      // Predicated region
      $region65: #{_lambda_.9} parent=11 // pred_check
        %p632 = pneg %p445
      $region66: #{_lambda_.9} parent=11 // pred_check_branch
        %634 = sbr.rel (%p632) target = $region68
      $region67: #{_lambda_.9} parent=11 // pred_region
        _
      $region68: #{_lambda_.9} parent=11 // pred_fallthru
        _
      // Predicated region
      $region69: #{_lambda_.9} parent=11 // pred_check
        %p635 = pneg %p466
      $region70: #{_lambda_.9} parent=11 // pred_check_branch
        %637 = sbr.rel (%p635) target = $region72
      $region71: #{_lambda_.9} parent=11 // pred_region
        _
      $region72: #{_lambda_.9} parent=11 // pred_fallthru
        _
      // Predicated region
      $region73: #{_lambda_.9} parent=11 // pred_check
        %p638 = pneg %p487
      $region74: #{_lambda_.9} parent=11 // pred_check_branch
        %640 = sbr.rel (%p638) target = $region76
      $region75: #{_lambda_.9} parent=11 // pred_region
        _
      $region76: #{_lambda_.9} parent=11 // pred_fallthru
        _
      // Predicated region
      $region77: #{_lambda_.9} parent=11 // pred_check
        %p641 = pneg %p508
      $region78: #{_lambda_.9} parent=11 // pred_check_branch
        %643 = sbr.rel (%p641) target = $region80
      $region79: #{_lambda_.9} parent=11 // pred_region
        _
      $region80: #{_lambda_.9} parent=11 // pred_fallthru
        _
      // Predicated region
      $region81: #{_lambda_.9} parent=11 // pred_check
        %p644 = pneg %p529
      $region82: #{_lambda_.9} parent=11 // pred_check_branch
        %646 = sbr.rel (%p644) target = $region84
      $region83: #{_lambda_.9} parent=11 // pred_region
        _
      $region84: #{_lambda_.9} parent=11 // pred_fallthru
        _
      // Predicated region
      $region85: #{_lambda_.9} parent=11 // pred_check
        %p647 = pneg %p550
      $region86: #{_lambda_.9} parent=11 // pred_check_branch
        %649 = sbr.rel (%p647) target = $region88
      $region87: #{_lambda_.9} parent=11 // pred_region
        _
      $region88: #{_lambda_.9} parent=11 // pred_fallthru
        _
    $region12: #{_lambda_.9} parent=5 // pred_fallthru
      _
    %p650 = scmp.lt.s32.totalorder %s31, 2
    // Predicated region
    $region89: #{_lambda_.9} parent=5 // pred_check
      %p651 = pneg %p650
    $region90: #{_lambda_.9} parent=5 // pred_check_branch
      %653 = sbr.rel (%p651) target = $region92
    $region91: #{_lambda_.9} parent=5 // pred_region
      // Predicated region
      $region93: #{_lambda_.9} parent=91 // pred_check
        %p654 = pneg %p65
      $region94: #{_lambda_.9} parent=91 // pred_check_branch
        %656 = sbr.rel (%p654) target = $region96
      $region95: #{_lambda_.9} parent=91 // pred_region
        %s657 = smul.u32 26, %s39
        %p658 = scmp.lt.s32.totalorder %s38, 1
        %s659 = scalar_select %p658, %s38, 1
        %p660 = scmp.lt.s32.totalorder %s657, 25
        %s661 = scalar_select %p660, %s657, 25
        %s662 = smul.addr %s659, 26
        %s663 = sadd.s32 %s661, %s662
        %s664 = smul.addr %s663, 8
        %s665 = scalar_lea.vmem %s0, %s664
        %s666 = smul.u32 26, %s39
      $region96: #{_lambda_.9} parent=91 // pred_fallthru
        _
      // Predicated region
      $region97: #{_lambda_.9} parent=91 // pred_check
        %p667 = pneg %p93
      $region98: #{_lambda_.9} parent=91 // pred_check_branch
        %669 = sbr.rel (%p667) target = $region100
      $region99: #{_lambda_.9} parent=91 // pred_region
        %s670 = smul.u32 26, %s39
        %p671 = scmp.lt.s32.totalorder %s38, 1
        %s672 = scalar_select %p671, %s38, 1
        %p673 = scmp.lt.s32.totalorder %s670, 25
        %s674 = scalar_select %p673, %s670, 25
        %s675 = smul.addr %s672, 26
        %s676 = sadd.s32 %s674, %s675
        %s677 = smul.addr %s676, 4
        %s678 = scalar_lea.vmem %s1, %s677
        %s679 = smul.u32 26, %s39
      $region100: #{_lambda_.9} parent=91 // pred_fallthru
        _
      // Predicated region
      $region101: #{_lambda_.9} parent=91 // pred_check
        %p680 = pneg %p119
      $region102: #{_lambda_.9} parent=91 // pred_check_branch
        %682 = sbr.rel (%p680) target = $region104
      $region103: #{_lambda_.9} parent=91 // pred_region
        %p683 = scmp.lt.s32.totalorder %s38, 1
        %s684 = scalar_select %p683, %s38, 1
        %s685 = scalar_lea.vmem %s2, %s684
      $region104: #{_lambda_.9} parent=91 // pred_fallthru
        _
      // Predicated region
      $region105: #{_lambda_.9} parent=91 // pred_check
        %p686 = pneg %p145
      $region106: #{_lambda_.9} parent=91 // pred_check_branch
        %688 = sbr.rel (%p686) target = $region108
      $region107: #{_lambda_.9} parent=91 // pred_region
        %p689 = scmp.lt.s32.totalorder %s38, 1
        %s690 = scalar_select %p689, %s38, 1
        %s691 = scalar_lea.vmem %s3, %s690
      $region108: #{_lambda_.9} parent=91 // pred_fallthru
        _
    $region92: #{_lambda_.9} parent=5 // pred_fallthru
      _
    %p692 = scmp.le.s32.totalorder 1, %s31
    %p693 = scmp.lt.s32.totalorder %s31, 3
    %p694 = pnand %p692, %p693
    %p695 = pneg %p694
    // Predicated region
    $region109: #{_lambda_.9} parent=5 // pred_check
      _
    $region110: #{_lambda_.9} parent=5 // pred_check_branch
      %697 = sbr.rel (%p694) target = $region112
    $region111: #{_lambda_.9} parent=5 // pred_region
      %s698 = ssub.s32 %s31, 1
      %s699 = smul.u32 26, %s41
      %p700 = scmp.lt.s32.totalorder %s40, 1
      %s701 = scalar_select %p700, %s40, 1
      %p702 = scmp.lt.s32.totalorder %s699, 25
      %s703 = scalar_select %p702, %s699, 25
      %s704 = smul.addr %s701, 26
      %s705 = sadd.s32 %s703, %s704
      %s706 = smul.addr %s705, 8
      %s707 = scalar_lea.vmem %s0, %s706
      %p708 = pneg %p71
      %p709 = pneg %p68
      %s710 = smul.u32 26, %s41
      %p711 = scmp.lt.s32.totalorder %s40, 1
      %s712 = scalar_select %p711, %s40, 1
      %p713 = scmp.lt.s32.totalorder %s710, 25
      %s714 = scalar_select %p713, %s710, 25
      %s715 = smul.addr %s712, 26
      %s716 = sadd.s32 %s714, %s715
      %s717 = smul.addr %s716, 4
      %s718 = scalar_lea.vmem %s1, %s717
      %p719 = pneg %p99
      %p720 = pneg %p96
      %p721 = scmp.lt.s32.totalorder %s40, 1
      %s722 = scalar_select %p721, %s40, 1
      %s723 = scalar_lea.vmem %s2, %s722
      %p724 = pneg %p125
      %p725 = pneg %p122
      %p726 = scmp.lt.s32.totalorder %s40, 1
      %s727 = scalar_select %p726, %s40, 1
      %s728 = scalar_lea.vmem %s3, %s727
      %p729 = pneg %p151
      %p730 = pneg %p148
      %p731 = pneg %p172
      %p732 = pneg %p169
      %p733 = pneg %p193
      %p734 = pneg %p190
      %p735 = pneg %p214
      %p736 = pneg %p211
      %p737 = pneg %p235
      %p738 = pneg %p232
      %p739 = pneg %p256
      %p740 = pneg %p253
      %p741 = pneg %p277
      %p742 = pneg %p274
      %p743 = pneg %p298
      %p744 = pneg %p295
      %p745 = pneg %p319
      %p746 = pneg %p316
      %p747 = pneg %p340
      %p748 = pneg %p337
      %p749 = pneg %p361
      %p750 = pneg %p358
      %p751 = pneg %p382
      %p752 = pneg %p379
      %p753 = pneg %p403
      %p754 = pneg %p400
      %p755 = pneg %p424
      %p756 = pneg %p421
      %p757 = pneg %p445
      %p758 = pneg %p442
      %p759 = pneg %p466
      %p760 = pneg %p463
      %p761 = pneg %p487
      %p762 = pneg %p484
      %p763 = pneg %p508
      %p764 = pneg %p505
      %p765 = pneg %p529
      %p766 = pneg %p526
      %p767 = pneg %p550
      %p768 = pneg %p547
      %p769 = pneg %p578
      %p770 = pneg %p575
      %s771 = smul.u32 26, %s41
      %p772 = scmp.lt.s32.totalorder %s40, 1
      %s773 = scalar_select %p772, %s40, 1
      %p774 = scmp.lt.s32.totalorder %s771, 25
      %s775 = scalar_select %p774, %s771, 25
      %s776 = smul.addr %s773, 26
      %s777 = sadd.s32 %s775, %s776
      %s778 = smul.addr %s777, 8
      %s779 = scalar_lea.vmem %s23, %s778
      %s780 = smul.u32 26, %s41
      %p781 = scmp.lt.s32.totalorder %s40, 1
      %s782 = scalar_select %p781, %s40, 1
      %p783 = scmp.lt.s32.totalorder %s780, 25
      %s784 = scalar_select %p783, %s780, 25
      %s785 = smul.addr %s782, 26
      %s786 = sadd.s32 %s784, %s785
      %s787 = smul.addr %s786, 8
      %s788 = scalar_lea.vmem %s0, %s787
      %s789 = smul.u32 26, %s41
      %s790 = smul.u32 26, %s41
      %p791 = scmp.lt.s32.totalorder %s40, 1
      %s792 = scalar_select %p791, %s40, 1
      %p793 = scmp.lt.s32.totalorder %s790, 25
      %s794 = scalar_select %p793, %s790, 25
      %s795 = smul.addr %s792, 26
      %s796 = sadd.s32 %s794, %s795
      %s797 = smul.addr %s796, 4
      %s798 = scalar_lea.vmem %s1, %s797
      %s799 = smul.u32 26, %s41
      %p800 = scmp.lt.s32.totalorder %s40, 1
      %s801 = scalar_select %p800, %s40, 1
      %s802 = scalar_lea.vmem %s2, %s801
      %p803 = scmp.lt.s32.totalorder %s40, 1
      %s804 = scalar_select %p803, %s40, 1
      %s805 = scalar_lea.vmem %s3, %s804
      %s806 = smul.u32 26, %s41
      %p807 = scmp.lt.s32.totalorder %s40, 1
      %s808 = scalar_select %p807, %s40, 1
      %p809 = scmp.lt.s32.totalorder %s806, 25
      %s810 = scalar_select %p809, %s806, 25
      %s811 = smul.addr %s808, 26
      %s812 = sadd.s32 %s810, %s811
      %s813 = smul.addr %s812, 8
      %s814 = scalar_lea.vmem %s23, %s813
      %s815 = smul.u32 26, %s41
      %v817 = vld [vmem:[%s788] sm:$0xff]
      %v818 = vld [vmem:[%s788 + $0x8] sm:$0xff]
      %v819 = vld [vmem:[%s788 + $0x10] sm:$0xff]
      %v820 = vld [vmem:[%s788 + $0x18] sm:$0xff]
      %v821 = vld [vmem:[%s788 + $0x20] sm:$0xff]
      %v822 = vld [vmem:[%s788 + $0x28] sm:$0xff]
      %v823 = vld [vmem:[%s788 + $0x30] sm:$0xff]
      %v824 = vld [vmem:[%s788 + $0x38] sm:$0xff]
      %v825 = vld [vmem:[%s788 + $0x40] sm:$0xff]
      %v826 = vld [vmem:[%s788 + $0x48] sm:$0xff]
      %v827 = vld [vmem:[%s788 + $0x50] sm:$0xff]
      %v828 = vld [vmem:[%s788 + $0x58] sm:$0xff]
      %v829 = vld [vmem:[%s788 + $0x60] sm:$0xff]
      %v830 = vld [vmem:[%s788 + $0x68] sm:$0xff]
      %v831 = vld [vmem:[%s788 + $0x70] sm:$0xff]
      %v832 = vld [vmem:[%s788 + $0x78] sm:$0xff]
      %v833 = vld [vmem:[%s788 + $0x80] sm:$0xff]
      %v834 = vld [vmem:[%s788 + $0x88] sm:$0xff]
      %v835 = vld [vmem:[%s788 + $0x90] sm:$0xff]
      %v836 = vld [vmem:[%s788 + $0x98] sm:$0xff]
      %v837 = vld [vmem:[%s788 + $0xa0] sm:$0xff]
      %v838 = vld [vmem:[%s788 + $0xa8] sm:$0xff]
      %v839 = vld [vmem:[%s788 + $0xb0] sm:$0xff]
      %v840 = vld [vmem:[%s788 + $0xb8] sm:$0xff]
      %v841 = vld [vmem:[%s788 + $0xc0] sm:$0xff]
      %v842 = vld [vmem:[%s788 + $0xc8] sm:$0xff]
      %v843 = vld [vmem:[%s798] sm:$0xf]
      %v844 = vld [vmem:[%s798 + $0x4] sm:$0xf]
      %v845 = vld [vmem:[%s798 + $0x8] sm:$0xf]
      %v846 = vld [vmem:[%s798 + $0xc] sm:$0xf]
      %v847 = vld [vmem:[%s798 + $0x10] sm:$0xf]
      %v848 = vld [vmem:[%s798 + $0x14] sm:$0xf]
      %v849 = vld [vmem:[%s798 + $0x18] sm:$0xf]
      %v850 = vld [vmem:[%s798 + $0x1c] sm:$0xf]
      %v851 = vld [vmem:[%s798 + $0x20] sm:$0xf]
      %v852 = vld [vmem:[%s798 + $0x24] sm:$0xf]
      %v853 = vld [vmem:[%s798 + $0x28] sm:$0xf]
      %v854 = vld [vmem:[%s798 + $0x2c] sm:$0xf]
      %v855 = vld [vmem:[%s798 + $0x30] sm:$0xf]
      %v856 = vld [vmem:[%s798 + $0x34] sm:$0xf]
      %v857 = vld [vmem:[%s798 + $0x38] sm:$0xf]
      %v858 = vld [vmem:[%s798 + $0x3c] sm:$0xf]
      %v859 = vld [vmem:[%s798 + $0x40] sm:$0xf]
      %v860 = vld [vmem:[%s798 + $0x44] sm:$0xf]
      %v861 = vld [vmem:[%s798 + $0x48] sm:$0xf]
      %v862 = vld [vmem:[%s798 + $0x4c] sm:$0xf]
      %v863 = vld [vmem:[%s798 + $0x50] sm:$0xf]
      %v864 = vld [vmem:[%s798 + $0x54] sm:$0xf]
      %v865 = vld [vmem:[%s798 + $0x58] sm:$0xf]
      %v866 = vld [vmem:[%s798 + $0x5c] sm:$0xf]
      %v867 = vld [vmem:[%s798 + $0x60] sm:$0xf]
      %v868 = vld [vmem:[%s798 + $0x64] sm:$0xf]
      %v869 = vld [vmem:[%s802] sm:$0x1]
      %v870 = vld [vmem:[%s805] sm:$0x1]
      %v871 = vld [vmem:[%s4] sm:$0x3]
      %v872 = vld [vmem:[%s5] sm:$0xf]
      %v873 = vld [vmem:[%s5 + $0x4] sm:$0xf]
      %v874 = vld [vmem:[%s6] sm:$0xf]
      %v875 = vld [vmem:[%s6 + $0x4] sm:$0xf]
      %v876 = vld [vmem:[%s7] sm:$0xf]
      %v877 = vld [vmem:[%s8] sm:$0x1]
      %v878 = vld [vmem:[%s9] sm:$0xf]
      %v879 = vld [vmem:[%s9 + $0x4] sm:$0xf]
      %v880 = vld [vmem:[%s9 + $0x8] sm:$0xf]
      %v881 = vld [vmem:[%s9 + $0xc] sm:$0xf]
      %v882 = vld [vmem:[%s10] sm:$0x1]
      %v883 = vld [vmem:[%s11] sm:$0xf]
      %v884 = vld [vmem:[%s11 + $0x4] sm:$0xf]
      %v885 = vld [vmem:[%s11 + $0x8] sm:$0xf]
      %v886 = vld [vmem:[%s11 + $0xc] sm:$0xf]
      %v887 = vld [vmem:[#allocation2] sm:$0x1]
      %v888 = vpack.c.bf16 %v818, %v817
      %v889 = vpack.c.bf16 %v820, %v819
      %v890 = vpack.c.bf16 %v822, %v821
      %v891 = vpack.c.bf16 %v824, %v823
      %v892 = vpack.c.bf16 %v826, %v825
      %v893 = vpack.c.bf16 %v828, %v827
      %v894 = vpack.c.bf16 %v830, %v829
      %v895 = vpack.c.bf16 %v832, %v831
      %v896 = vpack.c.bf16 %v834, %v833
      %v897 = vpack.c.bf16 %v836, %v835
      %v898 = vpack.c.bf16 %v838, %v837
      %v899 = vpack.c.bf16 %v840, %v839
      %v900 = vpack.c.bf16 %v842, %v841
      %vm901 = vcmask 23552
      %v903 = vsel %vm901, %v888, 0
      %v906 = vsel %vm901, %v889, 0
      %v909 = vsel %vm901, %v890, 0
      %v912 = vsel %vm901, %v891, 0
      %v915 = vsel %vm901, %v892, 0
      %v918 = vsel %vm901, %v893, 0
      %v921 = vsel %vm901, %v894, 0
      %v924 = vsel %vm901, %v895, 0
      %v927 = vsel %vm901, %v896, 0
      %v930 = vsel %vm901, %v897, 0
      %v933 = vsel %vm901, %v898, 0
      %v936 = vsel %vm901, %v899, 0
      %v939 = vsel %vm901, %v900, 0
      %vm941 = vcmask 1040384
      %vm942 = vcmask 1041408
      %v943 = vsel %vm941, 4294967295, 65535
      %v944 = vsel %vm942, %v943, 0
      %v946 = vand.u32 %v871, %v944
      %948 = vmatprep.subr.bf16.mxu0 0
      %949 = vmatpush1.bf16.msra.mxu0 0
      %950 = vmatprep.subr.bf16.mxu0 0
      %951 = vmatpush1.bf16.msra.mxu0 0
      %952 = vmatprep.subr.bf16.mxu0 0
      %953 = vmatpush1.bf16.msra.mxu0 0
      %954 = vmatprep.subr.bf16.mxu0 0
      %955 = vmatpush1.bf16.msra.mxu0 0
      %956 = vmatprep.subr.bf16.mxu0 0
      %957 = vmatpush1.bf16.msra.mxu0 0
      %958 = vmatprep.subr.bf16.mxu0 0
      %959 = vmatpush1.bf16.msra.mxu0 0
      %960 = vmatprep.subr.bf16.mxu0 0
      %961 = vmatpush1.bf16.msra.mxu0 0
      %962 = vmatprep.subr.bf16.mxu0 0
      %963 = vmatpush1.bf16.msra.mxu0 %v946
      %964 = vmatprep.subr.bf16.mxu0 0
      %965 = vmatpush2.bf16.msra.mxu0 0
      %966 = vmatprep.subr.bf16.mxu0 0
      %967 = vmatpush2.bf16.msra.mxu0 0
      %968 = vmatprep.subr.bf16.mxu0 0
      %969 = vmatpush2.bf16.msra.mxu0 0
      %970 = vmatprep.subr.bf16.mxu0 0
      %971 = vmatpush2.bf16.msra.mxu0 0
      %972 = vmatprep.subr.bf16.mxu0 0
      %973 = vmatpush2.bf16.msra.mxu0 0
      %974 = vmatprep.subr.bf16.mxu0 0
      %975 = vmatpush2.bf16.msra.mxu0 0
      %976 = vmatprep.subr.bf16.mxu0 0
      %977 = vmatpush2.bf16.msra.mxu0 0
      %978 = vmatprep.subr.bf16.mxu0 0
      %979 = vmatpush2.bf16.msra.mxu0 0
      %980 = vmatprep.mubr.bf16.mxu0 0
      %981 = vmatmul.mubr.bf16.gmra.mxu0 %v903
      %v982 = vpop.f32.mrf.mxu0
      %v983 = vadd.f32 0.0, %v982
      %v984 = vpop.f32.mrf.mxu0
      %v985 = vpop.f32.mrf.mxu0
      %v986 = vadd.f32 0.0, %v985
      %v987 = vpop.f32.mrf.mxu0
      %988 = vmatprep.mubr.bf16.mxu0 0
      %989 = vmatmul.mubr.bf16.gmra.mxu0 %v906
      %v990 = vpop.f32.mrf.mxu0
      %v991 = vadd.f32 0.0, %v990
      %v992 = vpop.f32.mrf.mxu0
      %v993 = vpop.f32.mrf.mxu0
      %v994 = vadd.f32 0.0, %v993
      %v995 = vpop.f32.mrf.mxu0
      %996 = vmatprep.mubr.bf16.mxu0 0
      %997 = vmatmul.mubr.bf16.gmra.mxu0 %v909
      %v998 = vpop.f32.mrf.mxu0
      %v999 = vadd.f32 0.0, %v998
      %v1000 = vpop.f32.mrf.mxu0
      %v1001 = vpop.f32.mrf.mxu0
      %v1002 = vadd.f32 0.0, %v1001
      %v1003 = vpop.f32.mrf.mxu0
      %1004 = vmatprep.mubr.bf16.mxu0 0
      %1005 = vmatmul.mubr.bf16.gmra.mxu0 %v912
      %v1006 = vpop.f32.mrf.mxu0
      %v1007 = vadd.f32 0.0, %v1006
      %v1008 = vpop.f32.mrf.mxu0
      %v1009 = vpop.f32.mrf.mxu0
      %v1010 = vadd.f32 0.0, %v1009
      %v1011 = vpop.f32.mrf.mxu0
      %1012 = vmatprep.mubr.bf16.mxu0 0
      %1013 = vmatmul.mubr.bf16.gmra.mxu0 %v915
      %v1014 = vpop.f32.mrf.mxu0
      %v1015 = vadd.f32 0.0, %v1014
      %v1016 = vpop.f32.mrf.mxu0
      %v1017 = vpop.f32.mrf.mxu0
      %v1018 = vadd.f32 0.0, %v1017
      %v1019 = vpop.f32.mrf.mxu0
      %1020 = vmatprep.mubr.bf16.mxu0 0
      %1021 = vmatmul.mubr.bf16.gmra.mxu0 %v918
      %v1022 = vpop.f32.mrf.mxu0
      %v1023 = vadd.f32 0.0, %v1022
      %v1024 = vpop.f32.mrf.mxu0
      %v1025 = vpop.f32.mrf.mxu0
      %v1026 = vadd.f32 0.0, %v1025
      %v1027 = vpop.f32.mrf.mxu0
      %1028 = vmatprep.mubr.bf16.mxu0 0
      %1029 = vmatmul.mubr.bf16.gmra.mxu0 %v921
      %v1030 = vpop.f32.mrf.mxu0
      %v1031 = vadd.f32 0.0, %v1030
      %v1032 = vpop.f32.mrf.mxu0
      %v1033 = vpop.f32.mrf.mxu0
      %v1034 = vadd.f32 0.0, %v1033
      %v1035 = vpop.f32.mrf.mxu0
      %1036 = vmatprep.mubr.bf16.mxu0 0
      %1037 = vmatmul.mubr.bf16.gmra.mxu0 %v924
      %v1038 = vpop.f32.mrf.mxu0
      %v1039 = vadd.f32 0.0, %v1038
      %v1040 = vpop.f32.mrf.mxu0
      %v1041 = vpop.f32.mrf.mxu0
      %v1042 = vadd.f32 0.0, %v1041
      %v1043 = vpop.f32.mrf.mxu0
      %1044 = vmatprep.mubr.bf16.mxu0 0
      %1045 = vmatmul.mubr.bf16.gmra.mxu0 %v927
      %v1046 = vpop.f32.mrf.mxu0
      %v1047 = vadd.f32 0.0, %v1046
      %v1048 = vpop.f32.mrf.mxu0
      %v1049 = vpop.f32.mrf.mxu0
      %v1050 = vadd.f32 0.0, %v1049
      %v1051 = vpop.f32.mrf.mxu0
      %1052 = vmatprep.mubr.bf16.mxu0 0
      %1053 = vmatmul.mubr.bf16.gmra.mxu0 %v930
      %v1054 = vpop.f32.mrf.mxu0
      %v1055 = vadd.f32 0.0, %v1054
      %v1056 = vpop.f32.mrf.mxu0
      %v1057 = vpop.f32.mrf.mxu0
      %v1058 = vadd.f32 0.0, %v1057
      %v1059 = vpop.f32.mrf.mxu0
      %1060 = vmatprep.mubr.bf16.mxu0 0
      %1061 = vmatmul.mubr.bf16.gmra.mxu0 %v933
      %v1062 = vpop.f32.mrf.mxu0
      %v1063 = vadd.f32 0.0, %v1062
      %v1064 = vpop.f32.mrf.mxu0
      %v1065 = vpop.f32.mrf.mxu0
      %v1066 = vadd.f32 0.0, %v1065
      %v1067 = vpop.f32.mrf.mxu0
      %1068 = vmatprep.mubr.bf16.mxu0 0
      %1069 = vmatmul.mubr.bf16.gmra.mxu0 %v936
      %v1070 = vpop.f32.mrf.mxu0
      %v1071 = vadd.f32 0.0, %v1070
      %v1072 = vpop.f32.mrf.mxu0
      %v1073 = vpop.f32.mrf.mxu0
      %v1074 = vadd.f32 0.0, %v1073
      %v1075 = vpop.f32.mrf.mxu0
      %1076 = vmatprep.mubr.bf16.mxu0 0
      %1077 = vmatmul.mubr.bf16.gmra.mxu0 %v939
      %v1078 = vpop.f32.mrf.mxu0
      %v1079 = vadd.f32 0.0, %v1078
      %v1080 = vpop.f32.mrf.mxu0
      %v1081 = vpop.f32.mrf.mxu0
      %v1082 = vadd.f32 0.0, %v1081
      %v1083 = vpop.f32.mrf.mxu0
      %1084 = vdwg.mxu0
      %v1086 = vlaneseq
      %v1087 = vshrl.u32 %v1086, 7
      %v1088 = vsub.s32 0, %v1087
      %v1089 = vrot.slane %v877, %v1088
      %v1091 = vadd.f32 %v1089, %v983
      %v1092 = vadd.f32 %v1089, %v986
      %v1093 = vadd.f32 %v1089, %v991
      %v1094 = vadd.f32 %v1089, %v994
      %v1095 = vadd.f32 %v1089, %v999
      %v1096 = vadd.f32 %v1089, %v1002
      %v1097 = vadd.f32 %v1089, %v1007
      %v1098 = vadd.f32 %v1089, %v1010
      %v1099 = vadd.f32 %v1089, %v1015
      %v1100 = vadd.f32 %v1089, %v1018
      %v1101 = vadd.f32 %v1089, %v1023
      %v1102 = vadd.f32 %v1089, %v1026
      %v1103 = vadd.f32 %v1089, %v1031
      %v1104 = vadd.f32 %v1089, %v1034
      %v1105 = vadd.f32 %v1089, %v1039
      %v1106 = vadd.f32 %v1089, %v1042
      %v1107 = vadd.f32 %v1089, %v1047
      %v1108 = vadd.f32 %v1089, %v1050
      %v1109 = vadd.f32 %v1089, %v1055
      %v1110 = vadd.f32 %v1089, %v1058
      %v1111 = vadd.f32 %v1089, %v1063
      %v1112 = vadd.f32 %v1089, %v1066
      %v1113 = vadd.f32 %v1089, %v1071
      %v1114 = vadd.f32 %v1089, %v1074
      %v1115 = vadd.f32 %v1089, %v1079
      %v1116 = vadd.f32 %v1089, %v1082
      %v1143 = vunpack.c.l.b16 %v843
      %v1144 = vunpack.c.l.b16 %v844
      %v1145 = vunpack.c.l.b16 %v845
      %v1146 = vunpack.c.l.b16 %v846
      %v1147 = vunpack.c.l.b16 %v847
      %v1148 = vunpack.c.l.b16 %v848
      %v1149 = vunpack.c.l.b16 %v849
      %v1150 = vunpack.c.l.b16 %v850
      %v1151 = vunpack.c.l.b16 %v851
      %v1152 = vunpack.c.l.b16 %v852
      %v1153 = vunpack.c.l.b16 %v853
      %v1154 = vunpack.c.l.b16 %v854
      %v1155 = vunpack.c.l.b16 %v855
      %v1156 = vunpack.c.l.b16 %v856
      %v1157 = vunpack.c.l.b16 %v857
      %v1158 = vunpack.c.l.b16 %v858
      %v1159 = vunpack.c.l.b16 %v859
      %v1160 = vunpack.c.l.b16 %v860
      %v1161 = vunpack.c.l.b16 %v861
      %v1162 = vunpack.c.l.b16 %v862
      %v1163 = vunpack.c.l.b16 %v863
      %v1164 = vunpack.c.l.b16 %v864
      %v1165 = vunpack.c.l.b16 %v865
      %v1166 = vunpack.c.l.b16 %v866
      %v1167 = vunpack.c.l.b16 %v867
      %v1168 = vunpack.c.l.b16 %v868
      %v1169 = vpack.c.b16 %v1144, %v1143
      %v1170 = vpack.c.b16 %v1146, %v1145
      %v1171 = vpack.c.b16 %v1148, %v1147
      %v1172 = vpack.c.b16 %v1150, %v1149
      %v1173 = vpack.c.b16 %v1152, %v1151
      %v1174 = vpack.c.b16 %v1154, %v1153
      %v1175 = vpack.c.b16 %v1156, %v1155
      %v1176 = vpack.c.b16 %v1158, %v1157
      %v1177 = vpack.c.b16 %v1160, %v1159
      %v1178 = vpack.c.b16 %v1162, %v1161
      %v1179 = vpack.c.b16 %v1164, %v1163
      %v1180 = vpack.c.b16 %v1166, %v1165
      %v1181 = vpack.c.b16 %v1168, %v1167
      %v1184 = vunpack.c.l.b16 %v872
      %v1185 = vunpack.c.l.b16 %v873
      %v1186 = vpack.c.b16 %v1185, %v1184
      %vm1188 = vcmask 130048
      %v1190 = vsel %vm1188, %v1169, 0
      %v1193 = vsel %vm1188, %v1170, 0
      %v1196 = vsel %vm1188, %v1171, 0
      %v1199 = vsel %vm1188, %v1172, 0
      %v1202 = vsel %vm1188, %v1173, 0
      %v1205 = vsel %vm1188, %v1174, 0
      %v1208 = vsel %vm1188, %v1175, 0
      %v1211 = vsel %vm1188, %v1176, 0
      %v1214 = vsel %vm1188, %v1177, 0
      %v1217 = vsel %vm1188, %v1178, 0
      %v1220 = vsel %vm1188, %v1179, 0
      %v1223 = vsel %vm1188, %v1180, 0
      %v1226 = vsel %vm1188, %v1181, 0
      %1228 = vmatprep.subr.bf16.mxu0 0
      %1229 = vmatpush1.bf16.msra.mxu0 0
      %1230 = vmatprep.subr.bf16.mxu0 0
      %1231 = vmatpush1.bf16.msra.mxu0 0
      %1232 = vmatprep.subr.bf16.mxu0 0
      %1233 = vmatpush1.bf16.msra.mxu0 0
      %1234 = vmatprep.subr.bf16.mxu0 0
      %1235 = vmatpush1.bf16.msra.mxu0 0
      %1236 = vmatprep.subr.bf16.mxu0 0
      %1237 = vmatpush1.bf16.msra.mxu0 0
      %1238 = vmatprep.subr.bf16.mxu0 0
      %1239 = vmatpush1.bf16.msra.mxu0 0
      %1240 = vmatprep.subr.bf16.mxu0 0
      %1241 = vmatpush1.bf16.msra.mxu0 0
      %1242 = vmatprep.subr.bf16.mxu0 0
      %1243 = vmatpush1.bf16.msra.mxu0 %v1186
      %1244 = vmatprep.subr.bf16.mxu0 0
      %1245 = vmatpush2.bf16.msra.mxu0 0
      %1246 = vmatprep.subr.bf16.mxu0 0
      %1247 = vmatpush2.bf16.msra.mxu0 0
      %1248 = vmatprep.subr.bf16.mxu0 0
      %1249 = vmatpush2.bf16.msra.mxu0 0
      %1250 = vmatprep.subr.bf16.mxu0 0
      %1251 = vmatpush2.bf16.msra.mxu0 0
      %1252 = vmatprep.subr.bf16.mxu0 0
      %1253 = vmatpush2.bf16.msra.mxu0 0
      %1254 = vmatprep.subr.bf16.mxu0 0
      %1255 = vmatpush2.bf16.msra.mxu0 0
      %1256 = vmatprep.subr.bf16.mxu0 0
      %1257 = vmatpush2.bf16.msra.mxu0 0
      %1258 = vmatprep.subr.bf16.mxu0 0
      %1259 = vmatpush2.bf16.msra.mxu0 0
      %1260 = vmatprep.mubr.bf16.mxu0 0
      %1261 = vmatmul.mubr.bf16.gmra.mxu0 %v1190
      %v1262 = vpop.f32.mrf.mxu0
      %v1263 = vadd.f32 0.0, %v1262
      %v1264 = vpop.f32.mrf.mxu0
      %v1265 = vpop.f32.mrf.mxu0
      %v1266 = vadd.f32 0.0, %v1265
      %v1267 = vpop.f32.mrf.mxu0
      %1268 = vmatprep.mubr.bf16.mxu0 0
      %1269 = vmatmul.mubr.bf16.gmra.mxu0 %v1193
      %v1270 = vpop.f32.mrf.mxu0
      %v1271 = vadd.f32 0.0, %v1270
      %v1272 = vpop.f32.mrf.mxu0
      %v1273 = vpop.f32.mrf.mxu0
      %v1274 = vadd.f32 0.0, %v1273
      %v1275 = vpop.f32.mrf.mxu0
      %1276 = vmatprep.mubr.bf16.mxu0 0
      %1277 = vmatmul.mubr.bf16.gmra.mxu0 %v1196
      %v1278 = vpop.f32.mrf.mxu0
      %v1279 = vadd.f32 0.0, %v1278
      %v1280 = vpop.f32.mrf.mxu0
      %v1281 = vpop.f32.mrf.mxu0
      %v1282 = vadd.f32 0.0, %v1281
      %v1283 = vpop.f32.mrf.mxu0
      %1284 = vmatprep.mubr.bf16.mxu0 0
      %1285 = vmatmul.mubr.bf16.gmra.mxu0 %v1199
      %v1286 = vpop.f32.mrf.mxu0
      %v1287 = vadd.f32 0.0, %v1286
      %v1288 = vpop.f32.mrf.mxu0
      %v1289 = vpop.f32.mrf.mxu0
      %v1290 = vadd.f32 0.0, %v1289
      %v1291 = vpop.f32.mrf.mxu0
      %1292 = vmatprep.mubr.bf16.mxu0 0
      %1293 = vmatmul.mubr.bf16.gmra.mxu0 %v1202
      %v1294 = vpop.f32.mrf.mxu0
      %v1295 = vadd.f32 0.0, %v1294
      %v1296 = vpop.f32.mrf.mxu0
      %v1297 = vpop.f32.mrf.mxu0
      %v1298 = vadd.f32 0.0, %v1297
      %v1299 = vpop.f32.mrf.mxu0
      %1300 = vmatprep.mubr.bf16.mxu0 0
      %1301 = vmatmul.mubr.bf16.gmra.mxu0 %v1205
      %v1302 = vpop.f32.mrf.mxu0
      %v1303 = vadd.f32 0.0, %v1302
      %v1304 = vpop.f32.mrf.mxu0
      %v1305 = vpop.f32.mrf.mxu0
      %v1306 = vadd.f32 0.0, %v1305
      %v1307 = vpop.f32.mrf.mxu0
      %1308 = vmatprep.mubr.bf16.mxu0 0
      %1309 = vmatmul.mubr.bf16.gmra.mxu0 %v1208
      %v1310 = vpop.f32.mrf.mxu0
      %v1311 = vadd.f32 0.0, %v1310
      %v1312 = vpop.f32.mrf.mxu0
      %v1313 = vpop.f32.mrf.mxu0
      %v1314 = vadd.f32 0.0, %v1313
      %v1315 = vpop.f32.mrf.mxu0
      %1316 = vmatprep.mubr.bf16.mxu0 0
      %1317 = vmatmul.mubr.bf16.gmra.mxu0 %v1211
      %v1318 = vpop.f32.mrf.mxu0
      %v1319 = vadd.f32 0.0, %v1318
      %v1320 = vpop.f32.mrf.mxu0
      %v1321 = vpop.f32.mrf.mxu0
      %v1322 = vadd.f32 0.0, %v1321
      %v1323 = vpop.f32.mrf.mxu0
      %1324 = vmatprep.mubr.bf16.mxu0 0
      %1325 = vmatmul.mubr.bf16.gmra.mxu0 %v1214
      %v1326 = vpop.f32.mrf.mxu0
      %v1327 = vadd.f32 0.0, %v1326
      %v1328 = vpop.f32.mrf.mxu0
      %v1329 = vpop.f32.mrf.mxu0
      %v1330 = vadd.f32 0.0, %v1329
      %v1331 = vpop.f32.mrf.mxu0
      %1332 = vmatprep.mubr.bf16.mxu0 0
      %1333 = vmatmul.mubr.bf16.gmra.mxu0 %v1217
      %v1334 = vpop.f32.mrf.mxu0
      %v1335 = vadd.f32 0.0, %v1334
      %v1336 = vpop.f32.mrf.mxu0
      %v1337 = vpop.f32.mrf.mxu0
      %v1338 = vadd.f32 0.0, %v1337
      %v1339 = vpop.f32.mrf.mxu0
      %1340 = vmatprep.mubr.bf16.mxu0 0
      %1341 = vmatmul.mubr.bf16.gmra.mxu0 %v1220
      %v1342 = vpop.f32.mrf.mxu0
      %v1343 = vadd.f32 0.0, %v1342
      %v1344 = vpop.f32.mrf.mxu0
      %v1345 = vpop.f32.mrf.mxu0
      %v1346 = vadd.f32 0.0, %v1345
      %v1347 = vpop.f32.mrf.mxu0
      %1348 = vmatprep.mubr.bf16.mxu0 0
      %1349 = vmatmul.mubr.bf16.gmra.mxu0 %v1223
      %v1350 = vpop.f32.mrf.mxu0
      %v1351 = vadd.f32 0.0, %v1350
      %v1352 = vpop.f32.mrf.mxu0
      %v1353 = vpop.f32.mrf.mxu0
      %v1354 = vadd.f32 0.0, %v1353
      %v1355 = vpop.f32.mrf.mxu0
      %1356 = vmatprep.mubr.bf16.mxu0 0
      %1357 = vmatmul.mubr.bf16.gmra.mxu0 %v1226
      %v1358 = vpop.f32.mrf.mxu0
      %v1359 = vadd.f32 0.0, %v1358
      %v1360 = vpop.f32.mrf.mxu0
      %v1361 = vpop.f32.mrf.mxu0
      %v1362 = vadd.f32 0.0, %v1361
      %v1363 = vpop.f32.mrf.mxu0
      %1364 = vdwg.mxu0
      %v1365 = vadd.f32 %v1091, %v1263
      %v1366 = vadd.f32 %v1092, %v1266
      %v1367 = vadd.f32 %v1093, %v1271
      %v1368 = vadd.f32 %v1094, %v1274
      %v1369 = vadd.f32 %v1095, %v1279
      %v1370 = vadd.f32 %v1096, %v1282
      %v1371 = vadd.f32 %v1097, %v1287
      %v1372 = vadd.f32 %v1098, %v1290
      %v1373 = vadd.f32 %v1099, %v1295
      %v1374 = vadd.f32 %v1100, %v1298
      %v1375 = vadd.f32 %v1101, %v1303
      %v1376 = vadd.f32 %v1102, %v1306
      %v1377 = vadd.f32 %v1103, %v1311
      %v1378 = vadd.f32 %v1104, %v1314
      %v1379 = vadd.f32 %v1105, %v1319
      %v1380 = vadd.f32 %v1106, %v1322
      %v1381 = vadd.f32 %v1107, %v1327
      %v1382 = vadd.f32 %v1108, %v1330
      %v1383 = vadd.f32 %v1109, %v1335
      %v1384 = vadd.f32 %v1110, %v1338
      %v1385 = vadd.f32 %v1111, %v1343
      %v1386 = vadd.f32 %v1112, %v1346
      %v1387 = vadd.f32 %v1113, %v1351
      %v1388 = vadd.f32 %v1114, %v1354
      %v1389 = vadd.f32 %v1115, %v1359
      %v1390 = vadd.f32 %v1116, %v1362
      %v1391 = vpack.c.bf16 %v869, %v869
      %v1394 = vunpack.c.l.b16 %v874
      %v1395 = vunpack.c.l.b16 %v875
      %v1396 = vpack.c.b16 %v1395, %v1394
      %v1399 = vsel %vm1188, %v1391, 0
      %1401 = vmatprep.subr.bf16.mxu0 0
      %1402 = vmatpush1.bf16.msra.mxu0 0
      %1403 = vmatprep.subr.bf16.mxu0 0
      %1404 = vmatpush1.bf16.msra.mxu0 0
      %1405 = vmatprep.subr.bf16.mxu0 0
      %1406 = vmatpush1.bf16.msra.mxu0 0
      %1407 = vmatprep.subr.bf16.mxu0 0
      %1408 = vmatpush1.bf16.msra.mxu0 0
      %1409 = vmatprep.subr.bf16.mxu0 0
      %1410 = vmatpush1.bf16.msra.mxu0 0
      %1411 = vmatprep.subr.bf16.mxu0 0
      %1412 = vmatpush1.bf16.msra.mxu0 0
      %1413 = vmatprep.subr.bf16.mxu0 0
      %1414 = vmatpush1.bf16.msra.mxu0 0
      %1415 = vmatprep.subr.bf16.mxu0 0
      %1416 = vmatpush1.bf16.msra.mxu0 %v1396
      %1417 = vmatprep.subr.bf16.mxu0 0
      %1418 = vmatpush2.bf16.msra.mxu0 0
      %1419 = vmatprep.subr.bf16.mxu0 0
      %1420 = vmatpush2.bf16.msra.mxu0 0
      %1421 = vmatprep.subr.bf16.mxu0 0
      %1422 = vmatpush2.bf16.msra.mxu0 0
      %1423 = vmatprep.subr.bf16.mxu0 0
      %1424 = vmatpush2.bf16.msra.mxu0 0
      %1425 = vmatprep.subr.bf16.mxu0 0
      %1426 = vmatpush2.bf16.msra.mxu0 0
      %1427 = vmatprep.subr.bf16.mxu0 0
      %1428 = vmatpush2.bf16.msra.mxu0 0
      %1429 = vmatprep.subr.bf16.mxu0 0
      %1430 = vmatpush2.bf16.msra.mxu0 0
      %1431 = vmatprep.subr.bf16.mxu0 0
      %1432 = vmatpush2.bf16.msra.mxu0 0
      %1433 = vmatprep.mubr.bf16.mxu0 0
      %1434 = vmatmul.mubr.bf16.gmra.mxu0 %v1399
      %v1435 = vpop.f32.mrf.mxu0
      %v1436 = vadd.f32 0.0, %v1435
      %v1437 = vpop.f32.mrf.mxu0
      %v1438 = vpop.f32.mrf.mxu0
      %v1439 = vpop.f32.mrf.mxu0
      %1440 = vdwg.mxu0
      %v1441 = vlaneseq
      %v1442 = vshrl.u32 %v1441, 7
      %v1443 = vsub.s32 0, %v1442
      %v1444 = vrot.slane %v1436, %v1443
      %v1445 = vadd.f32 %v1365, %v1444
      %v1446 = vadd.f32 %v1366, %v1444
      %v1447 = vadd.f32 %v1367, %v1444
      %v1448 = vadd.f32 %v1368, %v1444
      %v1449 = vadd.f32 %v1369, %v1444
      %v1450 = vadd.f32 %v1370, %v1444
      %v1451 = vadd.f32 %v1371, %v1444
      %v1452 = vadd.f32 %v1372, %v1444
      %v1453 = vadd.f32 %v1373, %v1444
      %v1454 = vadd.f32 %v1374, %v1444
      %v1455 = vadd.f32 %v1375, %v1444
      %v1456 = vadd.f32 %v1376, %v1444
      %v1457 = vadd.f32 %v1377, %v1444
      %v1458 = vadd.f32 %v1378, %v1444
      %v1459 = vadd.f32 %v1379, %v1444
      %v1460 = vadd.f32 %v1380, %v1444
      %v1461 = vadd.f32 %v1381, %v1444
      %v1462 = vadd.f32 %v1382, %v1444
      %v1463 = vadd.f32 %v1383, %v1444
      %v1464 = vadd.f32 %v1384, %v1444
      %v1465 = vadd.f32 %v1385, %v1444
      %v1466 = vadd.f32 %v1386, %v1444
      %v1467 = vadd.f32 %v1387, %v1444
      %v1468 = vadd.f32 %v1388, %v1444
      %v1469 = vadd.f32 %v1389, %v1444
      %v1470 = vadd.f32 %v1390, %v1444
      %v1471 = vpack.c.bf16 %v870, %v870
      %vm1472 = vcmask 64512
      %v1474 = vsel %vm1472, %v1471, 0
      %vm1476 = vcmask 1043456
      %v1478 = vsel %vm1476, %v876, 0
      %1480 = vmatprep.subr.bf16.mxu0 0
      %1481 = vmatpush1.bf16.msra.mxu0 0
      %1482 = vmatprep.subr.bf16.mxu0 0
      %1483 = vmatpush1.bf16.msra.mxu0 0
      %1484 = vmatprep.subr.bf16.mxu0 0
      %1485 = vmatpush1.bf16.msra.mxu0 0
      %1486 = vmatprep.subr.bf16.mxu0 0
      %1487 = vmatpush1.bf16.msra.mxu0 0
      %1488 = vmatprep.subr.bf16.mxu0 0
      %1489 = vmatpush1.bf16.msra.mxu0 0
      %1490 = vmatprep.subr.bf16.mxu0 0
      %1491 = vmatpush1.bf16.msra.mxu0 0
      %1492 = vmatprep.subr.bf16.mxu0 0
      %1493 = vmatpush1.bf16.msra.mxu0 0
      %1494 = vmatprep.subr.bf16.mxu0 0
      %1495 = vmatpush1.bf16.msra.mxu0 %v1478
      %1496 = vmatprep.subr.bf16.mxu0 0
      %1497 = vmatpush2.bf16.msra.mxu0 0
      %1498 = vmatprep.subr.bf16.mxu0 0
      %1499 = vmatpush2.bf16.msra.mxu0 0
      %1500 = vmatprep.subr.bf16.mxu0 0
      %1501 = vmatpush2.bf16.msra.mxu0 0
      %1502 = vmatprep.subr.bf16.mxu0 0
      %1503 = vmatpush2.bf16.msra.mxu0 0
      %1504 = vmatprep.subr.bf16.mxu0 0
      %1505 = vmatpush2.bf16.msra.mxu0 0
      %1506 = vmatprep.subr.bf16.mxu0 0
      %1507 = vmatpush2.bf16.msra.mxu0 0
      %1508 = vmatprep.subr.bf16.mxu0 0
      %1509 = vmatpush2.bf16.msra.mxu0 0
      %1510 = vmatprep.subr.bf16.mxu0 0
      %1511 = vmatpush2.bf16.msra.mxu0 0
      %1512 = vmatprep.mubr.bf16.mxu0 0
      %1513 = vmatmul.mubr.bf16.gmra.mxu0 %v1474
      %v1514 = vpop.f32.mrf.mxu0
      %v1515 = vadd.f32 0.0, %v1514
      %v1516 = vpop.f32.mrf.mxu0
      %v1517 = vpop.f32.mrf.mxu0
      %v1518 = vpop.f32.mrf.mxu0
      %1519 = vdwg.mxu0
      %v1520 = vlaneseq
      %v1521 = vshrl.u32 %v1520, 7
      %v1522 = vsub.s32 0, %v1521
      %v1523 = vrot.slane %v1515, %v1522
      %v1524 = vadd.f32 %v1445, %v1523
      %v1525 = vadd.f32 %v1446, %v1523
      %v1526 = vadd.f32 %v1447, %v1523
      %v1527 = vadd.f32 %v1448, %v1523
      %v1528 = vadd.f32 %v1449, %v1523
      %v1529 = vadd.f32 %v1450, %v1523
      %v1530 = vadd.f32 %v1451, %v1523
      %v1531 = vadd.f32 %v1452, %v1523
      %v1532 = vadd.f32 %v1453, %v1523
      %v1533 = vadd.f32 %v1454, %v1523
      %v1534 = vadd.f32 %v1455, %v1523
      %v1535 = vadd.f32 %v1456, %v1523
      %v1536 = vadd.f32 %v1457, %v1523
      %v1537 = vadd.f32 %v1458, %v1523
      %v1538 = vadd.f32 %v1459, %v1523
      %v1539 = vadd.f32 %v1460, %v1523
      %v1540 = vadd.f32 %v1461, %v1523
      %v1541 = vadd.f32 %v1462, %v1523
      %v1542 = vadd.f32 %v1463, %v1523
      %v1543 = vadd.f32 %v1464, %v1523
      %v1544 = vadd.f32 %v1465, %v1523
      %v1545 = vadd.f32 %v1466, %v1523
      %v1546 = vadd.f32 %v1467, %v1523
      %v1547 = vadd.f32 %v1468, %v1523
      %v1548 = vadd.f32 %v1469, %v1523
      %v1549 = vadd.f32 %v1470, %v1523
      %v1550 = vmax.f32 %v1524, 0.0
      %v1551 = vmax.f32 %v1525, 0.0
      %v1552 = vmax.f32 %v1526, 0.0
      %v1553 = vmax.f32 %v1527, 0.0
      %v1554 = vmax.f32 %v1528, 0.0
      %v1555 = vmax.f32 %v1529, 0.0
      %v1556 = vmax.f32 %v1530, 0.0
      %v1557 = vmax.f32 %v1531, 0.0
      %v1558 = vmax.f32 %v1532, 0.0
      %v1559 = vmax.f32 %v1533, 0.0
      %v1560 = vmax.f32 %v1534, 0.0
      %v1561 = vmax.f32 %v1535, 0.0
      %v1562 = vmax.f32 %v1536, 0.0
      %v1563 = vmax.f32 %v1537, 0.0
      %v1564 = vmax.f32 %v1538, 0.0
      %v1565 = vmax.f32 %v1539, 0.0
      %v1566 = vmax.f32 %v1540, 0.0
      %v1567 = vmax.f32 %v1541, 0.0
      %v1568 = vmax.f32 %v1542, 0.0
      %v1569 = vmax.f32 %v1543, 0.0
      %v1570 = vmax.f32 %v1544, 0.0
      %v1571 = vmax.f32 %v1545, 0.0
      %v1572 = vmax.f32 %v1546, 0.0
      %v1573 = vmax.f32 %v1547, 0.0
      %v1574 = vmax.f32 %v1548, 0.0
      %v1575 = vmax.f32 %v1549, 0.0
      %v1576 = vpack.c.bf16 %v1551, %v1550
      %v1577 = vpack.c.bf16 %v1553, %v1552
      %v1578 = vpack.c.bf16 %v1555, %v1554
      %v1579 = vpack.c.bf16 %v1557, %v1556
      %v1580 = vpack.c.bf16 %v1559, %v1558
      %v1581 = vpack.c.bf16 %v1561, %v1560
      %v1582 = vpack.c.bf16 %v1563, %v1562
      %v1583 = vpack.c.bf16 %v1565, %v1564
      %v1584 = vpack.c.bf16 %v1567, %v1566
      %v1585 = vpack.c.bf16 %v1569, %v1568
      %v1586 = vpack.c.bf16 %v1571, %v1570
      %v1587 = vpack.c.bf16 %v1573, %v1572
      %v1588 = vpack.c.bf16 %v1575, %v1574
      %v1590 = vlaneseq
      %v1591 = vshrl.u32 %v1590, 7
      %v1592 = vsub.s32 0, %v1591
      %v1593 = vrot.slane %v882, %v1592
      %v1599 = vunpack.c.l.b16 %v878
      %v1600 = vunpack.c.l.b16 %v879
      %v1601 = vunpack.c.l.b16 %v880
      %v1602 = vunpack.c.l.b16 %v881
      %v1603 = vpack.c.b16 %v1600, %v1599
      %v1604 = vpack.c.b16 %v1602, %v1601
      %vm1607 = vcmask 261120
      %v1609 = vsel %vm1607, %v1576, 0
      %v1612 = vsel %vm1607, %v1577, 0
      %v1615 = vsel %vm1607, %v1578, 0
      %v1618 = vsel %vm1607, %v1579, 0
      %v1621 = vsel %vm1607, %v1580, 0
      %v1624 = vsel %vm1607, %v1581, 0
      %v1627 = vsel %vm1607, %v1582, 0
      %v1630 = vsel %vm1607, %v1583, 0
      %v1633 = vsel %vm1607, %v1584, 0
      %v1636 = vsel %vm1607, %v1585, 0
      %v1639 = vsel %vm1607, %v1586, 0
      %v1642 = vsel %vm1607, %v1587, 0
      %v1645 = vsel %vm1607, %v1588, 0
      %1647 = vmatprep.subr.bf16.mxu0 0
      %1648 = vmatpush1.bf16.msra.mxu0 0
      %1649 = vmatprep.subr.bf16.mxu0 0
      %1650 = vmatpush1.bf16.msra.mxu0 0
      %1651 = vmatprep.subr.bf16.mxu0 0
      %1652 = vmatpush1.bf16.msra.mxu0 0
      %1653 = vmatprep.subr.bf16.mxu0 0
      %1654 = vmatpush1.bf16.msra.mxu0 0
      %1655 = vmatprep.subr.bf16.mxu0 0
      %1656 = vmatpush1.bf16.msra.mxu0 0
      %1657 = vmatprep.subr.bf16.mxu0 0
      %1658 = vmatpush1.bf16.msra.mxu0 0
      %1659 = vmatprep.subr.bf16.mxu0 0
      %1660 = vmatpush1.bf16.msra.mxu0 %v1604
      %1661 = vmatprep.subr.bf16.mxu0 0
      %1662 = vmatpush1.bf16.msra.mxu0 %v1603
      %1663 = vmatprep.subr.bf16.mxu0 0
      %1664 = vmatpush2.bf16.msra.mxu0 0
      %1665 = vmatprep.subr.bf16.mxu0 0
      %1666 = vmatpush2.bf16.msra.mxu0 0
      %1667 = vmatprep.subr.bf16.mxu0 0
      %1668 = vmatpush2.bf16.msra.mxu0 0
      %1669 = vmatprep.subr.bf16.mxu0 0
      %1670 = vmatpush2.bf16.msra.mxu0 0
      %1671 = vmatprep.subr.bf16.mxu0 0
      %1672 = vmatpush2.bf16.msra.mxu0 0
      %1673 = vmatprep.subr.bf16.mxu0 0
      %1674 = vmatpush2.bf16.msra.mxu0 0
      %1675 = vmatprep.subr.bf16.mxu0 0
      %1676 = vmatpush2.bf16.msra.mxu0 0
      %1677 = vmatprep.subr.bf16.mxu0 0
      %1678 = vmatpush2.bf16.msra.mxu0 0
      %1679 = vmatprep.mubr.bf16.mxu0 0
      %1680 = vmatmul.mubr.bf16.gmra.mxu0 %v1609
      %v1681 = vpop.f32.mrf.mxu0
      %v1682 = vadd.f32 %v1593, %v1681
      %v1683 = vpop.f32.mrf.mxu0
      %v1684 = vpop.f32.mrf.mxu0
      %v1685 = vadd.f32 %v1593, %v1684
      %v1686 = vpop.f32.mrf.mxu0
      %1687 = vmatprep.mubr.bf16.mxu0 0
      %1688 = vmatmul.mubr.bf16.gmra.mxu0 %v1612
      %v1689 = vpop.f32.mrf.mxu0
      %v1690 = vadd.f32 %v1593, %v1689
      %v1691 = vpop.f32.mrf.mxu0
      %v1692 = vpop.f32.mrf.mxu0
      %v1693 = vadd.f32 %v1593, %v1692
      %v1694 = vpop.f32.mrf.mxu0
      %1695 = vmatprep.mubr.bf16.mxu0 0
      %1696 = vmatmul.mubr.bf16.gmra.mxu0 %v1615
      %v1697 = vpop.f32.mrf.mxu0
      %v1698 = vadd.f32 %v1593, %v1697
      %v1699 = vpop.f32.mrf.mxu0
      %v1700 = vpop.f32.mrf.mxu0
      %v1701 = vadd.f32 %v1593, %v1700
      %v1702 = vpop.f32.mrf.mxu0
      %1703 = vmatprep.mubr.bf16.mxu0 0
      %1704 = vmatmul.mubr.bf16.gmra.mxu0 %v1618
      %v1705 = vpop.f32.mrf.mxu0
      %v1706 = vadd.f32 %v1593, %v1705
      %v1707 = vpop.f32.mrf.mxu0
      %v1708 = vpop.f32.mrf.mxu0
      %v1709 = vadd.f32 %v1593, %v1708
      %v1710 = vpop.f32.mrf.mxu0
      %1711 = vmatprep.mubr.bf16.mxu0 0
      %1712 = vmatmul.mubr.bf16.gmra.mxu0 %v1621
      %v1713 = vpop.f32.mrf.mxu0
      %v1714 = vadd.f32 %v1593, %v1713
      %v1715 = vpop.f32.mrf.mxu0
      %v1716 = vpop.f32.mrf.mxu0
      %v1717 = vadd.f32 %v1593, %v1716
      %v1718 = vpop.f32.mrf.mxu0
      %1719 = vmatprep.mubr.bf16.mxu0 0
      %1720 = vmatmul.mubr.bf16.gmra.mxu0 %v1624
      %v1721 = vpop.f32.mrf.mxu0
      %v1722 = vadd.f32 %v1593, %v1721
      %v1723 = vpop.f32.mrf.mxu0
      %v1724 = vpop.f32.mrf.mxu0
      %v1725 = vadd.f32 %v1593, %v1724
      %v1726 = vpop.f32.mrf.mxu0
      %1727 = vmatprep.mubr.bf16.mxu0 0
      %1728 = vmatmul.mubr.bf16.gmra.mxu0 %v1627
      %v1729 = vpop.f32.mrf.mxu0
      %v1730 = vadd.f32 %v1593, %v1729
      %v1731 = vpop.f32.mrf.mxu0
      %v1732 = vpop.f32.mrf.mxu0
      %v1733 = vadd.f32 %v1593, %v1732
      %v1734 = vpop.f32.mrf.mxu0
      %1735 = vmatprep.mubr.bf16.mxu0 0
      %1736 = vmatmul.mubr.bf16.gmra.mxu0 %v1630
      %v1737 = vpop.f32.mrf.mxu0
      %v1738 = vadd.f32 %v1593, %v1737
      %v1739 = vpop.f32.mrf.mxu0
      %v1740 = vpop.f32.mrf.mxu0
      %v1741 = vadd.f32 %v1593, %v1740
      %v1742 = vpop.f32.mrf.mxu0
      %1743 = vmatprep.mubr.bf16.mxu0 0
      %1744 = vmatmul.mubr.bf16.gmra.mxu0 %v1633
      %v1745 = vpop.f32.mrf.mxu0
      %v1746 = vadd.f32 %v1593, %v1745
      %v1747 = vpop.f32.mrf.mxu0
      %v1748 = vpop.f32.mrf.mxu0
      %v1749 = vadd.f32 %v1593, %v1748
      %v1750 = vpop.f32.mrf.mxu0
      %1751 = vmatprep.mubr.bf16.mxu0 0
      %1752 = vmatmul.mubr.bf16.gmra.mxu0 %v1636
      %v1753 = vpop.f32.mrf.mxu0
      %v1754 = vadd.f32 %v1593, %v1753
      %v1755 = vpop.f32.mrf.mxu0
      %v1756 = vpop.f32.mrf.mxu0
      %v1757 = vadd.f32 %v1593, %v1756
      %v1758 = vpop.f32.mrf.mxu0
      %1759 = vmatprep.mubr.bf16.mxu0 0
      %1760 = vmatmul.mubr.bf16.gmra.mxu0 %v1639
      %v1761 = vpop.f32.mrf.mxu0
      %v1762 = vadd.f32 %v1593, %v1761
      %v1763 = vpop.f32.mrf.mxu0
      %v1764 = vpop.f32.mrf.mxu0
      %v1765 = vadd.f32 %v1593, %v1764
      %v1766 = vpop.f32.mrf.mxu0
      %1767 = vmatprep.mubr.bf16.mxu0 0
      %1768 = vmatmul.mubr.bf16.gmra.mxu0 %v1642
      %v1769 = vpop.f32.mrf.mxu0
      %v1770 = vadd.f32 %v1593, %v1769
      %v1771 = vpop.f32.mrf.mxu0
      %v1772 = vpop.f32.mrf.mxu0
      %v1773 = vadd.f32 %v1593, %v1772
      %v1774 = vpop.f32.mrf.mxu0
      %1775 = vmatprep.mubr.bf16.mxu0 0
      %1776 = vmatmul.mubr.bf16.gmra.mxu0 %v1645
      %v1777 = vpop.f32.mrf.mxu0
      %v1778 = vadd.f32 %v1593, %v1777
      %v1779 = vpop.f32.mrf.mxu0
      %v1780 = vpop.f32.mrf.mxu0
      %v1781 = vadd.f32 %v1593, %v1780
      %v1782 = vpop.f32.mrf.mxu0
      %1783 = vdwg.mxu0
      %v1784 = vmax.f32 %v1682, 0.0
      %v1785 = vmax.f32 %v1685, 0.0
      %v1786 = vmax.f32 %v1690, 0.0
      %v1787 = vmax.f32 %v1693, 0.0
      %v1788 = vmax.f32 %v1698, 0.0
      %v1789 = vmax.f32 %v1701, 0.0
      %v1790 = vmax.f32 %v1706, 0.0
      %v1791 = vmax.f32 %v1709, 0.0
      %v1792 = vmax.f32 %v1714, 0.0
      %v1793 = vmax.f32 %v1717, 0.0
      %v1794 = vmax.f32 %v1722, 0.0
      %v1795 = vmax.f32 %v1725, 0.0
      %v1796 = vmax.f32 %v1730, 0.0
      %v1797 = vmax.f32 %v1733, 0.0
      %v1798 = vmax.f32 %v1738, 0.0
      %v1799 = vmax.f32 %v1741, 0.0
      %v1800 = vmax.f32 %v1746, 0.0
      %v1801 = vmax.f32 %v1749, 0.0
      %v1802 = vmax.f32 %v1754, 0.0
      %v1803 = vmax.f32 %v1757, 0.0
      %v1804 = vmax.f32 %v1762, 0.0
      %v1805 = vmax.f32 %v1765, 0.0
      %v1806 = vmax.f32 %v1770, 0.0
      %v1807 = vmax.f32 %v1773, 0.0
      %v1808 = vmax.f32 %v1778, 0.0
      %v1809 = vmax.f32 %v1781, 0.0
      %v1810 = vpack.c.bf16 %v1785, %v1784
      %v1811 = vpack.c.bf16 %v1787, %v1786
      %v1812 = vpack.c.bf16 %v1789, %v1788
      %v1813 = vpack.c.bf16 %v1791, %v1790
      %v1814 = vpack.c.bf16 %v1793, %v1792
      %v1815 = vpack.c.bf16 %v1795, %v1794
      %v1816 = vpack.c.bf16 %v1797, %v1796
      %v1817 = vpack.c.bf16 %v1799, %v1798
      %v1818 = vpack.c.bf16 %v1801, %v1800
      %v1819 = vpack.c.bf16 %v1803, %v1802
      %v1820 = vpack.c.bf16 %v1805, %v1804
      %v1821 = vpack.c.bf16 %v1807, %v1806
      %v1822 = vpack.c.bf16 %v1809, %v1808
      %v1824 = vlaneseq
      %v1825 = vshrl.u32 %v1824, 7
      %v1826 = vsub.s32 0, %v1825
      %v1827 = vrot.slane %v887, %v1826
      %v1833 = vunpack.c.l.b16 %v883
      %v1834 = vunpack.c.l.b16 %v884
      %v1835 = vunpack.c.l.b16 %v885
      %v1836 = vunpack.c.l.b16 %v886
      %v1837 = vpack.c.b16 %v1834, %v1833
      %v1838 = vpack.c.b16 %v1836, %v1835
      %v1842 = vsel %vm1607, %v1810, 0
      %v1845 = vsel %vm1607, %v1811, 0
      %v1848 = vsel %vm1607, %v1812, 0
      %v1851 = vsel %vm1607, %v1813, 0
      %v1854 = vsel %vm1607, %v1814, 0
      %v1857 = vsel %vm1607, %v1815, 0
      %v1860 = vsel %vm1607, %v1816, 0
      %v1863 = vsel %vm1607, %v1817, 0
      %v1866 = vsel %vm1607, %v1818, 0
      %v1869 = vsel %vm1607, %v1819, 0
      %v1872 = vsel %vm1607, %v1820, 0
      %v1875 = vsel %vm1607, %v1821, 0
      %v1878 = vsel %vm1607, %v1822, 0
      %1880 = vmatprep.subr.bf16.mxu0 0
      %1881 = vmatpush1.bf16.msra.mxu0 0
      %1882 = vmatprep.subr.bf16.mxu0 0
      %1883 = vmatpush1.bf16.msra.mxu0 0
      %1884 = vmatprep.subr.bf16.mxu0 0
      %1885 = vmatpush1.bf16.msra.mxu0 0
      %1886 = vmatprep.subr.bf16.mxu0 0
      %1887 = vmatpush1.bf16.msra.mxu0 0
      %1888 = vmatprep.subr.bf16.mxu0 0
      %1889 = vmatpush1.bf16.msra.mxu0 0
      %1890 = vmatprep.subr.bf16.mxu0 0
      %1891 = vmatpush1.bf16.msra.mxu0 0
      %1892 = vmatprep.subr.bf16.mxu0 0
      %1893 = vmatpush1.bf16.msra.mxu0 %v1838
      %1894 = vmatprep.subr.bf16.mxu0 0
      %1895 = vmatpush1.bf16.msra.mxu0 %v1837
      %1896 = vmatprep.subr.bf16.mxu0 0
      %1897 = vmatpush2.bf16.msra.mxu0 0
      %1898 = vmatprep.subr.bf16.mxu0 0
      %1899 = vmatpush2.bf16.msra.mxu0 0
      %1900 = vmatprep.subr.bf16.mxu0 0
      %1901 = vmatpush2.bf16.msra.mxu0 0
      %1902 = vmatprep.subr.bf16.mxu0 0
      %1903 = vmatpush2.bf16.msra.mxu0 0
      %1904 = vmatprep.subr.bf16.mxu0 0
      %1905 = vmatpush2.bf16.msra.mxu0 0
      %1906 = vmatprep.subr.bf16.mxu0 0
      %1907 = vmatpush2.bf16.msra.mxu0 0
      %1908 = vmatprep.subr.bf16.mxu0 0
      %1909 = vmatpush2.bf16.msra.mxu0 0
      %1910 = vmatprep.subr.bf16.mxu0 0
      %1911 = vmatpush2.bf16.msra.mxu0 0
      %1912 = vmatprep.mubr.bf16.mxu0 0
      %1913 = vmatmul.mubr.bf16.gmra.mxu0 %v1842
      %v1914 = vpop.f32.mrf.mxu0
      %v1915 = vadd.f32 %v1827, %v1914
      %v1916 = vpop.f32.mrf.mxu0
      %v1917 = vpop.f32.mrf.mxu0
      %v1918 = vadd.f32 %v1827, %v1917
      %v1919 = vpop.f32.mrf.mxu0
      %1920 = vmatprep.mubr.bf16.mxu0 0
      %1921 = vmatmul.mubr.bf16.gmra.mxu0 %v1845
      %v1922 = vpop.f32.mrf.mxu0
      %v1923 = vadd.f32 %v1827, %v1922
      %v1924 = vpop.f32.mrf.mxu0
      %v1925 = vpop.f32.mrf.mxu0
      %v1926 = vadd.f32 %v1827, %v1925
      %v1927 = vpop.f32.mrf.mxu0
      %1928 = vmatprep.mubr.bf16.mxu0 0
      %1929 = vmatmul.mubr.bf16.gmra.mxu0 %v1848
      %v1930 = vpop.f32.mrf.mxu0
      %v1931 = vadd.f32 %v1827, %v1930
      %v1932 = vpop.f32.mrf.mxu0
      %v1933 = vpop.f32.mrf.mxu0
      %v1934 = vadd.f32 %v1827, %v1933
      %v1935 = vpop.f32.mrf.mxu0
      %1936 = vmatprep.mubr.bf16.mxu0 0
      %1937 = vmatmul.mubr.bf16.gmra.mxu0 %v1851
      %v1938 = vpop.f32.mrf.mxu0
      %v1939 = vadd.f32 %v1827, %v1938
      %v1940 = vpop.f32.mrf.mxu0
      %v1941 = vpop.f32.mrf.mxu0
      %v1942 = vadd.f32 %v1827, %v1941
      %v1943 = vpop.f32.mrf.mxu0
      %1944 = vmatprep.mubr.bf16.mxu0 0
      %1945 = vmatmul.mubr.bf16.gmra.mxu0 %v1854
      %v1946 = vpop.f32.mrf.mxu0
      %v1947 = vadd.f32 %v1827, %v1946
      %v1948 = vpop.f32.mrf.mxu0
      %v1949 = vpop.f32.mrf.mxu0
      %v1950 = vadd.f32 %v1827, %v1949
      %v1951 = vpop.f32.mrf.mxu0
      %1952 = vmatprep.mubr.bf16.mxu0 0
      %1953 = vmatmul.mubr.bf16.gmra.mxu0 %v1857
      %v1954 = vpop.f32.mrf.mxu0
      %v1955 = vadd.f32 %v1827, %v1954
      %v1956 = vpop.f32.mrf.mxu0
      %v1957 = vpop.f32.mrf.mxu0
      %v1958 = vadd.f32 %v1827, %v1957
      %v1959 = vpop.f32.mrf.mxu0
      %1960 = vmatprep.mubr.bf16.mxu0 0
      %1961 = vmatmul.mubr.bf16.gmra.mxu0 %v1860
      %v1962 = vpop.f32.mrf.mxu0
      %v1963 = vadd.f32 %v1827, %v1962
      %v1964 = vpop.f32.mrf.mxu0
      %v1965 = vpop.f32.mrf.mxu0
      %v1966 = vadd.f32 %v1827, %v1965
      %v1967 = vpop.f32.mrf.mxu0
      %1968 = vmatprep.mubr.bf16.mxu0 0
      %1969 = vmatmul.mubr.bf16.gmra.mxu0 %v1863
      %v1970 = vpop.f32.mrf.mxu0
      %v1971 = vadd.f32 %v1827, %v1970
      %v1972 = vpop.f32.mrf.mxu0
      %v1973 = vpop.f32.mrf.mxu0
      %v1974 = vadd.f32 %v1827, %v1973
      %v1975 = vpop.f32.mrf.mxu0
      %1976 = vmatprep.mubr.bf16.mxu0 0
      %1977 = vmatmul.mubr.bf16.gmra.mxu0 %v1866
      %v1978 = vpop.f32.mrf.mxu0
      %v1979 = vadd.f32 %v1827, %v1978
      %v1980 = vpop.f32.mrf.mxu0
      %v1981 = vpop.f32.mrf.mxu0
      %v1982 = vadd.f32 %v1827, %v1981
      %v1983 = vpop.f32.mrf.mxu0
      %1984 = vmatprep.mubr.bf16.mxu0 0
      %1985 = vmatmul.mubr.bf16.gmra.mxu0 %v1869
      %v1986 = vpop.f32.mrf.mxu0
      %v1987 = vadd.f32 %v1827, %v1986
      %v1988 = vpop.f32.mrf.mxu0
      %v1989 = vpop.f32.mrf.mxu0
      %v1990 = vadd.f32 %v1827, %v1989
      %v1991 = vpop.f32.mrf.mxu0
      %1992 = vmatprep.mubr.bf16.mxu0 0
      %1993 = vmatmul.mubr.bf16.gmra.mxu0 %v1872
      %v1994 = vpop.f32.mrf.mxu0
      %v1995 = vadd.f32 %v1827, %v1994
      %v1996 = vpop.f32.mrf.mxu0
      %v1997 = vpop.f32.mrf.mxu0
      %v1998 = vadd.f32 %v1827, %v1997
      %v1999 = vpop.f32.mrf.mxu0
      %2000 = vmatprep.mubr.bf16.mxu0 0
      %2001 = vmatmul.mubr.bf16.gmra.mxu0 %v1875
      %v2002 = vpop.f32.mrf.mxu0
      %v2003 = vadd.f32 %v1827, %v2002
      %v2004 = vpop.f32.mrf.mxu0
      %v2005 = vpop.f32.mrf.mxu0
      %v2006 = vadd.f32 %v1827, %v2005
      %v2007 = vpop.f32.mrf.mxu0
      %2008 = vmatprep.mubr.bf16.mxu0 0
      %2009 = vmatmul.mubr.bf16.gmra.mxu0 %v1878
      %v2010 = vpop.f32.mrf.mxu0
      %v2011 = vadd.f32 %v1827, %v2010
      %v2012 = vpop.f32.mrf.mxu0
      %v2013 = vpop.f32.mrf.mxu0
      %v2014 = vadd.f32 %v1827, %v2013
      %v2015 = vpop.f32.mrf.mxu0
      %2016 = vdwg.mxu0
      %v2017 = vld [vmem:[%s13] sm:$0x3]
      %v2018 = vld [vmem:[%s14] sm:$0xf]
      %v2019 = vld [vmem:[%s14 + $0x4] sm:$0xf]
      %v2020 = vld [vmem:[%s15] sm:$0xf]
      %v2021 = vld [vmem:[%s15 + $0x4] sm:$0xf]
      %v2022 = vld [vmem:[%s16] sm:$0xf]
      %v2023 = vld [vmem:[%s17] sm:$0x1]
      %v2024 = vld [vmem:[%s18] sm:$0x1]
      %v2025 = vld [vmem:[%s19] sm:$0xf]
      %v2026 = vld [vmem:[%s19 + $0x4] sm:$0xf]
      %v2027 = vld [vmem:[%s19 + $0x8] sm:$0xf]
      %v2028 = vld [vmem:[%s19 + $0xc] sm:$0xf]
      %v2029 = vld [vmem:[%s20] sm:$0x1]
      %v2030 = vld [vmem:[%s21] sm:$0xf]
      %v2031 = vld [vmem:[%s21 + $0x4] sm:$0xf]
      %v2032 = vld [vmem:[%s21 + $0x8] sm:$0xf]
      %v2033 = vld [vmem:[%s21 + $0xc] sm:$0xf]
      %v2034 = vld [vmem:[%s22] sm:$0x1]
      %v2036 = vand.u32 %v2017, %v944
      %2038 = vmatprep.subr.bf16.mxu0 0
      %2039 = vmatpush1.bf16.msra.mxu0 0
      %2040 = vmatprep.subr.bf16.mxu0 0
      %2041 = vmatpush1.bf16.msra.mxu0 0
      %2042 = vmatprep.subr.bf16.mxu0 0
      %2043 = vmatpush1.bf16.msra.mxu0 0
      %2044 = vmatprep.subr.bf16.mxu0 0
      %2045 = vmatpush1.bf16.msra.mxu0 0
      %2046 = vmatprep.subr.bf16.mxu0 0
      %2047 = vmatpush1.bf16.msra.mxu0 0
      %2048 = vmatprep.subr.bf16.mxu0 0
      %2049 = vmatpush1.bf16.msra.mxu0 0
      %2050 = vmatprep.subr.bf16.mxu0 0
      %2051 = vmatpush1.bf16.msra.mxu0 0
      %2052 = vmatprep.subr.bf16.mxu0 0
      %2053 = vmatpush1.bf16.msra.mxu0 %v2036
      %2054 = vmatprep.subr.bf16.mxu0 0
      %2055 = vmatpush2.bf16.msra.mxu0 0
      %2056 = vmatprep.subr.bf16.mxu0 0
      %2057 = vmatpush2.bf16.msra.mxu0 0
      %2058 = vmatprep.subr.bf16.mxu0 0
      %2059 = vmatpush2.bf16.msra.mxu0 0
      %2060 = vmatprep.subr.bf16.mxu0 0
      %2061 = vmatpush2.bf16.msra.mxu0 0
      %2062 = vmatprep.subr.bf16.mxu0 0
      %2063 = vmatpush2.bf16.msra.mxu0 0
      %2064 = vmatprep.subr.bf16.mxu0 0
      %2065 = vmatpush2.bf16.msra.mxu0 0
      %2066 = vmatprep.subr.bf16.mxu0 0
      %2067 = vmatpush2.bf16.msra.mxu0 0
      %2068 = vmatprep.subr.bf16.mxu0 0
      %2069 = vmatpush2.bf16.msra.mxu0 0
      %2070 = vmatprep.mubr.bf16.mxu0 0
      %2071 = vmatmul.mubr.bf16.gmra.mxu0 %v903
      %v2072 = vpop.f32.mrf.mxu0
      %v2073 = vadd.f32 0.0, %v2072
      %v2074 = vpop.f32.mrf.mxu0
      %v2075 = vpop.f32.mrf.mxu0
      %v2076 = vadd.f32 0.0, %v2075
      %v2077 = vpop.f32.mrf.mxu0
      %2078 = vmatprep.mubr.bf16.mxu0 0
      %2079 = vmatmul.mubr.bf16.gmra.mxu0 %v906
      %v2080 = vpop.f32.mrf.mxu0
      %v2081 = vadd.f32 0.0, %v2080
      %v2082 = vpop.f32.mrf.mxu0
      %v2083 = vpop.f32.mrf.mxu0
      %v2084 = vadd.f32 0.0, %v2083
      %v2085 = vpop.f32.mrf.mxu0
      %2086 = vmatprep.mubr.bf16.mxu0 0
      %2087 = vmatmul.mubr.bf16.gmra.mxu0 %v909
      %v2088 = vpop.f32.mrf.mxu0
      %v2089 = vadd.f32 0.0, %v2088
      %v2090 = vpop.f32.mrf.mxu0
      %v2091 = vpop.f32.mrf.mxu0
      %v2092 = vadd.f32 0.0, %v2091
      %v2093 = vpop.f32.mrf.mxu0
      %2094 = vmatprep.mubr.bf16.mxu0 0
      %2095 = vmatmul.mubr.bf16.gmra.mxu0 %v912
      %v2096 = vpop.f32.mrf.mxu0
      %v2097 = vadd.f32 0.0, %v2096
      %v2098 = vpop.f32.mrf.mxu0
      %v2099 = vpop.f32.mrf.mxu0
      %v2100 = vadd.f32 0.0, %v2099
      %v2101 = vpop.f32.mrf.mxu0
      %2102 = vmatprep.mubr.bf16.mxu0 0
      %2103 = vmatmul.mubr.bf16.gmra.mxu0 %v915
      %v2104 = vpop.f32.mrf.mxu0
      %v2105 = vadd.f32 0.0, %v2104
      %v2106 = vpop.f32.mrf.mxu0
      %v2107 = vpop.f32.mrf.mxu0
      %v2108 = vadd.f32 0.0, %v2107
      %v2109 = vpop.f32.mrf.mxu0
      %2110 = vmatprep.mubr.bf16.mxu0 0
      %2111 = vmatmul.mubr.bf16.gmra.mxu0 %v918
      %v2112 = vpop.f32.mrf.mxu0
      %v2113 = vadd.f32 0.0, %v2112
      %v2114 = vpop.f32.mrf.mxu0
      %v2115 = vpop.f32.mrf.mxu0
      %v2116 = vadd.f32 0.0, %v2115
      %v2117 = vpop.f32.mrf.mxu0
      %2118 = vmatprep.mubr.bf16.mxu0 0
      %2119 = vmatmul.mubr.bf16.gmra.mxu0 %v921
      %v2120 = vpop.f32.mrf.mxu0
      %v2121 = vadd.f32 0.0, %v2120
      %v2122 = vpop.f32.mrf.mxu0
      %v2123 = vpop.f32.mrf.mxu0
      %v2124 = vadd.f32 0.0, %v2123
      %v2125 = vpop.f32.mrf.mxu0
      %2126 = vmatprep.mubr.bf16.mxu0 0
      %2127 = vmatmul.mubr.bf16.gmra.mxu0 %v924
      %v2128 = vpop.f32.mrf.mxu0
      %v2129 = vadd.f32 0.0, %v2128
      %v2130 = vpop.f32.mrf.mxu0
      %v2131 = vpop.f32.mrf.mxu0
      %v2132 = vadd.f32 0.0, %v2131
      %v2133 = vpop.f32.mrf.mxu0
      %2134 = vmatprep.mubr.bf16.mxu0 0
      %2135 = vmatmul.mubr.bf16.gmra.mxu0 %v927
      %v2136 = vpop.f32.mrf.mxu0
      %v2137 = vadd.f32 0.0, %v2136
      %v2138 = vpop.f32.mrf.mxu0
      %v2139 = vpop.f32.mrf.mxu0
      %v2140 = vadd.f32 0.0, %v2139
      %v2141 = vpop.f32.mrf.mxu0
      %2142 = vmatprep.mubr.bf16.mxu0 0
      %2143 = vmatmul.mubr.bf16.gmra.mxu0 %v930
      %v2144 = vpop.f32.mrf.mxu0
      %v2145 = vadd.f32 0.0, %v2144
      %v2146 = vpop.f32.mrf.mxu0
      %v2147 = vpop.f32.mrf.mxu0
      %v2148 = vadd.f32 0.0, %v2147
      %v2149 = vpop.f32.mrf.mxu0
      %2150 = vmatprep.mubr.bf16.mxu0 0
      %2151 = vmatmul.mubr.bf16.gmra.mxu0 %v933
      %v2152 = vpop.f32.mrf.mxu0
      %v2153 = vadd.f32 0.0, %v2152
      %v2154 = vpop.f32.mrf.mxu0
      %v2155 = vpop.f32.mrf.mxu0
      %v2156 = vadd.f32 0.0, %v2155
      %v2157 = vpop.f32.mrf.mxu0
      %2158 = vmatprep.mubr.bf16.mxu0 0
      %2159 = vmatmul.mubr.bf16.gmra.mxu0 %v936
      %v2160 = vpop.f32.mrf.mxu0
      %v2161 = vadd.f32 0.0, %v2160
      %v2162 = vpop.f32.mrf.mxu0
      %v2163 = vpop.f32.mrf.mxu0
      %v2164 = vadd.f32 0.0, %v2163
      %v2165 = vpop.f32.mrf.mxu0
      %2166 = vmatprep.mubr.bf16.mxu0 0
      %2167 = vmatmul.mubr.bf16.gmra.mxu0 %v939
      %v2168 = vpop.f32.mrf.mxu0
      %v2169 = vadd.f32 0.0, %v2168
      %v2170 = vpop.f32.mrf.mxu0
      %v2171 = vpop.f32.mrf.mxu0
      %v2172 = vadd.f32 0.0, %v2171
      %v2173 = vpop.f32.mrf.mxu0
      %2174 = vdwg.mxu0
      %v2176 = vlaneseq
      %v2177 = vshrl.u32 %v2176, 7
      %v2178 = vsub.s32 0, %v2177
      %v2179 = vrot.slane %v2024, %v2178
      %v2181 = vadd.f32 %v2179, %v2073
      %v2182 = vadd.f32 %v2179, %v2076
      %v2183 = vadd.f32 %v2179, %v2081
      %v2184 = vadd.f32 %v2179, %v2084
      %v2185 = vadd.f32 %v2179, %v2089
      %v2186 = vadd.f32 %v2179, %v2092
      %v2187 = vadd.f32 %v2179, %v2097
      %v2188 = vadd.f32 %v2179, %v2100
      %v2189 = vadd.f32 %v2179, %v2105
      %v2190 = vadd.f32 %v2179, %v2108
      %v2191 = vadd.f32 %v2179, %v2113
      %v2192 = vadd.f32 %v2179, %v2116
      %v2193 = vadd.f32 %v2179, %v2121
      %v2194 = vadd.f32 %v2179, %v2124
      %v2195 = vadd.f32 %v2179, %v2129
      %v2196 = vadd.f32 %v2179, %v2132
      %v2197 = vadd.f32 %v2179, %v2137
      %v2198 = vadd.f32 %v2179, %v2140
      %v2199 = vadd.f32 %v2179, %v2145
      %v2200 = vadd.f32 %v2179, %v2148
      %v2201 = vadd.f32 %v2179, %v2153
      %v2202 = vadd.f32 %v2179, %v2156
      %v2203 = vadd.f32 %v2179, %v2161
      %v2204 = vadd.f32 %v2179, %v2164
      %v2205 = vadd.f32 %v2179, %v2169
      %v2206 = vadd.f32 %v2179, %v2172
      %v2209 = vunpack.c.l.b16 %v2018
      %v2210 = vunpack.c.l.b16 %v2019
      %v2211 = vpack.c.b16 %v2210, %v2209
      %2213 = vmatprep.subr.bf16.mxu0 0
      %2214 = vmatpush1.bf16.msra.mxu0 0
      %2215 = vmatprep.subr.bf16.mxu0 0
      %2216 = vmatpush1.bf16.msra.mxu0 0
      %2217 = vmatprep.subr.bf16.mxu0 0
      %2218 = vmatpush1.bf16.msra.mxu0 0
      %2219 = vmatprep.subr.bf16.mxu0 0
      %2220 = vmatpush1.bf16.msra.mxu0 0
      %2221 = vmatprep.subr.bf16.mxu0 0
      %2222 = vmatpush1.bf16.msra.mxu0 0
      %2223 = vmatprep.subr.bf16.mxu0 0
      %2224 = vmatpush1.bf16.msra.mxu0 0
      %2225 = vmatprep.subr.bf16.mxu0 0
      %2226 = vmatpush1.bf16.msra.mxu0 0
      %2227 = vmatprep.subr.bf16.mxu0 0
      %2228 = vmatpush1.bf16.msra.mxu0 %v2211
      %2229 = vmatprep.subr.bf16.mxu0 0
      %2230 = vmatpush2.bf16.msra.mxu0 0
      %2231 = vmatprep.subr.bf16.mxu0 0
      %2232 = vmatpush2.bf16.msra.mxu0 0
      %2233 = vmatprep.subr.bf16.mxu0 0
      %2234 = vmatpush2.bf16.msra.mxu0 0
      %2235 = vmatprep.subr.bf16.mxu0 0
      %2236 = vmatpush2.bf16.msra.mxu0 0
      %2237 = vmatprep.subr.bf16.mxu0 0
      %2238 = vmatpush2.bf16.msra.mxu0 0
      %2239 = vmatprep.subr.bf16.mxu0 0
      %2240 = vmatpush2.bf16.msra.mxu0 0
      %2241 = vmatprep.subr.bf16.mxu0 0
      %2242 = vmatpush2.bf16.msra.mxu0 0
      %2243 = vmatprep.subr.bf16.mxu0 0
      %2244 = vmatpush2.bf16.msra.mxu0 0
      %2245 = vmatprep.mubr.bf16.mxu0 0
      %2246 = vmatmul.mubr.bf16.gmra.mxu0 %v1190
      %v2247 = vpop.f32.mrf.mxu0
      %v2248 = vadd.f32 0.0, %v2247
      %v2249 = vpop.f32.mrf.mxu0
      %v2250 = vpop.f32.mrf.mxu0
      %v2251 = vadd.f32 0.0, %v2250
      %v2252 = vpop.f32.mrf.mxu0
      %2253 = vmatprep.mubr.bf16.mxu0 0
      %2254 = vmatmul.mubr.bf16.gmra.mxu0 %v1193
      %v2255 = vpop.f32.mrf.mxu0
      %v2256 = vadd.f32 0.0, %v2255
      %v2257 = vpop.f32.mrf.mxu0
      %v2258 = vpop.f32.mrf.mxu0
      %v2259 = vadd.f32 0.0, %v2258
      %v2260 = vpop.f32.mrf.mxu0
      %2261 = vmatprep.mubr.bf16.mxu0 0
      %2262 = vmatmul.mubr.bf16.gmra.mxu0 %v1196
      %v2263 = vpop.f32.mrf.mxu0
      %v2264 = vadd.f32 0.0, %v2263
      %v2265 = vpop.f32.mrf.mxu0
      %v2266 = vpop.f32.mrf.mxu0
      %v2267 = vadd.f32 0.0, %v2266
      %v2268 = vpop.f32.mrf.mxu0
      %2269 = vmatprep.mubr.bf16.mxu0 0
      %2270 = vmatmul.mubr.bf16.gmra.mxu0 %v1199
      %v2271 = vpop.f32.mrf.mxu0
      %v2272 = vadd.f32 0.0, %v2271
      %v2273 = vpop.f32.mrf.mxu0
      %v2274 = vpop.f32.mrf.mxu0
      %v2275 = vadd.f32 0.0, %v2274
      %v2276 = vpop.f32.mrf.mxu0
      %2277 = vmatprep.mubr.bf16.mxu0 0
      %2278 = vmatmul.mubr.bf16.gmra.mxu0 %v1202
      %v2279 = vpop.f32.mrf.mxu0
      %v2280 = vadd.f32 0.0, %v2279
      %v2281 = vpop.f32.mrf.mxu0
      %v2282 = vpop.f32.mrf.mxu0
      %v2283 = vadd.f32 0.0, %v2282
      %v2284 = vpop.f32.mrf.mxu0
      %2285 = vmatprep.mubr.bf16.mxu0 0
      %2286 = vmatmul.mubr.bf16.gmra.mxu0 %v1205
      %v2287 = vpop.f32.mrf.mxu0
      %v2288 = vadd.f32 0.0, %v2287
      %v2289 = vpop.f32.mrf.mxu0
      %v2290 = vpop.f32.mrf.mxu0
      %v2291 = vadd.f32 0.0, %v2290
      %v2292 = vpop.f32.mrf.mxu0
      %2293 = vmatprep.mubr.bf16.mxu0 0
      %2294 = vmatmul.mubr.bf16.gmra.mxu0 %v1208
      %v2295 = vpop.f32.mrf.mxu0
      %v2296 = vadd.f32 0.0, %v2295
      %v2297 = vpop.f32.mrf.mxu0
      %v2298 = vpop.f32.mrf.mxu0
      %v2299 = vadd.f32 0.0, %v2298
      %v2300 = vpop.f32.mrf.mxu0
      %2301 = vmatprep.mubr.bf16.mxu0 0
      %2302 = vmatmul.mubr.bf16.gmra.mxu0 %v1211
      %v2303 = vpop.f32.mrf.mxu0
      %v2304 = vadd.f32 0.0, %v2303
      %v2305 = vpop.f32.mrf.mxu0
      %v2306 = vpop.f32.mrf.mxu0
      %v2307 = vadd.f32 0.0, %v2306
      %v2308 = vpop.f32.mrf.mxu0
      %2309 = vmatprep.mubr.bf16.mxu0 0
      %2310 = vmatmul.mubr.bf16.gmra.mxu0 %v1214
      %v2311 = vpop.f32.mrf.mxu0
      %v2312 = vadd.f32 0.0, %v2311
      %v2313 = vpop.f32.mrf.mxu0
      %v2314 = vpop.f32.mrf.mxu0
      %v2315 = vadd.f32 0.0, %v2314
      %v2316 = vpop.f32.mrf.mxu0
      %2317 = vmatprep.mubr.bf16.mxu0 0
      %2318 = vmatmul.mubr.bf16.gmra.mxu0 %v1217
      %v2319 = vpop.f32.mrf.mxu0
      %v2320 = vadd.f32 0.0, %v2319
      %v2321 = vpop.f32.mrf.mxu0
      %v2322 = vpop.f32.mrf.mxu0
      %v2323 = vadd.f32 0.0, %v2322
      %v2324 = vpop.f32.mrf.mxu0
      %2325 = vmatprep.mubr.bf16.mxu0 0
      %2326 = vmatmul.mubr.bf16.gmra.mxu0 %v1220
      %v2327 = vpop.f32.mrf.mxu0
      %v2328 = vadd.f32 0.0, %v2327
      %v2329 = vpop.f32.mrf.mxu0
      %v2330 = vpop.f32.mrf.mxu0
      %v2331 = vadd.f32 0.0, %v2330
      %v2332 = vpop.f32.mrf.mxu0
      %2333 = vmatprep.mubr.bf16.mxu0 0
      %2334 = vmatmul.mubr.bf16.gmra.mxu0 %v1223
      %v2335 = vpop.f32.mrf.mxu0
      %v2336 = vadd.f32 0.0, %v2335
      %v2337 = vpop.f32.mrf.mxu0
      %v2338 = vpop.f32.mrf.mxu0
      %v2339 = vadd.f32 0.0, %v2338
      %v2340 = vpop.f32.mrf.mxu0
      %2341 = vmatprep.mubr.bf16.mxu0 0
      %2342 = vmatmul.mubr.bf16.gmra.mxu0 %v1226
      %v2343 = vpop.f32.mrf.mxu0
      %v2344 = vadd.f32 0.0, %v2343
      %v2345 = vpop.f32.mrf.mxu0
      %v2346 = vpop.f32.mrf.mxu0
      %v2347 = vadd.f32 0.0, %v2346
      %v2348 = vpop.f32.mrf.mxu0
      %2349 = vdwg.mxu0
      %v2350 = vadd.f32 %v2181, %v2248
      %v2351 = vadd.f32 %v2182, %v2251
      %v2352 = vadd.f32 %v2183, %v2256
      %v2353 = vadd.f32 %v2184, %v2259
      %v2354 = vadd.f32 %v2185, %v2264
      %v2355 = vadd.f32 %v2186, %v2267
      %v2356 = vadd.f32 %v2187, %v2272
      %v2357 = vadd.f32 %v2188, %v2275
      %v2358 = vadd.f32 %v2189, %v2280
      %v2359 = vadd.f32 %v2190, %v2283
      %v2360 = vadd.f32 %v2191, %v2288
      %v2361 = vadd.f32 %v2192, %v2291
      %v2362 = vadd.f32 %v2193, %v2296
      %v2363 = vadd.f32 %v2194, %v2299
      %v2364 = vadd.f32 %v2195, %v2304
      %v2365 = vadd.f32 %v2196, %v2307
      %v2366 = vadd.f32 %v2197, %v2312
      %v2367 = vadd.f32 %v2198, %v2315
      %v2368 = vadd.f32 %v2199, %v2320
      %v2369 = vadd.f32 %v2200, %v2323
      %v2370 = vadd.f32 %v2201, %v2328
      %v2371 = vadd.f32 %v2202, %v2331
      %v2372 = vadd.f32 %v2203, %v2336
      %v2373 = vadd.f32 %v2204, %v2339
      %v2374 = vadd.f32 %v2205, %v2344
      %v2375 = vadd.f32 %v2206, %v2347
      %v2378 = vunpack.c.l.b16 %v2020
      %v2379 = vunpack.c.l.b16 %v2021
      %v2380 = vpack.c.b16 %v2379, %v2378
      %2382 = vmatprep.subr.bf16.mxu0 0
      %2383 = vmatpush1.bf16.msra.mxu0 0
      %2384 = vmatprep.subr.bf16.mxu0 0
      %2385 = vmatpush1.bf16.msra.mxu0 0
      %2386 = vmatprep.subr.bf16.mxu0 0
      %2387 = vmatpush1.bf16.msra.mxu0 0
      %2388 = vmatprep.subr.bf16.mxu0 0
      %2389 = vmatpush1.bf16.msra.mxu0 0
      %2390 = vmatprep.subr.bf16.mxu0 0
      %2391 = vmatpush1.bf16.msra.mxu0 0
      %2392 = vmatprep.subr.bf16.mxu0 0
      %2393 = vmatpush1.bf16.msra.mxu0 0
      %2394 = vmatprep.subr.bf16.mxu0 0
      %2395 = vmatpush1.bf16.msra.mxu0 0
      %2396 = vmatprep.subr.bf16.mxu0 0
      %2397 = vmatpush1.bf16.msra.mxu0 %v2380
      %2398 = vmatprep.subr.bf16.mxu0 0
      %2399 = vmatpush2.bf16.msra.mxu0 0
      %2400 = vmatprep.subr.bf16.mxu0 0
      %2401 = vmatpush2.bf16.msra.mxu0 0
      %2402 = vmatprep.subr.bf16.mxu0 0
      %2403 = vmatpush2.bf16.msra.mxu0 0
      %2404 = vmatprep.subr.bf16.mxu0 0
      %2405 = vmatpush2.bf16.msra.mxu0 0
      %2406 = vmatprep.subr.bf16.mxu0 0
      %2407 = vmatpush2.bf16.msra.mxu0 0
      %2408 = vmatprep.subr.bf16.mxu0 0
      %2409 = vmatpush2.bf16.msra.mxu0 0
      %2410 = vmatprep.subr.bf16.mxu0 0
      %2411 = vmatpush2.bf16.msra.mxu0 0
      %2412 = vmatprep.subr.bf16.mxu0 0
      %2413 = vmatpush2.bf16.msra.mxu0 0
      %2414 = vmatprep.mubr.bf16.mxu0 0
      %2415 = vmatmul.mubr.bf16.gmra.mxu0 %v1399
      %v2416 = vpop.f32.mrf.mxu0
      %v2417 = vadd.f32 0.0, %v2416
      %v2418 = vpop.f32.mrf.mxu0
      %v2419 = vpop.f32.mrf.mxu0
      %v2420 = vpop.f32.mrf.mxu0
      %2421 = vdwg.mxu0
      %v2422 = vlaneseq
      %v2423 = vshrl.u32 %v2422, 7
      %v2424 = vsub.s32 0, %v2423
      %v2425 = vrot.slane %v2417, %v2424
      %v2426 = vadd.f32 %v2350, %v2425
      %v2427 = vadd.f32 %v2351, %v2425
      %v2428 = vadd.f32 %v2352, %v2425
      %v2429 = vadd.f32 %v2353, %v2425
      %v2430 = vadd.f32 %v2354, %v2425
      %v2431 = vadd.f32 %v2355, %v2425
      %v2432 = vadd.f32 %v2356, %v2425
      %v2433 = vadd.f32 %v2357, %v2425
      %v2434 = vadd.f32 %v2358, %v2425
      %v2435 = vadd.f32 %v2359, %v2425
      %v2436 = vadd.f32 %v2360, %v2425
      %v2437 = vadd.f32 %v2361, %v2425
      %v2438 = vadd.f32 %v2362, %v2425
      %v2439 = vadd.f32 %v2363, %v2425
      %v2440 = vadd.f32 %v2364, %v2425
      %v2441 = vadd.f32 %v2365, %v2425
      %v2442 = vadd.f32 %v2366, %v2425
      %v2443 = vadd.f32 %v2367, %v2425
      %v2444 = vadd.f32 %v2368, %v2425
      %v2445 = vadd.f32 %v2369, %v2425
      %v2446 = vadd.f32 %v2370, %v2425
      %v2447 = vadd.f32 %v2371, %v2425
      %v2448 = vadd.f32 %v2372, %v2425
      %v2449 = vadd.f32 %v2373, %v2425
      %v2450 = vadd.f32 %v2374, %v2425
      %v2451 = vadd.f32 %v2375, %v2425
      %v2453 = vsel %vm1476, %v2022, 0
      %2455 = vmatprep.subr.bf16.mxu0 0
      %2456 = vmatpush1.bf16.msra.mxu0 0
      %2457 = vmatprep.subr.bf16.mxu0 0
      %2458 = vmatpush1.bf16.msra.mxu0 0
      %2459 = vmatprep.subr.bf16.mxu0 0
      %2460 = vmatpush1.bf16.msra.mxu0 0
      %2461 = vmatprep.subr.bf16.mxu0 0
      %2462 = vmatpush1.bf16.msra.mxu0 0
      %2463 = vmatprep.subr.bf16.mxu0 0
      %2464 = vmatpush1.bf16.msra.mxu0 0
      %2465 = vmatprep.subr.bf16.mxu0 0
      %2466 = vmatpush1.bf16.msra.mxu0 0
      %2467 = vmatprep.subr.bf16.mxu0 0
      %2468 = vmatpush1.bf16.msra.mxu0 0
      %2469 = vmatprep.subr.bf16.mxu0 0
      %2470 = vmatpush1.bf16.msra.mxu0 %v2453
      %2471 = vmatprep.subr.bf16.mxu0 0
      %2472 = vmatpush2.bf16.msra.mxu0 0
      %2473 = vmatprep.subr.bf16.mxu0 0
      %2474 = vmatpush2.bf16.msra.mxu0 0
      %2475 = vmatprep.subr.bf16.mxu0 0
      %2476 = vmatpush2.bf16.msra.mxu0 0
      %2477 = vmatprep.subr.bf16.mxu0 0
      %2478 = vmatpush2.bf16.msra.mxu0 0
      %2479 = vmatprep.subr.bf16.mxu0 0
      %2480 = vmatpush2.bf16.msra.mxu0 0
      %2481 = vmatprep.subr.bf16.mxu0 0
      %2482 = vmatpush2.bf16.msra.mxu0 0
      %2483 = vmatprep.subr.bf16.mxu0 0
      %2484 = vmatpush2.bf16.msra.mxu0 0
      %2485 = vmatprep.subr.bf16.mxu0 0
      %2486 = vmatpush2.bf16.msra.mxu0 0
      %2487 = vmatprep.mubr.bf16.mxu0 0
      %2488 = vmatmul.mubr.bf16.gmra.mxu0 %v1474
      %v2489 = vpop.f32.mrf.mxu0
      %v2490 = vadd.f32 0.0, %v2489
      %v2491 = vpop.f32.mrf.mxu0
      %v2492 = vpop.f32.mrf.mxu0
      %v2493 = vpop.f32.mrf.mxu0
      %2494 = vdwg.mxu0
      %v2495 = vlaneseq
      %v2496 = vshrl.u32 %v2495, 7
      %v2497 = vsub.s32 0, %v2496
      %v2498 = vrot.slane %v2490, %v2497
      %v2499 = vadd.f32 %v2426, %v2498
      %v2500 = vadd.f32 %v2427, %v2498
      %v2501 = vadd.f32 %v2428, %v2498
      %v2502 = vadd.f32 %v2429, %v2498
      %v2503 = vadd.f32 %v2430, %v2498
      %v2504 = vadd.f32 %v2431, %v2498
      %v2505 = vadd.f32 %v2432, %v2498
      %v2506 = vadd.f32 %v2433, %v2498
      %v2507 = vadd.f32 %v2434, %v2498
      %v2508 = vadd.f32 %v2435, %v2498
      %v2509 = vadd.f32 %v2436, %v2498
      %v2510 = vadd.f32 %v2437, %v2498
      %v2511 = vadd.f32 %v2438, %v2498
      %v2512 = vadd.f32 %v2439, %v2498
      %v2513 = vadd.f32 %v2440, %v2498
      %v2514 = vadd.f32 %v2441, %v2498
      %v2515 = vadd.f32 %v2442, %v2498
      %v2516 = vadd.f32 %v2443, %v2498
      %v2517 = vadd.f32 %v2444, %v2498
      %v2518 = vadd.f32 %v2445, %v2498
      %v2519 = vadd.f32 %v2446, %v2498
      %v2520 = vadd.f32 %v2447, %v2498
      %v2521 = vadd.f32 %v2448, %v2498
      %v2522 = vadd.f32 %v2449, %v2498
      %v2523 = vadd.f32 %v2450, %v2498
      %v2524 = vadd.f32 %v2451, %v2498
      %v2525 = vpack.c.bf16 %v1918, %v1915
      %v2526 = vpack.c.bf16 %v1926, %v1923
      %v2527 = vpack.c.bf16 %v1934, %v1931
      %v2528 = vpack.c.bf16 %v1942, %v1939
      %v2529 = vpack.c.bf16 %v1950, %v1947
      %v2530 = vpack.c.bf16 %v1958, %v1955
      %v2531 = vpack.c.bf16 %v1966, %v1963
      %v2532 = vpack.c.bf16 %v1974, %v1971
      %v2533 = vpack.c.bf16 %v1982, %v1979
      %v2534 = vpack.c.bf16 %v1990, %v1987
      %v2535 = vpack.c.bf16 %v1998, %v1995
      %v2536 = vpack.c.bf16 %v2006, %v2003
      %v2537 = vpack.c.bf16 %v2014, %v2011
      %vm2538 = vcmask 7168
      %v2540 = vsel %vm2538, %v2525, 0
      %v2543 = vsel %vm2538, %v2526, 0
      %v2546 = vsel %vm2538, %v2527, 0
      %v2549 = vsel %vm2538, %v2528, 0
      %v2552 = vsel %vm2538, %v2529, 0
      %v2555 = vsel %vm2538, %v2530, 0
      %v2558 = vsel %vm2538, %v2531, 0
      %v2561 = vsel %vm2538, %v2532, 0
      %v2564 = vsel %vm2538, %v2533, 0
      %v2567 = vsel %vm2538, %v2534, 0
      %v2570 = vsel %vm2538, %v2535, 0
      %v2573 = vsel %vm2538, %v2536, 0
      %v2576 = vsel %vm2538, %v2537, 0
      %v2578 = vsel 0, 4294967295, 65535
      %v2579 = vsel %vm941, %v2578, 0
      %v2581 = vand.u32 %v2023, %v2579
      %2583 = vmatprep.subr.bf16.mxu0 0
      %2584 = vmatpush1.bf16.msra.mxu0 0
      %2585 = vmatprep.subr.bf16.mxu0 0
      %2586 = vmatpush1.bf16.msra.mxu0 0
      %2587 = vmatprep.subr.bf16.mxu0 0
      %2588 = vmatpush1.bf16.msra.mxu0 0
      %2589 = vmatprep.subr.bf16.mxu0 0
      %2590 = vmatpush1.bf16.msra.mxu0 0
      %2591 = vmatprep.subr.bf16.mxu0 0
      %2592 = vmatpush1.bf16.msra.mxu0 0
      %2593 = vmatprep.subr.bf16.mxu0 0
      %2594 = vmatpush1.bf16.msra.mxu0 0
      %2595 = vmatprep.subr.bf16.mxu0 0
      %2596 = vmatpush1.bf16.msra.mxu0 0
      %2597 = vmatprep.subr.bf16.mxu0 0
      %2598 = vmatpush1.bf16.msra.mxu0 %v2581
      %2599 = vmatprep.subr.bf16.mxu0 0
      %2600 = vmatpush2.bf16.msra.mxu0 0
      %2601 = vmatprep.subr.bf16.mxu0 0
      %2602 = vmatpush2.bf16.msra.mxu0 0
      %2603 = vmatprep.subr.bf16.mxu0 0
      %2604 = vmatpush2.bf16.msra.mxu0 0
      %2605 = vmatprep.subr.bf16.mxu0 0
      %2606 = vmatpush2.bf16.msra.mxu0 0
      %2607 = vmatprep.subr.bf16.mxu0 0
      %2608 = vmatpush2.bf16.msra.mxu0 0
      %2609 = vmatprep.subr.bf16.mxu0 0
      %2610 = vmatpush2.bf16.msra.mxu0 0
      %2611 = vmatprep.subr.bf16.mxu0 0
      %2612 = vmatpush2.bf16.msra.mxu0 0
      %2613 = vmatprep.subr.bf16.mxu0 0
      %2614 = vmatpush2.bf16.msra.mxu0 0
      %2615 = vmatprep.mubr.bf16.mxu0 0
      %2616 = vmatmul.mubr.bf16.gmra.mxu0 %v2540
      %v2617 = vpop.f32.mrf.mxu0
      %v2618 = vadd.f32 0.0, %v2617
      %v2619 = vpop.f32.mrf.mxu0
      %v2620 = vpop.f32.mrf.mxu0
      %v2621 = vadd.f32 0.0, %v2620
      %v2622 = vpop.f32.mrf.mxu0
      %2623 = vmatprep.mubr.bf16.mxu0 0
      %2624 = vmatmul.mubr.bf16.gmra.mxu0 %v2543
      %v2625 = vpop.f32.mrf.mxu0
      %v2626 = vadd.f32 0.0, %v2625
      %v2627 = vpop.f32.mrf.mxu0
      %v2628 = vpop.f32.mrf.mxu0
      %v2629 = vadd.f32 0.0, %v2628
      %v2630 = vpop.f32.mrf.mxu0
      %2631 = vmatprep.mubr.bf16.mxu0 0
      %2632 = vmatmul.mubr.bf16.gmra.mxu0 %v2546
      %v2633 = vpop.f32.mrf.mxu0
      %v2634 = vadd.f32 0.0, %v2633
      %v2635 = vpop.f32.mrf.mxu0
      %v2636 = vpop.f32.mrf.mxu0
      %v2637 = vadd.f32 0.0, %v2636
      %v2638 = vpop.f32.mrf.mxu0
      %2639 = vmatprep.mubr.bf16.mxu0 0
      %2640 = vmatmul.mubr.bf16.gmra.mxu0 %v2549
      %v2641 = vpop.f32.mrf.mxu0
      %v2642 = vadd.f32 0.0, %v2641
      %v2643 = vpop.f32.mrf.mxu0
      %v2644 = vpop.f32.mrf.mxu0
      %v2645 = vadd.f32 0.0, %v2644
      %v2646 = vpop.f32.mrf.mxu0
      %2647 = vmatprep.mubr.bf16.mxu0 0
      %2648 = vmatmul.mubr.bf16.gmra.mxu0 %v2552
      %v2649 = vpop.f32.mrf.mxu0
      %v2650 = vadd.f32 0.0, %v2649
      %v2651 = vpop.f32.mrf.mxu0
      %v2652 = vpop.f32.mrf.mxu0
      %v2653 = vadd.f32 0.0, %v2652
      %v2654 = vpop.f32.mrf.mxu0
      %2655 = vmatprep.mubr.bf16.mxu0 0
      %2656 = vmatmul.mubr.bf16.gmra.mxu0 %v2555
      %v2657 = vpop.f32.mrf.mxu0
      %v2658 = vadd.f32 0.0, %v2657
      %v2659 = vpop.f32.mrf.mxu0
      %v2660 = vpop.f32.mrf.mxu0
      %v2661 = vadd.f32 0.0, %v2660
      %v2662 = vpop.f32.mrf.mxu0
      %2663 = vmatprep.mubr.bf16.mxu0 0
      %2664 = vmatmul.mubr.bf16.gmra.mxu0 %v2558
      %v2665 = vpop.f32.mrf.mxu0
      %v2666 = vadd.f32 0.0, %v2665
      %v2667 = vpop.f32.mrf.mxu0
      %v2668 = vpop.f32.mrf.mxu0
      %v2669 = vadd.f32 0.0, %v2668
      %v2670 = vpop.f32.mrf.mxu0
      %2671 = vmatprep.mubr.bf16.mxu0 0
      %2672 = vmatmul.mubr.bf16.gmra.mxu0 %v2561
      %v2673 = vpop.f32.mrf.mxu0
      %v2674 = vadd.f32 0.0, %v2673
      %v2675 = vpop.f32.mrf.mxu0
      %v2676 = vpop.f32.mrf.mxu0
      %v2677 = vadd.f32 0.0, %v2676
      %v2678 = vpop.f32.mrf.mxu0
      %2679 = vmatprep.mubr.bf16.mxu0 0
      %2680 = vmatmul.mubr.bf16.gmra.mxu0 %v2564
      %v2681 = vpop.f32.mrf.mxu0
      %v2682 = vadd.f32 0.0, %v2681
      %v2683 = vpop.f32.mrf.mxu0
      %v2684 = vpop.f32.mrf.mxu0
      %v2685 = vadd.f32 0.0, %v2684
      %v2686 = vpop.f32.mrf.mxu0
      %2687 = vmatprep.mubr.bf16.mxu0 0
      %2688 = vmatmul.mubr.bf16.gmra.mxu0 %v2567
      %v2689 = vpop.f32.mrf.mxu0
      %v2690 = vadd.f32 0.0, %v2689
      %v2691 = vpop.f32.mrf.mxu0
      %v2692 = vpop.f32.mrf.mxu0
      %v2693 = vadd.f32 0.0, %v2692
      %v2694 = vpop.f32.mrf.mxu0
      %2695 = vmatprep.mubr.bf16.mxu0 0
      %2696 = vmatmul.mubr.bf16.gmra.mxu0 %v2570
      %v2697 = vpop.f32.mrf.mxu0
      %v2698 = vadd.f32 0.0, %v2697
      %v2699 = vpop.f32.mrf.mxu0
      %v2700 = vpop.f32.mrf.mxu0
      %v2701 = vadd.f32 0.0, %v2700
      %v2702 = vpop.f32.mrf.mxu0
      %2703 = vmatprep.mubr.bf16.mxu0 0
      %2704 = vmatmul.mubr.bf16.gmra.mxu0 %v2573
      %v2705 = vpop.f32.mrf.mxu0
      %v2706 = vadd.f32 0.0, %v2705
      %v2707 = vpop.f32.mrf.mxu0
      %v2708 = vpop.f32.mrf.mxu0
      %v2709 = vadd.f32 0.0, %v2708
      %v2710 = vpop.f32.mrf.mxu0
      %2711 = vmatprep.mubr.bf16.mxu0 0
      %2712 = vmatmul.mubr.bf16.gmra.mxu0 %v2576
      %v2713 = vpop.f32.mrf.mxu0
      %v2714 = vadd.f32 0.0, %v2713
      %v2715 = vpop.f32.mrf.mxu0
      %v2716 = vpop.f32.mrf.mxu0
      %v2717 = vadd.f32 0.0, %v2716
      %v2718 = vpop.f32.mrf.mxu0
      %2719 = vdwg.mxu0
      %v2720 = vadd.f32 %v2499, %v2618
      %v2721 = vadd.f32 %v2500, %v2621
      %v2722 = vadd.f32 %v2501, %v2626
      %v2723 = vadd.f32 %v2502, %v2629
      %v2724 = vadd.f32 %v2503, %v2634
      %v2725 = vadd.f32 %v2504, %v2637
      %v2726 = vadd.f32 %v2505, %v2642
      %v2727 = vadd.f32 %v2506, %v2645
      %v2728 = vadd.f32 %v2507, %v2650
      %v2729 = vadd.f32 %v2508, %v2653
      %v2730 = vadd.f32 %v2509, %v2658
      %v2731 = vadd.f32 %v2510, %v2661
      %v2732 = vadd.f32 %v2511, %v2666
      %v2733 = vadd.f32 %v2512, %v2669
      %v2734 = vadd.f32 %v2513, %v2674
      %v2735 = vadd.f32 %v2514, %v2677
      %v2736 = vadd.f32 %v2515, %v2682
      %v2737 = vadd.f32 %v2516, %v2685
      %v2738 = vadd.f32 %v2517, %v2690
      %v2739 = vadd.f32 %v2518, %v2693
      %v2740 = vadd.f32 %v2519, %v2698
      %v2741 = vadd.f32 %v2520, %v2701
      %v2742 = vadd.f32 %v2521, %v2706
      %v2743 = vadd.f32 %v2522, %v2709
      %v2744 = vadd.f32 %v2523, %v2714
      %v2745 = vadd.f32 %v2524, %v2717
      %v2746 = vmax.f32 %v2720, 0.0
      %v2747 = vmax.f32 %v2721, 0.0
      %v2748 = vmax.f32 %v2722, 0.0
      %v2749 = vmax.f32 %v2723, 0.0
      %v2750 = vmax.f32 %v2724, 0.0
      %v2751 = vmax.f32 %v2725, 0.0
      %v2752 = vmax.f32 %v2726, 0.0
      %v2753 = vmax.f32 %v2727, 0.0
      %v2754 = vmax.f32 %v2728, 0.0
      %v2755 = vmax.f32 %v2729, 0.0
      %v2756 = vmax.f32 %v2730, 0.0
      %v2757 = vmax.f32 %v2731, 0.0
      %v2758 = vmax.f32 %v2732, 0.0
      %v2759 = vmax.f32 %v2733, 0.0
      %v2760 = vmax.f32 %v2734, 0.0
      %v2761 = vmax.f32 %v2735, 0.0
      %v2762 = vmax.f32 %v2736, 0.0
      %v2763 = vmax.f32 %v2737, 0.0
      %v2764 = vmax.f32 %v2738, 0.0
      %v2765 = vmax.f32 %v2739, 0.0
      %v2766 = vmax.f32 %v2740, 0.0
      %v2767 = vmax.f32 %v2741, 0.0
      %v2768 = vmax.f32 %v2742, 0.0
      %v2769 = vmax.f32 %v2743, 0.0
      %v2770 = vmax.f32 %v2744, 0.0
      %v2771 = vmax.f32 %v2745, 0.0
      %v2772 = vpack.c.bf16 %v2747, %v2746
      %v2773 = vpack.c.bf16 %v2749, %v2748
      %v2774 = vpack.c.bf16 %v2751, %v2750
      %v2775 = vpack.c.bf16 %v2753, %v2752
      %v2776 = vpack.c.bf16 %v2755, %v2754
      %v2777 = vpack.c.bf16 %v2757, %v2756
      %v2778 = vpack.c.bf16 %v2759, %v2758
      %v2779 = vpack.c.bf16 %v2761, %v2760
      %v2780 = vpack.c.bf16 %v2763, %v2762
      %v2781 = vpack.c.bf16 %v2765, %v2764
      %v2782 = vpack.c.bf16 %v2767, %v2766
      %v2783 = vpack.c.bf16 %v2769, %v2768
      %v2784 = vpack.c.bf16 %v2771, %v2770
      %v2786 = vlaneseq
      %v2787 = vshrl.u32 %v2786, 7
      %v2788 = vsub.s32 0, %v2787
      %v2789 = vrot.slane %v2029, %v2788
      %v2795 = vunpack.c.l.b16 %v2025
      %v2796 = vunpack.c.l.b16 %v2026
      %v2797 = vunpack.c.l.b16 %v2027
      %v2798 = vunpack.c.l.b16 %v2028
      %v2799 = vpack.c.b16 %v2796, %v2795
      %v2800 = vpack.c.b16 %v2798, %v2797
      %v2804 = vsel %vm1607, %v2772, 0
      %v2807 = vsel %vm1607, %v2773, 0
      %v2810 = vsel %vm1607, %v2774, 0
      %v2813 = vsel %vm1607, %v2775, 0
      %v2816 = vsel %vm1607, %v2776, 0
      %v2819 = vsel %vm1607, %v2777, 0
      %v2822 = vsel %vm1607, %v2778, 0
      %v2825 = vsel %vm1607, %v2779, 0
      %v2828 = vsel %vm1607, %v2780, 0
      %v2831 = vsel %vm1607, %v2781, 0
      %v2834 = vsel %vm1607, %v2782, 0
      %v2837 = vsel %vm1607, %v2783, 0
      %v2840 = vsel %vm1607, %v2784, 0
      %2842 = vmatprep.subr.bf16.mxu0 0
      %2843 = vmatpush1.bf16.msra.mxu0 0
      %2844 = vmatprep.subr.bf16.mxu0 0
      %2845 = vmatpush1.bf16.msra.mxu0 0
      %2846 = vmatprep.subr.bf16.mxu0 0
      %2847 = vmatpush1.bf16.msra.mxu0 0
      %2848 = vmatprep.subr.bf16.mxu0 0
      %2849 = vmatpush1.bf16.msra.mxu0 0
      %2850 = vmatprep.subr.bf16.mxu0 0
      %2851 = vmatpush1.bf16.msra.mxu0 0
      %2852 = vmatprep.subr.bf16.mxu0 0
      %2853 = vmatpush1.bf16.msra.mxu0 0
      %2854 = vmatprep.subr.bf16.mxu0 0
      %2855 = vmatpush1.bf16.msra.mxu0 %v2800
      %2856 = vmatprep.subr.bf16.mxu0 0
      %2857 = vmatpush1.bf16.msra.mxu0 %v2799
      %2858 = vmatprep.subr.bf16.mxu0 0
      %2859 = vmatpush2.bf16.msra.mxu0 0
      %2860 = vmatprep.subr.bf16.mxu0 0
      %2861 = vmatpush2.bf16.msra.mxu0 0
      %2862 = vmatprep.subr.bf16.mxu0 0
      %2863 = vmatpush2.bf16.msra.mxu0 0
      %2864 = vmatprep.subr.bf16.mxu0 0
      %2865 = vmatpush2.bf16.msra.mxu0 0
      %2866 = vmatprep.subr.bf16.mxu0 0
      %2867 = vmatpush2.bf16.msra.mxu0 0
      %2868 = vmatprep.subr.bf16.mxu0 0
      %2869 = vmatpush2.bf16.msra.mxu0 0
      %2870 = vmatprep.subr.bf16.mxu0 0
      %2871 = vmatpush2.bf16.msra.mxu0 0
      %2872 = vmatprep.subr.bf16.mxu0 0
      %2873 = vmatpush2.bf16.msra.mxu0 0
      %2874 = vmatprep.mubr.bf16.mxu0 0
      %2875 = vmatmul.mubr.bf16.gmra.mxu0 %v2804
      %v2876 = vpop.f32.mrf.mxu0
      %v2877 = vadd.f32 %v2789, %v2876
      %v2878 = vpop.f32.mrf.mxu0
      %v2879 = vpop.f32.mrf.mxu0
      %v2880 = vadd.f32 %v2789, %v2879
      %v2881 = vpop.f32.mrf.mxu0
      %2882 = vmatprep.mubr.bf16.mxu0 0
      %2883 = vmatmul.mubr.bf16.gmra.mxu0 %v2807
      %v2884 = vpop.f32.mrf.mxu0
      %v2885 = vadd.f32 %v2789, %v2884
      %v2886 = vpop.f32.mrf.mxu0
      %v2887 = vpop.f32.mrf.mxu0
      %v2888 = vadd.f32 %v2789, %v2887
      %v2889 = vpop.f32.mrf.mxu0
      %2890 = vmatprep.mubr.bf16.mxu0 0
      %2891 = vmatmul.mubr.bf16.gmra.mxu0 %v2810
      %v2892 = vpop.f32.mrf.mxu0
      %v2893 = vadd.f32 %v2789, %v2892
      %v2894 = vpop.f32.mrf.mxu0
      %v2895 = vpop.f32.mrf.mxu0
      %v2896 = vadd.f32 %v2789, %v2895
      %v2897 = vpop.f32.mrf.mxu0
      %2898 = vmatprep.mubr.bf16.mxu0 0
      %2899 = vmatmul.mubr.bf16.gmra.mxu0 %v2813
      %v2900 = vpop.f32.mrf.mxu0
      %v2901 = vadd.f32 %v2789, %v2900
      %v2902 = vpop.f32.mrf.mxu0
      %v2903 = vpop.f32.mrf.mxu0
      %v2904 = vadd.f32 %v2789, %v2903
      %v2905 = vpop.f32.mrf.mxu0
      %2906 = vmatprep.mubr.bf16.mxu0 0
      %2907 = vmatmul.mubr.bf16.gmra.mxu0 %v2816
      %v2908 = vpop.f32.mrf.mxu0
      %v2909 = vadd.f32 %v2789, %v2908
      %v2910 = vpop.f32.mrf.mxu0
      %v2911 = vpop.f32.mrf.mxu0
      %v2912 = vadd.f32 %v2789, %v2911
      %v2913 = vpop.f32.mrf.mxu0
      %2914 = vmatprep.mubr.bf16.mxu0 0
      %2915 = vmatmul.mubr.bf16.gmra.mxu0 %v2819
      %v2916 = vpop.f32.mrf.mxu0
      %v2917 = vadd.f32 %v2789, %v2916
      %v2918 = vpop.f32.mrf.mxu0
      %v2919 = vpop.f32.mrf.mxu0
      %v2920 = vadd.f32 %v2789, %v2919
      %v2921 = vpop.f32.mrf.mxu0
      %2922 = vmatprep.mubr.bf16.mxu0 0
      %2923 = vmatmul.mubr.bf16.gmra.mxu0 %v2822
      %v2924 = vpop.f32.mrf.mxu0
      %v2925 = vadd.f32 %v2789, %v2924
      %v2926 = vpop.f32.mrf.mxu0
      %v2927 = vpop.f32.mrf.mxu0
      %v2928 = vadd.f32 %v2789, %v2927
      %v2929 = vpop.f32.mrf.mxu0
      %2930 = vmatprep.mubr.bf16.mxu0 0
      %2931 = vmatmul.mubr.bf16.gmra.mxu0 %v2825
      %v2932 = vpop.f32.mrf.mxu0
      %v2933 = vadd.f32 %v2789, %v2932
      %v2934 = vpop.f32.mrf.mxu0
      %v2935 = vpop.f32.mrf.mxu0
      %v2936 = vadd.f32 %v2789, %v2935
      %v2937 = vpop.f32.mrf.mxu0
      %2938 = vmatprep.mubr.bf16.mxu0 0
      %2939 = vmatmul.mubr.bf16.gmra.mxu0 %v2828
      %v2940 = vpop.f32.mrf.mxu0
      %v2941 = vadd.f32 %v2789, %v2940
      %v2942 = vpop.f32.mrf.mxu0
      %v2943 = vpop.f32.mrf.mxu0
      %v2944 = vadd.f32 %v2789, %v2943
      %v2945 = vpop.f32.mrf.mxu0
      %2946 = vmatprep.mubr.bf16.mxu0 0
      %2947 = vmatmul.mubr.bf16.gmra.mxu0 %v2831
      %v2948 = vpop.f32.mrf.mxu0
      %v2949 = vadd.f32 %v2789, %v2948
      %v2950 = vpop.f32.mrf.mxu0
      %v2951 = vpop.f32.mrf.mxu0
      %v2952 = vadd.f32 %v2789, %v2951
      %v2953 = vpop.f32.mrf.mxu0
      %2954 = vmatprep.mubr.bf16.mxu0 0
      %2955 = vmatmul.mubr.bf16.gmra.mxu0 %v2834
      %v2956 = vpop.f32.mrf.mxu0
      %v2957 = vadd.f32 %v2789, %v2956
      %v2958 = vpop.f32.mrf.mxu0
      %v2959 = vpop.f32.mrf.mxu0
      %v2960 = vadd.f32 %v2789, %v2959
      %v2961 = vpop.f32.mrf.mxu0
      %2962 = vmatprep.mubr.bf16.mxu0 0
      %2963 = vmatmul.mubr.bf16.gmra.mxu0 %v2837
      %v2964 = vpop.f32.mrf.mxu0
      %v2965 = vadd.f32 %v2789, %v2964
      %v2966 = vpop.f32.mrf.mxu0
      %v2967 = vpop.f32.mrf.mxu0
      %v2968 = vadd.f32 %v2789, %v2967
      %v2969 = vpop.f32.mrf.mxu0
      %2970 = vmatprep.mubr.bf16.mxu0 0
      %2971 = vmatmul.mubr.bf16.gmra.mxu0 %v2840
      %v2972 = vpop.f32.mrf.mxu0
      %v2973 = vadd.f32 %v2789, %v2972
      %v2974 = vpop.f32.mrf.mxu0
      %v2975 = vpop.f32.mrf.mxu0
      %v2976 = vadd.f32 %v2789, %v2975
      %v2977 = vpop.f32.mrf.mxu0
      %2978 = vdwg.mxu0
      %v2979 = vmax.f32 %v2877, 0.0
      %v2980 = vmax.f32 %v2880, 0.0
      %v2981 = vmax.f32 %v2885, 0.0
      %v2982 = vmax.f32 %v2888, 0.0
      %v2983 = vmax.f32 %v2893, 0.0
      %v2984 = vmax.f32 %v2896, 0.0
      %v2985 = vmax.f32 %v2901, 0.0
      %v2986 = vmax.f32 %v2904, 0.0
      %v2987 = vmax.f32 %v2909, 0.0
      %v2988 = vmax.f32 %v2912, 0.0
      %v2989 = vmax.f32 %v2917, 0.0
      %v2990 = vmax.f32 %v2920, 0.0
      %v2991 = vmax.f32 %v2925, 0.0
      %v2992 = vmax.f32 %v2928, 0.0
      %v2993 = vmax.f32 %v2933, 0.0
      %v2994 = vmax.f32 %v2936, 0.0
      %v2995 = vmax.f32 %v2941, 0.0
      %v2996 = vmax.f32 %v2944, 0.0
      %v2997 = vmax.f32 %v2949, 0.0
      %v2998 = vmax.f32 %v2952, 0.0
      %v2999 = vmax.f32 %v2957, 0.0
      %v3000 = vmax.f32 %v2960, 0.0
      %v3001 = vmax.f32 %v2965, 0.0
      %v3002 = vmax.f32 %v2968, 0.0
      %v3003 = vmax.f32 %v2973, 0.0
      %v3004 = vmax.f32 %v2976, 0.0
      %v3005 = vpack.c.bf16 %v2980, %v2979
      %v3006 = vpack.c.bf16 %v2982, %v2981
      %v3007 = vpack.c.bf16 %v2984, %v2983
      %v3008 = vpack.c.bf16 %v2986, %v2985
      %v3009 = vpack.c.bf16 %v2988, %v2987
      %v3010 = vpack.c.bf16 %v2990, %v2989
      %v3011 = vpack.c.bf16 %v2992, %v2991
      %v3012 = vpack.c.bf16 %v2994, %v2993
      %v3013 = vpack.c.bf16 %v2996, %v2995
      %v3014 = vpack.c.bf16 %v2998, %v2997
      %v3015 = vpack.c.bf16 %v3000, %v2999
      %v3016 = vpack.c.bf16 %v3002, %v3001
      %v3017 = vpack.c.bf16 %v3004, %v3003
      %v3019 = vlaneseq
      %v3020 = vshrl.u32 %v3019, 7
      %v3021 = vsub.s32 0, %v3020
      %v3022 = vrot.slane %v2034, %v3021
      %v3028 = vunpack.c.l.b16 %v2030
      %v3029 = vunpack.c.l.b16 %v2031
      %v3030 = vunpack.c.l.b16 %v2032
      %v3031 = vunpack.c.l.b16 %v2033
      %v3032 = vpack.c.b16 %v3029, %v3028
      %v3033 = vpack.c.b16 %v3031, %v3030
      %v3037 = vsel %vm1607, %v3005, 0
      %v3040 = vsel %vm1607, %v3006, 0
      %v3043 = vsel %vm1607, %v3007, 0
      %v3046 = vsel %vm1607, %v3008, 0
      %v3049 = vsel %vm1607, %v3009, 0
      %v3052 = vsel %vm1607, %v3010, 0
      %v3055 = vsel %vm1607, %v3011, 0
      %v3058 = vsel %vm1607, %v3012, 0
      %v3061 = vsel %vm1607, %v3013, 0
      %v3064 = vsel %vm1607, %v3014, 0
      %v3067 = vsel %vm1607, %v3015, 0
      %v3070 = vsel %vm1607, %v3016, 0
      %v3073 = vsel %vm1607, %v3017, 0
      %3075 = vmatprep.subr.bf16.mxu0 0
      %3076 = vmatpush1.bf16.msra.mxu0 0
      %3077 = vmatprep.subr.bf16.mxu0 0
      %3078 = vmatpush1.bf16.msra.mxu0 0
      %3079 = vmatprep.subr.bf16.mxu0 0
      %3080 = vmatpush1.bf16.msra.mxu0 0
      %3081 = vmatprep.subr.bf16.mxu0 0
      %3082 = vmatpush1.bf16.msra.mxu0 0
      %3083 = vmatprep.subr.bf16.mxu0 0
      %3084 = vmatpush1.bf16.msra.mxu0 0
      %3085 = vmatprep.subr.bf16.mxu0 0
      %3086 = vmatpush1.bf16.msra.mxu0 0
      %3087 = vmatprep.subr.bf16.mxu0 0
      %3088 = vmatpush1.bf16.msra.mxu0 %v3033
      %3089 = vmatprep.subr.bf16.mxu0 0
      %3090 = vmatpush1.bf16.msra.mxu0 %v3032
      %3091 = vmatprep.subr.bf16.mxu0 0
      %3092 = vmatpush2.bf16.msra.mxu0 0
      %3093 = vmatprep.subr.bf16.mxu0 0
      %3094 = vmatpush2.bf16.msra.mxu0 0
      %3095 = vmatprep.subr.bf16.mxu0 0
      %3096 = vmatpush2.bf16.msra.mxu0 0
      %3097 = vmatprep.subr.bf16.mxu0 0
      %3098 = vmatpush2.bf16.msra.mxu0 0
      %3099 = vmatprep.subr.bf16.mxu0 0
      %3100 = vmatpush2.bf16.msra.mxu0 0
      %3101 = vmatprep.subr.bf16.mxu0 0
      %3102 = vmatpush2.bf16.msra.mxu0 0
      %3103 = vmatprep.subr.bf16.mxu0 0
      %3104 = vmatpush2.bf16.msra.mxu0 0
      %3105 = vmatprep.subr.bf16.mxu0 0
      %3106 = vmatpush2.bf16.msra.mxu0 0
      %3107 = vmatprep.mubr.bf16.mxu0 0
      %3108 = vmatmul.mubr.bf16.gmra.mxu0 %v3037
      %v3109 = vpop.f32.mrf.mxu0
      %v3110 = vadd.f32 %v3022, %v3109
      %v3111 = vpop.f32.mrf.mxu0
      %v3112 = vpop.f32.mrf.mxu0
      %v3113 = vadd.f32 %v3022, %v3112
      %v3114 = vpop.f32.mrf.mxu0
      %3115 = vmatprep.mubr.bf16.mxu0 0
      %3116 = vmatmul.mubr.bf16.gmra.mxu0 %v3040
      %v3117 = vpop.f32.mrf.mxu0
      %v3118 = vadd.f32 %v3022, %v3117
      %v3119 = vpop.f32.mrf.mxu0
      %v3120 = vpop.f32.mrf.mxu0
      %v3121 = vadd.f32 %v3022, %v3120
      %v3122 = vpop.f32.mrf.mxu0
      %3123 = vmatprep.mubr.bf16.mxu0 0
      %3124 = vmatmul.mubr.bf16.gmra.mxu0 %v3043
      %v3125 = vpop.f32.mrf.mxu0
      %v3126 = vadd.f32 %v3022, %v3125
      %v3127 = vpop.f32.mrf.mxu0
      %v3128 = vpop.f32.mrf.mxu0
      %v3129 = vadd.f32 %v3022, %v3128
      %v3130 = vpop.f32.mrf.mxu0
      %3131 = vmatprep.mubr.bf16.mxu0 0
      %3132 = vmatmul.mubr.bf16.gmra.mxu0 %v3046
      %v3133 = vpop.f32.mrf.mxu0
      %v3134 = vadd.f32 %v3022, %v3133
      %v3135 = vpop.f32.mrf.mxu0
      %v3136 = vpop.f32.mrf.mxu0
      %v3137 = vadd.f32 %v3022, %v3136
      %v3138 = vpop.f32.mrf.mxu0
      %3139 = vmatprep.mubr.bf16.mxu0 0
      %3140 = vmatmul.mubr.bf16.gmra.mxu0 %v3049
      %v3141 = vpop.f32.mrf.mxu0
      %v3142 = vadd.f32 %v3022, %v3141
      %v3143 = vpop.f32.mrf.mxu0
      %v3144 = vpop.f32.mrf.mxu0
      %v3145 = vadd.f32 %v3022, %v3144
      %v3146 = vpop.f32.mrf.mxu0
      %3147 = vmatprep.mubr.bf16.mxu0 0
      %3148 = vmatmul.mubr.bf16.gmra.mxu0 %v3052
      %v3149 = vpop.f32.mrf.mxu0
      %v3150 = vadd.f32 %v3022, %v3149
      %v3151 = vpop.f32.mrf.mxu0
      %v3152 = vpop.f32.mrf.mxu0
      %v3153 = vadd.f32 %v3022, %v3152
      %v3154 = vpop.f32.mrf.mxu0
      %3155 = vmatprep.mubr.bf16.mxu0 0
      %3156 = vmatmul.mubr.bf16.gmra.mxu0 %v3055
      %v3157 = vpop.f32.mrf.mxu0
      %v3158 = vadd.f32 %v3022, %v3157
      %v3159 = vpop.f32.mrf.mxu0
      %v3160 = vpop.f32.mrf.mxu0
      %v3161 = vadd.f32 %v3022, %v3160
      %v3162 = vpop.f32.mrf.mxu0
      %3163 = vmatprep.mubr.bf16.mxu0 0
      %3164 = vmatmul.mubr.bf16.gmra.mxu0 %v3058
      %v3165 = vpop.f32.mrf.mxu0
      %v3166 = vadd.f32 %v3022, %v3165
      %v3167 = vpop.f32.mrf.mxu0
      %v3168 = vpop.f32.mrf.mxu0
      %v3169 = vadd.f32 %v3022, %v3168
      %v3170 = vpop.f32.mrf.mxu0
      %3171 = vmatprep.mubr.bf16.mxu0 0
      %3172 = vmatmul.mubr.bf16.gmra.mxu0 %v3061
      %v3173 = vpop.f32.mrf.mxu0
      %v3174 = vadd.f32 %v3022, %v3173
      %v3175 = vpop.f32.mrf.mxu0
      %v3176 = vpop.f32.mrf.mxu0
      %v3177 = vadd.f32 %v3022, %v3176
      %v3178 = vpop.f32.mrf.mxu0
      %3179 = vmatprep.mubr.bf16.mxu0 0
      %3180 = vmatmul.mubr.bf16.gmra.mxu0 %v3064
      %v3181 = vpop.f32.mrf.mxu0
      %v3182 = vadd.f32 %v3022, %v3181
      %v3183 = vpop.f32.mrf.mxu0
      %v3184 = vpop.f32.mrf.mxu0
      %v3185 = vadd.f32 %v3022, %v3184
      %v3186 = vpop.f32.mrf.mxu0
      %3187 = vmatprep.mubr.bf16.mxu0 0
      %3188 = vmatmul.mubr.bf16.gmra.mxu0 %v3067
      %v3189 = vpop.f32.mrf.mxu0
      %v3190 = vadd.f32 %v3022, %v3189
      %v3191 = vpop.f32.mrf.mxu0
      %v3192 = vpop.f32.mrf.mxu0
      %v3193 = vadd.f32 %v3022, %v3192
      %v3194 = vpop.f32.mrf.mxu0
      %3195 = vmatprep.mubr.bf16.mxu0 0
      %3196 = vmatmul.mubr.bf16.gmra.mxu0 %v3070
      %v3197 = vpop.f32.mrf.mxu0
      %v3198 = vadd.f32 %v3022, %v3197
      %v3199 = vpop.f32.mrf.mxu0
      %v3200 = vpop.f32.mrf.mxu0
      %v3201 = vadd.f32 %v3022, %v3200
      %v3202 = vpop.f32.mrf.mxu0
      %3203 = vmatprep.mubr.bf16.mxu0 0
      %3204 = vmatmul.mubr.bf16.gmra.mxu0 %v3073
      %v3205 = vpop.f32.mrf.mxu0
      %v3206 = vadd.f32 %v3022, %v3205
      %v3207 = vpop.f32.mrf.mxu0
      %v3208 = vpop.f32.mrf.mxu0
      %v3209 = vadd.f32 %v3022, %v3208
      %v3210 = vpop.f32.mrf.mxu0
      %3211 = vdwg.mxu0
      %3238 = vrot.lane.b32.xlu0 %v3110, 1
      %v3239 = vpop.permute.xlu0 %3238
      %3240 = vrot.lane.b32.xlu0 %v3113, 1
      %v3241 = vpop.permute.xlu0 %3240
      %3242 = vrot.lane.b32.xlu0 %v3118, 1
      %v3243 = vpop.permute.xlu0 %3242
      %3244 = vrot.lane.b32.xlu0 %v3121, 1
      %v3245 = vpop.permute.xlu0 %3244
      %3246 = vrot.lane.b32.xlu0 %v3126, 1
      %v3247 = vpop.permute.xlu0 %3246
      %3248 = vrot.lane.b32.xlu0 %v3129, 1
      %v3249 = vpop.permute.xlu0 %3248
      %3250 = vrot.lane.b32.xlu0 %v3134, 1
      %v3251 = vpop.permute.xlu0 %3250
      %3252 = vrot.lane.b32.xlu0 %v3137, 1
      %v3253 = vpop.permute.xlu0 %3252
      %3254 = vrot.lane.b32.xlu0 %v3142, 1
      %v3255 = vpop.permute.xlu0 %3254
      %3256 = vrot.lane.b32.xlu0 %v3145, 1
      %v3257 = vpop.permute.xlu0 %3256
      %3258 = vrot.lane.b32.xlu0 %v3150, 1
      %v3259 = vpop.permute.xlu0 %3258
      %3260 = vrot.lane.b32.xlu0 %v3153, 1
      %v3261 = vpop.permute.xlu0 %3260
      %3262 = vrot.lane.b32.xlu0 %v3158, 1
      %v3263 = vpop.permute.xlu0 %3262
      %3264 = vrot.lane.b32.xlu0 %v3161, 1
      %v3265 = vpop.permute.xlu0 %3264
      %3266 = vrot.lane.b32.xlu0 %v3166, 1
      %v3267 = vpop.permute.xlu0 %3266
      %3268 = vrot.lane.b32.xlu0 %v3169, 1
      %v3269 = vpop.permute.xlu0 %3268
      %3270 = vrot.lane.b32.xlu0 %v3174, 1
      %v3271 = vpop.permute.xlu0 %3270
      %3272 = vrot.lane.b32.xlu0 %v3177, 1
      %v3273 = vpop.permute.xlu0 %3272
      %3274 = vrot.lane.b32.xlu0 %v3182, 1
      %v3275 = vpop.permute.xlu0 %3274
      %3276 = vrot.lane.b32.xlu0 %v3185, 1
      %v3277 = vpop.permute.xlu0 %3276
      %3278 = vrot.lane.b32.xlu0 %v3190, 1
      %v3279 = vpop.permute.xlu0 %3278
      %3280 = vrot.lane.b32.xlu0 %v3193, 1
      %v3281 = vpop.permute.xlu0 %3280
      %3282 = vrot.lane.b32.xlu0 %v3198, 1
      %v3283 = vpop.permute.xlu0 %3282
      %3284 = vrot.lane.b32.xlu0 %v3201, 1
      %v3285 = vpop.permute.xlu0 %3284
      %3286 = vrot.lane.b32.xlu0 %v3206, 1
      %v3287 = vpop.permute.xlu0 %3286
      %3288 = vrot.lane.b32.xlu0 %v3209, 1
      %v3289 = vpop.permute.xlu0 %3288
      %v3316 = vsel %vm2538, %v1915, %v3239
      %v3317 = vsel %vm2538, %v1918, %v3241
      %v3318 = vsel %vm2538, %v1923, %v3243
      %v3319 = vsel %vm2538, %v1926, %v3245
      %v3320 = vsel %vm2538, %v1931, %v3247
      %v3321 = vsel %vm2538, %v1934, %v3249
      %v3322 = vsel %vm2538, %v1939, %v3251
      %v3323 = vsel %vm2538, %v1942, %v3253
      %v3324 = vsel %vm2538, %v1947, %v3255
      %v3325 = vsel %vm2538, %v1950, %v3257
      %v3326 = vsel %vm2538, %v1955, %v3259
      %v3327 = vsel %vm2538, %v1958, %v3261
      %v3328 = vsel %vm2538, %v1963, %v3263
      %v3329 = vsel %vm2538, %v1966, %v3265
      %v3330 = vsel %vm2538, %v1971, %v3267
      %v3331 = vsel %vm2538, %v1974, %v3269
      %v3332 = vsel %vm2538, %v1979, %v3271
      %v3333 = vsel %vm2538, %v1982, %v3273
      %v3334 = vsel %vm2538, %v1987, %v3275
      %v3335 = vsel %vm2538, %v1990, %v3277
      %v3336 = vsel %vm2538, %v1995, %v3279
      %v3337 = vsel %vm2538, %v1998, %v3281
      %v3338 = vsel %vm2538, %v2003, %v3283
      %v3339 = vsel %vm2538, %v2006, %v3285
      %v3340 = vsel %vm2538, %v2011, %v3287
      %v3341 = vsel %vm2538, %v2014, %v3289
      %vm3342 = vcmask 31744
      %3343 = vst.msk [vmem:[%s814] sm:$0xff] %vm3342, %v3316
      %3344 = vst.msk [vmem:[%s814 + $0x8] sm:$0xff] %vm3342, %v3317
      %3345 = vst.msk [vmem:[%s814 + $0x10] sm:$0xff] %vm3342, %v3318
      %3346 = vst.msk [vmem:[%s814 + $0x18] sm:$0xff] %vm3342, %v3319
      %3347 = vst.msk [vmem:[%s814 + $0x20] sm:$0xff] %vm3342, %v3320
      %3348 = vst.msk [vmem:[%s814 + $0x28] sm:$0xff] %vm3342, %v3321
      %3349 = vst.msk [vmem:[%s814 + $0x30] sm:$0xff] %vm3342, %v3322
      %3350 = vst.msk [vmem:[%s814 + $0x38] sm:$0xff] %vm3342, %v3323
      %3351 = vst.msk [vmem:[%s814 + $0x40] sm:$0xff] %vm3342, %v3324
      %3352 = vst.msk [vmem:[%s814 + $0x48] sm:$0xff] %vm3342, %v3325
      %3353 = vst.msk [vmem:[%s814 + $0x50] sm:$0xff] %vm3342, %v3326
      %3354 = vst.msk [vmem:[%s814 + $0x58] sm:$0xff] %vm3342, %v3327
      %3355 = vst.msk [vmem:[%s814 + $0x60] sm:$0xff] %vm3342, %v3328
      %3356 = vst.msk [vmem:[%s814 + $0x68] sm:$0xff] %vm3342, %v3329
      %3357 = vst.msk [vmem:[%s814 + $0x70] sm:$0xff] %vm3342, %v3330
      %3358 = vst.msk [vmem:[%s814 + $0x78] sm:$0xff] %vm3342, %v3331
      %3359 = vst.msk [vmem:[%s814 + $0x80] sm:$0xff] %vm3342, %v3332
      %3360 = vst.msk [vmem:[%s814 + $0x88] sm:$0xff] %vm3342, %v3333
      %3361 = vst.msk [vmem:[%s814 + $0x90] sm:$0xff] %vm3342, %v3334
      %3362 = vst.msk [vmem:[%s814 + $0x98] sm:$0xff] %vm3342, %v3335
      %3363 = vst.msk [vmem:[%s814 + $0xa0] sm:$0xff] %vm3342, %v3336
      %3364 = vst.msk [vmem:[%s814 + $0xa8] sm:$0xff] %vm3342, %v3337
      %3365 = vst.msk [vmem:[%s814 + $0xb0] sm:$0xff] %vm3342, %v3338
      %3366 = vst.msk [vmem:[%s814 + $0xb8] sm:$0xff] %vm3342, %v3339
      %3367 = vst.msk [vmem:[%s814 + $0xc0] sm:$0xff] %vm3342, %v3340
      %3368 = vst.msk [vmem:[%s814 + $0xc8] sm:$0xff] %vm3342, %v3341
      %s3369 = smul.u32 26, %s41
      %p3370 = scmp.lt.s32.totalorder %s40, 1
      %s3371 = scalar_select %p3370, %s40, 1
      %p3372 = scmp.lt.s32.totalorder %s3369, 25
      %s3373 = scalar_select %p3372, %s3369, 25
      %s3374 = smul.addr %s3371, 26
      %s3375 = sadd.s32 %s3373, %s3374
      %s3376 = smul.addr %s3375, 8
      %s3377 = scalar_lea.vmem %s23, %s3376
      // Predicated region
      $region113: #{_lambda_.9} parent=111 // pred_check
        %p3378 = pneg %p575
      $region114: #{_lambda_.9} parent=111 // pred_check_branch
        %3380 = sbr.rel (%p3378) target = $region116
      $region115: #{_lambda_.9} parent=111 // pred_region
        %s3381 = smul.u32 26, %s41
      $region116: #{_lambda_.9} parent=111 // pred_fallthru
        _
    $region112: #{_lambda_.9} parent=5 // pred_fallthru
      _
    %p3382 = scmp.le.s32.totalorder 2, %s31
    // Predicated region
    $region117: #{_lambda_.9} parent=5 // pred_check
      %p3383 = pneg %p3382
    $region118: #{_lambda_.9} parent=5 // pred_check_branch
      %3385 = sbr.rel (%p3383) target = $region120
    $region119: #{_lambda_.9} parent=5 // pred_region
      %s3386 = ssub.s32 %s31, 2
      // Predicated region
      $region121: #{_lambda_.9} parent=119 // pred_check
        %p3387 = pneg %p581
      $region122: #{_lambda_.9} parent=119 // pred_check_branch
        %3389 = sbr.rel (%p3387) target = $region124
      $region123: #{_lambda_.9} parent=119 // pred_region
        %s3390 = smul.u32 26, %s43
        %p3391 = scmp.lt.s32.totalorder %s42, 1
        %s3392 = scalar_select %p3391, %s42, 1
        %p3393 = scmp.lt.s32.totalorder %s3390, 25
        %s3394 = scalar_select %p3393, %s3390, 25
        %s3395 = smul.addr %s3392, 26
        %s3396 = sadd.s32 %s3394, %s3395
        %s3397 = smul.addr %s3396, 8
        %s3398 = scalar_lea.vmem %s23, %s3397
      $region124: #{_lambda_.9} parent=119 // pred_fallthru
        _
    $region120: #{_lambda_.9} parent=5 // pred_fallthru
      _
  $region6: #{_lambda_.9} parent=0 // loop_footer
    %s35 = sadd.s32 1, %s31
  $region7: #{_lambda_.9} parent=0 // loop_footer_branch
    %30 = sbr.rel target = $region3
  $region8: #{_lambda_.9} parent=0 // loop_exit
    _

</llo_original>
